<compile_context>
chip_gen: v6e
topology: v6e:2x2x1
jax: 0.10.0
libtpu: 0.0.40
codegen_flags: <defaults>
</compile_context>

<pallas_src>
import functools

import numpy as np
import jax
import jax.numpy as jnp
from jax.experimental import pallas as pl
from jax.experimental.pallas import tpu as pltpu


# ---------------------------------------------------------------------------
# Small helpers
# ---------------------------------------------------------------------------
def _round_up(x, m):
    return ((x + m - 1) // m) * m


def _pick_tile(dim, prefs=(512, 256, 128)):
    for t in prefs:
        if dim >= t and dim % t == 0:
            return t
    return dim


def _check_vmem(nbytes, what):
    budget = 80 * 1024 * 1024
    if nbytes > budget:
        raise ValueError(
            f"{what}: per-step VMEM working set {nbytes} B exceeds {budget} B; "
            "choose smaller tiles.")


_MM_PARAMS = pltpu.CompilerParams(
    dimension_semantics=("parallel", "arbitrary"),
    vmem_limit_bytes=64 << 20)


# ---------------------------------------------------------------------------
# Pallas matmul kernels (radon forward / fused filtered-backprojection)
# ---------------------------------------------------------------------------
def _mm_kernel(a_ref, b_ref, o_ref):
    """o = a @ b, accumulated directly into the resident f32 output block."""
    @pl.when(pl.program_id(1) == 0)
    def _():
        o_ref[...] = jnp.zeros_like(o_ref)

    o_ref[...] += jnp.dot(a_ref[...].astype(jnp.bfloat16), b_ref[...],
                          preferred_element_type=jnp.float32)


def _fp_diff_kernel(y_ref, at_ref, x_ref, o_ref):
    """o = y @ A_T - x  (subtraction fused into the accumulator init)."""
    @pl.when(pl.program_id(1) == 0)
    def _():
        o_ref[...] = -x_ref[...]

    o_ref[...] += jnp.dot(y_ref[...].astype(jnp.bfloat16), at_ref[...],
                          preferred_element_type=jnp.float32)


def _bp_axpy_kernel(step_ref, d_ref, afbp_ref, y_ref, o_ref):
    """o = y + step * (d @ A_fbp)  (axpy fused into the matmul epilogue)."""
    k = pl.program_id(1)

    @pl.when(k == 0)
    def _():
        o_ref[...] = jnp.zeros_like(o_ref)

    o_ref[...] += jnp.dot(d_ref[...].astype(jnp.bfloat16), afbp_ref[...],
                          preferred_element_type=jnp.float32)

    @pl.when(k == pl.num_programs(1) - 1)
    def _():
        o_ref[...] = y_ref[...] + step_ref[0] * o_ref[...]


def fbp_init(x_flat, a_fbp):
    """y0 = FBP(x): (M, P) @ (P, Npix) -> (M, Npix) f32."""
    M, K = x_flat.shape
    _, N = a_fbp.shape
    tk, tn = _pick_tile(K), _pick_tile(N)
    _check_vmem(2 * (M * tk * 4 + tk * tn * 2) + 2 * M * tn * 4, "fbp_init")
    return pl.pallas_call(
        _mm_kernel,
        out_shape=jax.ShapeDtypeStruct((M, N), jnp.float32),
        grid_spec=pltpu.PrefetchScalarGridSpec(
            num_scalar_prefetch=0,
            grid=(N // tn, K // tk),
            in_specs=[pl.BlockSpec((M, tk), lambda n, k: (0, k)),
                      pl.BlockSpec((tk, tn), lambda n, k: (k, n))],
            out_specs=pl.BlockSpec((M, tn), lambda n, k: (0, n))),
        compiler_params=_MM_PARAMS,
    )(x_flat, a_fbp)


def forward_project_diff(y_flat, a_t, x_flat):
    """diff = y @ A_T - x : (M, Npix) @ (Npix, P) - (M, P)."""
    M, K = y_flat.shape
    _, N = a_t.shape
    tk, tn = _pick_tile(K), _pick_tile(N)
    _check_vmem(2 * (M * tk * 4 + tk * tn * 2 + M * tn * 4) + 2 * M * tn * 4,
                "forward_project_diff")
    return pl.pallas_call(
        _fp_diff_kernel,
        out_shape=jax.ShapeDtypeStruct((M, N), jnp.float32),
        grid_spec=pltpu.PrefetchScalarGridSpec(
            num_scalar_prefetch=0,
            grid=(N // tn, K // tk),
            in_specs=[pl.BlockSpec((M, tk), lambda n, k: (0, k)),
                      pl.BlockSpec((tk, tn), lambda n, k: (k, n)),
                      pl.BlockSpec((M, tn), lambda n, k: (0, n))],
            out_specs=pl.BlockSpec((M, tn), lambda n, k: (0, n))),
        compiler_params=_MM_PARAMS,
    )(y_flat, a_t, x_flat)


def backproject_axpy(diff, a_fbp, y_flat, step):
    """y_update = y + step * (diff @ A_fbp)."""
    M, K = diff.shape
    _, N = a_fbp.shape
    tk, tn = _pick_tile(K), _pick_tile(N)
    _check_vmem(2 * (M * tk * 4 + tk * tn * 2 + M * tn * 4) + 2 * M * tn * 4,
                "backproject_axpy")
    step_arr = jnp.reshape(step, (1,)).astype(jnp.float32)
    return pl.pallas_call(
        _bp_axpy_kernel,
        out_shape=jax.ShapeDtypeStruct((M, N), jnp.float32),
        grid_spec=pltpu.PrefetchScalarGridSpec(
            num_scalar_prefetch=0,
            grid=(N // tn, K // tk),
            in_specs=[pl.BlockSpec(memory_space=pltpu.MemorySpace.SMEM),
                      pl.BlockSpec((M, tk), lambda n, k: (0, k)),
                      pl.BlockSpec((tk, tn), lambda n, k: (k, n)),
                      pl.BlockSpec((M, tn), lambda n, k: (0, n))],
            out_specs=pl.BlockSpec((M, tn), lambda n, k: (0, n))),
        compiler_params=_MM_PARAMS,
    )(step_arr, diff, a_fbp, y_flat)


# ---------------------------------------------------------------------------
# 3x3 conv: in-kernel patch formation (9 shifted MXU matmuls, bias folded)
# ---------------------------------------------------------------------------
def _conv3x3_kernel(w_ref, x_ref, o_ref, *, wp, n_out, relu):
    # w_ref: (9, C_out, C_in+1) bf16 (last input channel = ones -> bias)
    # x_ref: (C_in+1, n_in) bf16 flattened padded image (one batch element)
    # o_ref: (C_out, n_out)
    acc = jnp.zeros(o_ref.shape, jnp.float32)
    for t in range(9):
        dy, dx = divmod(t, 3)
        xt = x_ref[:, pl.ds(dy * wp + dx, n_out)]
        acc = acc + jnp.dot(w_ref[t], xt, preferred_element_type=jnp.float32)
    if relu:
        acc = jnp.maximum(acc, 0.0)
    o_ref[...] = acc.astype(o_ref.dtype)


def make_conv_waug(w, b):
    """(C_out, C_in, 3, 3) + (C_out,) -> (9, C_out, C_in+1) bf16, bias in tap 4."""
    c_out, c_in = w.shape[0], w.shape[1]
    w_t = jnp.transpose(w, (2, 3, 0, 1)).reshape(9, c_out, c_in)
    bias_col = jnp.zeros((9, c_out, 1), w.dtype).at[4, :, 0].set(b)
    return jnp.concatenate([w_t, bias_col], axis=2).astype(jnp.bfloat16)


def conv3x3(x, w_aug, relu, out_dtype):
    """x: (B, C, H, W); w_aug: (9, C_out, C+1). Returns (B, C_out, H, W)."""
    B, C, H, W = x.shape
    c_out = w_aug.shape[1]
    hp, wp = H + 2, W + 2
    n_img = hp * wp
    n_out = _round_up(n_img, 128)                       # lane-dense output
    n_in = _round_up(n_out + 2 * wp + 2, 128)           # covers the max tap shift

    ones = jnp.ones((B, 1, H, W), dtype=x.dtype)        # bias / interior channel
    xa = jnp.concatenate([x, ones], axis=1)
    xa = jnp.pad(xa, ((0, 0), (0, 0), (1, 1), (1, 1)))
    xa = xa.reshape(B, C + 1, n_img)
    xa = jnp.pad(xa, ((0, 0), (0, 0), (0, n_in - n_img)))
    xa = xa.astype(jnp.bfloat16)

    kern = functools.partial(_conv3x3_kernel, wp=wp, n_out=n_out, relu=relu)
    out = pl.pallas_call(
        kern,
        out_shape=jax.ShapeDtypeStruct((B, c_out, n_out), out_dtype),
        grid_spec=pltpu.PrefetchScalarGridSpec(
            num_scalar_prefetch=0,
            grid=(B,),
            in_specs=[pl.BlockSpec((9, c_out, C + 1), lambda b: (0, 0, 0)),
                      pl.BlockSpec((None, C + 1, n_in), lambda b: (b, 0, 0))],
            out_specs=pl.BlockSpec((None, c_out, n_out), lambda b: (b, 0, 0))),
        compiler_params=pltpu.CompilerParams(
            dimension_semantics=("parallel",),
            vmem_limit_bytes=64 << 20),
    )(w_aug, xa)

    out = out[:, :, :n_img].reshape(B, c_out, hp, wp)[:, :, :H, :W]
    return out


def cnn_forward(x, blk):
    """relu(conv1) -> relu(conv2) -> conv3 (1 channel)."""
    h = conv3x3(x, make_conv_waug(blk["w1"], blk["b1"]), relu=True,
                out_dtype=jnp.bfloat16)
    h = conv3x3(h, make_conv_waug(blk["w2"], blk["b2"]), relu=True,
                out_dtype=jnp.bfloat16)
    h = conv3x3(h, make_conv_waug(blk["w3"], blk["b3"]), relu=False,
                out_dtype=jnp.float32)
    return h


# ---------------------------------------------------------------------------
# Radon operators as matrices (host-side numpy, applied via Pallas matmuls)
# ---------------------------------------------------------------------------
def build_radon_matrix(img_size, angles, det_count):
    c = (img_size - 1) / 2.0
    ys, xs = np.meshgrid(np.arange(img_size), np.arange(img_size),
                         indexing="ij")
    x = (xs - c).astype(np.float64)
    y = (ys - c).astype(np.float64)
    circle = ((x ** 2 + y ** 2) <= (img_size / 2.0) ** 2).astype(np.float32)
    det_c = (det_count - 1) / 2.0
    n_pix = img_size * img_size
    A = np.zeros((len(angles) * det_count, n_pix), dtype=np.float32)
    xf, yf, cf = x.ravel(), y.ravel(), circle.ravel()
    cols = np.arange(n_pix)
    for ai, th in enumerate(angles):
        t = xf * np.cos(th) + yf * np.sin(th) + det_c
        d0 = np.floor(t).astype(np.int64)
        frac = t - d0
        for dd, ww in ((d0, 1.0 - frac), (d0 + 1, frac)):
            valid = (dd >= 0) & (dd < det_count)
            rows = ai * det_count + np.clip(dd, 0, det_count - 1)
            np.add.at(A, (rows, cols), (ww * cf * valid).astype(np.float32))
    return A, circle


def build_ramp_filter_matrix(det_count):
    # Circulant Ram-Lak filter: F @ v == real(ifft(ramp * fft(v)))
    freqs = np.fft.fftfreq(det_count)
    ramp = 2.0 * np.abs(freqs)
    dft = np.fft.fft(np.eye(det_count), axis=0)
    F = np.real(np.fft.ifft(ramp[:, None] * dft, axis=0)).astype(np.float32)
    return F


def build_fbp_matrix(A, F, circle, n_angles, det_count, bp_scale):
    """Fold ramp filter, pi/(2*nAngles) scale and circle clip into one matrix."""
    n_pix = A.shape[1]
    A_r = A.reshape(n_angles, det_count, n_pix).astype(np.float64)
    # A_fbp[a*det + d, j] = sum_e F[e, d] * A[a*det + e, j]
    A_f = np.einsum("ed,aej->adj", F.astype(np.float64), A_r)
    A_fbp = A_f.reshape(n_angles * det_count, n_pix) * bp_scale
    A_fbp = A_fbp * circle.ravel()[None, :].astype(np.float64)
    return A_fbp.astype(np.float32)


# ---------------------------------------------------------------------------
# AirNetSNL forward
# ---------------------------------------------------------------------------
def make_airnet_forward(consts, n_iterations):
    a_t = consts["A_T"]          # (Npix, P) bf16   forward projection
    a_fbp = consts["A_fbp"]      # (P, Npix) bf16   fused filtered backprojection
    img = consts["img_size"]
    na, det = consts["n_angles"], consts["det_count"]

    @jax.jit
    def forward(x_sinogram, params):
        B, C = x_sinogram.shape[:2]                       # C == 1
        x_flat = x_sinogram.reshape(B * C, na * det)
        # FBP initialization (filter_sinogram + backprojection fused)
        y_prev_flat = fbp_init(x_flat, a_fbp)             # (B, Npix) f32
        y_block = y_prev_flat.reshape(B, C, img, img)
        y_concat = None
        for ii in range(n_iterations):
            blk = params[ii]
            # IterationBlock: A y - x, FBP, y + step*fbp  (fused epilogues)
            diff = forward_project_diff(y_prev_flat, a_t, x_flat)
            y_update_flat = backproject_axpy(diff, a_fbp, y_prev_flat,
                                             blk["step"])
            y_update = y_update_flat.reshape(B, C, img, img)
            if y_concat is None:
                y_cc = y_update
            else:
                y_cc = jnp.concatenate([y_update, y_concat], axis=1)
            y_block = cnn_forward(y_cc, blk)
            y_concat = y_cc
            y_prev_flat = y_block.reshape(B * C, img * img)
        return consts["zero_mask"] * y_block

    return forward


def init_params(key, n_iterations, n_cnn):
    def u(k, shape, fan_in):
        bound = 1.0 / np.sqrt(fan_in)
        return jax.random.uniform(k, shape, jnp.float32, -bound, bound)

    blocks = []
    for ii in range(n_iterations):
        c_in = ii + 1
        key, *ks = jax.random.split(key, 7)
        blocks.append(dict(
            w1=u(ks[0], (n_cnn, c_in, 3, 3), c_in * 9),
            b1=u(ks[1], (n_cnn,), c_in * 9),
            w2=u(ks[2], (n_cnn, n_cnn, 3, 3), n_cnn * 9),
            b2=u(ks[3], (n_cnn,), n_cnn * 9),
            w3=u(ks[4], (1, n_cnn, 3, 3), n_cnn * 9),
            b3=u(ks[5], (1,), n_cnn * 9),
            step=jnp.float32(1.0),
        ))
    return blocks


if __name__ == "__main__":
    # Small, module-consistent shapes.
    img_size = 16
    batch = 2
    n_angles = 8
    det_count = img_size
    n_iterations = 3
    n_cnn = 4

    angles = np.linspace(0.0, np.pi, n_angles, endpoint=False)
    A, circle = build_radon_matrix(img_size, angles, det_count)
    F = build_ramp_filter_matrix(det_count)
    bp_scale = float(np.pi / (2.0 * n_angles))
    A_fbp = build_fbp_matrix(A, F, circle, n_angles, det_count, bp_scale)

    consts = dict(
        A_T=jnp.asarray(A.T, dtype=jnp.bfloat16),        # forward projection
        A_fbp=jnp.asarray(A_fbp, dtype=jnp.bfloat16),    # fused FBP operator
        zero_mask=jnp.broadcast_to(                      # getMask((B,1,H,W))
            jnp.asarray(circle)[None, None],
            (batch, 1, img_size, img_size)).astype(jnp.float32),
        n_angles=n_angles,
        det_count=det_count,
        img_size=img_size,
    )

    key = jax.random.PRNGKey(0)
    k_x, k_p = jax.random.split(key)
    # x_sinogram_in: (nSamples, nChannels, nAngles, nDetectors)
    x_sinogram = jax.random.normal(
        k_x, (batch, 1, n_angles, det_count), jnp.float32)
    params = init_params(k_p, n_iterations, n_cnn)

    forward = make_airnet_forward(consts, n_iterations)
    out = forward(x_sinogram, params)
    jax.block_until_ready(out)
    assert out.shape == (batch, 1, img_size, img_size)
    assert bool(jnp.all(jnp.isfinite(out)))
    print("KERNEL_OK")
</pallas_src>

<mosaic_0001>
module attributes {stable_mosaic.version = 11 : i64} {
  func.func @_bp_axpy_kernel(%arg0: i32, %arg1: i32, %arg2: memref<1xf32, #tpu.memory_space<smem>>, %arg3: memref<2x128xf32, #tpu.memory_space<vmem>>, %arg4: memref<128x256xbf16, #tpu.memory_space<vmem>>, %arg5: memref<2x256xf32, #tpu.memory_space<vmem>>, %arg6: memref<2x256xf32, #tpu.memory_space<vmem>>) attributes {dimension_semantics = [#tpu.dimension_semantics<parallel>, #tpu.dimension_semantics<arbitrary>], iteration_bounds = array<i64: 1, 1>, scalar_prefetch = 0 : i64, scratch_operands = 0 : i64, tpu.core_type = #tpu.core_type<tc>, window_params = [{transform_indices = @transform_0, window_bounds = array<i64: 1>}, {transform_indices = @transform_1, window_bounds = array<i64: 2, 128>}, {transform_indices = @transform_2, window_bounds = array<i64: 128, 256>}, {transform_indices = @transform_3, window_bounds = array<i64: 2, 256>}, {transform_indices = @transform_4, window_bounds = array<i64: 2, 256>}]} {
    %c0_i32 = arith.constant 0 : i32
    %0 = arith.cmpi eq, %arg1, %c0_i32 : i32
    %1 = arith.extui %0 : i1 to i32
    %c0_i32_0 = arith.constant 0 : i32
    %2 = arith.cmpi ne, %1, %c0_i32_0 : i32
    scf.if %2 {
      %cst_10 = arith.constant 0.000000e+00 : f32
      %13 = vector.broadcast %cst_10 : f32 to vector<2x256xf32>
      %c0_11 = arith.constant 0 : index
      %c0_12 = arith.constant 0 : index
      %14 = vector.load %arg6[%c0_11, %c0_12] : memref<2x256xf32, #tpu.memory_space<vmem>>, vector<2x256xf32>
      tpu.vector_store %arg6[%c0_11, %c0_12], %13 {strides = array<i32>} : memref<2x256xf32, #tpu.memory_space<vmem>>, vector<2x256xf32>,
    } else {
    }
    %c0 = arith.constant 0 : index
    %c0_1 = arith.constant 0 : index
    %3 = vector.load %arg6[%c0, %c0_1] : memref<2x256xf32, #tpu.memory_space<vmem>>, vector<2x256xf32>
    %c0_2 = arith.constant 0 : index
    %c0_3 = arith.constant 0 : index
    %4 = vector.load %arg3[%c0_2, %c0_3] : memref<2x128xf32, #tpu.memory_space<vmem>>, vector<2x128xf32>
    %5 = arith.truncf %4 : vector<2x128xf32> to vector<2x128xbf16>
    %c0_4 = arith.constant 0 : index
    %c0_5 = arith.constant 0 : index
    %6 = vector.load %arg4[%c0_4, %c0_5] : memref<128x256xbf16, #tpu.memory_space<vmem>>, vector<128x256xbf16>
    %cst = arith.constant dense<0.000000e+00> : vector<2x256xf32>
    %7 = tpu.matmul %5, %6, %cst {dimension_numbers = #tpu.dot_dimension_numbers<[1], [0], [0], [1], [0, 0, 1, 1], [], []>} : vector<2x128xbf16>, vector<128x256xbf16>, vector<2x256xf32> -> vector<2x256xf32>
    %8 = arith.addf %3, %7 : vector<2x256xf32>
    %c0_6 = arith.constant 0 : index
    %c0_7 = arith.constant 0 : index
    %9 = vector.load %arg6[%c0_6, %c0_7] : memref<2x256xf32, #tpu.memory_space<vmem>>, vector<2x256xf32>
    tpu.vector_store %arg6[%c0_6, %c0_7], %8 {strides = array<i32>} : memref<2x256xf32, #tpu.memory_space<vmem>>, vector<2x256xf32>,
    %c0_i32_8 = arith.constant 0 : i32
    %10 = arith.cmpi eq, %arg1, %c0_i32_8 : i32
    %11 = arith.extui %10 : i1 to i32
    %c0_i32_9 = arith.constant 0 : i32
    %12 = arith.cmpi ne, %11, %c0_i32_9 : i32
    scf.if %12 {
      %c0_10 = arith.constant 0 : index
      %c0_11 = arith.constant 0 : index
      %13 = vector.load %arg5[%c0_10, %c0_11] : memref<2x256xf32, #tpu.memory_space<vmem>>, vector<2x256xf32>
      %c0_12 = arith.constant 0 : index
      %14 = memref.load %arg2[%c0_12] : memref<1xf32, #tpu.memory_space<smem>>
      %c0_13 = arith.constant 0 : index
      %c0_14 = arith.constant 0 : index
      %15 = vector.load %arg6[%c0_13, %c0_14] : memref<2x256xf32, #tpu.memory_space<vmem>>, vector<2x256xf32>
      %16 = vector.broadcast %14 : f32 to vector<2x256xf32>
      %17 = arith.mulf %16, %15 : vector<2x256xf32>
      %18 = arith.addf %13, %17 : vector<2x256xf32>
      %c0_15 = arith.constant 0 : index
      %c0_16 = arith.constant 0 : index
      %19 = vector.load %arg6[%c0_15, %c0_16] : memref<2x256xf32, #tpu.memory_space<vmem>>, vector<2x256xf32>
      tpu.vector_store %arg6[%c0_15, %c0_16], %18 {strides = array<i32>} : memref<2x256xf32, #tpu.memory_space<vmem>>, vector<2x256xf32>,
    } else {
    }
    return
  }
  func.func @transform_0(%arg0: i32, %arg1: i32) -> i32 {
    %c0_i32 = arith.constant 0 : i32
    %c0_i32_0 = arith.constant 0 : i32
    return %c0_i32 : i32
  }
  func.func @transform_1(%arg0: i32, %arg1: i32) -> (i32, i32) {
    %c0_i32 = arith.constant 0 : i32
    %c0_i32_0 = arith.constant 0 : i32
    return %c0_i32, %arg1 : i32, i32
  }
  func.func @transform_2(%arg0: i32, %arg1: i32) -> (i32, i32) {
    %c0_i32 = arith.constant 0 : i32
    return %arg1, %arg0 : i32, i32
  }
  func.func @transform_3(%arg0: i32, %arg1: i32) -> (i32, i32) {
    %c0_i32 = arith.constant 0 : i32
    %c0_i32_0 = arith.constant 0 : i32
    return %c0_i32, %arg0 : i32, i32
  }
  func.func @transform_4(%arg0: i32, %arg1: i32) -> (i32, i32) {
    %c0_i32 = arith.constant 0 : i32
    %c0_i32_0 = arith.constant 0 : i32
    return %c0_i32, %arg0 : i32, i32
  }
}

module attributes {stable_mosaic.version = 11 : i64} {
  func.func @_mm_kernel(%arg0: i32, %arg1: i32, %arg2: memref<2x128xf32, #tpu.memory_space<vmem>>, %arg3: memref<128x256xbf16, #tpu.memory_space<vmem>>, %arg4: memref<2x256xf32, #tpu.memory_space<vmem>>) attributes {dimension_semantics = [#tpu.dimension_semantics<parallel>, #tpu.dimension_semantics<arbitrary>], iteration_bounds = array<i64: 1, 1>, scalar_prefetch = 0 : i64, scratch_operands = 0 : i64, tpu.core_type = #tpu.core_type<tc>, window_params = [{transform_indices = @transform_0, window_bounds = array<i64: 2, 128>}, {transform_indices = @transform_1, window_bounds = array<i64: 128, 256>}, {transform_indices = @transform_2, window_bounds = array<i64: 2, 256>}]} {
    %c0_i32 = arith.constant 0 : i32
    %0 = arith.cmpi eq, %arg1, %c0_i32 : i32
    %1 = arith.extui %0 : i1 to i32
    %c0_i32_0 = arith.constant 0 : i32
    %2 = arith.cmpi ne, %1, %c0_i32_0 : i32
    scf.if %2 {
      %cst_8 = arith.constant 0.000000e+00 : f32
      %10 = vector.broadcast %cst_8 : f32 to vector<2x256xf32>
      %c0_9 = arith.constant 0 : index
      %c0_10 = arith.constant 0 : index
      %11 = vector.load %arg4[%c0_9, %c0_10] : memref<2x256xf32, #tpu.memory_space<vmem>>, vector<2x256xf32>
      tpu.vector_store %arg4[%c0_9, %c0_10], %10 {strides = array<i32>} : memref<2x256xf32, #tpu.memory_space<vmem>>, vector<2x256xf32>,
    } else {
    }
    %c0 = arith.constant 0 : index
    %c0_1 = arith.constant 0 : index
    %3 = vector.load %arg4[%c0, %c0_1] : memref<2x256xf32, #tpu.memory_space<vmem>>, vector<2x256xf32>
    %c0_2 = arith.constant 0 : index
    %c0_3 = arith.constant 0 : index
    %4 = vector.load %arg2[%c0_2, %c0_3] : memref<2x128xf32, #tpu.memory_space<vmem>>, vector<2x128xf32>
    %5 = arith.truncf %4 : vector<2x128xf32> to vector<2x128xbf16>
    %c0_4 = arith.constant 0 : index
    %c0_5 = arith.constant 0 : index
    %6 = vector.load %arg3[%c0_4, %c0_5] : memref<128x256xbf16, #tpu.memory_space<vmem>>, vector<128x256xbf16>
    %cst = arith.constant dense<0.000000e+00> : vector<2x256xf32>
    %7 = tpu.matmul %5, %6, %cst {dimension_numbers = #tpu.dot_dimension_numbers<[1], [0], [0], [1], [0, 0, 1, 1], [], []>} : vector<2x128xbf16>, vector<128x256xbf16>, vector<2x256xf32> -> vector<2x256xf32>
    %8 = arith.addf %3, %7 : vector<2x256xf32>
    %c0_6 = arith.constant 0 : index
    %c0_7 = arith.constant 0 : index
    %9 = vector.load %arg4[%c0_6, %c0_7] : memref<2x256xf32, #tpu.memory_space<vmem>>, vector<2x256xf32>
    tpu.vector_store %arg4[%c0_6, %c0_7], %8 {strides = array<i32>} : memref<2x256xf32, #tpu.memory_space<vmem>>, vector<2x256xf32>,
    return
  }
  func.func @transform_0(%arg0: i32, %arg1: i32) -> (i32, i32) {
    %c0_i32 = arith.constant 0 : i32
    %c0_i32_0 = arith.constant 0 : i32
    return %c0_i32, %arg1 : i32, i32
  }
  func.func @transform_1(%arg0: i32, %arg1: i32) -> (i32, i32) {
    %c0_i32 = arith.constant 0 : i32
    return %arg1, %arg0 : i32, i32
  }
  func.func @transform_2(%arg0: i32, %arg1: i32) -> (i32, i32) {
    %c0_i32 = arith.constant 0 : i32
    %c0_i32_0 = arith.constant 0 : i32
    return %c0_i32, %arg0 : i32, i32
  }
}

module attributes {stable_mosaic.version = 11 : i64} {
  func.func @_fp_diff_kernel(%arg0: i32, %arg1: i32, %arg2: memref<2x256xf32, #tpu.memory_space<vmem>>, %arg3: memref<256x128xbf16, #tpu.memory_space<vmem>>, %arg4: memref<2x128xf32, #tpu.memory_space<vmem>>, %arg5: memref<2x128xf32, #tpu.memory_space<vmem>>) attributes {dimension_semantics = [#tpu.dimension_semantics<parallel>, #tpu.dimension_semantics<arbitrary>], iteration_bounds = array<i64: 1, 1>, scalar_prefetch = 0 : i64, scratch_operands = 0 : i64, tpu.core_type = #tpu.core_type<tc>, window_params = [{transform_indices = @transform_0, window_bounds = array<i64: 2, 256>}, {transform_indices = @transform_1, window_bounds = array<i64: 256, 128>}, {transform_indices = @transform_2, window_bounds = array<i64: 2, 128>}, {transform_indices = @transform_3, window_bounds = array<i64: 2, 128>}]} {
    %c0_i32 = arith.constant 0 : i32
    %0 = arith.cmpi eq, %arg1, %c0_i32 : i32
    %1 = arith.extui %0 : i1 to i32
    %c0_i32_0 = arith.constant 0 : i32
    %2 = arith.cmpi ne, %1, %c0_i32_0 : i32
    scf.if %2 {
      %c0_8 = arith.constant 0 : index
      %c0_9 = arith.constant 0 : index
      %10 = vector.load %arg4[%c0_8, %c0_9] : memref<2x128xf32, #tpu.memory_space<vmem>>, vector<2x128xf32>
      %cst_10 = arith.constant 0.000000e+00 : f32
      %11 = vector.broadcast %cst_10 : f32 to vector<2x128xf32>
      %12 = arith.subf %11, %10 : vector<2x128xf32>
      %c0_11 = arith.constant 0 : index
      %c0_12 = arith.constant 0 : index
      %13 = vector.load %arg5[%c0_11, %c0_12] : memref<2x128xf32, #tpu.memory_space<vmem>>, vector<2x128xf32>
      tpu.vector_store %arg5[%c0_11, %c0_12], %12 {strides = array<i32>} : memref<2x128xf32, #tpu.memory_space<vmem>>, vector<2x128xf32>,
    } else {
    }
    %c0 = arith.constant 0 : index
    %c0_1 = arith.constant 0 : index
    %3 = vector.load %arg5[%c0, %c0_1] : memref<2x128xf32, #tpu.memory_space<vmem>>, vector<2x128xf32>
    %c0_2 = arith.constant 0 : index
    %c0_3 = arith.constant 0 : index
    %4 = vector.load %arg2[%c0_2, %c0_3] : memref<2x256xf32, #tpu.memory_space<vmem>>, vector<2x256xf32>
    %5 = arith.truncf %4 : vector<2x256xf32> to vector<2x256xbf16>
    %c0_4 = arith.constant 0 : index
    %c0_5 = arith.constant 0 : index
    %6 = vector.load %arg3[%c0_4, %c0_5] : memref<256x128xbf16, #tpu.memory_space<vmem>>, vector<256x128xbf16>
    %cst = arith.constant dense<0.000000e+00> : vector<2x128xf32>
    %7 = tpu.matmul %5, %6, %cst {dimension_numbers = #tpu.dot_dimension_numbers<[1], [0], [0], [1], [0, 0, 1, 1], [], []>} : vector<2x256xbf16>, vector<256x128xbf16>, vector<2x128xf32> -> vector<2x128xf32>
    %8 = arith.addf %3, %7 : vector<2x128xf32>
    %c0_6 = arith.constant 0 : index
    %c0_7 = arith.constant 0 : index
    %9 = vector.load %arg5[%c0_6, %c0_7] : memref<2x128xf32, #tpu.memory_space<vmem>>, vector<2x128xf32>
    tpu.vector_store %arg5[%c0_6, %c0_7], %8 {strides = array<i32>} : memref<2x128xf32, #tpu.memory_space<vmem>>, vector<2x128xf32>,
    return
  }
  func.func @transform_0(%arg0: i32, %arg1: i32) -> (i32, i32) {
    %c0_i32 = arith.constant 0 : i32
    %c0_i32_0 = arith.constant 0 : i32
    return %c0_i32, %arg1 : i32, i32
  }
  func.func @transform_1(%arg0: i32, %arg1: i32) -> (i32, i32) {
    %c0_i32 = arith.constant 0 : i32
    return %arg1, %arg0 : i32, i32
  }
  func.func @transform_2(%arg0: i32, %arg1: i32) -> (i32, i32) {
    %c0_i32 = arith.constant 0 : i32
    %c0_i32_0 = arith.constant 0 : i32
    return %c0_i32, %arg0 : i32, i32
  }
  func.func @transform_3(%arg0: i32, %arg1: i32) -> (i32, i32) {
    %c0_i32 = arith.constant 0 : i32
    %c0_i32_0 = arith.constant 0 : i32
    return %c0_i32, %arg0 : i32, i32
  }
}

module attributes {stable_mosaic.version = 11 : i64} {
  func.func @_conv3x3_kernel(%arg0: i32, %arg1: memref<9x4x2xbf16, #tpu.memory_space<vmem>>, %arg2: memref<1x2x512xbf16, #tpu.memory_space<vmem>>, %arg3: memref<1x4x384xbf16, #tpu.memory_space<vmem>>) attributes {dimension_semantics = [#tpu.dimension_semantics<parallel>], iteration_bounds = array<i64: 2>, scalar_prefetch = 0 : i64, scratch_operands = 0 : i64, tpu.core_type = #tpu.core_type<tc>, window_params = [{pipeline_mode = #tpu.pipeline_mode<synchronous>, transform_indices = @transform_0, window_bounds = array<i64: 9, 4, 2>}, {transform_indices = @transform_1, window_bounds = array<i64: 1, 2, 512>}, {transform_indices = @transform_2, window_bounds = array<i64: 1, 4, 384>}]} {
    %cst = arith.constant 0.000000e+00 : f32
    %0 = vector.broadcast %cst : f32 to vector<4x384xf32>
    %c0 = arith.constant 0 : index
    %c0_0 = arith.constant 0 : index
    %c0_1 = arith.constant 0 : index
    %1 = vector.load %arg2[%c0, %c0_0, %c0_1] : memref<1x2x512xbf16, #tpu.memory_space<vmem>>, vector<1x2x384xbf16>
    %2 = vector.shape_cast %1 : vector<1x2x384xbf16> to vector<2x384xbf16>
    %c0_2 = arith.constant 0 : index
    %c0_3 = arith.constant 0 : index
    %c0_4 = arith.constant 0 : index
    %3 = vector.load %arg1[%c0_2, %c0_3, %c0_4] : memref<9x4x2xbf16, #tpu.memory_space<vmem>>, vector<1x4x2xbf16>
    %4 = vector.shape_cast %3 : vector<1x4x2xbf16> to vector<4x2xbf16>
    %cst_5 = arith.constant dense<0.000000e+00> : vector<4x384xf32>
    %5 = tpu.matmul %4, %2, %cst_5 {dimension_numbers = #tpu.dot_dimension_numbers<[1], [0], [0], [1], [0, 0, 1, 1], [], []>} : vector<4x2xbf16>, vector<2x384xbf16>, vector<4x384xf32> -> vector<4x384xf32>
    %6 = arith.addf %0, %5 : vector<4x384xf32>
    %c0_6 = arith.constant 0 : index
    %c0_7 = arith.constant 0 : index
    %c1 = arith.constant 1 : index
    %7 = vector.load %arg2[%c0_6, %c0_7, %c1] : memref<1x2x512xbf16, #tpu.memory_space<vmem>>, vector<1x2x384xbf16>
    %8 = vector.shape_cast %7 : vector<1x2x384xbf16> to vector<2x384xbf16>
    %c1_8 = arith.constant 1 : index
    %c0_9 = arith.constant 0 : index
    %c0_10 = arith.constant 0 : index
    %9 = vector.load %arg1[%c1_8, %c0_9, %c0_10] : memref<9x4x2xbf16, #tpu.memory_space<vmem>>, vector<1x4x2xbf16>
    %10 = vector.shape_cast %9 : vector<1x4x2xbf16> to vector<4x2xbf16>
    %cst_11 = arith.constant dense<0.000000e+00> : vector<4x384xf32>
    %11 = tpu.matmul %10, %8, %cst_11 {dimension_numbers = #tpu.dot_dimension_numbers<[1], [0], [0], [1], [0, 0, 1, 1], [], []>} : vector<4x2xbf16>, vector<2x384xbf16>, vector<4x384xf32> -> vector<4x384xf32>
    %12 = arith.addf %6, %11 : vector<4x384xf32>
    %c0_12 = arith.constant 0 : index
    %c0_13 = arith.constant 0 : index
    %c2 = arith.constant 2 : index
    %13 = vector.load %arg2[%c0_12, %c0_13, %c2] : memref<1x2x512xbf16, #tpu.memory_space<vmem>>, vector<1x2x384xbf16>
    %14 = vector.shape_cast %13 : vector<1x2x384xbf16> to vector<2x384xbf16>
    %c2_14 = arith.constant 2 : index
    %c0_15 = arith.constant 0 : index
    %c0_16 = arith.constant 0 : index
    %15 = vector.load %arg1[%c2_14, %c0_15, %c0_16] : memref<9x4x2xbf16, #tpu.memory_space<vmem>>, vector<1x4x2xbf16>
    %16 = vector.shape_cast %15 : vector<1x4x2xbf16> to vector<4x2xbf16>
    %cst_17 = arith.constant dense<0.000000e+00> : vector<4x384xf32>
    %17 = tpu.matmul %16, %14, %cst_17 {dimension_numbers = #tpu.dot_dimension_numbers<[1], [0], [0], [1], [0, 0, 1, 1], [], []>} : vector<4x2xbf16>, vector<2x384xbf16>, vector<4x384xf32> -> vector<4x384xf32>
    %18 = arith.addf %12, %17 : vector<4x384xf32>
    %c0_18 = arith.constant 0 : index
    %c0_19 = arith.constant 0 : index
    %c18 = arith.constant 18 : index
    %19 = vector.load %arg2[%c0_18, %c0_19, %c18] : memref<1x2x512xbf16, #tpu.memory_space<vmem>>, vector<1x2x384xbf16>
    %20 = vector.shape_cast %19 : vector<1x2x384xbf16> to vector<2x384xbf16>
    %c3 = arith.constant 3 : index
    %c0_20 = arith.constant 0 : index
    %c0_21 = arith.constant 0 : index
    %21 = vector.load %arg1[%c3, %c0_20, %c0_21] : memref<9x4x2xbf16, #tpu.memory_space<vmem>>, vector<1x4x2xbf16>
    %22 = vector.shape_cast %21 : vector<1x4x2xbf16> to vector<4x2xbf16>
    %cst_22 = arith.constant dense<0.000000e+00> : vector<4x384xf32>
    %23 = tpu.matmul %22, %20, %cst_22 {dimension_numbers = #tpu.dot_dimension_numbers<[1], [0], [0], [1], [0, 0, 1, 1], [], []>} : vector<4x2xbf16>, vector<2x384xbf16>, vector<4x384xf32> -> vector<4x384xf32>
    %24 = arith.addf %18, %23 : vector<4x384xf32>
    %c0_23 = arith.constant 0 : index
    %c0_24 = arith.constant 0 : index
    %c19 = arith.constant 19 : index
    %25 = vector.load %arg2[%c0_23, %c0_24, %c19] : memref<1x2x512xbf16, #tpu.memory_space<vmem>>, vector<1x2x384xbf16>
    %26 = vector.shape_cast %25 : vector<1x2x384xbf16> to vector<2x384xbf16>
    %c4 = arith.constant 4 : index
    %c0_25 = arith.constant 0 : index
    %c0_26 = arith.constant 0 : index
    %27 = vector.load %arg1[%c4, %c0_25, %c0_26] : memref<9x4x2xbf16, #tpu.memory_space<vmem>>, vector<1x4x2xbf16>
    %28 = vector.shape_cast %27 : vector<1x4x2xbf16> to vector<4x2xbf16>
    %cst_27 = arith.constant dense<0.000000e+00> : vector<4x384xf32>
    %29 = tpu.matmul %28, %26, %cst_27 {dimension_numbers = #tpu.dot_dimension_numbers<[1], [0], [0], [1], [0, 0, 1, 1], [], []>} : vector<4x2xbf16>, vector<2x384xbf16>, vector<4x384xf32> -> vector<4x384xf32>
    %30 = arith.addf %24, %29 : vector<4x384xf32>
    %c0_28 = arith.constant 0 : index
    %c0_29 = arith.constant 0 : index
    %c20 = arith.constant 20 : index
    %31 = vector.load %arg2[%c0_28, %c0_29, %c20] : memref<1x2x512xbf16, #tpu.memory_space<vmem>>, vector<1x2x384xbf16>
    %32 = vector.shape_cast %31 : vector<1x2x384xbf16> to vector<2x384xbf16>
    %c5 = arith.constant 5 : index
    %c0_30 = arith.constant 0 : index
    %c0_31 = arith.constant 0 : index
    %33 = vector.load %arg1[%c5, %c0_30, %c0_31] : memref<9x4x2xbf16, #tpu.memory_space<vmem>>, vector<1x4x2xbf16>
    %34 = vector.shape_cast %33 : vector<1x4x2xbf16> to vector<4x2xbf16>
    %cst_32 = arith.constant dense<0.000000e+00> : vector<4x384xf32>
    %35 = tpu.matmul %34, %32, %cst_32 {dimension_numbers = #tpu.dot_dimension_numbers<[1], [0], [0], [1], [0, 0, 1, 1], [], []>} : vector<4x2xbf16>, vector<2x384xbf16>, vector<4x384xf32> -> vector<4x384xf32>
    %36 = arith.addf %30, %35 : vector<4x384xf32>
    %c0_33 = arith.constant 0 : index
    %c0_34 = arith.constant 0 : index
    %c36 = arith.constant 36 : index
    %37 = vector.load %arg2[%c0_33, %c0_34, %c36] : memref<1x2x512xbf16, #tpu.memory_space<vmem>>, vector<1x2x384xbf16>
    %38 = vector.shape_cast %37 : vector<1x2x384xbf16> to vector<2x384xbf16>
    %c6 = arith.constant 6 : index
    %c0_35 = arith.constant 0 : index
    %c0_36 = arith.constant 0 : index
    %39 = vector.load %arg1[%c6, %c0_35, %c0_36] : memref<9x4x2xbf16, #tpu.memory_space<vmem>>, vector<1x4x2xbf16>
    %40 = vector.shape_cast %39 : vector<1x4x2xbf16> to vector<4x2xbf16>
    %cst_37 = arith.constant dense<0.000000e+00> : vector<4x384xf32>
    %41 = tpu.matmul %40, %38, %cst_37 {dimension_numbers = #tpu.dot_dimension_numbers<[1], [0], [0], [1], [0, 0, 1, 1], [], []>} : vector<4x2xbf16>, vector<2x384xbf16>, vector<4x384xf32> -> vector<4x384xf32>
    %42 = arith.addf %36, %41 : vector<4x384xf32>
    %c0_38 = arith.constant 0 : index
    %c0_39 = arith.constant 0 : index
    %c37 = arith.constant 37 : index
    %43 = vector.load %arg2[%c0_38, %c0_39, %c37] : memref<1x2x512xbf16, #tpu.memory_space<vmem>>, vector<1x2x384xbf16>
    %44 = vector.shape_cast %43 : vector<1x2x384xbf16> to vector<2x384xbf16>
    %c7 = arith.constant 7 : index
    %c0_40 = arith.constant 0 : index
    %c0_41 = arith.constant 0 : index
    %45 = vector.load %arg1[%c7, %c0_40, %c0_41] : memref<9x4x2xbf16, #tpu.memory_space<vmem>>, vector<1x4x2xbf16>
    %46 = vector.shape_cast %45 : vector<1x4x2xbf16> to vector<4x2xbf16>
    %cst_42 = arith.constant dense<0.000000e+00> : vector<4x384xf32>
    %47 = tpu.matmul %46, %44, %cst_42 {dimension_numbers = #tpu.dot_dimension_numbers<[1], [0], [0], [1], [0, 0, 1, 1], [], []>} : vector<4x2xbf16>, vector<2x384xbf16>, vector<4x384xf32> -> vector<4x384xf32>
    %48 = arith.addf %42, %47 : vector<4x384xf32>
    %c0_43 = arith.constant 0 : index
    %c0_44 = arith.constant 0 : index
    %c38 = arith.constant 38 : index
    %49 = vector.load %arg2[%c0_43, %c0_44, %c38] : memref<1x2x512xbf16, #tpu.memory_space<vmem>>, vector<1x2x384xbf16>
    %50 = vector.shape_cast %49 : vector<1x2x384xbf16> to vector<2x384xbf16>
    %c8 = arith.constant 8 : index
    %c0_45 = arith.constant 0 : index
    %c0_46 = arith.constant 0 : index
    %51 = vector.load %arg1[%c8, %c0_45, %c0_46] : memref<9x4x2xbf16, #tpu.memory_space<vmem>>, vector<1x4x2xbf16>
    %52 = vector.shape_cast %51 : vector<1x4x2xbf16> to vector<4x2xbf16>
    %cst_47 = arith.constant dense<0.000000e+00> : vector<4x384xf32>
    %53 = tpu.matmul %52, %50, %cst_47 {dimension_numbers = #tpu.dot_dimension_numbers<[1], [0], [0], [1], [0, 0, 1, 1], [], []>} : vector<4x2xbf16>, vector<2x384xbf16>, vector<4x384xf32> -> vector<4x384xf32>
    %54 = arith.addf %48, %53 : vector<4x384xf32>
    %cst_48 = arith.constant 0.000000e+00 : f32
    %55 = vector.broadcast %cst_48 : f32 to vector<4x384xf32>
    %56 = arith.maximumf %54, %55 : vector<4x384xf32>
    %57 = arith.truncf %56 : vector<4x384xf32> to vector<4x384xbf16>
    %c0_49 = arith.constant 0 : index
    %c0_50 = arith.constant 0 : index
    %c0_51 = arith.constant 0 : index
    %58 = vector.load %arg3[%c0_49, %c0_50, %c0_51] : memref<1x4x384xbf16, #tpu.memory_space<vmem>>, vector<1x4x384xbf16>
    %59 = vector.shape_cast %58 : vector<1x4x384xbf16> to vector<4x384xbf16>
    %60 = vector.shape_cast %57 : vector<4x384xbf16> to vector<1x4x384xbf16>
    tpu.vector_store %arg3[%c0_49, %c0_50, %c0_51], %60 {strides = array<i32>} : memref<1x4x384xbf16, #tpu.memory_space<vmem>>, vector<1x4x384xbf16>,
    return
  }
  func.func @transform_0(%arg0: i32) -> (i32, i32, i32) {
    %c0_i32 = arith.constant 0 : i32
    %c0_i32_0 = arith.constant 0 : i32
    %c0_i32_1 = arith.constant 0 : i32
    %c0_i32_2 = arith.constant 0 : i32
    return %c0_i32, %c0_i32_0, %c0_i32_1 : i32, i32, i32
  }
  func.func @transform_1(%arg0: i32) -> (i32, i32, i32) {
    %c0_i32 = arith.constant 0 : i32
    %c0_i32_0 = arith.constant 0 : i32
    %c0_i32_1 = arith.constant 0 : i32
    return %arg0, %c0_i32, %c0_i32_0 : i32, i32, i32
  }
  func.func @transform_2(%arg0: i32) -> (i32, i32, i32) {
    %c0_i32 = arith.constant 0 : i32
    %c0_i32_0 = arith.constant 0 : i32
    %c0_i32_1 = arith.constant 0 : i32
    return %arg0, %c0_i32, %c0_i32_0 : i32, i32, i32
  }
}

module attributes {stable_mosaic.version = 11 : i64} {
  func.func @_conv3x3_kernel(%arg0: i32, %arg1: memref<9x4x5xbf16, #tpu.memory_space<vmem>>, %arg2: memref<1x5x512xbf16, #tpu.memory_space<vmem>>, %arg3: memref<1x4x384xbf16, #tpu.memory_space<vmem>>) attributes {dimension_semantics = [#tpu.dimension_semantics<parallel>], iteration_bounds = array<i64: 2>, scalar_prefetch = 0 : i64, scratch_operands = 0 : i64, tpu.core_type = #tpu.core_type<tc>, window_params = [{pipeline_mode = #tpu.pipeline_mode<synchronous>, transform_indices = @transform_0, window_bounds = array<i64: 9, 4, 5>}, {transform_indices = @transform_1, window_bounds = array<i64: 1, 5, 512>}, {transform_indices = @transform_2, window_bounds = array<i64: 1, 4, 384>}]} {
    %cst = arith.constant 0.000000e+00 : f32
    %0 = vector.broadcast %cst : f32 to vector<4x384xf32>
    %c0 = arith.constant 0 : index
    %c0_0 = arith.constant 0 : index
    %c0_1 = arith.constant 0 : index
    %1 = vector.load %arg2[%c0, %c0_0, %c0_1] : memref<1x5x512xbf16, #tpu.memory_space<vmem>>, vector<1x5x384xbf16>
    %2 = vector.shape_cast %1 : vector<1x5x384xbf16> to vector<5x384xbf16>
    %c0_2 = arith.constant 0 : index
    %c0_3 = arith.constant 0 : index
    %c0_4 = arith.constant 0 : index
    %3 = vector.load %arg1[%c0_2, %c0_3, %c0_4] : memref<9x4x5xbf16, #tpu.memory_space<vmem>>, vector<1x4x5xbf16>
    %4 = vector.shape_cast %3 : vector<1x4x5xbf16> to vector<4x5xbf16>
    %cst_5 = arith.constant dense<0.000000e+00> : vector<4x384xf32>
    %5 = tpu.matmul %4, %2, %cst_5 {dimension_numbers = #tpu.dot_dimension_numbers<[1], [0], [0], [1], [0, 0, 1, 1], [], []>} : vector<4x5xbf16>, vector<5x384xbf16>, vector<4x384xf32> -> vector<4x384xf32>
    %6 = arith.addf %0, %5 : vector<4x384xf32>
    %c0_6 = arith.constant 0 : index
    %c0_7 = arith.constant 0 : index
    %c1 = arith.constant 1 : index
    %7 = vector.load %arg2[%c0_6, %c0_7, %c1] : memref<1x5x512xbf16, #tpu.memory_space<vmem>>, vector<1x5x384xbf16>
    %8 = vector.shape_cast %7 : vector<1x5x384xbf16> to vector<5x384xbf16>
    %c1_8 = arith.constant 1 : index
    %c0_9 = arith.constant 0 : index
    %c0_10 = arith.constant 0 : index
    %9 = vector.load %arg1[%c1_8, %c0_9, %c0_10] : memref<9x4x5xbf16, #tpu.memory_space<vmem>>, vector<1x4x5xbf16>
    %10 = vector.shape_cast %9 : vector<1x4x5xbf16> to vector<4x5xbf16>
    %cst_11 = arith.constant dense<0.000000e+00> : vector<4x384xf32>
    %11 = tpu.matmul %10, %8, %cst_11 {dimension_numbers = #tpu.dot_dimension_numbers<[1], [0], [0], [1], [0, 0, 1, 1], [], []>} : vector<4x5xbf16>, vector<5x384xbf16>, vector<4x384xf32> -> vector<4x384xf32>
    %12 = arith.addf %6, %11 : vector<4x384xf32>
    %c0_12 = arith.constant 0 : index
    %c0_13 = arith.constant 0 : index
    %c2 = arith.constant 2 : index
    %13 = vector.load %arg2[%c0_12, %c0_13, %c2] : memref<1x5x512xbf16, #tpu.memory_space<vmem>>, vector<1x5x384xbf16>
    %14 = vector.shape_cast %13 : vector<1x5x384xbf16> to vector<5x384xbf16>
    %c2_14 = arith.constant 2 : index
    %c0_15 = arith.constant 0 : index
    %c0_16 = arith.constant 0 : index
    %15 = vector.load %arg1[%c2_14, %c0_15, %c0_16] : memref<9x4x5xbf16, #tpu.memory_space<vmem>>, vector<1x4x5xbf16>
    %16 = vector.shape_cast %15 : vector<1x4x5xbf16> to vector<4x5xbf16>
    %cst_17 = arith.constant dense<0.000000e+00> : vector<4x384xf32>
    %17 = tpu.matmul %16, %14, %cst_17 {dimension_numbers = #tpu.dot_dimension_numbers<[1], [0], [0], [1], [0, 0, 1, 1], [], []>} : vector<4x5xbf16>, vector<5x384xbf16>, vector<4x384xf32> -> vector<4x384xf32>
    %18 = arith.addf %12, %17 : vector<4x384xf32>
    %c0_18 = arith.constant 0 : index
    %c0_19 = arith.constant 0 : index
    %c18 = arith.constant 18 : index
    %19 = vector.load %arg2[%c0_18, %c0_19, %c18] : memref<1x5x512xbf16, #tpu.memory_space<vmem>>, vector<1x5x384xbf16>
    %20 = vector.shape_cast %19 : vector<1x5x384xbf16> to vector<5x384xbf16>
    %c3 = arith.constant 3 : index
    %c0_20 = arith.constant 0 : index
    %c0_21 = arith.constant 0 : index
    %21 = vector.load %arg1[%c3, %c0_20, %c0_21] : memref<9x4x5xbf16, #tpu.memory_space<vmem>>, vector<1x4x5xbf16>
    %22 = vector.shape_cast %21 : vector<1x4x5xbf16> to vector<4x5xbf16>
    %cst_22 = arith.constant dense<0.000000e+00> : vector<4x384xf32>
    %23 = tpu.matmul %22, %20, %cst_22 {dimension_numbers = #tpu.dot_dimension_numbers<[1], [0], [0], [1], [0, 0, 1, 1], [], []>} : vector<4x5xbf16>, vector<5x384xbf16>, vector<4x384xf32> -> vector<4x384xf32>
    %24 = arith.addf %18, %23 : vector<4x384xf32>
    %c0_23 = arith.constant 0 : index
    %c0_24 = arith.constant 0 : index
    %c19 = arith.constant 19 : index
    %25 = vector.load %arg2[%c0_23, %c0_24, %c19] : memref<1x5x512xbf16, #tpu.memory_space<vmem>>, vector<1x5x384xbf16>
    %26 = vector.shape_cast %25 : vector<1x5x384xbf16> to vector<5x384xbf16>
    %c4 = arith.constant 4 : index
    %c0_25 = arith.constant 0 : index
    %c0_26 = arith.constant 0 : index
    %27 = vector.load %arg1[%c4, %c0_25, %c0_26] : memref<9x4x5xbf16, #tpu.memory_space<vmem>>, vector<1x4x5xbf16>
    %28 = vector.shape_cast %27 : vector<1x4x5xbf16> to vector<4x5xbf16>
    %cst_27 = arith.constant dense<0.000000e+00> : vector<4x384xf32>
    %29 = tpu.matmul %28, %26, %cst_27 {dimension_numbers = #tpu.dot_dimension_numbers<[1], [0], [0], [1], [0, 0, 1, 1], [], []>} : vector<4x5xbf16>, vector<5x384xbf16>, vector<4x384xf32> -> vector<4x384xf32>
    %30 = arith.addf %24, %29 : vector<4x384xf32>
    %c0_28 = arith.constant 0 : index
    %c0_29 = arith.constant 0 : index
    %c20 = arith.constant 20 : index
    %31 = vector.load %arg2[%c0_28, %c0_29, %c20] : memref<1x5x512xbf16, #tpu.memory_space<vmem>>, vector<1x5x384xbf16>
    %32 = vector.shape_cast %31 : vector<1x5x384xbf16> to vector<5x384xbf16>
    %c5 = arith.constant 5 : index
    %c0_30 = arith.constant 0 : index
    %c0_31 = arith.constant 0 : index
    %33 = vector.load %arg1[%c5, %c0_30, %c0_31] : memref<9x4x5xbf16, #tpu.memory_space<vmem>>, vector<1x4x5xbf16>
    %34 = vector.shape_cast %33 : vector<1x4x5xbf16> to vector<4x5xbf16>
    %cst_32 = arith.constant dense<0.000000e+00> : vector<4x384xf32>
    %35 = tpu.matmul %34, %32, %cst_32 {dimension_numbers = #tpu.dot_dimension_numbers<[1], [0], [0], [1], [0, 0, 1, 1], [], []>} : vector<4x5xbf16>, vector<5x384xbf16>, vector<4x384xf32> -> vector<4x384xf32>
    %36 = arith.addf %30, %35 : vector<4x384xf32>
    %c0_33 = arith.constant 0 : index
    %c0_34 = arith.constant 0 : index
    %c36 = arith.constant 36 : index
    %37 = vector.load %arg2[%c0_33, %c0_34, %c36] : memref<1x5x512xbf16, #tpu.memory_space<vmem>>, vector<1x5x384xbf16>
    %38 = vector.shape_cast %37 : vector<1x5x384xbf16> to vector<5x384xbf16>
    %c6 = arith.constant 6 : index
    %c0_35 = arith.constant 0 : index
    %c0_36 = arith.constant 0 : index
    %39 = vector.load %arg1[%c6, %c0_35, %c0_36] : memref<9x4x5xbf16, #tpu.memory_space<vmem>>, vector<1x4x5xbf16>
    %40 = vector.shape_cast %39 : vector<1x4x5xbf16> to vector<4x5xbf16>
    %cst_37 = arith.constant dense<0.000000e+00> : vector<4x384xf32>
    %41 = tpu.matmul %40, %38, %cst_37 {dimension_numbers = #tpu.dot_dimension_numbers<[1], [0], [0], [1], [0, 0, 1, 1], [], []>} : vector<4x5xbf16>, vector<5x384xbf16>, vector<4x384xf32> -> vector<4x384xf32>
    %42 = arith.addf %36, %41 : vector<4x384xf32>
    %c0_38 = arith.constant 0 : index
    %c0_39 = arith.constant 0 : index
    %c37 = arith.constant 37 : index
    %43 = vector.load %arg2[%c0_38, %c0_39, %c37] : memref<1x5x512xbf16, #tpu.memory_space<vmem>>, vector<1x5x384xbf16>
    %44 = vector.shape_cast %43 : vector<1x5x384xbf16> to vector<5x384xbf16>
    %c7 = arith.constant 7 : index
    %c0_40 = arith.constant 0 : index
    %c0_41 = arith.constant 0 : index
    %45 = vector.load %arg1[%c7, %c0_40, %c0_41] : memref<9x4x5xbf16, #tpu.memory_space<vmem>>, vector<1x4x5xbf16>
    %46 = vector.shape_cast %45 : vector<1x4x5xbf16> to vector<4x5xbf16>
    %cst_42 = arith.constant dense<0.000000e+00> : vector<4x384xf32>
    %47 = tpu.matmul %46, %44, %cst_42 {dimension_numbers = #tpu.dot_dimension_numbers<[1], [0], [0], [1], [0, 0, 1, 1], [], []>} : vector<4x5xbf16>, vector<5x384xbf16>, vector<4x384xf32> -> vector<4x384xf32>
    %48 = arith.addf %42, %47 : vector<4x384xf32>
    %c0_43 = arith.constant 0 : index
    %c0_44 = arith.constant 0 : index
    %c38 = arith.constant 38 : index
    %49 = vector.load %arg2[%c0_43, %c0_44, %c38] : memref<1x5x512xbf16, #tpu.memory_space<vmem>>, vector<1x5x384xbf16>
    %50 = vector.shape_cast %49 : vector<1x5x384xbf16> to vector<5x384xbf16>
    %c8 = arith.constant 8 : index
    %c0_45 = arith.constant 0 : index
    %c0_46 = arith.constant 0 : index
    %51 = vector.load %arg1[%c8, %c0_45, %c0_46] : memref<9x4x5xbf16, #tpu.memory_space<vmem>>, vector<1x4x5xbf16>
    %52 = vector.shape_cast %51 : vector<1x4x5xbf16> to vector<4x5xbf16>
    %cst_47 = arith.constant dense<0.000000e+00> : vector<4x384xf32>
    %53 = tpu.matmul %52, %50, %cst_47 {dimension_numbers = #tpu.dot_dimension_numbers<[1], [0], [0], [1], [0, 0, 1, 1], [], []>} : vector<4x5xbf16>, vector<5x384xbf16>, vector<4x384xf32> -> vector<4x384xf32>
    %54 = arith.addf %48, %53 : vector<4x384xf32>
    %cst_48 = arith.constant 0.000000e+00 : f32
    %55 = vector.broadcast %cst_48 : f32 to vector<4x384xf32>
    %56 = arith.maximumf %54, %55 : vector<4x384xf32>
    %57 = arith.truncf %56 : vector<4x384xf32> to vector<4x384xbf16>
    %c0_49 = arith.constant 0 : index
    %c0_50 = arith.constant 0 : index
    %c0_51 = arith.constant 0 : index
    %58 = vector.load %arg3[%c0_49, %c0_50, %c0_51] : memref<1x4x384xbf16, #tpu.memory_space<vmem>>, vector<1x4x384xbf16>
    %59 = vector.shape_cast %58 : vector<1x4x384xbf16> to vector<4x384xbf16>
    %60 = vector.shape_cast %57 : vector<4x384xbf16> to vector<1x4x384xbf16>
    tpu.vector_store %arg3[%c0_49, %c0_50, %c0_51], %60 {strides = array<i32>} : memref<1x4x384xbf16, #tpu.memory_space<vmem>>, vector<1x4x384xbf16>,
    return
  }
  func.func @transform_0(%arg0: i32) -> (i32, i32, i32) {
    %c0_i32 = arith.constant 0 : i32
    %c0_i32_0 = arith.constant 0 : i32
    %c0_i32_1 = arith.constant 0 : i32
    %c0_i32_2 = arith.constant 0 : i32
    return %c0_i32, %c0_i32_0, %c0_i32_1 : i32, i32, i32
  }
  func.func @transform_1(%arg0: i32) -> (i32, i32, i32) {
    %c0_i32 = arith.constant 0 : i32
    %c0_i32_0 = arith.constant 0 : i32
    %c0_i32_1 = arith.constant 0 : i32
    return %arg0, %c0_i32, %c0_i32_0 : i32, i32, i32
  }
  func.func @transform_2(%arg0: i32) -> (i32, i32, i32) {
    %c0_i32 = arith.constant 0 : i32
    %c0_i32_0 = arith.constant 0 : i32
    %c0_i32_1 = arith.constant 0 : i32
    return %arg0, %c0_i32, %c0_i32_0 : i32, i32, i32
  }
}

module attributes {stable_mosaic.version = 11 : i64} {
  func.func @_conv3x3_kernel(%arg0: i32, %arg1: memref<9x1x5xbf16, #tpu.memory_space<vmem>>, %arg2: memref<1x5x512xbf16, #tpu.memory_space<vmem>>, %arg3: memref<1x1x384xf32, #tpu.memory_space<vmem>>) attributes {dimension_semantics = [#tpu.dimension_semantics<parallel>], iteration_bounds = array<i64: 2>, scalar_prefetch = 0 : i64, scratch_operands = 0 : i64, tpu.core_type = #tpu.core_type<tc>, window_params = [{pipeline_mode = #tpu.pipeline_mode<synchronous>, transform_indices = @transform_0, window_bounds = array<i64: 9, 1, 5>}, {transform_indices = @transform_1, window_bounds = array<i64: 1, 5, 512>}, {transform_indices = @transform_2, window_bounds = array<i64: 1, 1, 384>}]} {
    %cst = arith.constant 0.000000e+00 : f32
    %0 = vector.broadcast %cst : f32 to vector<1x384xf32>
    %c0 = arith.constant 0 : index
    %c0_0 = arith.constant 0 : index
    %c0_1 = arith.constant 0 : index
    %1 = vector.load %arg2[%c0, %c0_0, %c0_1] : memref<1x5x512xbf16, #tpu.memory_space<vmem>>, vector<1x5x384xbf16>
    %2 = vector.shape_cast %1 : vector<1x5x384xbf16> to vector<5x384xbf16>
    %c0_2 = arith.constant 0 : index
    %c0_3 = arith.constant 0 : index
    %c0_4 = arith.constant 0 : index
    %3 = vector.load %arg1[%c0_2, %c0_3, %c0_4] : memref<9x1x5xbf16, #tpu.memory_space<vmem>>, vector<1x1x5xbf16>
    %4 = vector.shape_cast %3 : vector<1x1x5xbf16> to vector<1x5xbf16>
    %cst_5 = arith.constant dense<0.000000e+00> : vector<1x384xf32>
    %5 = tpu.matmul %4, %2, %cst_5 {dimension_numbers = #tpu.dot_dimension_numbers<[1], [0], [0], [1], [0, 0, 1, 1], [], []>} : vector<1x5xbf16>, vector<5x384xbf16>, vector<1x384xf32> -> vector<1x384xf32>
    %6 = arith.addf %0, %5 : vector<1x384xf32>
    %c0_6 = arith.constant 0 : index
    %c0_7 = arith.constant 0 : index
    %c1 = arith.constant 1 : index
    %7 = vector.load %arg2[%c0_6, %c0_7, %c1] : memref<1x5x512xbf16, #tpu.memory_space<vmem>>, vector<1x5x384xbf16>
    %8 = vector.shape_cast %7 : vector<1x5x384xbf16> to vector<5x384xbf16>
    %c1_8 = arith.constant 1 : index
    %c0_9 = arith.constant 0 : index
    %c0_10 = arith.constant 0 : index
    %9 = vector.load %arg1[%c1_8, %c0_9, %c0_10] : memref<9x1x5xbf16, #tpu.memory_space<vmem>>, vector<1x1x5xbf16>
    %10 = vector.shape_cast %9 : vector<1x1x5xbf16> to vector<1x5xbf16>
    %cst_11 = arith.constant dense<0.000000e+00> : vector<1x384xf32>
    %11 = tpu.matmul %10, %8, %cst_11 {dimension_numbers = #tpu.dot_dimension_numbers<[1], [0], [0], [1], [0, 0, 1, 1], [], []>} : vector<1x5xbf16>, vector<5x384xbf16>, vector<1x384xf32> -> vector<1x384xf32>
    %12 = arith.addf %6, %11 : vector<1x384xf32>
    %c0_12 = arith.constant 0 : index
    %c0_13 = arith.constant 0 : index
    %c2 = arith.constant 2 : index
    %13 = vector.load %arg2[%c0_12, %c0_13, %c2] : memref<1x5x512xbf16, #tpu.memory_space<vmem>>, vector<1x5x384xbf16>
    %14 = vector.shape_cast %13 : vector<1x5x384xbf16> to vector<5x384xbf16>
    %c2_14 = arith.constant 2 : index
    %c0_15 = arith.constant 0 : index
    %c0_16 = arith.constant 0 : index
    %15 = vector.load %arg1[%c2_14, %c0_15, %c0_16] : memref<9x1x5xbf16, #tpu.memory_space<vmem>>, vector<1x1x5xbf16>
    %16 = vector.shape_cast %15 : vector<1x1x5xbf16> to vector<1x5xbf16>
    %cst_17 = arith.constant dense<0.000000e+00> : vector<1x384xf32>
    %17 = tpu.matmul %16, %14, %cst_17 {dimension_numbers = #tpu.dot_dimension_numbers<[1], [0], [0], [1], [0, 0, 1, 1], [], []>} : vector<1x5xbf16>, vector<5x384xbf16>, vector<1x384xf32> -> vector<1x384xf32>
    %18 = arith.addf %12, %17 : vector<1x384xf32>
    %c0_18 = arith.constant 0 : index
    %c0_19 = arith.constant 0 : index
    %c18 = arith.constant 18 : index
    %19 = vector.load %arg2[%c0_18, %c0_19, %c18] : memref<1x5x512xbf16, #tpu.memory_space<vmem>>, vector<1x5x384xbf16>
    %20 = vector.shape_cast %19 : vector<1x5x384xbf16> to vector<5x384xbf16>
    %c3 = arith.constant 3 : index
    %c0_20 = arith.constant 0 : index
    %c0_21 = arith.constant 0 : index
    %21 = vector.load %arg1[%c3, %c0_20, %c0_21] : memref<9x1x5xbf16, #tpu.memory_space<vmem>>, vector<1x1x5xbf16>
    %22 = vector.shape_cast %21 : vector<1x1x5xbf16> to vector<1x5xbf16>
    %cst_22 = arith.constant dense<0.000000e+00> : vector<1x384xf32>
    %23 = tpu.matmul %22, %20, %cst_22 {dimension_numbers = #tpu.dot_dimension_numbers<[1], [0], [0], [1], [0, 0, 1, 1], [], []>} : vector<1x5xbf16>, vector<5x384xbf16>, vector<1x384xf32> -> vector<1x384xf32>
    %24 = arith.addf %18, %23 : vector<1x384xf32>
    %c0_23 = arith.constant 0 : index
    %c0_24 = arith.constant 0 : index
    %c19 = arith.constant 19 : index
    %25 = vector.load %arg2[%c0_23, %c0_24, %c19] : memref<1x5x512xbf16, #tpu.memory_space<vmem>>, vector<1x5x384xbf16>
    %26 = vector.shape_cast %25 : vector<1x5x384xbf16> to vector<5x384xbf16>
    %c4 = arith.constant 4 : index
    %c0_25 = arith.constant 0 : index
    %c0_26 = arith.constant 0 : index
    %27 = vector.load %arg1[%c4, %c0_25, %c0_26] : memref<9x1x5xbf16, #tpu.memory_space<vmem>>, vector<1x1x5xbf16>
    %28 = vector.shape_cast %27 : vector<1x1x5xbf16> to vector<1x5xbf16>
    %cst_27 = arith.constant dense<0.000000e+00> : vector<1x384xf32>
    %29 = tpu.matmul %28, %26, %cst_27 {dimension_numbers = #tpu.dot_dimension_numbers<[1], [0], [0], [1], [0, 0, 1, 1], [], []>} : vector<1x5xbf16>, vector<5x384xbf16>, vector<1x384xf32> -> vector<1x384xf32>
    %30 = arith.addf %24, %29 : vector<1x384xf32>
    %c0_28 = arith.constant 0 : index
    %c0_29 = arith.constant 0 : index
    %c20 = arith.constant 20 : index
    %31 = vector.load %arg2[%c0_28, %c0_29, %c20] : memref<1x5x512xbf16, #tpu.memory_space<vmem>>, vector<1x5x384xbf16>
    %32 = vector.shape_cast %31 : vector<1x5x384xbf16> to vector<5x384xbf16>
    %c5 = arith.constant 5 : index
    %c0_30 = arith.constant 0 : index
    %c0_31 = arith.constant 0 : index
    %33 = vector.load %arg1[%c5, %c0_30, %c0_31] : memref<9x1x5xbf16, #tpu.memory_space<vmem>>, vector<1x1x5xbf16>
    %34 = vector.shape_cast %33 : vector<1x1x5xbf16> to vector<1x5xbf16>
    %cst_32 = arith.constant dense<0.000000e+00> : vector<1x384xf32>
    %35 = tpu.matmul %34, %32, %cst_32 {dimension_numbers = #tpu.dot_dimension_numbers<[1], [0], [0], [1], [0, 0, 1, 1], [], []>} : vector<1x5xbf16>, vector<5x384xbf16>, vector<1x384xf32> -> vector<1x384xf32>
    %36 = arith.addf %30, %35 : vector<1x384xf32>
    %c0_33 = arith.constant 0 : index
    %c0_34 = arith.constant 0 : index
    %c36 = arith.constant 36 : index
    %37 = vector.load %arg2[%c0_33, %c0_34, %c36] : memref<1x5x512xbf16, #tpu.memory_space<vmem>>, vector<1x5x384xbf16>
    %38 = vector.shape_cast %37 : vector<1x5x384xbf16> to vector<5x384xbf16>
    %c6 = arith.constant 6 : index
    %c0_35 = arith.constant 0 : index
    %c0_36 = arith.constant 0 : index
    %39 = vector.load %arg1[%c6, %c0_35, %c0_36] : memref<9x1x5xbf16, #tpu.memory_space<vmem>>, vector<1x1x5xbf16>
    %40 = vector.shape_cast %39 : vector<1x1x5xbf16> to vector<1x5xbf16>
    %cst_37 = arith.constant dense<0.000000e+00> : vector<1x384xf32>
    %41 = tpu.matmul %40, %38, %cst_37 {dimension_numbers = #tpu.dot_dimension_numbers<[1], [0], [0], [1], [0, 0, 1, 1], [], []>} : vector<1x5xbf16>, vector<5x384xbf16>, vector<1x384xf32> -> vector<1x384xf32>
    %42 = arith.addf %36, %41 : vector<1x384xf32>
    %c0_38 = arith.constant 0 : index
    %c0_39 = arith.constant 0 : index
    %c37 = arith.constant 37 : index
    %43 = vector.load %arg2[%c0_38, %c0_39, %c37] : memref<1x5x512xbf16, #tpu.memory_space<vmem>>, vector<1x5x384xbf16>
    %44 = vector.shape_cast %43 : vector<1x5x384xbf16> to vector<5x384xbf16>
    %c7 = arith.constant 7 : index
    %c0_40 = arith.constant 0 : index
    %c0_41 = arith.constant 0 : index
    %45 = vector.load %arg1[%c7, %c0_40, %c0_41] : memref<9x1x5xbf16, #tpu.memory_space<vmem>>, vector<1x1x5xbf16>
    %46 = vector.shape_cast %45 : vector<1x1x5xbf16> to vector<1x5xbf16>
    %cst_42 = arith.constant dense<0.000000e+00> : vector<1x384xf32>
    %47 = tpu.matmul %46, %44, %cst_42 {dimension_numbers = #tpu.dot_dimension_numbers<[1], [0], [0], [1], [0, 0, 1, 1], [], []>} : vector<1x5xbf16>, vector<5x384xbf16>, vector<1x384xf32> -> vector<1x384xf32>
    %48 = arith.addf %42, %47 : vector<1x384xf32>
    %c0_43 = arith.constant 0 : index
    %c0_44 = arith.constant 0 : index
    %c38 = arith.constant 38 : index
    %49 = vector.load %arg2[%c0_43, %c0_44, %c38] : memref<1x5x512xbf16, #tpu.memory_space<vmem>>, vector<1x5x384xbf16>
    %50 = vector.shape_cast %49 : vector<1x5x384xbf16> to vector<5x384xbf16>
    %c8 = arith.constant 8 : index
    %c0_45 = arith.constant 0 : index
    %c0_46 = arith.constant 0 : index
    %51 = vector.load %arg1[%c8, %c0_45, %c0_46] : memref<9x1x5xbf16, #tpu.memory_space<vmem>>, vector<1x1x5xbf16>
    %52 = vector.shape_cast %51 : vector<1x1x5xbf16> to vector<1x5xbf16>
    %cst_47 = arith.constant dense<0.000000e+00> : vector<1x384xf32>
    %53 = tpu.matmul %52, %50, %cst_47 {dimension_numbers = #tpu.dot_dimension_numbers<[1], [0], [0], [1], [0, 0, 1, 1], [], []>} : vector<1x5xbf16>, vector<5x384xbf16>, vector<1x384xf32> -> vector<1x384xf32>
    %54 = arith.addf %48, %53 : vector<1x384xf32>
    %c0_48 = arith.constant 0 : index
    %c0_49 = arith.constant 0 : index
    %c0_50 = arith.constant 0 : index
    %55 = vector.load %arg3[%c0_48, %c0_49, %c0_50] : memref<1x1x384xf32, #tpu.memory_space<vmem>>, vector<1x1x384xf32>
    %56 = vector.shape_cast %55 : vector<1x1x384xf32> to vector<1x384xf32>
    %57 = vector.shape_cast %54 : vector<1x384xf32> to vector<1x1x384xf32>
    tpu.vector_store %arg3[%c0_48, %c0_49, %c0_50], %57 {strides = array<i32>} : memref<1x1x384xf32, #tpu.memory_space<vmem>>, vector<1x1x384xf32>,
    return
  }
  func.func @transform_0(%arg0: i32) -> (i32, i32, i32) {
    %c0_i32 = arith.constant 0 : i32
    %c0_i32_0 = arith.constant 0 : i32
    %c0_i32_1 = arith.constant 0 : i32
    %c0_i32_2 = arith.constant 0 : i32
    return %c0_i32, %c0_i32_0, %c0_i32_1 : i32, i32, i32
  }
  func.func @transform_1(%arg0: i32) -> (i32, i32, i32) {
    %c0_i32 = arith.constant 0 : i32
    %c0_i32_0 = arith.constant 0 : i32
    %c0_i32_1 = arith.constant 0 : i32
    return %arg0, %c0_i32, %c0_i32_0 : i32, i32, i32
  }
  func.func @transform_2(%arg0: i32) -> (i32, i32, i32) {
    %c0_i32 = arith.constant 0 : i32
    %c0_i32_0 = arith.constant 0 : i32
    %c0_i32_1 = arith.constant 0 : i32
    return %arg0, %c0_i32, %c0_i32_0 : i32, i32, i32
  }
}

module attributes {stable_mosaic.version = 11 : i64} {
  func.func @_conv3x3_kernel(%arg0: i32, %arg1: memref<9x4x3xbf16, #tpu.memory_space<vmem>>, %arg2: memref<1x3x512xbf16, #tpu.memory_space<vmem>>, %arg3: memref<1x4x384xbf16, #tpu.memory_space<vmem>>) attributes {dimension_semantics = [#tpu.dimension_semantics<parallel>], iteration_bounds = array<i64: 2>, scalar_prefetch = 0 : i64, scratch_operands = 0 : i64, tpu.core_type = #tpu.core_type<tc>, window_params = [{pipeline_mode = #tpu.pipeline_mode<synchronous>, transform_indices = @transform_0, window_bounds = array<i64: 9, 4, 3>}, {transform_indices = @transform_1, window_bounds = array<i64: 1, 3, 512>}, {transform_indices = @transform_2, window_bounds = array<i64: 1, 4, 384>}]} {
    %cst = arith.constant 0.000000e+00 : f32
    %0 = vector.broadcast %cst : f32 to vector<4x384xf32>
    %c0 = arith.constant 0 : index
    %c0_0 = arith.constant 0 : index
    %c0_1 = arith.constant 0 : index
    %1 = vector.load %arg2[%c0, %c0_0, %c0_1] : memref<1x3x512xbf16, #tpu.memory_space<vmem>>, vector<1x3x384xbf16>
    %2 = vector.shape_cast %1 : vector<1x3x384xbf16> to vector<3x384xbf16>
    %c0_2 = arith.constant 0 : index
    %c0_3 = arith.constant 0 : index
    %c0_4 = arith.constant 0 : index
    %3 = vector.load %arg1[%c0_2, %c0_3, %c0_4] : memref<9x4x3xbf16, #tpu.memory_space<vmem>>, vector<1x4x3xbf16>
    %4 = vector.shape_cast %3 : vector<1x4x3xbf16> to vector<4x3xbf16>
    %cst_5 = arith.constant dense<0.000000e+00> : vector<4x384xf32>
    %5 = tpu.matmul %4, %2, %cst_5 {dimension_numbers = #tpu.dot_dimension_numbers<[1], [0], [0], [1], [0, 0, 1, 1], [], []>} : vector<4x3xbf16>, vector<3x384xbf16>, vector<4x384xf32> -> vector<4x384xf32>
    %6 = arith.addf %0, %5 : vector<4x384xf32>
    %c0_6 = arith.constant 0 : index
    %c0_7 = arith.constant 0 : index
    %c1 = arith.constant 1 : index
    %7 = vector.load %arg2[%c0_6, %c0_7, %c1] : memref<1x3x512xbf16, #tpu.memory_space<vmem>>, vector<1x3x384xbf16>
    %8 = vector.shape_cast %7 : vector<1x3x384xbf16> to vector<3x384xbf16>
    %c1_8 = arith.constant 1 : index
    %c0_9 = arith.constant 0 : index
    %c0_10 = arith.constant 0 : index
    %9 = vector.load %arg1[%c1_8, %c0_9, %c0_10] : memref<9x4x3xbf16, #tpu.memory_space<vmem>>, vector<1x4x3xbf16>
    %10 = vector.shape_cast %9 : vector<1x4x3xbf16> to vector<4x3xbf16>
    %cst_11 = arith.constant dense<0.000000e+00> : vector<4x384xf32>
    %11 = tpu.matmul %10, %8, %cst_11 {dimension_numbers = #tpu.dot_dimension_numbers<[1], [0], [0], [1], [0, 0, 1, 1], [], []>} : vector<4x3xbf16>, vector<3x384xbf16>, vector<4x384xf32> -> vector<4x384xf32>
    %12 = arith.addf %6, %11 : vector<4x384xf32>
    %c0_12 = arith.constant 0 : index
    %c0_13 = arith.constant 0 : index
    %c2 = arith.constant 2 : index
    %13 = vector.load %arg2[%c0_12, %c0_13, %c2] : memref<1x3x512xbf16, #tpu.memory_space<vmem>>, vector<1x3x384xbf16>
    %14 = vector.shape_cast %13 : vector<1x3x384xbf16> to vector<3x384xbf16>
    %c2_14 = arith.constant 2 : index
    %c0_15 = arith.constant 0 : index
    %c0_16 = arith.constant 0 : index
    %15 = vector.load %arg1[%c2_14, %c0_15, %c0_16] : memref<9x4x3xbf16, #tpu.memory_space<vmem>>, vector<1x4x3xbf16>
    %16 = vector.shape_cast %15 : vector<1x4x3xbf16> to vector<4x3xbf16>
    %cst_17 = arith.constant dense<0.000000e+00> : vector<4x384xf32>
    %17 = tpu.matmul %16, %14, %cst_17 {dimension_numbers = #tpu.dot_dimension_numbers<[1], [0], [0], [1], [0, 0, 1, 1], [], []>} : vector<4x3xbf16>, vector<3x384xbf16>, vector<4x384xf32> -> vector<4x384xf32>
    %18 = arith.addf %12, %17 : vector<4x384xf32>
    %c0_18 = arith.constant 0 : index
    %c0_19 = arith.constant 0 : index
    %c18 = arith.constant 18 : index
    %19 = vector.load %arg2[%c0_18, %c0_19, %c18] : memref<1x3x512xbf16, #tpu.memory_space<vmem>>, vector<1x3x384xbf16>
    %20 = vector.shape_cast %19 : vector<1x3x384xbf16> to vector<3x384xbf16>
    %c3 = arith.constant 3 : index
    %c0_20 = arith.constant 0 : index
    %c0_21 = arith.constant 0 : index
    %21 = vector.load %arg1[%c3, %c0_20, %c0_21] : memref<9x4x3xbf16, #tpu.memory_space<vmem>>, vector<1x4x3xbf16>
    %22 = vector.shape_cast %21 : vector<1x4x3xbf16> to vector<4x3xbf16>
    %cst_22 = arith.constant dense<0.000000e+00> : vector<4x384xf32>
    %23 = tpu.matmul %22, %20, %cst_22 {dimension_numbers = #tpu.dot_dimension_numbers<[1], [0], [0], [1], [0, 0, 1, 1], [], []>} : vector<4x3xbf16>, vector<3x384xbf16>, vector<4x384xf32> -> vector<4x384xf32>
    %24 = arith.addf %18, %23 : vector<4x384xf32>
    %c0_23 = arith.constant 0 : index
    %c0_24 = arith.constant 0 : index
    %c19 = arith.constant 19 : index
    %25 = vector.load %arg2[%c0_23, %c0_24, %c19] : memref<1x3x512xbf16, #tpu.memory_space<vmem>>, vector<1x3x384xbf16>
    %26 = vector.shape_cast %25 : vector<1x3x384xbf16> to vector<3x384xbf16>
    %c4 = arith.constant 4 : index
    %c0_25 = arith.constant 0 : index
    %c0_26 = arith.constant 0 : index
    %27 = vector.load %arg1[%c4, %c0_25, %c0_26] : memref<9x4x3xbf16, #tpu.memory_space<vmem>>, vector<1x4x3xbf16>
    %28 = vector.shape_cast %27 : vector<1x4x3xbf16> to vector<4x3xbf16>
    %cst_27 = arith.constant dense<0.000000e+00> : vector<4x384xf32>
    %29 = tpu.matmul %28, %26, %cst_27 {dimension_numbers = #tpu.dot_dimension_numbers<[1], [0], [0], [1], [0, 0, 1, 1], [], []>} : vector<4x3xbf16>, vector<3x384xbf16>, vector<4x384xf32> -> vector<4x384xf32>
    %30 = arith.addf %24, %29 : vector<4x384xf32>
    %c0_28 = arith.constant 0 : index
    %c0_29 = arith.constant 0 : index
    %c20 = arith.constant 20 : index
    %31 = vector.load %arg2[%c0_28, %c0_29, %c20] : memref<1x3x512xbf16, #tpu.memory_space<vmem>>, vector<1x3x384xbf16>
    %32 = vector.shape_cast %31 : vector<1x3x384xbf16> to vector<3x384xbf16>
    %c5 = arith.constant 5 : index
    %c0_30 = arith.constant 0 : index
    %c0_31 = arith.constant 0 : index
    %33 = vector.load %arg1[%c5, %c0_30, %c0_31] : memref<9x4x3xbf16, #tpu.memory_space<vmem>>, vector<1x4x3xbf16>
    %34 = vector.shape_cast %33 : vector<1x4x3xbf16> to vector<4x3xbf16>
    %cst_32 = arith.constant dense<0.000000e+00> : vector<4x384xf32>
    %35 = tpu.matmul %34, %32, %cst_32 {dimension_numbers = #tpu.dot_dimension_numbers<[1], [0], [0], [1], [0, 0, 1, 1], [], []>} : vector<4x3xbf16>, vector<3x384xbf16>, vector<4x384xf32> -> vector<4x384xf32>
    %36 = arith.addf %30, %35 : vector<4x384xf32>
    %c0_33 = arith.constant 0 : index
    %c0_34 = arith.constant 0 : index
    %c36 = arith.constant 36 : index
    %37 = vector.load %arg2[%c0_33, %c0_34, %c36] : memref<1x3x512xbf16, #tpu.memory_space<vmem>>, vector<1x3x384xbf16>
    %38 = vector.shape_cast %37 : vector<1x3x384xbf16> to vector<3x384xbf16>
    %c6 = arith.constant 6 : index
    %c0_35 = arith.constant 0 : index
    %c0_36 = arith.constant 0 : index
    %39 = vector.load %arg1[%c6, %c0_35, %c0_36] : memref<9x4x3xbf16, #tpu.memory_space<vmem>>, vector<1x4x3xbf16>
    %40 = vector.shape_cast %39 : vector<1x4x3xbf16> to vector<4x3xbf16>
    %cst_37 = arith.constant dense<0.000000e+00> : vector<4x384xf32>
    %41 = tpu.matmul %40, %38, %cst_37 {dimension_numbers = #tpu.dot_dimension_numbers<[1], [0], [0], [1], [0, 0, 1, 1], [], []>} : vector<4x3xbf16>, vector<3x384xbf16>, vector<4x384xf32> -> vector<4x384xf32>
    %42 = arith.addf %36, %41 : vector<4x384xf32>
    %c0_38 = arith.constant 0 : index
    %c0_39 = arith.constant 0 : index
    %c37 = arith.constant 37 : index
    %43 = vector.load %arg2[%c0_38, %c0_39, %c37] : memref<1x3x512xbf16, #tpu.memory_space<vmem>>, vector<1x3x384xbf16>
    %44 = vector.shape_cast %43 : vector<1x3x384xbf16> to vector<3x384xbf16>
    %c7 = arith.constant 7 : index
    %c0_40 = arith.constant 0 : index
    %c0_41 = arith.constant 0 : index
    %45 = vector.load %arg1[%c7, %c0_40, %c0_41] : memref<9x4x3xbf16, #tpu.memory_space<vmem>>, vector<1x4x3xbf16>
    %46 = vector.shape_cast %45 : vector<1x4x3xbf16> to vector<4x3xbf16>
    %cst_42 = arith.constant dense<0.000000e+00> : vector<4x384xf32>
    %47 = tpu.matmul %46, %44, %cst_42 {dimension_numbers = #tpu.dot_dimension_numbers<[1], [0], [0], [1], [0, 0, 1, 1], [], []>} : vector<4x3xbf16>, vector<3x384xbf16>, vector<4x384xf32> -> vector<4x384xf32>
    %48 = arith.addf %42, %47 : vector<4x384xf32>
    %c0_43 = arith.constant 0 : index
    %c0_44 = arith.constant 0 : index
    %c38 = arith.constant 38 : index
    %49 = vector.load %arg2[%c0_43, %c0_44, %c38] : memref<1x3x512xbf16, #tpu.memory_space<vmem>>, vector<1x3x384xbf16>
    %50 = vector.shape_cast %49 : vector<1x3x384xbf16> to vector<3x384xbf16>
    %c8 = arith.constant 8 : index
    %c0_45 = arith.constant 0 : index
    %c0_46 = arith.constant 0 : index
    %51 = vector.load %arg1[%c8, %c0_45, %c0_46] : memref<9x4x3xbf16, #tpu.memory_space<vmem>>, vector<1x4x3xbf16>
    %52 = vector.shape_cast %51 : vector<1x4x3xbf16> to vector<4x3xbf16>
    %cst_47 = arith.constant dense<0.000000e+00> : vector<4x384xf32>
    %53 = tpu.matmul %52, %50, %cst_47 {dimension_numbers = #tpu.dot_dimension_numbers<[1], [0], [0], [1], [0, 0, 1, 1], [], []>} : vector<4x3xbf16>, vector<3x384xbf16>, vector<4x384xf32> -> vector<4x384xf32>
    %54 = arith.addf %48, %53 : vector<4x384xf32>
    %cst_48 = arith.constant 0.000000e+00 : f32
    %55 = vector.broadcast %cst_48 : f32 to vector<4x384xf32>
    %56 = arith.maximumf %54, %55 : vector<4x384xf32>
    %57 = arith.truncf %56 : vector<4x384xf32> to vector<4x384xbf16>
    %c0_49 = arith.constant 0 : index
    %c0_50 = arith.constant 0 : index
    %c0_51 = arith.constant 0 : index
    %58 = vector.load %arg3[%c0_49, %c0_50, %c0_51] : memref<1x4x384xbf16, #tpu.memory_space<vmem>>, vector<1x4x384xbf16>
    %59 = vector.shape_cast %58 : vector<1x4x384xbf16> to vector<4x384xbf16>
    %60 = vector.shape_cast %57 : vector<4x384xbf16> to vector<1x4x384xbf16>
    tpu.vector_store %arg3[%c0_49, %c0_50, %c0_51], %60 {strides = array<i32>} : memref<1x4x384xbf16, #tpu.memory_space<vmem>>, vector<1x4x384xbf16>,
    return
  }
  func.func @transform_0(%arg0: i32) -> (i32, i32, i32) {
    %c0_i32 = arith.constant 0 : i32
    %c0_i32_0 = arith.constant 0 : i32
    %c0_i32_1 = arith.constant 0 : i32
    %c0_i32_2 = arith.constant 0 : i32
    return %c0_i32, %c0_i32_0, %c0_i32_1 : i32, i32, i32
  }
  func.func @transform_1(%arg0: i32) -> (i32, i32, i32) {
    %c0_i32 = arith.constant 0 : i32
    %c0_i32_0 = arith.constant 0 : i32
    %c0_i32_1 = arith.constant 0 : i32
    return %arg0, %c0_i32, %c0_i32_0 : i32, i32, i32
  }
  func.func @transform_2(%arg0: i32) -> (i32, i32, i32) {
    %c0_i32 = arith.constant 0 : i32
    %c0_i32_0 = arith.constant 0 : i32
    %c0_i32_1 = arith.constant 0 : i32
    return %arg0, %c0_i32, %c0_i32_0 : i32, i32, i32
  }
}

module attributes {stable_mosaic.version = 11 : i64} {
  func.func @_conv3x3_kernel(%arg0: i32, %arg1: memref<9x4x4xbf16, #tpu.memory_space<vmem>>, %arg2: memref<1x4x512xbf16, #tpu.memory_space<vmem>>, %arg3: memref<1x4x384xbf16, #tpu.memory_space<vmem>>) attributes {dimension_semantics = [#tpu.dimension_semantics<parallel>], iteration_bounds = array<i64: 2>, scalar_prefetch = 0 : i64, scratch_operands = 0 : i64, tpu.core_type = #tpu.core_type<tc>, window_params = [{pipeline_mode = #tpu.pipeline_mode<synchronous>, transform_indices = @transform_0, window_bounds = array<i64: 9, 4, 4>}, {transform_indices = @transform_1, window_bounds = array<i64: 1, 4, 512>}, {transform_indices = @transform_2, window_bounds = array<i64: 1, 4, 384>}]} {
    %cst = arith.constant 0.000000e+00 : f32
    %0 = vector.broadcast %cst : f32 to vector<4x384xf32>
    %c0 = arith.constant 0 : index
    %c0_0 = arith.constant 0 : index
    %c0_1 = arith.constant 0 : index
    %1 = vector.load %arg2[%c0, %c0_0, %c0_1] : memref<1x4x512xbf16, #tpu.memory_space<vmem>>, vector<1x4x384xbf16>
    %2 = vector.shape_cast %1 : vector<1x4x384xbf16> to vector<4x384xbf16>
    %c0_2 = arith.constant 0 : index
    %c0_3 = arith.constant 0 : index
    %c0_4 = arith.constant 0 : index
    %3 = vector.load %arg1[%c0_2, %c0_3, %c0_4] : memref<9x4x4xbf16, #tpu.memory_space<vmem>>, vector<1x4x4xbf16>
    %4 = vector.shape_cast %3 : vector<1x4x4xbf16> to vector<4x4xbf16>
    %cst_5 = arith.constant dense<0.000000e+00> : vector<4x384xf32>
    %5 = tpu.matmul %4, %2, %cst_5 {dimension_numbers = #tpu.dot_dimension_numbers<[1], [0], [0], [1], [0, 0, 1, 1], [], []>} : vector<4x4xbf16>, vector<4x384xbf16>, vector<4x384xf32> -> vector<4x384xf32>
    %6 = arith.addf %0, %5 : vector<4x384xf32>
    %c0_6 = arith.constant 0 : index
    %c0_7 = arith.constant 0 : index
    %c1 = arith.constant 1 : index
    %7 = vector.load %arg2[%c0_6, %c0_7, %c1] : memref<1x4x512xbf16, #tpu.memory_space<vmem>>, vector<1x4x384xbf16>
    %8 = vector.shape_cast %7 : vector<1x4x384xbf16> to vector<4x384xbf16>
    %c1_8 = arith.constant 1 : index
    %c0_9 = arith.constant 0 : index
    %c0_10 = arith.constant 0 : index
    %9 = vector.load %arg1[%c1_8, %c0_9, %c0_10] : memref<9x4x4xbf16, #tpu.memory_space<vmem>>, vector<1x4x4xbf16>
    %10 = vector.shape_cast %9 : vector<1x4x4xbf16> to vector<4x4xbf16>
    %cst_11 = arith.constant dense<0.000000e+00> : vector<4x384xf32>
    %11 = tpu.matmul %10, %8, %cst_11 {dimension_numbers = #tpu.dot_dimension_numbers<[1], [0], [0], [1], [0, 0, 1, 1], [], []>} : vector<4x4xbf16>, vector<4x384xbf16>, vector<4x384xf32> -> vector<4x384xf32>
    %12 = arith.addf %6, %11 : vector<4x384xf32>
    %c0_12 = arith.constant 0 : index
    %c0_13 = arith.constant 0 : index
    %c2 = arith.constant 2 : index
    %13 = vector.load %arg2[%c0_12, %c0_13, %c2] : memref<1x4x512xbf16, #tpu.memory_space<vmem>>, vector<1x4x384xbf16>
    %14 = vector.shape_cast %13 : vector<1x4x384xbf16> to vector<4x384xbf16>
    %c2_14 = arith.constant 2 : index
    %c0_15 = arith.constant 0 : index
    %c0_16 = arith.constant 0 : index
    %15 = vector.load %arg1[%c2_14, %c0_15, %c0_16] : memref<9x4x4xbf16, #tpu.memory_space<vmem>>, vector<1x4x4xbf16>
    %16 = vector.shape_cast %15 : vector<1x4x4xbf16> to vector<4x4xbf16>
    %cst_17 = arith.constant dense<0.000000e+00> : vector<4x384xf32>
    %17 = tpu.matmul %16, %14, %cst_17 {dimension_numbers = #tpu.dot_dimension_numbers<[1], [0], [0], [1], [0, 0, 1, 1], [], []>} : vector<4x4xbf16>, vector<4x384xbf16>, vector<4x384xf32> -> vector<4x384xf32>
    %18 = arith.addf %12, %17 : vector<4x384xf32>
    %c0_18 = arith.constant 0 : index
    %c0_19 = arith.constant 0 : index
    %c18 = arith.constant 18 : index
    %19 = vector.load %arg2[%c0_18, %c0_19, %c18] : memref<1x4x512xbf16, #tpu.memory_space<vmem>>, vector<1x4x384xbf16>
    %20 = vector.shape_cast %19 : vector<1x4x384xbf16> to vector<4x384xbf16>
    %c3 = arith.constant 3 : index
    %c0_20 = arith.constant 0 : index
    %c0_21 = arith.constant 0 : index
    %21 = vector.load %arg1[%c3, %c0_20, %c0_21] : memref<9x4x4xbf16, #tpu.memory_space<vmem>>, vector<1x4x4xbf16>
    %22 = vector.shape_cast %21 : vector<1x4x4xbf16> to vector<4x4xbf16>
    %cst_22 = arith.constant dense<0.000000e+00> : vector<4x384xf32>
    %23 = tpu.matmul %22, %20, %cst_22 {dimension_numbers = #tpu.dot_dimension_numbers<[1], [0], [0], [1], [0, 0, 1, 1], [], []>} : vector<4x4xbf16>, vector<4x384xbf16>, vector<4x384xf32> -> vector<4x384xf32>
    %24 = arith.addf %18, %23 : vector<4x384xf32>
    %c0_23 = arith.constant 0 : index
    %c0_24 = arith.constant 0 : index
    %c19 = arith.constant 19 : index
    %25 = vector.load %arg2[%c0_23, %c0_24, %c19] : memref<1x4x512xbf16, #tpu.memory_space<vmem>>, vector<1x4x384xbf16>
    %26 = vector.shape_cast %25 : vector<1x4x384xbf16> to vector<4x384xbf16>
    %c4 = arith.constant 4 : index
    %c0_25 = arith.constant 0 : index
    %c0_26 = arith.constant 0 : index
    %27 = vector.load %arg1[%c4, %c0_25, %c0_26] : memref<9x4x4xbf16, #tpu.memory_space<vmem>>, vector<1x4x4xbf16>
    %28 = vector.shape_cast %27 : vector<1x4x4xbf16> to vector<4x4xbf16>
    %cst_27 = arith.constant dense<0.000000e+00> : vector<4x384xf32>
    %29 = tpu.matmul %28, %26, %cst_27 {dimension_numbers = #tpu.dot_dimension_numbers<[1], [0], [0], [1], [0, 0, 1, 1], [], []>} : vector<4x4xbf16>, vector<4x384xbf16>, vector<4x384xf32> -> vector<4x384xf32>
    %30 = arith.addf %24, %29 : vector<4x384xf32>
    %c0_28 = arith.constant 0 : index
    %c0_29 = arith.constant 0 : index
    %c20 = arith.constant 20 : index
    %31 = vector.load %arg2[%c0_28, %c0_29, %c20] : memref<1x4x512xbf16, #tpu.memory_space<vmem>>, vector<1x4x384xbf16>
    %32 = vector.shape_cast %31 : vector<1x4x384xbf16> to vector<4x384xbf16>
    %c5 = arith.constant 5 : index
    %c0_30 = arith.constant 0 : index
    %c0_31 = arith.constant 0 : index
    %33 = vector.load %arg1[%c5, %c0_30, %c0_31] : memref<9x4x4xbf16, #tpu.memory_space<vmem>>, vector<1x4x4xbf16>
    %34 = vector.shape_cast %33 : vector<1x4x4xbf16> to vector<4x4xbf16>
    %cst_32 = arith.constant dense<0.000000e+00> : vector<4x384xf32>
    %35 = tpu.matmul %34, %32, %cst_32 {dimension_numbers = #tpu.dot_dimension_numbers<[1], [0], [0], [1], [0, 0, 1, 1], [], []>} : vector<4x4xbf16>, vector<4x384xbf16>, vector<4x384xf32> -> vector<4x384xf32>
    %36 = arith.addf %30, %35 : vector<4x384xf32>
    %c0_33 = arith.constant 0 : index
    %c0_34 = arith.constant 0 : index
    %c36 = arith.constant 36 : index
    %37 = vector.load %arg2[%c0_33, %c0_34, %c36] : memref<1x4x512xbf16, #tpu.memory_space<vmem>>, vector<1x4x384xbf16>
    %38 = vector.shape_cast %37 : vector<1x4x384xbf16> to vector<4x384xbf16>
    %c6 = arith.constant 6 : index
    %c0_35 = arith.constant 0 : index
    %c0_36 = arith.constant 0 : index
    %39 = vector.load %arg1[%c6, %c0_35, %c0_36] : memref<9x4x4xbf16, #tpu.memory_space<vmem>>, vector<1x4x4xbf16>
    %40 = vector.shape_cast %39 : vector<1x4x4xbf16> to vector<4x4xbf16>
    %cst_37 = arith.constant dense<0.000000e+00> : vector<4x384xf32>
    %41 = tpu.matmul %40, %38, %cst_37 {dimension_numbers = #tpu.dot_dimension_numbers<[1], [0], [0], [1], [0, 0, 1, 1], [], []>} : vector<4x4xbf16>, vector<4x384xbf16>, vector<4x384xf32> -> vector<4x384xf32>
    %42 = arith.addf %36, %41 : vector<4x384xf32>
    %c0_38 = arith.constant 0 : index
    %c0_39 = arith.constant 0 : index
    %c37 = arith.constant 37 : index
    %43 = vector.load %arg2[%c0_38, %c0_39, %c37] : memref<1x4x512xbf16, #tpu.memory_space<vmem>>, vector<1x4x384xbf16>
    %44 = vector.shape_cast %43 : vector<1x4x384xbf16> to vector<4x384xbf16>
    %c7 = arith.constant 7 : index
    %c0_40 = arith.constant 0 : index
    %c0_41 = arith.constant 0 : index
    %45 = vector.load %arg1[%c7, %c0_40, %c0_41] : memref<9x4x4xbf16, #tpu.memory_space<vmem>>, vector<1x4x4xbf16>
    %46 = vector.shape_cast %45 : vector<1x4x4xbf16> to vector<4x4xbf16>
    %cst_42 = arith.constant dense<0.000000e+00> : vector<4x384xf32>
    %47 = tpu.matmul %46, %44, %cst_42 {dimension_numbers = #tpu.dot_dimension_numbers<[1], [0], [0], [1], [0, 0, 1, 1], [], []>} : vector<4x4xbf16>, vector<4x384xbf16>, vector<4x384xf32> -> vector<4x384xf32>
    %48 = arith.addf %42, %47 : vector<4x384xf32>
    %c0_43 = arith.constant 0 : index
    %c0_44 = arith.constant 0 : index
    %c38 = arith.constant 38 : index
    %49 = vector.load %arg2[%c0_43, %c0_44, %c38] : memref<1x4x512xbf16, #tpu.memory_space<vmem>>, vector<1x4x384xbf16>
    %50 = vector.shape_cast %49 : vector<1x4x384xbf16> to vector<4x384xbf16>
    %c8 = arith.constant 8 : index
    %c0_45 = arith.constant 0 : index
    %c0_46 = arith.constant 0 : index
    %51 = vector.load %arg1[%c8, %c0_45, %c0_46] : memref<9x4x4xbf16, #tpu.memory_space<vmem>>, vector<1x4x4xbf16>
    %52 = vector.shape_cast %51 : vector<1x4x4xbf16> to vector<4x4xbf16>
    %cst_47 = arith.constant dense<0.000000e+00> : vector<4x384xf32>
    %53 = tpu.matmul %52, %50, %cst_47 {dimension_numbers = #tpu.dot_dimension_numbers<[1], [0], [0], [1], [0, 0, 1, 1], [], []>} : vector<4x4xbf16>, vector<4x384xbf16>, vector<4x384xf32> -> vector<4x384xf32>
    %54 = arith.addf %48, %53 : vector<4x384xf32>
    %cst_48 = arith.constant 0.000000e+00 : f32
    %55 = vector.broadcast %cst_48 : f32 to vector<4x384xf32>
    %56 = arith.maximumf %54, %55 : vector<4x384xf32>
    %57 = arith.truncf %56 : vector<4x384xf32> to vector<4x384xbf16>
    %c0_49 = arith.constant 0 : index
    %c0_50 = arith.constant 0 : index
    %c0_51 = arith.constant 0 : index
    %58 = vector.load %arg3[%c0_49, %c0_50, %c0_51] : memref<1x4x384xbf16, #tpu.memory_space<vmem>>, vector<1x4x384xbf16>
    %59 = vector.shape_cast %58 : vector<1x4x384xbf16> to vector<4x384xbf16>
    %60 = vector.shape_cast %57 : vector<4x384xbf16> to vector<1x4x384xbf16>
    tpu.vector_store %arg3[%c0_49, %c0_50, %c0_51], %60 {strides = array<i32>} : memref<1x4x384xbf16, #tpu.memory_space<vmem>>, vector<1x4x384xbf16>,
    return
  }
  func.func @transform_0(%arg0: i32) -> (i32, i32, i32) {
    %c0_i32 = arith.constant 0 : i32
    %c0_i32_0 = arith.constant 0 : i32
    %c0_i32_1 = arith.constant 0 : i32
    %c0_i32_2 = arith.constant 0 : i32
    return %c0_i32, %c0_i32_0, %c0_i32_1 : i32, i32, i32
  }
  func.func @transform_1(%arg0: i32) -> (i32, i32, i32) {
    %c0_i32 = arith.constant 0 : i32
    %c0_i32_0 = arith.constant 0 : i32
    %c0_i32_1 = arith.constant 0 : i32
    return %arg0, %c0_i32, %c0_i32_0 : i32, i32, i32
  }
  func.func @transform_2(%arg0: i32) -> (i32, i32, i32) {
    %c0_i32 = arith.constant 0 : i32
    %c0_i32_0 = arith.constant 0 : i32
    %c0_i32_1 = arith.constant 0 : i32
    return %arg0, %c0_i32, %c0_i32_0 : i32, i32, i32
  }
}

</mosaic_0001>

<llo_original>
// kernel: forward.18
$region0: #{forward.18}
  #allocation0 [shape = 'u32[]', space=smem, size = 0x4, offset = 0x4, fixed_abs, tag = 'smem constant byte address 0x4 - core index']
  #allocation1 [shape = 'u32[144,128]{1,0:T(1,128)}', space=vmem, size = 0x12000, scoped, tag = 'internal scratch']
  #allocation2 [shape = 'f32[1]{0:T(128)S(6)}', space=smem, size = 0x200, scoped, tag = 'scoped memory for forward.18']
  %s0 = inlined_call_operand.<no memory space> [shape: f32[1], index: 0, kind: input, shape index: {}]
  %s1 = inlined_call_operand.vmem [shape: f32[2,128], index: 1, kind: input, shape index: {}]
  %s2 = inlined_call_operand.vmem [shape: bf16[128,256], index: 2, kind: input, shape index: {}]
  %s3 = inlined_call_operand.vmem [shape: f32[2,256], index: 3, kind: input, shape index: {}]
  %s4 = inlined_call_operand.vmem [shape: f32[2,256], index: 4, kind: output, shape index: {}]
  %s5 = sld [smem:[#allocation0]]
  $region34: #{forward.18} parent=0
    _
  %s7 = ssub.s32 1, %s5
  %s8 = scalar_select 0, %s7, %s5
  %9 = sst [smem:[#allocation2]] %s0
  // Predicated region
  $region2: #{forward.18} parent=0 // pred_check
    _
  $region3: #{forward.18} parent=0 // pred_check_branch
    %11 = sbr.rel (0) target = $region5
  $region4: #{forward.18} parent=0 // pred_region
    _
  $region5: #{forward.18} parent=0 // pred_fallthru
    _
  // Predicated region
  $region6: #{forward.18} parent=0 // pred_check
    _
  $region7: #{forward.18} parent=0 // pred_check_branch
    %13 = sbr.rel (0) target = $region9
  $region8: #{forward.18} parent=0 // pred_region
    _
  $region9: #{forward.18} parent=0 // pred_fallthru
    _
  // Predicated region
  $region10: #{forward.18} parent=0 // pred_check
    _
  $region11: #{forward.18} parent=0 // pred_check_branch
    %15 = sbr.rel (0) target = $region13
  $region12: #{forward.18} parent=0 // pred_region
    _
  $region13: #{forward.18} parent=0 // pred_fallthru
    _
  // Predicated region
  $region14: #{forward.18} parent=0 // pred_check
    _
  $region15: #{forward.18} parent=0 // pred_check_branch
    %17 = sbr.rel (0) target = $region17
  $region16: #{forward.18} parent=0 // pred_region
    _
  $region17: #{forward.18} parent=0 // pred_fallthru
    _
  %p19 = scmp.eq.s32.totalorder 0, 0
  // Predicated region
  $region18: #{forward.18} parent=0 // pred_check
    %p20 = pneg %p19
  $region19: #{forward.18} parent=0 // pred_check_branch
    %22 = sbr.rel (%p20) target = $region21
  $region20: #{forward.18} parent=0 // pred_region
    %23 = vst [vmem:[%s4] sm:$0xf] 0.0
  $region21: #{forward.18} parent=0 // pred_fallthru
    _
  %v24 = vld [vmem:[%s4] sm:$0xf]
  %v25 = vld [vmem:[%s1] sm:$0x3]
  %v26 = vpack.c.bf16 %v25, %v25
  %v27 = vld [vmem:[%s2] sm:$0xff]
  %v28 = vld [vmem:[%s2 + $0x8] sm:$0xff]
  %v29 = vld [vmem:[%s2 + $0x10] sm:$0xff]
  %v30 = vld [vmem:[%s2 + $0x18] sm:$0xff]
  %v31 = vld [vmem:[%s2 + $0x20] sm:$0xff]
  %v32 = vld [vmem:[%s2 + $0x28] sm:$0xff]
  %v33 = vld [vmem:[%s2 + $0x30] sm:$0xff]
  %v34 = vld [vmem:[%s2 + $0x38] sm:$0xff]
  %v35 = vld [vmem:[%s2 + $0x40] sm:$0xff]
  %v36 = vld [vmem:[%s2 + $0x48] sm:$0xff]
  %v37 = vld [vmem:[%s2 + $0x50] sm:$0xff]
  %v38 = vld [vmem:[%s2 + $0x58] sm:$0xff]
  %v39 = vld [vmem:[%s2 + $0x60] sm:$0xff]
  %v40 = vld [vmem:[%s2 + $0x68] sm:$0xff]
  %v41 = vld [vmem:[%s2 + $0x70] sm:$0xff]
  %v42 = vld [vmem:[%s2 + $0x78] sm:$0xff]
  %v59 = vunpack.c.l.b16 %v27
  %v60 = vunpack.c.h.b16 %v27
  %v61 = vunpack.c.l.b16 %v28
  %v62 = vunpack.c.h.b16 %v28
  %v63 = vunpack.c.l.b16 %v29
  %v64 = vunpack.c.h.b16 %v29
  %v65 = vunpack.c.l.b16 %v30
  %v66 = vunpack.c.h.b16 %v30
  %v67 = vunpack.c.l.b16 %v31
  %v68 = vunpack.c.h.b16 %v31
  %v69 = vunpack.c.l.b16 %v32
  %v70 = vunpack.c.h.b16 %v32
  %v71 = vunpack.c.l.b16 %v33
  %v72 = vunpack.c.h.b16 %v33
  %v73 = vunpack.c.l.b16 %v34
  %v74 = vunpack.c.h.b16 %v34
  %v75 = vunpack.c.l.b16 %v35
  %v76 = vunpack.c.h.b16 %v35
  %v77 = vunpack.c.l.b16 %v36
  %v78 = vunpack.c.h.b16 %v36
  %v79 = vunpack.c.l.b16 %v37
  %v80 = vunpack.c.h.b16 %v37
  %v81 = vunpack.c.l.b16 %v38
  %v82 = vunpack.c.h.b16 %v38
  %v83 = vunpack.c.l.b16 %v39
  %v84 = vunpack.c.h.b16 %v39
  %v85 = vunpack.c.l.b16 %v40
  %v86 = vunpack.c.h.b16 %v40
  %v87 = vunpack.c.l.b16 %v41
  %v88 = vunpack.c.h.b16 %v41
  %v89 = vunpack.c.l.b16 %v42
  %v90 = vunpack.c.h.b16 %v42
  %v91 = vpack.c.b16 %v61, %v59
  %v92 = vpack.c.b16 %v62, %v60
  %v93 = vpack.c.b16 %v65, %v63
  %v94 = vpack.c.b16 %v66, %v64
  %v95 = vpack.c.b16 %v69, %v67
  %v96 = vpack.c.b16 %v70, %v68
  %v97 = vpack.c.b16 %v73, %v71
  %v98 = vpack.c.b16 %v74, %v72
  %v99 = vpack.c.b16 %v77, %v75
  %v100 = vpack.c.b16 %v78, %v76
  %v101 = vpack.c.b16 %v81, %v79
  %v102 = vpack.c.b16 %v82, %v80
  %v103 = vpack.c.b16 %v85, %v83
  %v104 = vpack.c.b16 %v86, %v84
  %v105 = vpack.c.b16 %v89, %v87
  %v106 = vpack.c.b16 %v90, %v88
  %123 = vmatprep.subr.bf16.mxu0 %v106
  %124 = vmatpush1.bf16.msra.mxu0 %v105
  %125 = vmatprep.subr.bf16.mxu0 %v104
  %126 = vmatpush1.bf16.msra.mxu0 %v103
  %127 = vmatprep.subr.bf16.mxu0 %v102
  %128 = vmatpush1.bf16.msra.mxu0 %v101
  %129 = vmatprep.subr.bf16.mxu0 %v100
  %130 = vmatpush1.bf16.msra.mxu0 %v99
  %131 = vmatprep.subr.bf16.mxu0 %v98
  %132 = vmatpush1.bf16.msra.mxu0 %v97
  %133 = vmatprep.subr.bf16.mxu0 %v96
  %134 = vmatpush1.bf16.msra.mxu0 %v95
  %135 = vmatprep.subr.bf16.mxu0 %v94
  %136 = vmatpush1.bf16.msra.mxu0 %v93
  %137 = vmatprep.subr.bf16.mxu0 %v92
  %138 = vmatpush1.bf16.msra.mxu0 %v91
  %139 = vmatprep.subr.bf16.mxu0 0
  %140 = vmatpush2.bf16.msra.mxu0 0
  %141 = vmatprep.subr.bf16.mxu0 0
  %142 = vmatpush2.bf16.msra.mxu0 0
  %143 = vmatprep.subr.bf16.mxu0 0
  %144 = vmatpush2.bf16.msra.mxu0 0
  %145 = vmatprep.subr.bf16.mxu0 0
  %146 = vmatpush2.bf16.msra.mxu0 0
  %147 = vmatprep.subr.bf16.mxu0 0
  %148 = vmatpush2.bf16.msra.mxu0 0
  %149 = vmatprep.subr.bf16.mxu0 0
  %150 = vmatpush2.bf16.msra.mxu0 0
  %151 = vmatprep.subr.bf16.mxu0 0
  %152 = vmatpush2.bf16.msra.mxu0 0
  %153 = vmatprep.subr.bf16.mxu0 0
  %154 = vmatpush2.bf16.msra.mxu0 0
  %155 = vmatprep.mubr.bf16.mxu0 0
  %156 = vmatmul.mubr.bf16.gmra.mxu0 %v26
  %v157 = vpop.f32.mrf.mxu0
  %v158 = vadd.f32 0.0, %v157
  %v159 = vpop.f32.mrf.mxu0
  %v160 = vadd.f32 0.0, %v159
  %v161 = vpop.f32.mrf.mxu0
  %v162 = vpop.f32.mrf.mxu0
  %163 = vdwg.mxu0
  %v166 = vcombine.low %v158, %v160
  %v168 = vunpack.c.l.s4 1983009808
  %v169 = vunpack.c.0.s8 %v168
  %v170 = vlaneseq
  %v171 = vshrl.u32 %v170, 7
  %v172 = vsub.s32 %v169, %v171
  %v173 = vrot.slane %v166, %v172
  %v175 = vadd.f32 %v24, %v173
  %176 = vst [vmem:[%s4] sm:$0xf] %v175
  // Predicated region
  $region22: #{forward.18} parent=0 // pred_check
    %p177 = pneg %p19
  $region23: #{forward.18} parent=0 // pred_check_branch
    %179 = sbr.rel (%p177) target = $region25
  $region24: #{forward.18} parent=0 // pred_region
    %v180 = vld [vmem:[%s3] sm:$0xf]
    %s181 = sld [smem:[#allocation2]]
    %v182 = vld [vmem:[%s4] sm:$0xf]
    %v183 = vstv %s181
    %v184 = vmul.f32 %v183, %v182
    %v185 = vadd.f32 %v180, %v184
    %186 = vst [vmem:[%s4] sm:$0xf] %v185
  $region25: #{forward.18} parent=0 // pred_fallthru
    _
  // Predicated region
  $region26: #{forward.18} parent=0 // pred_check
    _
  $region27: #{forward.18} parent=0 // pred_check_branch
    %188 = sbr.rel (0) target = $region29
  $region28: #{forward.18} parent=0 // pred_region
    _
  $region29: #{forward.18} parent=0 // pred_fallthru
    _
  // Predicated region
  $region30: #{forward.18} parent=0 // pred_check
    _
  $region31: #{forward.18} parent=0 // pred_check_branch
    %190 = sbr.rel (0) target = $region33
  $region32: #{forward.18} parent=0 // pred_region
    _
  $region33: #{forward.18} parent=0 // pred_fallthru
    _

// kernel: forward.17
$region0: #{forward.17}
  #allocation0 [shape = 'u32[]', space=smem, size = 0x4, offset = 0x4, fixed_abs, tag = 'smem constant byte address 0x4 - core index']
  #allocation1 [shape = 'u32[144,128]{1,0:T(1,128)}', space=vmem, size = 0x12000, scoped, tag = 'internal scratch']
  %s0 = inlined_call_operand.vmem [shape: f32[2,256], index: 0, kind: input, shape index: {}]
  %s1 = inlined_call_operand.vmem [shape: bf16[256,128], index: 1, kind: input, shape index: {}]
  %s2 = inlined_call_operand.vmem [shape: f32[2,128], index: 2, kind: input, shape index: {}]
  %s3 = inlined_call_operand.vmem [shape: f32[2,128], index: 3, kind: output, shape index: {}]
  %s4 = sld [smem:[#allocation0]]
  $region26: #{forward.17} parent=0
    _
  %s6 = ssub.s32 1, %s4
  %s7 = scalar_select 0, %s6, %s4
  // Predicated region
  $region2: #{forward.17} parent=0 // pred_check
    _
  $region3: #{forward.17} parent=0 // pred_check_branch
    %9 = sbr.rel (0) target = $region5
  $region4: #{forward.17} parent=0 // pred_region
    _
  $region5: #{forward.17} parent=0 // pred_fallthru
    _
  // Predicated region
  $region6: #{forward.17} parent=0 // pred_check
    _
  $region7: #{forward.17} parent=0 // pred_check_branch
    %11 = sbr.rel (0) target = $region9
  $region8: #{forward.17} parent=0 // pred_region
    _
  $region9: #{forward.17} parent=0 // pred_fallthru
    _
  // Predicated region
  $region10: #{forward.17} parent=0 // pred_check
    _
  $region11: #{forward.17} parent=0 // pred_check_branch
    %13 = sbr.rel (0) target = $region13
  $region12: #{forward.17} parent=0 // pred_region
    _
  $region13: #{forward.17} parent=0 // pred_fallthru
    _
  %p15 = scmp.eq.s32.totalorder 0, 0
  // Predicated region
  $region14: #{forward.17} parent=0 // pred_check
    %p16 = pneg %p15
  $region15: #{forward.17} parent=0 // pred_check_branch
    %18 = sbr.rel (%p16) target = $region17
  $region16: #{forward.17} parent=0 // pred_region
    %v19 = vld [vmem:[%s2] sm:$0x3]
    %v20 = vsub.f32 0.0, %v19
    %21 = vst [vmem:[%s3] sm:$0x3] %v20
  $region17: #{forward.17} parent=0 // pred_fallthru
    _
  %v22 = vld [vmem:[%s3] sm:$0x3]
  %v23 = vld [vmem:[%s0] sm:$0xf]
  %v26 = vunpack.c.l.s4 1983009808
  %v27 = vunpack.c.0.s8 %v26
  %v28 = vlaneseq
  %v29 = vshrl.u32 %v28, 7
  %v30 = vsub.s32 %v27, %v29
  %v31 = vrot.slane %v23, %v30
  %v32 = vcombine.high %v31, %v31
  %v35 = vpack.c.bf16 %v31, %v31
  %v36 = vpack.c.bf16 %v32, %v32
  %v37 = vld [vmem:[%s1] sm:$0xf]
  %v38 = vld [vmem:[%s1 + $0x4] sm:$0xf]
  %v39 = vld [vmem:[%s1 + $0x8] sm:$0xf]
  %v40 = vld [vmem:[%s1 + $0xc] sm:$0xf]
  %v41 = vld [vmem:[%s1 + $0x10] sm:$0xf]
  %v42 = vld [vmem:[%s1 + $0x14] sm:$0xf]
  %v43 = vld [vmem:[%s1 + $0x18] sm:$0xf]
  %v44 = vld [vmem:[%s1 + $0x1c] sm:$0xf]
  %v45 = vld [vmem:[%s1 + $0x20] sm:$0xf]
  %v46 = vld [vmem:[%s1 + $0x24] sm:$0xf]
  %v47 = vld [vmem:[%s1 + $0x28] sm:$0xf]
  %v48 = vld [vmem:[%s1 + $0x2c] sm:$0xf]
  %v49 = vld [vmem:[%s1 + $0x30] sm:$0xf]
  %v50 = vld [vmem:[%s1 + $0x34] sm:$0xf]
  %v51 = vld [vmem:[%s1 + $0x38] sm:$0xf]
  %v52 = vld [vmem:[%s1 + $0x3c] sm:$0xf]
  %v53 = vld [vmem:[%s1 + $0x40] sm:$0xf]
  %v54 = vld [vmem:[%s1 + $0x44] sm:$0xf]
  %v55 = vld [vmem:[%s1 + $0x48] sm:$0xf]
  %v56 = vld [vmem:[%s1 + $0x4c] sm:$0xf]
  %v57 = vld [vmem:[%s1 + $0x50] sm:$0xf]
  %v58 = vld [vmem:[%s1 + $0x54] sm:$0xf]
  %v59 = vld [vmem:[%s1 + $0x58] sm:$0xf]
  %v60 = vld [vmem:[%s1 + $0x5c] sm:$0xf]
  %v61 = vld [vmem:[%s1 + $0x60] sm:$0xf]
  %v62 = vld [vmem:[%s1 + $0x64] sm:$0xf]
  %v63 = vld [vmem:[%s1 + $0x68] sm:$0xf]
  %v64 = vld [vmem:[%s1 + $0x6c] sm:$0xf]
  %v65 = vld [vmem:[%s1 + $0x70] sm:$0xf]
  %v66 = vld [vmem:[%s1 + $0x74] sm:$0xf]
  %v67 = vld [vmem:[%s1 + $0x78] sm:$0xf]
  %v68 = vld [vmem:[%s1 + $0x7c] sm:$0xf]
  %v101 = vunpack.c.l.b16 %v37
  %v102 = vunpack.c.l.b16 %v38
  %v103 = vunpack.c.l.b16 %v39
  %v104 = vunpack.c.l.b16 %v40
  %v105 = vunpack.c.l.b16 %v41
  %v106 = vunpack.c.l.b16 %v42
  %v107 = vunpack.c.l.b16 %v43
  %v108 = vunpack.c.l.b16 %v44
  %v109 = vunpack.c.l.b16 %v45
  %v110 = vunpack.c.l.b16 %v46
  %v111 = vunpack.c.l.b16 %v47
  %v112 = vunpack.c.l.b16 %v48
  %v113 = vunpack.c.l.b16 %v49
  %v114 = vunpack.c.l.b16 %v50
  %v115 = vunpack.c.l.b16 %v51
  %v116 = vunpack.c.l.b16 %v52
  %v117 = vunpack.c.l.b16 %v53
  %v118 = vunpack.c.l.b16 %v54
  %v119 = vunpack.c.l.b16 %v55
  %v120 = vunpack.c.l.b16 %v56
  %v121 = vunpack.c.l.b16 %v57
  %v122 = vunpack.c.l.b16 %v58
  %v123 = vunpack.c.l.b16 %v59
  %v124 = vunpack.c.l.b16 %v60
  %v125 = vunpack.c.l.b16 %v61
  %v126 = vunpack.c.l.b16 %v62
  %v127 = vunpack.c.l.b16 %v63
  %v128 = vunpack.c.l.b16 %v64
  %v129 = vunpack.c.l.b16 %v65
  %v130 = vunpack.c.l.b16 %v66
  %v131 = vunpack.c.l.b16 %v67
  %v132 = vunpack.c.l.b16 %v68
  %v133 = vpack.c.b16 %v102, %v101
  %v134 = vpack.c.b16 %v104, %v103
  %v135 = vpack.c.b16 %v106, %v105
  %v136 = vpack.c.b16 %v108, %v107
  %v137 = vpack.c.b16 %v110, %v109
  %v138 = vpack.c.b16 %v112, %v111
  %v139 = vpack.c.b16 %v114, %v113
  %v140 = vpack.c.b16 %v116, %v115
  %v141 = vpack.c.b16 %v118, %v117
  %v142 = vpack.c.b16 %v120, %v119
  %v143 = vpack.c.b16 %v122, %v121
  %v144 = vpack.c.b16 %v124, %v123
  %v145 = vpack.c.b16 %v126, %v125
  %v146 = vpack.c.b16 %v128, %v127
  %v147 = vpack.c.b16 %v130, %v129
  %v148 = vpack.c.b16 %v132, %v131
  %165 = vmatprep.subr.bf16.mxu0 0
  %166 = vmatpush1.bf16.msra.mxu0 %v140
  %167 = vmatprep.subr.bf16.mxu0 0
  %168 = vmatpush1.bf16.msra.mxu0 %v139
  %169 = vmatprep.subr.bf16.mxu0 0
  %170 = vmatpush1.bf16.msra.mxu0 %v138
  %171 = vmatprep.subr.bf16.mxu0 0
  %172 = vmatpush1.bf16.msra.mxu0 %v137
  %173 = vmatprep.subr.bf16.mxu0 0
  %174 = vmatpush1.bf16.msra.mxu0 %v136
  %175 = vmatprep.subr.bf16.mxu0 0
  %176 = vmatpush1.bf16.msra.mxu0 %v135
  %177 = vmatprep.subr.bf16.mxu0 0
  %178 = vmatpush1.bf16.msra.mxu0 %v134
  %179 = vmatprep.subr.bf16.mxu0 0
  %180 = vmatpush1.bf16.msra.mxu0 %v133
  %181 = vmatprep.subr.bf16.mxu0 0
  %182 = vmatpush2.bf16.msra.mxu0 %v148
  %183 = vmatprep.subr.bf16.mxu0 0
  %184 = vmatpush2.bf16.msra.mxu0 %v147
  %185 = vmatprep.subr.bf16.mxu0 0
  %186 = vmatpush2.bf16.msra.mxu0 %v146
  %187 = vmatprep.subr.bf16.mxu0 0
  %188 = vmatpush2.bf16.msra.mxu0 %v145
  %189 = vmatprep.subr.bf16.mxu0 0
  %190 = vmatpush2.bf16.msra.mxu0 %v144
  %191 = vmatprep.subr.bf16.mxu0 0
  %192 = vmatpush2.bf16.msra.mxu0 %v143
  %193 = vmatprep.subr.bf16.mxu0 0
  %194 = vmatpush2.bf16.msra.mxu0 %v142
  %195 = vmatprep.subr.bf16.mxu0 0
  %196 = vmatpush2.bf16.msra.mxu0 %v141
  %197 = vmatprep.mubr.bf16.mxu0 %v36
  %198 = vmatmul.mubr.bf16.gmra.mxu0 %v35
  %v199 = vpop.f32.mrf.mxu0
  %v200 = vadd.f32 0.0, %v199
  %v201 = vpop.f32.mrf.mxu0
  %v202 = vpop.f32.mrf.mxu0
  %v203 = vpop.f32.mrf.mxu0
  %204 = vdwg.mxu0
  %v205 = vadd.f32 %v22, %v200
  %206 = vst [vmem:[%s3] sm:$0x3] %v205
  // Predicated region
  $region18: #{forward.17} parent=0 // pred_check
    _
  $region19: #{forward.17} parent=0 // pred_check_branch
    %208 = sbr.rel (0) target = $region21
  $region20: #{forward.17} parent=0 // pred_region
    _
  $region21: #{forward.17} parent=0 // pred_fallthru
    _
  // Predicated region
  $region22: #{forward.17} parent=0 // pred_check
    _
  $region23: #{forward.17} parent=0 // pred_check_branch
    %210 = sbr.rel (0) target = $region25
  $region24: #{forward.17} parent=0 // pred_region
    _
  $region25: #{forward.17} parent=0 // pred_fallthru
    _

// kernel: forward.16
$region0: #{forward.16}
  #allocation0 [shape = 'u32[]', space=smem, size = 0x4, offset = 0x4, fixed_abs, tag = 'smem constant byte address 0x4 - core index']
  #allocation1 [shape = 'u32[144,128]{1,0:T(1,128)}', space=vmem, size = 0x12000, scoped, tag = 'internal scratch']
  %s0 = inlined_call_operand.vmem [shape: f32[2,128], index: 0, kind: input, shape index: {}]
  %s1 = inlined_call_operand.hbm [shape: bf16[128,256], index: 1, kind: input, shape index: {}]
  %s2 = inlined_call_operand.vmem [shape: f32[2,256], index: 2, kind: output, shape index: {}]
  %s3 = sld [smem:[#allocation0]]
  $region26: #{forward.16} parent=0
    _
  %s5 = ssub.s32 1, %s3
  %s6 = scalar_select 0, %s5, %s3
  $region1: #{forward.16} parent=0
    #allocation2 [shape = 'u8[65536]{0}', space=vmem, size = 0x10000, scoped, tag = 'input window, operand 1, single buffered']
    #allocation3 [shape = 's32[1]{0}', space=sflag, size = 0x4, scoped, tag = 'scoped memory for forward.16']
    %7 = vsyncpa [#allocation3], 0
    // Predicated region
    $region2: #{forward.16} parent=1 // pred_check
      _
    $region3: #{forward.16} parent=1 // pred_check_branch
      %9 = sbr.rel (0) target = $region5
    $region4: #{forward.16} parent=1 // pred_region
      _
    $region5: #{forward.16} parent=1 // pred_fallthru
      _
    // Predicated region
    $region6: #{forward.16} parent=1 // pred_check
      _
    $region7: #{forward.16} parent=1 // pred_check_branch
      %11 = sbr.rel (0) target = $region9
    $region8: #{forward.16} parent=1 // pred_region
      %s13 = ssub.s32 2048, 2048
      %14 = vsyncadd [#allocation3], %s13
      %s15 = sshll.u32 [#allocation2], 4
      %s16 = int_to_ptr.vmem [resolvable:$true] %s15
      %21 = dma.hbm_to_vmem [thread:$0]  %s1, 2048, %s16, [#allocation3], 128, 128, 8
    $region9: #{forward.16} parent=1 // pred_fallthru
      _
    // Predicated region
    $region10: #{forward.16} parent=1 // pred_check
      _
    $region11: #{forward.16} parent=1 // pred_check_branch
      %23 = sbr.rel (0) target = $region13
    $region12: #{forward.16} parent=1 // pred_region
      %24 = dma.done [#allocation3], 2048
    $region13: #{forward.16} parent=1 // pred_fallthru
      _
    %p26 = scmp.eq.s32.totalorder 0, 0
    // Predicated region
    $region14: #{forward.16} parent=1 // pred_check
      %p27 = pneg %p26
    $region15: #{forward.16} parent=1 // pred_check_branch
      %29 = sbr.rel (%p27) target = $region17
    $region16: #{forward.16} parent=1 // pred_region
      %30 = vst [vmem:[%s2] sm:$0xf] 0.0
    $region17: #{forward.16} parent=1 // pred_fallthru
      _
    %v31 = vld [vmem:[%s2] sm:$0xf]
    %v32 = vld [vmem:[%s0] sm:$0x3]
    %v33 = vpack.c.bf16 %v32, %v32
    %v34 = vld [vmem:[#allocation2] sm:$0xff]
    %v35 = vld [vmem:[#allocation2 + $0x8] sm:$0xff]
    %v36 = vld [vmem:[#allocation2 + $0x10] sm:$0xff]
    %v37 = vld [vmem:[#allocation2 + $0x18] sm:$0xff]
    %v38 = vld [vmem:[#allocation2 + $0x20] sm:$0xff]
    %v39 = vld [vmem:[#allocation2 + $0x28] sm:$0xff]
    %v40 = vld [vmem:[#allocation2 + $0x30] sm:$0xff]
    %v41 = vld [vmem:[#allocation2 + $0x38] sm:$0xff]
    %v42 = vld [vmem:[#allocation2 + $0x40] sm:$0xff]
    %v43 = vld [vmem:[#allocation2 + $0x48] sm:$0xff]
    %v44 = vld [vmem:[#allocation2 + $0x50] sm:$0xff]
    %v45 = vld [vmem:[#allocation2 + $0x58] sm:$0xff]
    %v46 = vld [vmem:[#allocation2 + $0x60] sm:$0xff]
    %v47 = vld [vmem:[#allocation2 + $0x68] sm:$0xff]
    %v48 = vld [vmem:[#allocation2 + $0x70] sm:$0xff]
    %v49 = vld [vmem:[#allocation2 + $0x78] sm:$0xff]
    %v66 = vunpack.c.l.b16 %v34
    %v67 = vunpack.c.h.b16 %v34
    %v68 = vunpack.c.l.b16 %v35
    %v69 = vunpack.c.h.b16 %v35
    %v70 = vunpack.c.l.b16 %v36
    %v71 = vunpack.c.h.b16 %v36
    %v72 = vunpack.c.l.b16 %v37
    %v73 = vunpack.c.h.b16 %v37
    %v74 = vunpack.c.l.b16 %v38
    %v75 = vunpack.c.h.b16 %v38
    %v76 = vunpack.c.l.b16 %v39
    %v77 = vunpack.c.h.b16 %v39
    %v78 = vunpack.c.l.b16 %v40
    %v79 = vunpack.c.h.b16 %v40
    %v80 = vunpack.c.l.b16 %v41
    %v81 = vunpack.c.h.b16 %v41
    %v82 = vunpack.c.l.b16 %v42
    %v83 = vunpack.c.h.b16 %v42
    %v84 = vunpack.c.l.b16 %v43
    %v85 = vunpack.c.h.b16 %v43
    %v86 = vunpack.c.l.b16 %v44
    %v87 = vunpack.c.h.b16 %v44
    %v88 = vunpack.c.l.b16 %v45
    %v89 = vunpack.c.h.b16 %v45
    %v90 = vunpack.c.l.b16 %v46
    %v91 = vunpack.c.h.b16 %v46
    %v92 = vunpack.c.l.b16 %v47
    %v93 = vunpack.c.h.b16 %v47
    %v94 = vunpack.c.l.b16 %v48
    %v95 = vunpack.c.h.b16 %v48
    %v96 = vunpack.c.l.b16 %v49
    %v97 = vunpack.c.h.b16 %v49
    %v98 = vpack.c.b16 %v68, %v66
    %v99 = vpack.c.b16 %v69, %v67
    %v100 = vpack.c.b16 %v72, %v70
    %v101 = vpack.c.b16 %v73, %v71
    %v102 = vpack.c.b16 %v76, %v74
    %v103 = vpack.c.b16 %v77, %v75
    %v104 = vpack.c.b16 %v80, %v78
    %v105 = vpack.c.b16 %v81, %v79
    %v106 = vpack.c.b16 %v84, %v82
    %v107 = vpack.c.b16 %v85, %v83
    %v108 = vpack.c.b16 %v88, %v86
    %v109 = vpack.c.b16 %v89, %v87
    %v110 = vpack.c.b16 %v92, %v90
    %v111 = vpack.c.b16 %v93, %v91
    %v112 = vpack.c.b16 %v96, %v94
    %v113 = vpack.c.b16 %v97, %v95
    %130 = vmatprep.subr.bf16.mxu0 %v113
    %131 = vmatpush1.bf16.msra.mxu0 %v112
    %132 = vmatprep.subr.bf16.mxu0 %v111
    %133 = vmatpush1.bf16.msra.mxu0 %v110
    %134 = vmatprep.subr.bf16.mxu0 %v109
    %135 = vmatpush1.bf16.msra.mxu0 %v108
    %136 = vmatprep.subr.bf16.mxu0 %v107
    %137 = vmatpush1.bf16.msra.mxu0 %v106
    %138 = vmatprep.subr.bf16.mxu0 %v105
    %139 = vmatpush1.bf16.msra.mxu0 %v104
    %140 = vmatprep.subr.bf16.mxu0 %v103
    %141 = vmatpush1.bf16.msra.mxu0 %v102
    %142 = vmatprep.subr.bf16.mxu0 %v101
    %143 = vmatpush1.bf16.msra.mxu0 %v100
    %144 = vmatprep.subr.bf16.mxu0 %v99
    %145 = vmatpush1.bf16.msra.mxu0 %v98
    %146 = vmatprep.subr.bf16.mxu0 0
    %147 = vmatpush2.bf16.msra.mxu0 0
    %148 = vmatprep.subr.bf16.mxu0 0
    %149 = vmatpush2.bf16.msra.mxu0 0
    %150 = vmatprep.subr.bf16.mxu0 0
    %151 = vmatpush2.bf16.msra.mxu0 0
    %152 = vmatprep.subr.bf16.mxu0 0
    %153 = vmatpush2.bf16.msra.mxu0 0
    %154 = vmatprep.subr.bf16.mxu0 0
    %155 = vmatpush2.bf16.msra.mxu0 0
    %156 = vmatprep.subr.bf16.mxu0 0
    %157 = vmatpush2.bf16.msra.mxu0 0
    %158 = vmatprep.subr.bf16.mxu0 0
    %159 = vmatpush2.bf16.msra.mxu0 0
    %160 = vmatprep.subr.bf16.mxu0 0
    %161 = vmatpush2.bf16.msra.mxu0 0
    %162 = vmatprep.mubr.bf16.mxu0 0
    %163 = vmatmul.mubr.bf16.gmra.mxu0 %v33
    %v164 = vpop.f32.mrf.mxu0
    %v165 = vadd.f32 0.0, %v164
    %v166 = vpop.f32.mrf.mxu0
    %v167 = vadd.f32 0.0, %v166
    %v168 = vpop.f32.mrf.mxu0
    %v169 = vpop.f32.mrf.mxu0
    %170 = vdwg.mxu0
    %v173 = vcombine.low %v165, %v167
    %v175 = vunpack.c.l.s4 1983009808
    %v176 = vunpack.c.0.s8 %v175
    %v177 = vlaneseq
    %v178 = vshrl.u32 %v177, 7
    %v179 = vsub.s32 %v176, %v178
    %v180 = vrot.slane %v173, %v179
    %v182 = vadd.f32 %v31, %v180
    %183 = vst [vmem:[%s2] sm:$0xf] %v182
    // Predicated region
    $region18: #{forward.16} parent=1 // pred_check
      _
    $region19: #{forward.16} parent=1 // pred_check_branch
      %185 = sbr.rel (0) target = $region21
    $region20: #{forward.16} parent=1 // pred_region
      _
    $region21: #{forward.16} parent=1 // pred_fallthru
      _
    // Predicated region
    $region22: #{forward.16} parent=1 // pred_check
      _
    $region23: #{forward.16} parent=1 // pred_check_branch
      %187 = sbr.rel (0) target = $region25
    $region24: #{forward.16} parent=1 // pred_region
      _
    $region25: #{forward.16} parent=1 // pred_fallthru
      _
    %188 = vsyncpa [#allocation3], 1

// kernel: forward.19
$region0: #{forward.19}
  #allocation0 [shape = 'u32[]', space=smem, size = 0x4, offset = 0x4, fixed_abs, tag = 'smem constant byte address 0x4 - core index']
  #allocation1 [shape = 'u32[144,128]{1,0:T(1,128)}', space=vmem, size = 0x12000, scoped, tag = 'internal scratch']
  %s0 = inlined_call_operand.vmem [shape: bf16[9,4,2], index: 0, kind: input, shape index: {}]
  %s1 = inlined_call_operand.vmem [shape: bf16[2,2,512], index: 1, kind: input, shape index: {}]
  %s2 = inlined_call_operand.vmem [shape: bf16[2,4,384], index: 2, kind: output, shape index: {}]
  %s3 = sld [smem:[#allocation0]]
  $region41: #{forward.19} parent=0
    _
  %s5 = ssub.s32 1, %s3
  %s6 = scalar_select 0, %s5, %s3
  loop: start=0, step=1, limit=4
  $region2: #{forward.19} parent=0 // loop_pre_header
    _
  $region3: #{forward.19} parent=0 // loop_header
    %s8 = sphi 0, %s12
    %p9 = scmp.ge.s32.totalorder %s8, 4
    %s16 = sphi 0, %s16
    %s18 = sphi 0, %s16
    %s19 = sphi 0, %s18
    %s33 = sphi 0, %s19
    %s39 = sphi 0, %s41
    %s42 = sphi 0, %s39
    %s43 = sphi 0, %s42
    %s59 = sphi 0, %s43
    %s65 = sphi 0, %s67
    %s68 = sphi 0, %s65
    %s69 = sphi 0, %s68
    %s85 = sphi 0, %s69
  $region4: #{forward.19} parent=0 // loop_header_branch
    %11 = sbr.rel (%p9) target = $region8
  $region5: #{forward.19} parent=0 // loop_body
    %s13 = ssub.s32 %s8, 1
    %s14 = ssub.s32 %s8, 2
    %s15 = sadd.s32 %s8, 1
    %s17 = sadd.s32 %s16, 1
    %p20 = scmp.eq.s32.totalorder %s8, 1
    %p21 = scmp.ne.s32.totalorder %s16, %s18
    %p22 = scmp.eq.s32.totalorder %s8, 0
    %p23 = por %p21, %p22
    %p24 = scmp.ne.s32.totalorder %s16, %s18
    %p25 = scmp.eq.s32.totalorder %s13, 1
    %p26 = por %p24, %p25
    %p27 = scmp.ne.s32.totalorder %s18, %s19
    %p28 = scmp.eq.s32.totalorder %s13, 0
    %p29 = por %p27, %p28
    %p30 = scmp.ne.s32.totalorder %s18, %s19
    %p31 = scmp.eq.s32.totalorder %s14, 1
    %p32 = por %p30, %p31
    %p34 = scmp.ne.s32.totalorder %s19, %s33
    %p35 = scmp.eq.s32.totalorder %s14, 0
    %p36 = por %p34, %p35
    %s37 = ssub.s32 %s8, %s15
    %p38 = scmp.eq.s32.totalorder %s37, 0
    %s40 = sadd.s32 %s39, 1
    %s41 = scalar_select %p38, %s39, %s40
    %p44 = pneg %p38
    %p45 = scmp.eq.s32.totalorder %s8, 1
    %p46 = por %p44, %p45
    %p47 = scmp.ne.s32.totalorder %s39, %s42
    %p48 = scmp.eq.s32.totalorder %s8, 0
    %p49 = por %p47, %p48
    %p50 = scmp.ne.s32.totalorder %s39, %s42
    %p51 = scmp.eq.s32.totalorder %s13, 1
    %p52 = por %p50, %p51
    %p53 = scmp.ne.s32.totalorder %s42, %s43
    %p54 = scmp.eq.s32.totalorder %s13, 0
    %p55 = por %p53, %p54
    %p56 = scmp.ne.s32.totalorder %s42, %s43
    %p57 = scmp.eq.s32.totalorder %s14, 1
    %p58 = por %p56, %p57
    %p60 = scmp.ne.s32.totalorder %s43, %s59
    %p61 = scmp.eq.s32.totalorder %s14, 0
    %p62 = por %p60, %p61
    %s63 = ssub.s32 %s8, %s15
    %p64 = scmp.eq.s32.totalorder %s63, 0
    %s66 = sadd.s32 %s65, 1
    %s67 = scalar_select %p64, %s65, %s66
    %p70 = pneg %p64
    %p71 = scmp.eq.s32.totalorder %s8, 1
    %p72 = por %p70, %p71
    %p73 = scmp.ne.s32.totalorder %s65, %s68
    %p74 = scmp.eq.s32.totalorder %s8, 0
    %p75 = por %p73, %p74
    %p76 = scmp.ne.s32.totalorder %s65, %s68
    %p77 = scmp.eq.s32.totalorder %s13, 1
    %p78 = por %p76, %p77
    %p79 = scmp.ne.s32.totalorder %s68, %s69
    %p80 = scmp.eq.s32.totalorder %s13, 0
    %p81 = por %p79, %p80
    %p82 = scmp.ne.s32.totalorder %s68, %s69
    %p83 = scmp.eq.s32.totalorder %s14, 1
    %p84 = por %p82, %p83
    %p86 = scmp.ne.s32.totalorder %s69, %s85
    %p87 = scmp.eq.s32.totalorder %s14, 0
    %p88 = por %p86, %p87
    %p89 = scmp.le.s32.totalorder 1, %s8
    %p90 = scmp.lt.s32.totalorder %s8, 3
    %p91 = pnand %p89, %p90
    %p92 = pneg %p91
    // Predicated region
    $region9: #{forward.19} parent=5 // pred_check
      _
    $region10: #{forward.19} parent=5 // pred_check_branch
      %94 = sbr.rel (%p91) target = $region12
    $region11: #{forward.19} parent=5 // pred_region
      %s95 = ssub.s32 %s8, 1
      // Predicated region
      $region13: #{forward.19} parent=11 // pred_check
        %p96 = pneg %p29
      $region14: #{forward.19} parent=11 // pred_check_branch
        %98 = sbr.rel (%p96) target = $region16
      $region15: #{forward.19} parent=11 // pred_region
        _
      $region16: #{forward.19} parent=11 // pred_fallthru
        _
    $region12: #{forward.19} parent=5 // pred_fallthru
      _
    %p99 = scmp.lt.s32.totalorder %s8, 2
    // Predicated region
    $region17: #{forward.19} parent=5 // pred_check
      %p100 = pneg %p99
    $region18: #{forward.19} parent=5 // pred_check_branch
      %102 = sbr.rel (%p100) target = $region20
    $region19: #{forward.19} parent=5 // pred_region
      // Predicated region
      $region21: #{forward.19} parent=19 // pred_check
        %p103 = pneg %p49
      $region22: #{forward.19} parent=19 // pred_check_branch
        %105 = sbr.rel (%p103) target = $region24
      $region23: #{forward.19} parent=19 // pred_region
        %p106 = scmp.lt.s32.totalorder %s8, 1
        %s107 = scalar_select %p106, %s8, 1
        %s108 = smul.addr %s107, 4
        %s109 = scalar_lea.vmem %s1, %s108
      $region24: #{forward.19} parent=19 // pred_fallthru
        _
    $region20: #{forward.19} parent=5 // pred_fallthru
      _
    %p110 = scmp.le.s32.totalorder 1, %s8
    %p111 = scmp.lt.s32.totalorder %s8, 3
    %p112 = pnand %p110, %p111
    %p113 = pneg %p112
    // Predicated region
    $region25: #{forward.19} parent=5 // pred_check
      _
    $region26: #{forward.19} parent=5 // pred_check_branch
      %115 = sbr.rel (%p112) target = $region28
    $region27: #{forward.19} parent=5 // pred_region
      %s116 = ssub.s32 %s8, 1
      %p117 = pneg %p29
      %p118 = pneg %p26
      %p119 = scmp.lt.s32.totalorder %s13, 1
      %s120 = scalar_select %p119, %s13, 1
      %s121 = smul.addr %s120, 4
      %s122 = scalar_lea.vmem %s1, %s121
      %p123 = pneg %p55
      %p124 = pneg %p52
      %p125 = pneg %p81
      %p126 = pneg %p78
      %p127 = scmp.lt.s32.totalorder %s13, 1
      %s128 = scalar_select %p127, %s13, 1
      %s129 = smul.addr %s128, 3
      %s130 = smul.addr %s129, 2
      %s131 = scalar_lea.vmem %s2, %s130
      %p132 = scmp.lt.s32.totalorder %s13, 1
      %s133 = scalar_select %p132, %s13, 1
      %s134 = smul.addr %s133, 4
      %s135 = scalar_lea.vmem %s1, %s134
      %p136 = scmp.lt.s32.totalorder %s13, 1
      %s137 = scalar_select %p136, %s13, 1
      %s138 = smul.addr %s137, 3
      %s139 = smul.addr %s138, 2
      %s140 = scalar_lea.vmem %s2, %s139
      %v142 = vld [vmem:[%s135] sm:$0x7]
      %v143 = vld [vmem:[%s0] sm:$0x3]
      %v144 = vld [vmem:[%s135] sm:$0xf]
      %s145 = scalar_lea.vmem %s0, 2
      %v146 = vld [vmem:[%s145] sm:$0x3]
      %v149 = vunpack.c.l.s4 1966171168
      %v150 = vunpack.c.0.s8 %v149
      %v151 = vlaneseq
      %v152 = vshrl.u32 %v151, 7
      %v153 = vsub.s32 %v150, %v152
      %v154 = vrot.slane %v144, %v153
      %v155 = vcombine.high %v154, %v154
      %v157 = vunpack.c.l.s4 1966171168
      %v158 = vunpack.c.0.s8 %v157
      %v159 = vlaneseq
      %v160 = vshrl.u32 %v159, 7
      %v161 = vsub.s32 %v158, %v160
      %v162 = vrot.slane %v154, %v161
      %v164 = vunpack.c.l.s4 1966171168
      %v165 = vunpack.c.0.s8 %v164
      %v166 = vlaneseq
      %v167 = vshrl.u32 %v166, 7
      %v168 = vsub.s32 %v165, %v167
      %v169 = vrot.slane %v155, %v168
      %v170 = vcombine.high %v162, %v162
      %v171 = vcombine.high %v169, %v169
      %172 = vrot.lane.b32.xlu0 %v162, 127
      %v173 = vpop.permute.xlu0 %172
      %174 = vrot.lane.b32.xlu0 %v169, 127
      %v175 = vpop.permute.xlu0 %174
      %176 = vrot.lane.b32.xlu0 %v170, 127
      %v177 = vpop.permute.xlu0 %176
      %178 = vrot.lane.b32.xlu0 %v171, 127
      %v179 = vpop.permute.xlu0 %178
      %vm180 = vcmask 1039360
      %v181 = vsel %vm180, %v173, %v175
      %v182 = vsel %vm180, %v175, %v177
      %v183 = vsel %vm180, %v177, %v179
      %vm184 = vcmask 15360
      %v186 = vsel %vm184, %v146, 0
      %vm188 = vcmask 1040384
      %v190 = vsel %vm188, %v181, 0
      %v193 = vsel %vm188, %v182, 0
      %v196 = vsel %vm188, %v183, 0
      %198 = vmatprep.subr.bf16.mxu0 0
      %199 = vmatpush1.bf16.msra.mxu0 0
      %200 = vmatprep.subr.bf16.mxu0 0
      %201 = vmatpush1.bf16.msra.mxu0 0
      %202 = vmatprep.subr.bf16.mxu0 0
      %203 = vmatpush1.bf16.msra.mxu0 0
      %204 = vmatprep.subr.bf16.mxu0 0
      %205 = vmatpush1.bf16.msra.mxu0 0
      %206 = vmatprep.subr.bf16.mxu0 0
      %207 = vmatpush1.bf16.msra.mxu0 0
      %208 = vmatprep.subr.bf16.mxu0 0
      %209 = vmatpush1.bf16.msra.mxu0 0
      %210 = vmatprep.subr.bf16.mxu0 0
      %211 = vmatpush1.bf16.msra.mxu0 0
      %212 = vmatprep.subr.bf16.mxu0 %v193
      %213 = vmatpush1.bf16.msra.mxu0 %v190
      %214 = vmatprep.subr.bf16.mxu0 0
      %215 = vmatpush2.bf16.msra.mxu0 0
      %216 = vmatprep.subr.bf16.mxu0 0
      %217 = vmatpush2.bf16.msra.mxu0 0
      %218 = vmatprep.subr.bf16.mxu0 0
      %219 = vmatpush2.bf16.msra.mxu0 0
      %220 = vmatprep.subr.bf16.mxu0 0
      %221 = vmatpush2.bf16.msra.mxu0 0
      %222 = vmatprep.subr.bf16.mxu0 0
      %223 = vmatpush2.bf16.msra.mxu0 0
      %224 = vmatprep.subr.bf16.mxu0 0
      %225 = vmatpush2.bf16.msra.mxu0 0
      %226 = vmatprep.subr.bf16.mxu0 0
      %227 = vmatpush2.bf16.msra.mxu0 0
      %228 = vmatprep.subr.bf16.mxu0 0
      %229 = vmatpush2.bf16.msra.mxu0 0
      %230 = vmatprep.mubr.bf16.mxu0 0
      %231 = vmatmul.mubr.bf16.gmra.mxu0 %v186
      %v232 = vpop.f32.mrf.mxu0
      %v233 = vadd.f32 0.0, %v232
      %v234 = vpop.f32.mrf.mxu0
      %v235 = vadd.f32 0.0, %v234
      %v236 = vpop.f32.mrf.mxu0
      %v237 = vpop.f32.mrf.mxu0
      %238 = vdwg.mxu0
      %239 = vmatprep.subr.bf16.mxu0 0
      %240 = vmatpush1.bf16.msra.mxu0 0
      %241 = vmatprep.subr.bf16.mxu0 0
      %242 = vmatpush1.bf16.msra.mxu0 0
      %243 = vmatprep.subr.bf16.mxu0 0
      %244 = vmatpush1.bf16.msra.mxu0 0
      %245 = vmatprep.subr.bf16.mxu0 0
      %246 = vmatpush1.bf16.msra.mxu0 0
      %247 = vmatprep.subr.bf16.mxu0 0
      %248 = vmatpush1.bf16.msra.mxu0 0
      %249 = vmatprep.subr.bf16.mxu0 0
      %250 = vmatpush1.bf16.msra.mxu0 0
      %251 = vmatprep.subr.bf16.mxu0 0
      %252 = vmatpush1.bf16.msra.mxu0 0
      %253 = vmatprep.subr.bf16.mxu0 0
      %254 = vmatpush1.bf16.msra.mxu0 %v196
      %255 = vmatprep.subr.bf16.mxu0 0
      %256 = vmatpush2.bf16.msra.mxu0 0
      %257 = vmatprep.subr.bf16.mxu0 0
      %258 = vmatpush2.bf16.msra.mxu0 0
      %259 = vmatprep.subr.bf16.mxu0 0
      %260 = vmatpush2.bf16.msra.mxu0 0
      %261 = vmatprep.subr.bf16.mxu0 0
      %262 = vmatpush2.bf16.msra.mxu0 0
      %263 = vmatprep.subr.bf16.mxu0 0
      %264 = vmatpush2.bf16.msra.mxu0 0
      %265 = vmatprep.subr.bf16.mxu0 0
      %266 = vmatpush2.bf16.msra.mxu0 0
      %267 = vmatprep.subr.bf16.mxu0 0
      %268 = vmatpush2.bf16.msra.mxu0 0
      %269 = vmatprep.subr.bf16.mxu0 0
      %270 = vmatpush2.bf16.msra.mxu0 0
      %271 = vmatprep.mubr.bf16.mxu0 0
      %272 = vmatmul.mubr.bf16.gmra.mxu0 %v186
      %v273 = vpop.f32.mrf.mxu0
      %v274 = vadd.f32 0.0, %v273
      %v275 = vpop.f32.mrf.mxu0
      %v276 = vpop.f32.mrf.mxu0
      %v277 = vpop.f32.mrf.mxu0
      %278 = vdwg.mxu0
      %v281 = vunpack.c.l.s4 1966171168
      %v282 = vunpack.c.0.s8 %v281
      %v283 = vlaneseq
      %v284 = vshrl.u32 %v283, 7
      %v285 = vsub.s32 %v282, %v284
      %v286 = vrot.slane %v142, %v285
      %v287 = vcombine.high %v286, %v286
      %v289 = vunpack.c.l.s4 1966171168
      %v290 = vunpack.c.0.s8 %v289
      %v291 = vlaneseq
      %v292 = vshrl.u32 %v291, 7
      %v293 = vsub.s32 %v290, %v292
      %v294 = vrot.slane %v286, %v293
      %v296 = vunpack.c.l.s4 1966171168
      %v297 = vunpack.c.0.s8 %v296
      %v298 = vlaneseq
      %v299 = vshrl.u32 %v298, 7
      %v300 = vsub.s32 %v297, %v299
      %v301 = vrot.slane %v287, %v300
      %v302 = vcombine.high %v294, %v294
      %v304 = vsel %vm184, %v143, 0
      %v307 = vsel %vm188, %v294, 0
      %v310 = vsel %vm188, %v301, 0
      %v313 = vsel %vm188, %v302, 0
      %315 = vmatprep.subr.bf16.mxu0 0
      %316 = vmatpush1.bf16.msra.mxu0 0
      %317 = vmatprep.subr.bf16.mxu0 0
      %318 = vmatpush1.bf16.msra.mxu0 0
      %319 = vmatprep.subr.bf16.mxu0 0
      %320 = vmatpush1.bf16.msra.mxu0 0
      %321 = vmatprep.subr.bf16.mxu0 0
      %322 = vmatpush1.bf16.msra.mxu0 0
      %323 = vmatprep.subr.bf16.mxu0 0
      %324 = vmatpush1.bf16.msra.mxu0 0
      %325 = vmatprep.subr.bf16.mxu0 0
      %326 = vmatpush1.bf16.msra.mxu0 0
      %327 = vmatprep.subr.bf16.mxu0 0
      %328 = vmatpush1.bf16.msra.mxu0 0
      %329 = vmatprep.subr.bf16.mxu0 %v310
      %330 = vmatpush1.bf16.msra.mxu0 %v307
      %331 = vmatprep.subr.bf16.mxu0 0
      %332 = vmatpush2.bf16.msra.mxu0 0
      %333 = vmatprep.subr.bf16.mxu0 0
      %334 = vmatpush2.bf16.msra.mxu0 0
      %335 = vmatprep.subr.bf16.mxu0 0
      %336 = vmatpush2.bf16.msra.mxu0 0
      %337 = vmatprep.subr.bf16.mxu0 0
      %338 = vmatpush2.bf16.msra.mxu0 0
      %339 = vmatprep.subr.bf16.mxu0 0
      %340 = vmatpush2.bf16.msra.mxu0 0
      %341 = vmatprep.subr.bf16.mxu0 0
      %342 = vmatpush2.bf16.msra.mxu0 0
      %343 = vmatprep.subr.bf16.mxu0 0
      %344 = vmatpush2.bf16.msra.mxu0 0
      %345 = vmatprep.subr.bf16.mxu0 0
      %346 = vmatpush2.bf16.msra.mxu0 0
      %347 = vmatprep.mubr.bf16.mxu0 0
      %348 = vmatmul.mubr.bf16.gmra.mxu0 %v304
      %v349 = vpop.f32.mrf.mxu0
      %v350 = vadd.f32 %v233, %v349
      %v351 = vpop.f32.mrf.mxu0
      %v352 = vadd.f32 %v235, %v351
      %v353 = vpop.f32.mrf.mxu0
      %v354 = vpop.f32.mrf.mxu0
      %355 = vdwg.mxu0
      %356 = vmatprep.subr.bf16.mxu0 0
      %357 = vmatpush1.bf16.msra.mxu0 0
      %358 = vmatprep.subr.bf16.mxu0 0
      %359 = vmatpush1.bf16.msra.mxu0 0
      %360 = vmatprep.subr.bf16.mxu0 0
      %361 = vmatpush1.bf16.msra.mxu0 0
      %362 = vmatprep.subr.bf16.mxu0 0
      %363 = vmatpush1.bf16.msra.mxu0 0
      %364 = vmatprep.subr.bf16.mxu0 0
      %365 = vmatpush1.bf16.msra.mxu0 0
      %366 = vmatprep.subr.bf16.mxu0 0
      %367 = vmatpush1.bf16.msra.mxu0 0
      %368 = vmatprep.subr.bf16.mxu0 0
      %369 = vmatpush1.bf16.msra.mxu0 0
      %370 = vmatprep.subr.bf16.mxu0 0
      %371 = vmatpush1.bf16.msra.mxu0 %v313
      %372 = vmatprep.subr.bf16.mxu0 0
      %373 = vmatpush2.bf16.msra.mxu0 0
      %374 = vmatprep.subr.bf16.mxu0 0
      %375 = vmatpush2.bf16.msra.mxu0 0
      %376 = vmatprep.subr.bf16.mxu0 0
      %377 = vmatpush2.bf16.msra.mxu0 0
      %378 = vmatprep.subr.bf16.mxu0 0
      %379 = vmatpush2.bf16.msra.mxu0 0
      %380 = vmatprep.subr.bf16.mxu0 0
      %381 = vmatpush2.bf16.msra.mxu0 0
      %382 = vmatprep.subr.bf16.mxu0 0
      %383 = vmatpush2.bf16.msra.mxu0 0
      %384 = vmatprep.subr.bf16.mxu0 0
      %385 = vmatpush2.bf16.msra.mxu0 0
      %386 = vmatprep.subr.bf16.mxu0 0
      %387 = vmatpush2.bf16.msra.mxu0 0
      %388 = vmatprep.mubr.bf16.mxu0 0
      %389 = vmatmul.mubr.bf16.gmra.mxu0 %v304
      %v390 = vpop.f32.mrf.mxu0
      %v391 = vadd.f32 %v274, %v390
      %v392 = vpop.f32.mrf.mxu0
      %v393 = vpop.f32.mrf.mxu0
      %v394 = vpop.f32.mrf.mxu0
      %395 = vdwg.mxu0
      %v396 = vld [vmem:[%s135] sm:$0xf]
      %s397 = scalar_lea.vmem %s0, 4
      %v398 = vld [vmem:[%s397] sm:$0x3]
      %v401 = vunpack.c.l.s4 1966171168
      %v402 = vunpack.c.0.s8 %v401
      %v403 = vlaneseq
      %v404 = vshrl.u32 %v403, 7
      %v405 = vsub.s32 %v402, %v404
      %v406 = vrot.slane %v396, %v405
      %v407 = vcombine.high %v406, %v406
      %v409 = vunpack.c.l.s4 1966171168
      %v410 = vunpack.c.0.s8 %v409
      %v411 = vlaneseq
      %v412 = vshrl.u32 %v411, 7
      %v413 = vsub.s32 %v410, %v412
      %v414 = vrot.slane %v406, %v413
      %v416 = vunpack.c.l.s4 1966171168
      %v417 = vunpack.c.0.s8 %v416
      %v418 = vlaneseq
      %v419 = vshrl.u32 %v418, 7
      %v420 = vsub.s32 %v417, %v419
      %v421 = vrot.slane %v407, %v420
      %v422 = vcombine.high %v414, %v414
      %v423 = vcombine.high %v421, %v421
      %424 = vrot.lane.b32.xlu0 %v414, 126
      %v425 = vpop.permute.xlu0 %424
      %426 = vrot.lane.b32.xlu0 %v421, 126
      %v427 = vpop.permute.xlu0 %426
      %428 = vrot.lane.b32.xlu0 %v422, 126
      %v429 = vpop.permute.xlu0 %428
      %430 = vrot.lane.b32.xlu0 %v423, 126
      %v431 = vpop.permute.xlu0 %430
      %vm432 = vcmask 1031168
      %v433 = vsel %vm432, %v425, %v427
      %v434 = vsel %vm432, %v427, %v429
      %v435 = vsel %vm432, %v429, %v431
      %v437 = vsel %vm184, %v398, 0
      %v440 = vsel %vm188, %v433, 0
      %v443 = vsel %vm188, %v434, 0
      %v446 = vsel %vm188, %v435, 0
      %448 = vmatprep.subr.bf16.mxu0 0
      %449 = vmatpush1.bf16.msra.mxu0 0
      %450 = vmatprep.subr.bf16.mxu0 0
      %451 = vmatpush1.bf16.msra.mxu0 0
      %452 = vmatprep.subr.bf16.mxu0 0
      %453 = vmatpush1.bf16.msra.mxu0 0
      %454 = vmatprep.subr.bf16.mxu0 0
      %455 = vmatpush1.bf16.msra.mxu0 0
      %456 = vmatprep.subr.bf16.mxu0 0
      %457 = vmatpush1.bf16.msra.mxu0 0
      %458 = vmatprep.subr.bf16.mxu0 0
      %459 = vmatpush1.bf16.msra.mxu0 0
      %460 = vmatprep.subr.bf16.mxu0 0
      %461 = vmatpush1.bf16.msra.mxu0 0
      %462 = vmatprep.subr.bf16.mxu0 %v443
      %463 = vmatpush1.bf16.msra.mxu0 %v440
      %464 = vmatprep.subr.bf16.mxu0 0
      %465 = vmatpush2.bf16.msra.mxu0 0
      %466 = vmatprep.subr.bf16.mxu0 0
      %467 = vmatpush2.bf16.msra.mxu0 0
      %468 = vmatprep.subr.bf16.mxu0 0
      %469 = vmatpush2.bf16.msra.mxu0 0
      %470 = vmatprep.subr.bf16.mxu0 0
      %471 = vmatpush2.bf16.msra.mxu0 0
      %472 = vmatprep.subr.bf16.mxu0 0
      %473 = vmatpush2.bf16.msra.mxu0 0
      %474 = vmatprep.subr.bf16.mxu0 0
      %475 = vmatpush2.bf16.msra.mxu0 0
      %476 = vmatprep.subr.bf16.mxu0 0
      %477 = vmatpush2.bf16.msra.mxu0 0
      %478 = vmatprep.subr.bf16.mxu0 0
      %479 = vmatpush2.bf16.msra.mxu0 0
      %480 = vmatprep.mubr.bf16.mxu0 0
      %481 = vmatmul.mubr.bf16.gmra.mxu0 %v437
      %v482 = vpop.f32.mrf.mxu0
      %v483 = vadd.f32 0.0, %v482
      %v484 = vpop.f32.mrf.mxu0
      %v485 = vadd.f32 0.0, %v484
      %v486 = vpop.f32.mrf.mxu0
      %v487 = vpop.f32.mrf.mxu0
      %488 = vdwg.mxu0
      %489 = vmatprep.subr.bf16.mxu0 0
      %490 = vmatpush1.bf16.msra.mxu0 0
      %491 = vmatprep.subr.bf16.mxu0 0
      %492 = vmatpush1.bf16.msra.mxu0 0
      %493 = vmatprep.subr.bf16.mxu0 0
      %494 = vmatpush1.bf16.msra.mxu0 0
      %495 = vmatprep.subr.bf16.mxu0 0
      %496 = vmatpush1.bf16.msra.mxu0 0
      %497 = vmatprep.subr.bf16.mxu0 0
      %498 = vmatpush1.bf16.msra.mxu0 0
      %499 = vmatprep.subr.bf16.mxu0 0
      %500 = vmatpush1.bf16.msra.mxu0 0
      %501 = vmatprep.subr.bf16.mxu0 0
      %502 = vmatpush1.bf16.msra.mxu0 0
      %503 = vmatprep.subr.bf16.mxu0 0
      %504 = vmatpush1.bf16.msra.mxu0 %v446
      %505 = vmatprep.subr.bf16.mxu0 0
      %506 = vmatpush2.bf16.msra.mxu0 0
      %507 = vmatprep.subr.bf16.mxu0 0
      %508 = vmatpush2.bf16.msra.mxu0 0
      %509 = vmatprep.subr.bf16.mxu0 0
      %510 = vmatpush2.bf16.msra.mxu0 0
      %511 = vmatprep.subr.bf16.mxu0 0
      %512 = vmatpush2.bf16.msra.mxu0 0
      %513 = vmatprep.subr.bf16.mxu0 0
      %514 = vmatpush2.bf16.msra.mxu0 0
      %515 = vmatprep.subr.bf16.mxu0 0
      %516 = vmatpush2.bf16.msra.mxu0 0
      %517 = vmatprep.subr.bf16.mxu0 0
      %518 = vmatpush2.bf16.msra.mxu0 0
      %519 = vmatprep.subr.bf16.mxu0 0
      %520 = vmatpush2.bf16.msra.mxu0 0
      %521 = vmatprep.mubr.bf16.mxu0 0
      %522 = vmatmul.mubr.bf16.gmra.mxu0 %v437
      %v523 = vpop.f32.mrf.mxu0
      %v524 = vadd.f32 0.0, %v523
      %v525 = vpop.f32.mrf.mxu0
      %v526 = vpop.f32.mrf.mxu0
      %v527 = vpop.f32.mrf.mxu0
      %528 = vdwg.mxu0
      %v529 = vadd.f32 %v350, %v483
      %v530 = vadd.f32 %v352, %v485
      %v531 = vadd.f32 %v391, %v524
      %v532 = vld [vmem:[%s135] sm:$0xf]
      %s533 = scalar_lea.vmem %s0, 6
      %v534 = vld [vmem:[%s533] sm:$0x3]
      %v537 = vunpack.c.l.s4 1966171168
      %v538 = vunpack.c.0.s8 %v537
      %v539 = vlaneseq
      %v540 = vshrl.u32 %v539, 7
      %v541 = vsub.s32 %v538, %v540
      %v542 = vrot.slane %v532, %v541
      %v543 = vcombine.high %v542, %v542
      %v545 = vunpack.c.l.s4 1966171168
      %v546 = vunpack.c.0.s8 %v545
      %v547 = vlaneseq
      %v548 = vshrl.u32 %v547, 7
      %v549 = vsub.s32 %v546, %v548
      %v550 = vrot.slane %v542, %v549
      %v552 = vunpack.c.l.s4 1966171168
      %v553 = vunpack.c.0.s8 %v552
      %v554 = vlaneseq
      %v555 = vshrl.u32 %v554, 7
      %v556 = vsub.s32 %v553, %v555
      %v557 = vrot.slane %v543, %v556
      %v558 = vcombine.high %v550, %v550
      %v559 = vcombine.high %v557, %v557
      %560 = vrot.lane.b32.xlu0 %v550, 110
      %v561 = vpop.permute.xlu0 %560
      %562 = vrot.lane.b32.xlu0 %v557, 110
      %v563 = vpop.permute.xlu0 %562
      %564 = vrot.lane.b32.xlu0 %v558, 110
      %v565 = vpop.permute.xlu0 %564
      %566 = vrot.lane.b32.xlu0 %v559, 110
      %v567 = vpop.permute.xlu0 %566
      %vm568 = vcmask 900096
      %v569 = vsel %vm568, %v561, %v563
      %v570 = vsel %vm568, %v563, %v565
      %v571 = vsel %vm568, %v565, %v567
      %v573 = vsel %vm184, %v534, 0
      %v576 = vsel %vm188, %v569, 0
      %v579 = vsel %vm188, %v570, 0
      %v582 = vsel %vm188, %v571, 0
      %584 = vmatprep.subr.bf16.mxu0 0
      %585 = vmatpush1.bf16.msra.mxu0 0
      %586 = vmatprep.subr.bf16.mxu0 0
      %587 = vmatpush1.bf16.msra.mxu0 0
      %588 = vmatprep.subr.bf16.mxu0 0
      %589 = vmatpush1.bf16.msra.mxu0 0
      %590 = vmatprep.subr.bf16.mxu0 0
      %591 = vmatpush1.bf16.msra.mxu0 0
      %592 = vmatprep.subr.bf16.mxu0 0
      %593 = vmatpush1.bf16.msra.mxu0 0
      %594 = vmatprep.subr.bf16.mxu0 0
      %595 = vmatpush1.bf16.msra.mxu0 0
      %596 = vmatprep.subr.bf16.mxu0 0
      %597 = vmatpush1.bf16.msra.mxu0 0
      %598 = vmatprep.subr.bf16.mxu0 %v579
      %599 = vmatpush1.bf16.msra.mxu0 %v576
      %600 = vmatprep.subr.bf16.mxu0 0
      %601 = vmatpush2.bf16.msra.mxu0 0
      %602 = vmatprep.subr.bf16.mxu0 0
      %603 = vmatpush2.bf16.msra.mxu0 0
      %604 = vmatprep.subr.bf16.mxu0 0
      %605 = vmatpush2.bf16.msra.mxu0 0
      %606 = vmatprep.subr.bf16.mxu0 0
      %607 = vmatpush2.bf16.msra.mxu0 0
      %608 = vmatprep.subr.bf16.mxu0 0
      %609 = vmatpush2.bf16.msra.mxu0 0
      %610 = vmatprep.subr.bf16.mxu0 0
      %611 = vmatpush2.bf16.msra.mxu0 0
      %612 = vmatprep.subr.bf16.mxu0 0
      %613 = vmatpush2.bf16.msra.mxu0 0
      %614 = vmatprep.subr.bf16.mxu0 0
      %615 = vmatpush2.bf16.msra.mxu0 0
      %616 = vmatprep.mubr.bf16.mxu0 0
      %617 = vmatmul.mubr.bf16.gmra.mxu0 %v573
      %v618 = vpop.f32.mrf.mxu0
      %v619 = vadd.f32 0.0, %v618
      %v620 = vpop.f32.mrf.mxu0
      %v621 = vadd.f32 0.0, %v620
      %v622 = vpop.f32.mrf.mxu0
      %v623 = vpop.f32.mrf.mxu0
      %624 = vdwg.mxu0
      %625 = vmatprep.subr.bf16.mxu0 0
      %626 = vmatpush1.bf16.msra.mxu0 0
      %627 = vmatprep.subr.bf16.mxu0 0
      %628 = vmatpush1.bf16.msra.mxu0 0
      %629 = vmatprep.subr.bf16.mxu0 0
      %630 = vmatpush1.bf16.msra.mxu0 0
      %631 = vmatprep.subr.bf16.mxu0 0
      %632 = vmatpush1.bf16.msra.mxu0 0
      %633 = vmatprep.subr.bf16.mxu0 0
      %634 = vmatpush1.bf16.msra.mxu0 0
      %635 = vmatprep.subr.bf16.mxu0 0
      %636 = vmatpush1.bf16.msra.mxu0 0
      %637 = vmatprep.subr.bf16.mxu0 0
      %638 = vmatpush1.bf16.msra.mxu0 0
      %639 = vmatprep.subr.bf16.mxu0 0
      %640 = vmatpush1.bf16.msra.mxu0 %v582
      %641 = vmatprep.subr.bf16.mxu0 0
      %642 = vmatpush2.bf16.msra.mxu0 0
      %643 = vmatprep.subr.bf16.mxu0 0
      %644 = vmatpush2.bf16.msra.mxu0 0
      %645 = vmatprep.subr.bf16.mxu0 0
      %646 = vmatpush2.bf16.msra.mxu0 0
      %647 = vmatprep.subr.bf16.mxu0 0
      %648 = vmatpush2.bf16.msra.mxu0 0
      %649 = vmatprep.subr.bf16.mxu0 0
      %650 = vmatpush2.bf16.msra.mxu0 0
      %651 = vmatprep.subr.bf16.mxu0 0
      %652 = vmatpush2.bf16.msra.mxu0 0
      %653 = vmatprep.subr.bf16.mxu0 0
      %654 = vmatpush2.bf16.msra.mxu0 0
      %655 = vmatprep.subr.bf16.mxu0 0
      %656 = vmatpush2.bf16.msra.mxu0 0
      %657 = vmatprep.mubr.bf16.mxu0 0
      %658 = vmatmul.mubr.bf16.gmra.mxu0 %v573
      %v659 = vpop.f32.mrf.mxu0
      %v660 = vadd.f32 0.0, %v659
      %v661 = vpop.f32.mrf.mxu0
      %v662 = vpop.f32.mrf.mxu0
      %v663 = vpop.f32.mrf.mxu0
      %664 = vdwg.mxu0
      %v665 = vadd.f32 %v529, %v619
      %v666 = vadd.f32 %v530, %v621
      %v667 = vadd.f32 %v531, %v660
      %v668 = vld [vmem:[%s135] sm:$0xf]
      %s669 = scalar_lea.vmem %s0, 8
      %v670 = vld [vmem:[%s669] sm:$0x3]
      %v673 = vunpack.c.l.s4 1966171168
      %v674 = vunpack.c.0.s8 %v673
      %v675 = vlaneseq
      %v676 = vshrl.u32 %v675, 7
      %v677 = vsub.s32 %v674, %v676
      %v678 = vrot.slane %v668, %v677
      %v679 = vcombine.high %v678, %v678
      %v681 = vunpack.c.l.s4 1966171168
      %v682 = vunpack.c.0.s8 %v681
      %v683 = vlaneseq
      %v684 = vshrl.u32 %v683, 7
      %v685 = vsub.s32 %v682, %v684
      %v686 = vrot.slane %v678, %v685
      %v688 = vunpack.c.l.s4 1966171168
      %v689 = vunpack.c.0.s8 %v688
      %v690 = vlaneseq
      %v691 = vshrl.u32 %v690, 7
      %v692 = vsub.s32 %v689, %v691
      %v693 = vrot.slane %v679, %v692
      %v694 = vcombine.high %v686, %v686
      %v695 = vcombine.high %v693, %v693
      %696 = vrot.lane.b32.xlu0 %v686, 109
      %v697 = vpop.permute.xlu0 %696
      %698 = vrot.lane.b32.xlu0 %v693, 109
      %v699 = vpop.permute.xlu0 %698
      %700 = vrot.lane.b32.xlu0 %v694, 109
      %v701 = vpop.permute.xlu0 %700
      %702 = vrot.lane.b32.xlu0 %v695, 109
      %v703 = vpop.permute.xlu0 %702
      %vm704 = vcmask 891904
      %v705 = vsel %vm704, %v697, %v699
      %v706 = vsel %vm704, %v699, %v701
      %v707 = vsel %vm704, %v701, %v703
      %v709 = vsel %vm184, %v670, 0
      %v712 = vsel %vm188, %v705, 0
      %v715 = vsel %vm188, %v706, 0
      %v718 = vsel %vm188, %v707, 0
      %720 = vmatprep.subr.bf16.mxu0 0
      %721 = vmatpush1.bf16.msra.mxu0 0
      %722 = vmatprep.subr.bf16.mxu0 0
      %723 = vmatpush1.bf16.msra.mxu0 0
      %724 = vmatprep.subr.bf16.mxu0 0
      %725 = vmatpush1.bf16.msra.mxu0 0
      %726 = vmatprep.subr.bf16.mxu0 0
      %727 = vmatpush1.bf16.msra.mxu0 0
      %728 = vmatprep.subr.bf16.mxu0 0
      %729 = vmatpush1.bf16.msra.mxu0 0
      %730 = vmatprep.subr.bf16.mxu0 0
      %731 = vmatpush1.bf16.msra.mxu0 0
      %732 = vmatprep.subr.bf16.mxu0 0
      %733 = vmatpush1.bf16.msra.mxu0 0
      %734 = vmatprep.subr.bf16.mxu0 %v715
      %735 = vmatpush1.bf16.msra.mxu0 %v712
      %736 = vmatprep.subr.bf16.mxu0 0
      %737 = vmatpush2.bf16.msra.mxu0 0
      %738 = vmatprep.subr.bf16.mxu0 0
      %739 = vmatpush2.bf16.msra.mxu0 0
      %740 = vmatprep.subr.bf16.mxu0 0
      %741 = vmatpush2.bf16.msra.mxu0 0
      %742 = vmatprep.subr.bf16.mxu0 0
      %743 = vmatpush2.bf16.msra.mxu0 0
      %744 = vmatprep.subr.bf16.mxu0 0
      %745 = vmatpush2.bf16.msra.mxu0 0
      %746 = vmatprep.subr.bf16.mxu0 0
      %747 = vmatpush2.bf16.msra.mxu0 0
      %748 = vmatprep.subr.bf16.mxu0 0
      %749 = vmatpush2.bf16.msra.mxu0 0
      %750 = vmatprep.subr.bf16.mxu0 0
      %751 = vmatpush2.bf16.msra.mxu0 0
      %752 = vmatprep.mubr.bf16.mxu0 0
      %753 = vmatmul.mubr.bf16.gmra.mxu0 %v709
      %v754 = vpop.f32.mrf.mxu0
      %v755 = vadd.f32 0.0, %v754
      %v756 = vpop.f32.mrf.mxu0
      %v757 = vadd.f32 0.0, %v756
      %v758 = vpop.f32.mrf.mxu0
      %v759 = vpop.f32.mrf.mxu0
      %760 = vdwg.mxu0
      %761 = vmatprep.subr.bf16.mxu0 0
      %762 = vmatpush1.bf16.msra.mxu0 0
      %763 = vmatprep.subr.bf16.mxu0 0
      %764 = vmatpush1.bf16.msra.mxu0 0
      %765 = vmatprep.subr.bf16.mxu0 0
      %766 = vmatpush1.bf16.msra.mxu0 0
      %767 = vmatprep.subr.bf16.mxu0 0
      %768 = vmatpush1.bf16.msra.mxu0 0
      %769 = vmatprep.subr.bf16.mxu0 0
      %770 = vmatpush1.bf16.msra.mxu0 0
      %771 = vmatprep.subr.bf16.mxu0 0
      %772 = vmatpush1.bf16.msra.mxu0 0
      %773 = vmatprep.subr.bf16.mxu0 0
      %774 = vmatpush1.bf16.msra.mxu0 0
      %775 = vmatprep.subr.bf16.mxu0 0
      %776 = vmatpush1.bf16.msra.mxu0 %v718
      %777 = vmatprep.subr.bf16.mxu0 0
      %778 = vmatpush2.bf16.msra.mxu0 0
      %779 = vmatprep.subr.bf16.mxu0 0
      %780 = vmatpush2.bf16.msra.mxu0 0
      %781 = vmatprep.subr.bf16.mxu0 0
      %782 = vmatpush2.bf16.msra.mxu0 0
      %783 = vmatprep.subr.bf16.mxu0 0
      %784 = vmatpush2.bf16.msra.mxu0 0
      %785 = vmatprep.subr.bf16.mxu0 0
      %786 = vmatpush2.bf16.msra.mxu0 0
      %787 = vmatprep.subr.bf16.mxu0 0
      %788 = vmatpush2.bf16.msra.mxu0 0
      %789 = vmatprep.subr.bf16.mxu0 0
      %790 = vmatpush2.bf16.msra.mxu0 0
      %791 = vmatprep.subr.bf16.mxu0 0
      %792 = vmatpush2.bf16.msra.mxu0 0
      %793 = vmatprep.mubr.bf16.mxu0 0
      %794 = vmatmul.mubr.bf16.gmra.mxu0 %v709
      %v795 = vpop.f32.mrf.mxu0
      %v796 = vadd.f32 0.0, %v795
      %v797 = vpop.f32.mrf.mxu0
      %v798 = vpop.f32.mrf.mxu0
      %v799 = vpop.f32.mrf.mxu0
      %800 = vdwg.mxu0
      %v801 = vadd.f32 %v665, %v755
      %v802 = vadd.f32 %v666, %v757
      %v803 = vadd.f32 %v667, %v796
      %v804 = vld [vmem:[%s135] sm:$0xf]
      %s805 = scalar_lea.vmem %s0, 10
      %v806 = vld [vmem:[%s805] sm:$0x3]
      %v809 = vunpack.c.l.s4 1966171168
      %v810 = vunpack.c.0.s8 %v809
      %v811 = vlaneseq
      %v812 = vshrl.u32 %v811, 7
      %v813 = vsub.s32 %v810, %v812
      %v814 = vrot.slane %v804, %v813
      %v815 = vcombine.high %v814, %v814
      %v817 = vunpack.c.l.s4 1966171168
      %v818 = vunpack.c.0.s8 %v817
      %v819 = vlaneseq
      %v820 = vshrl.u32 %v819, 7
      %v821 = vsub.s32 %v818, %v820
      %v822 = vrot.slane %v814, %v821
      %v824 = vunpack.c.l.s4 1966171168
      %v825 = vunpack.c.0.s8 %v824
      %v826 = vlaneseq
      %v827 = vshrl.u32 %v826, 7
      %v828 = vsub.s32 %v825, %v827
      %v829 = vrot.slane %v815, %v828
      %v830 = vcombine.high %v822, %v822
      %v831 = vcombine.high %v829, %v829
      %832 = vrot.lane.b32.xlu0 %v822, 108
      %v833 = vpop.permute.xlu0 %832
      %834 = vrot.lane.b32.xlu0 %v829, 108
      %v835 = vpop.permute.xlu0 %834
      %836 = vrot.lane.b32.xlu0 %v830, 108
      %v837 = vpop.permute.xlu0 %836
      %838 = vrot.lane.b32.xlu0 %v831, 108
      %v839 = vpop.permute.xlu0 %838
      %vm840 = vcmask 883712
      %v841 = vsel %vm840, %v833, %v835
      %v842 = vsel %vm840, %v835, %v837
      %v843 = vsel %vm840, %v837, %v839
      %v845 = vsel %vm184, %v806, 0
      %v848 = vsel %vm188, %v841, 0
      %v851 = vsel %vm188, %v842, 0
      %v854 = vsel %vm188, %v843, 0
      %856 = vmatprep.subr.bf16.mxu0 0
      %857 = vmatpush1.bf16.msra.mxu0 0
      %858 = vmatprep.subr.bf16.mxu0 0
      %859 = vmatpush1.bf16.msra.mxu0 0
      %860 = vmatprep.subr.bf16.mxu0 0
      %861 = vmatpush1.bf16.msra.mxu0 0
      %862 = vmatprep.subr.bf16.mxu0 0
      %863 = vmatpush1.bf16.msra.mxu0 0
      %864 = vmatprep.subr.bf16.mxu0 0
      %865 = vmatpush1.bf16.msra.mxu0 0
      %866 = vmatprep.subr.bf16.mxu0 0
      %867 = vmatpush1.bf16.msra.mxu0 0
      %868 = vmatprep.subr.bf16.mxu0 0
      %869 = vmatpush1.bf16.msra.mxu0 0
      %870 = vmatprep.subr.bf16.mxu0 %v851
      %871 = vmatpush1.bf16.msra.mxu0 %v848
      %872 = vmatprep.subr.bf16.mxu0 0
      %873 = vmatpush2.bf16.msra.mxu0 0
      %874 = vmatprep.subr.bf16.mxu0 0
      %875 = vmatpush2.bf16.msra.mxu0 0
      %876 = vmatprep.subr.bf16.mxu0 0
      %877 = vmatpush2.bf16.msra.mxu0 0
      %878 = vmatprep.subr.bf16.mxu0 0
      %879 = vmatpush2.bf16.msra.mxu0 0
      %880 = vmatprep.subr.bf16.mxu0 0
      %881 = vmatpush2.bf16.msra.mxu0 0
      %882 = vmatprep.subr.bf16.mxu0 0
      %883 = vmatpush2.bf16.msra.mxu0 0
      %884 = vmatprep.subr.bf16.mxu0 0
      %885 = vmatpush2.bf16.msra.mxu0 0
      %886 = vmatprep.subr.bf16.mxu0 0
      %887 = vmatpush2.bf16.msra.mxu0 0
      %888 = vmatprep.mubr.bf16.mxu0 0
      %889 = vmatmul.mubr.bf16.gmra.mxu0 %v845
      %v890 = vpop.f32.mrf.mxu0
      %v891 = vadd.f32 0.0, %v890
      %v892 = vpop.f32.mrf.mxu0
      %v893 = vadd.f32 0.0, %v892
      %v894 = vpop.f32.mrf.mxu0
      %v895 = vpop.f32.mrf.mxu0
      %896 = vdwg.mxu0
      %897 = vmatprep.subr.bf16.mxu0 0
      %898 = vmatpush1.bf16.msra.mxu0 0
      %899 = vmatprep.subr.bf16.mxu0 0
      %900 = vmatpush1.bf16.msra.mxu0 0
      %901 = vmatprep.subr.bf16.mxu0 0
      %902 = vmatpush1.bf16.msra.mxu0 0
      %903 = vmatprep.subr.bf16.mxu0 0
      %904 = vmatpush1.bf16.msra.mxu0 0
      %905 = vmatprep.subr.bf16.mxu0 0
      %906 = vmatpush1.bf16.msra.mxu0 0
      %907 = vmatprep.subr.bf16.mxu0 0
      %908 = vmatpush1.bf16.msra.mxu0 0
      %909 = vmatprep.subr.bf16.mxu0 0
      %910 = vmatpush1.bf16.msra.mxu0 0
      %911 = vmatprep.subr.bf16.mxu0 0
      %912 = vmatpush1.bf16.msra.mxu0 %v854
      %913 = vmatprep.subr.bf16.mxu0 0
      %914 = vmatpush2.bf16.msra.mxu0 0
      %915 = vmatprep.subr.bf16.mxu0 0
      %916 = vmatpush2.bf16.msra.mxu0 0
      %917 = vmatprep.subr.bf16.mxu0 0
      %918 = vmatpush2.bf16.msra.mxu0 0
      %919 = vmatprep.subr.bf16.mxu0 0
      %920 = vmatpush2.bf16.msra.mxu0 0
      %921 = vmatprep.subr.bf16.mxu0 0
      %922 = vmatpush2.bf16.msra.mxu0 0
      %923 = vmatprep.subr.bf16.mxu0 0
      %924 = vmatpush2.bf16.msra.mxu0 0
      %925 = vmatprep.subr.bf16.mxu0 0
      %926 = vmatpush2.bf16.msra.mxu0 0
      %927 = vmatprep.subr.bf16.mxu0 0
      %928 = vmatpush2.bf16.msra.mxu0 0
      %929 = vmatprep.mubr.bf16.mxu0 0
      %930 = vmatmul.mubr.bf16.gmra.mxu0 %v845
      %v931 = vpop.f32.mrf.mxu0
      %v932 = vadd.f32 0.0, %v931
      %v933 = vpop.f32.mrf.mxu0
      %v934 = vpop.f32.mrf.mxu0
      %v935 = vpop.f32.mrf.mxu0
      %936 = vdwg.mxu0
      %v937 = vadd.f32 %v801, %v891
      %v938 = vadd.f32 %v802, %v893
      %v939 = vadd.f32 %v803, %v932
      %v940 = vld [vmem:[%s135] sm:$0xf]
      %s941 = scalar_lea.vmem %s0, 12
      %v942 = vld [vmem:[%s941] sm:$0x3]
      %v945 = vunpack.c.l.s4 1966171168
      %v946 = vunpack.c.0.s8 %v945
      %v947 = vlaneseq
      %v948 = vshrl.u32 %v947, 7
      %v949 = vsub.s32 %v946, %v948
      %v950 = vrot.slane %v940, %v949
      %v951 = vcombine.high %v950, %v950
      %v953 = vunpack.c.l.s4 1966171168
      %v954 = vunpack.c.0.s8 %v953
      %v955 = vlaneseq
      %v956 = vshrl.u32 %v955, 7
      %v957 = vsub.s32 %v954, %v956
      %v958 = vrot.slane %v950, %v957
      %v960 = vunpack.c.l.s4 1966171168
      %v961 = vunpack.c.0.s8 %v960
      %v962 = vlaneseq
      %v963 = vshrl.u32 %v962, 7
      %v964 = vsub.s32 %v961, %v963
      %v965 = vrot.slane %v951, %v964
      %v966 = vcombine.high %v958, %v958
      %v967 = vcombine.high %v965, %v965
      %968 = vrot.lane.b32.xlu0 %v958, 92
      %v969 = vpop.permute.xlu0 %968
      %970 = vrot.lane.b32.xlu0 %v965, 92
      %v971 = vpop.permute.xlu0 %970
      %972 = vrot.lane.b32.xlu0 %v966, 92
      %v973 = vpop.permute.xlu0 %972
      %974 = vrot.lane.b32.xlu0 %v967, 92
      %v975 = vpop.permute.xlu0 %974
      %vm976 = vcmask 752640
      %v977 = vsel %vm976, %v969, %v971
      %v978 = vsel %vm976, %v971, %v973
      %v979 = vsel %vm976, %v973, %v975
      %v981 = vsel %vm184, %v942, 0
      %v984 = vsel %vm188, %v977, 0
      %v987 = vsel %vm188, %v978, 0
      %v990 = vsel %vm188, %v979, 0
      %992 = vmatprep.subr.bf16.mxu0 0
      %993 = vmatpush1.bf16.msra.mxu0 0
      %994 = vmatprep.subr.bf16.mxu0 0
      %995 = vmatpush1.bf16.msra.mxu0 0
      %996 = vmatprep.subr.bf16.mxu0 0
      %997 = vmatpush1.bf16.msra.mxu0 0
      %998 = vmatprep.subr.bf16.mxu0 0
      %999 = vmatpush1.bf16.msra.mxu0 0
      %1000 = vmatprep.subr.bf16.mxu0 0
      %1001 = vmatpush1.bf16.msra.mxu0 0
      %1002 = vmatprep.subr.bf16.mxu0 0
      %1003 = vmatpush1.bf16.msra.mxu0 0
      %1004 = vmatprep.subr.bf16.mxu0 0
      %1005 = vmatpush1.bf16.msra.mxu0 0
      %1006 = vmatprep.subr.bf16.mxu0 %v987
      %1007 = vmatpush1.bf16.msra.mxu0 %v984
      %1008 = vmatprep.subr.bf16.mxu0 0
      %1009 = vmatpush2.bf16.msra.mxu0 0
      %1010 = vmatprep.subr.bf16.mxu0 0
      %1011 = vmatpush2.bf16.msra.mxu0 0
      %1012 = vmatprep.subr.bf16.mxu0 0
      %1013 = vmatpush2.bf16.msra.mxu0 0
      %1014 = vmatprep.subr.bf16.mxu0 0
      %1015 = vmatpush2.bf16.msra.mxu0 0
      %1016 = vmatprep.subr.bf16.mxu0 0
      %1017 = vmatpush2.bf16.msra.mxu0 0
      %1018 = vmatprep.subr.bf16.mxu0 0
      %1019 = vmatpush2.bf16.msra.mxu0 0
      %1020 = vmatprep.subr.bf16.mxu0 0
      %1021 = vmatpush2.bf16.msra.mxu0 0
      %1022 = vmatprep.subr.bf16.mxu0 0
      %1023 = vmatpush2.bf16.msra.mxu0 0
      %1024 = vmatprep.mubr.bf16.mxu0 0
      %1025 = vmatmul.mubr.bf16.gmra.mxu0 %v981
      %v1026 = vpop.f32.mrf.mxu0
      %v1027 = vadd.f32 0.0, %v1026
      %v1028 = vpop.f32.mrf.mxu0
      %v1029 = vadd.f32 0.0, %v1028
      %v1030 = vpop.f32.mrf.mxu0
      %v1031 = vpop.f32.mrf.mxu0
      %1032 = vdwg.mxu0
      %1033 = vmatprep.subr.bf16.mxu0 0
      %1034 = vmatpush1.bf16.msra.mxu0 0
      %1035 = vmatprep.subr.bf16.mxu0 0
      %1036 = vmatpush1.bf16.msra.mxu0 0
      %1037 = vmatprep.subr.bf16.mxu0 0
      %1038 = vmatpush1.bf16.msra.mxu0 0
      %1039 = vmatprep.subr.bf16.mxu0 0
      %1040 = vmatpush1.bf16.msra.mxu0 0
      %1041 = vmatprep.subr.bf16.mxu0 0
      %1042 = vmatpush1.bf16.msra.mxu0 0
      %1043 = vmatprep.subr.bf16.mxu0 0
      %1044 = vmatpush1.bf16.msra.mxu0 0
      %1045 = vmatprep.subr.bf16.mxu0 0
      %1046 = vmatpush1.bf16.msra.mxu0 0
      %1047 = vmatprep.subr.bf16.mxu0 0
      %1048 = vmatpush1.bf16.msra.mxu0 %v990
      %1049 = vmatprep.subr.bf16.mxu0 0
      %1050 = vmatpush2.bf16.msra.mxu0 0
      %1051 = vmatprep.subr.bf16.mxu0 0
      %1052 = vmatpush2.bf16.msra.mxu0 0
      %1053 = vmatprep.subr.bf16.mxu0 0
      %1054 = vmatpush2.bf16.msra.mxu0 0
      %1055 = vmatprep.subr.bf16.mxu0 0
      %1056 = vmatpush2.bf16.msra.mxu0 0
      %1057 = vmatprep.subr.bf16.mxu0 0
      %1058 = vmatpush2.bf16.msra.mxu0 0
      %1059 = vmatprep.subr.bf16.mxu0 0
      %1060 = vmatpush2.bf16.msra.mxu0 0
      %1061 = vmatprep.subr.bf16.mxu0 0
      %1062 = vmatpush2.bf16.msra.mxu0 0
      %1063 = vmatprep.subr.bf16.mxu0 0
      %1064 = vmatpush2.bf16.msra.mxu0 0
      %1065 = vmatprep.mubr.bf16.mxu0 0
      %1066 = vmatmul.mubr.bf16.gmra.mxu0 %v981
      %v1067 = vpop.f32.mrf.mxu0
      %v1068 = vadd.f32 0.0, %v1067
      %v1069 = vpop.f32.mrf.mxu0
      %v1070 = vpop.f32.mrf.mxu0
      %v1071 = vpop.f32.mrf.mxu0
      %1072 = vdwg.mxu0
      %v1073 = vadd.f32 %v937, %v1027
      %v1074 = vadd.f32 %v938, %v1029
      %v1075 = vadd.f32 %v939, %v1068
      %v1076 = vld [vmem:[%s135] sm:$0xf]
      %s1077 = scalar_lea.vmem %s0, 14
      %v1078 = vld [vmem:[%s1077] sm:$0x3]
      %v1081 = vunpack.c.l.s4 1966171168
      %v1082 = vunpack.c.0.s8 %v1081
      %v1083 = vlaneseq
      %v1084 = vshrl.u32 %v1083, 7
      %v1085 = vsub.s32 %v1082, %v1084
      %v1086 = vrot.slane %v1076, %v1085
      %v1087 = vcombine.high %v1086, %v1086
      %v1089 = vunpack.c.l.s4 1966171168
      %v1090 = vunpack.c.0.s8 %v1089
      %v1091 = vlaneseq
      %v1092 = vshrl.u32 %v1091, 7
      %v1093 = vsub.s32 %v1090, %v1092
      %v1094 = vrot.slane %v1086, %v1093
      %v1096 = vunpack.c.l.s4 1966171168
      %v1097 = vunpack.c.0.s8 %v1096
      %v1098 = vlaneseq
      %v1099 = vshrl.u32 %v1098, 7
      %v1100 = vsub.s32 %v1097, %v1099
      %v1101 = vrot.slane %v1087, %v1100
      %v1102 = vcombine.high %v1094, %v1094
      %v1103 = vcombine.high %v1101, %v1101
      %1104 = vrot.lane.b32.xlu0 %v1094, 91
      %v1105 = vpop.permute.xlu0 %1104
      %1106 = vrot.lane.b32.xlu0 %v1101, 91
      %v1107 = vpop.permute.xlu0 %1106
      %1108 = vrot.lane.b32.xlu0 %v1102, 91
      %v1109 = vpop.permute.xlu0 %1108
      %1110 = vrot.lane.b32.xlu0 %v1103, 91
      %v1111 = vpop.permute.xlu0 %1110
      %vm1112 = vcmask 744448
      %v1113 = vsel %vm1112, %v1105, %v1107
      %v1114 = vsel %vm1112, %v1107, %v1109
      %v1115 = vsel %vm1112, %v1109, %v1111
      %v1117 = vsel %vm184, %v1078, 0
      %v1120 = vsel %vm188, %v1113, 0
      %v1123 = vsel %vm188, %v1114, 0
      %v1126 = vsel %vm188, %v1115, 0
      %1128 = vmatprep.subr.bf16.mxu0 0
      %1129 = vmatpush1.bf16.msra.mxu0 0
      %1130 = vmatprep.subr.bf16.mxu0 0
      %1131 = vmatpush1.bf16.msra.mxu0 0
      %1132 = vmatprep.subr.bf16.mxu0 0
      %1133 = vmatpush1.bf16.msra.mxu0 0
      %1134 = vmatprep.subr.bf16.mxu0 0
      %1135 = vmatpush1.bf16.msra.mxu0 0
      %1136 = vmatprep.subr.bf16.mxu0 0
      %1137 = vmatpush1.bf16.msra.mxu0 0
      %1138 = vmatprep.subr.bf16.mxu0 0
      %1139 = vmatpush1.bf16.msra.mxu0 0
      %1140 = vmatprep.subr.bf16.mxu0 0
      %1141 = vmatpush1.bf16.msra.mxu0 0
      %1142 = vmatprep.subr.bf16.mxu0 %v1123
      %1143 = vmatpush1.bf16.msra.mxu0 %v1120
      %1144 = vmatprep.subr.bf16.mxu0 0
      %1145 = vmatpush2.bf16.msra.mxu0 0
      %1146 = vmatprep.subr.bf16.mxu0 0
      %1147 = vmatpush2.bf16.msra.mxu0 0
      %1148 = vmatprep.subr.bf16.mxu0 0
      %1149 = vmatpush2.bf16.msra.mxu0 0
      %1150 = vmatprep.subr.bf16.mxu0 0
      %1151 = vmatpush2.bf16.msra.mxu0 0
      %1152 = vmatprep.subr.bf16.mxu0 0
      %1153 = vmatpush2.bf16.msra.mxu0 0
      %1154 = vmatprep.subr.bf16.mxu0 0
      %1155 = vmatpush2.bf16.msra.mxu0 0
      %1156 = vmatprep.subr.bf16.mxu0 0
      %1157 = vmatpush2.bf16.msra.mxu0 0
      %1158 = vmatprep.subr.bf16.mxu0 0
      %1159 = vmatpush2.bf16.msra.mxu0 0
      %1160 = vmatprep.mubr.bf16.mxu0 0
      %1161 = vmatmul.mubr.bf16.gmra.mxu0 %v1117
      %v1162 = vpop.f32.mrf.mxu0
      %v1163 = vadd.f32 0.0, %v1162
      %v1164 = vpop.f32.mrf.mxu0
      %v1165 = vadd.f32 0.0, %v1164
      %v1166 = vpop.f32.mrf.mxu0
      %v1167 = vpop.f32.mrf.mxu0
      %1168 = vdwg.mxu0
      %1169 = vmatprep.subr.bf16.mxu0 0
      %1170 = vmatpush1.bf16.msra.mxu0 0
      %1171 = vmatprep.subr.bf16.mxu0 0
      %1172 = vmatpush1.bf16.msra.mxu0 0
      %1173 = vmatprep.subr.bf16.mxu0 0
      %1174 = vmatpush1.bf16.msra.mxu0 0
      %1175 = vmatprep.subr.bf16.mxu0 0
      %1176 = vmatpush1.bf16.msra.mxu0 0
      %1177 = vmatprep.subr.bf16.mxu0 0
      %1178 = vmatpush1.bf16.msra.mxu0 0
      %1179 = vmatprep.subr.bf16.mxu0 0
      %1180 = vmatpush1.bf16.msra.mxu0 0
      %1181 = vmatprep.subr.bf16.mxu0 0
      %1182 = vmatpush1.bf16.msra.mxu0 0
      %1183 = vmatprep.subr.bf16.mxu0 0
      %1184 = vmatpush1.bf16.msra.mxu0 %v1126
      %1185 = vmatprep.subr.bf16.mxu0 0
      %1186 = vmatpush2.bf16.msra.mxu0 0
      %1187 = vmatprep.subr.bf16.mxu0 0
      %1188 = vmatpush2.bf16.msra.mxu0 0
      %1189 = vmatprep.subr.bf16.mxu0 0
      %1190 = vmatpush2.bf16.msra.mxu0 0
      %1191 = vmatprep.subr.bf16.mxu0 0
      %1192 = vmatpush2.bf16.msra.mxu0 0
      %1193 = vmatprep.subr.bf16.mxu0 0
      %1194 = vmatpush2.bf16.msra.mxu0 0
      %1195 = vmatprep.subr.bf16.mxu0 0
      %1196 = vmatpush2.bf16.msra.mxu0 0
      %1197 = vmatprep.subr.bf16.mxu0 0
      %1198 = vmatpush2.bf16.msra.mxu0 0
      %1199 = vmatprep.subr.bf16.mxu0 0
      %1200 = vmatpush2.bf16.msra.mxu0 0
      %1201 = vmatprep.mubr.bf16.mxu0 0
      %1202 = vmatmul.mubr.bf16.gmra.mxu0 %v1117
      %v1203 = vpop.f32.mrf.mxu0
      %v1204 = vadd.f32 0.0, %v1203
      %v1205 = vpop.f32.mrf.mxu0
      %v1206 = vpop.f32.mrf.mxu0
      %v1207 = vpop.f32.mrf.mxu0
      %1208 = vdwg.mxu0
      %v1209 = vadd.f32 %v1073, %v1163
      %v1210 = vadd.f32 %v1074, %v1165
      %v1211 = vadd.f32 %v1075, %v1204
      %v1212 = vld [vmem:[%s135] sm:$0xf]
      %s1213 = scalar_lea.vmem %s0, 16
      %v1214 = vld [vmem:[%s1213] sm:$0x3]
      %v1217 = vunpack.c.l.s4 1966171168
      %v1218 = vunpack.c.0.s8 %v1217
      %v1219 = vlaneseq
      %v1220 = vshrl.u32 %v1219, 7
      %v1221 = vsub.s32 %v1218, %v1220
      %v1222 = vrot.slane %v1212, %v1221
      %v1223 = vcombine.high %v1222, %v1222
      %v1225 = vunpack.c.l.s4 1966171168
      %v1226 = vunpack.c.0.s8 %v1225
      %v1227 = vlaneseq
      %v1228 = vshrl.u32 %v1227, 7
      %v1229 = vsub.s32 %v1226, %v1228
      %v1230 = vrot.slane %v1222, %v1229
      %v1232 = vunpack.c.l.s4 1966171168
      %v1233 = vunpack.c.0.s8 %v1232
      %v1234 = vlaneseq
      %v1235 = vshrl.u32 %v1234, 7
      %v1236 = vsub.s32 %v1233, %v1235
      %v1237 = vrot.slane %v1223, %v1236
      %v1238 = vcombine.high %v1230, %v1230
      %v1239 = vcombine.high %v1237, %v1237
      %1240 = vrot.lane.b32.xlu0 %v1230, 90
      %v1241 = vpop.permute.xlu0 %1240
      %1242 = vrot.lane.b32.xlu0 %v1237, 90
      %v1243 = vpop.permute.xlu0 %1242
      %1244 = vrot.lane.b32.xlu0 %v1238, 90
      %v1245 = vpop.permute.xlu0 %1244
      %1246 = vrot.lane.b32.xlu0 %v1239, 90
      %v1247 = vpop.permute.xlu0 %1246
      %vm1248 = vcmask 736256
      %v1249 = vsel %vm1248, %v1241, %v1243
      %v1250 = vsel %vm1248, %v1243, %v1245
      %v1251 = vsel %vm1248, %v1245, %v1247
      %v1253 = vsel %vm184, %v1214, 0
      %v1256 = vsel %vm188, %v1249, 0
      %v1259 = vsel %vm188, %v1250, 0
      %v1262 = vsel %vm188, %v1251, 0
      %1264 = vmatprep.subr.bf16.mxu0 0
      %1265 = vmatpush1.bf16.msra.mxu0 0
      %1266 = vmatprep.subr.bf16.mxu0 0
      %1267 = vmatpush1.bf16.msra.mxu0 0
      %1268 = vmatprep.subr.bf16.mxu0 0
      %1269 = vmatpush1.bf16.msra.mxu0 0
      %1270 = vmatprep.subr.bf16.mxu0 0
      %1271 = vmatpush1.bf16.msra.mxu0 0
      %1272 = vmatprep.subr.bf16.mxu0 0
      %1273 = vmatpush1.bf16.msra.mxu0 0
      %1274 = vmatprep.subr.bf16.mxu0 0
      %1275 = vmatpush1.bf16.msra.mxu0 0
      %1276 = vmatprep.subr.bf16.mxu0 0
      %1277 = vmatpush1.bf16.msra.mxu0 0
      %1278 = vmatprep.subr.bf16.mxu0 %v1259
      %1279 = vmatpush1.bf16.msra.mxu0 %v1256
      %1280 = vmatprep.subr.bf16.mxu0 0
      %1281 = vmatpush2.bf16.msra.mxu0 0
      %1282 = vmatprep.subr.bf16.mxu0 0
      %1283 = vmatpush2.bf16.msra.mxu0 0
      %1284 = vmatprep.subr.bf16.mxu0 0
      %1285 = vmatpush2.bf16.msra.mxu0 0
      %1286 = vmatprep.subr.bf16.mxu0 0
      %1287 = vmatpush2.bf16.msra.mxu0 0
      %1288 = vmatprep.subr.bf16.mxu0 0
      %1289 = vmatpush2.bf16.msra.mxu0 0
      %1290 = vmatprep.subr.bf16.mxu0 0
      %1291 = vmatpush2.bf16.msra.mxu0 0
      %1292 = vmatprep.subr.bf16.mxu0 0
      %1293 = vmatpush2.bf16.msra.mxu0 0
      %1294 = vmatprep.subr.bf16.mxu0 0
      %1295 = vmatpush2.bf16.msra.mxu0 0
      %1296 = vmatprep.mubr.bf16.mxu0 0
      %1297 = vmatmul.mubr.bf16.gmra.mxu0 %v1253
      %v1298 = vpop.f32.mrf.mxu0
      %v1299 = vadd.f32 0.0, %v1298
      %v1300 = vpop.f32.mrf.mxu0
      %v1301 = vadd.f32 0.0, %v1300
      %v1302 = vpop.f32.mrf.mxu0
      %v1303 = vpop.f32.mrf.mxu0
      %1304 = vdwg.mxu0
      %1305 = vmatprep.subr.bf16.mxu0 0
      %1306 = vmatpush1.bf16.msra.mxu0 0
      %1307 = vmatprep.subr.bf16.mxu0 0
      %1308 = vmatpush1.bf16.msra.mxu0 0
      %1309 = vmatprep.subr.bf16.mxu0 0
      %1310 = vmatpush1.bf16.msra.mxu0 0
      %1311 = vmatprep.subr.bf16.mxu0 0
      %1312 = vmatpush1.bf16.msra.mxu0 0
      %1313 = vmatprep.subr.bf16.mxu0 0
      %1314 = vmatpush1.bf16.msra.mxu0 0
      %1315 = vmatprep.subr.bf16.mxu0 0
      %1316 = vmatpush1.bf16.msra.mxu0 0
      %1317 = vmatprep.subr.bf16.mxu0 0
      %1318 = vmatpush1.bf16.msra.mxu0 0
      %1319 = vmatprep.subr.bf16.mxu0 0
      %1320 = vmatpush1.bf16.msra.mxu0 %v1262
      %1321 = vmatprep.subr.bf16.mxu0 0
      %1322 = vmatpush2.bf16.msra.mxu0 0
      %1323 = vmatprep.subr.bf16.mxu0 0
      %1324 = vmatpush2.bf16.msra.mxu0 0
      %1325 = vmatprep.subr.bf16.mxu0 0
      %1326 = vmatpush2.bf16.msra.mxu0 0
      %1327 = vmatprep.subr.bf16.mxu0 0
      %1328 = vmatpush2.bf16.msra.mxu0 0
      %1329 = vmatprep.subr.bf16.mxu0 0
      %1330 = vmatpush2.bf16.msra.mxu0 0
      %1331 = vmatprep.subr.bf16.mxu0 0
      %1332 = vmatpush2.bf16.msra.mxu0 0
      %1333 = vmatprep.subr.bf16.mxu0 0
      %1334 = vmatpush2.bf16.msra.mxu0 0
      %1335 = vmatprep.subr.bf16.mxu0 0
      %1336 = vmatpush2.bf16.msra.mxu0 0
      %1337 = vmatprep.mubr.bf16.mxu0 0
      %1338 = vmatmul.mubr.bf16.gmra.mxu0 %v1253
      %v1339 = vpop.f32.mrf.mxu0
      %v1340 = vadd.f32 0.0, %v1339
      %v1341 = vpop.f32.mrf.mxu0
      %v1342 = vpop.f32.mrf.mxu0
      %v1343 = vpop.f32.mrf.mxu0
      %1344 = vdwg.mxu0
      %v1345 = vadd.f32 %v1209, %v1299
      %v1346 = vadd.f32 %v1210, %v1301
      %v1347 = vadd.f32 %v1211, %v1340
      %v1348 = vmax.f32 %v1345, 0.0
      %v1349 = vmax.f32 %v1346, 0.0
      %v1350 = vmax.f32 %v1347, 0.0
      %v1351 = vpack.c.bf16 %v1348, %v1348
      %v1352 = vpack.c.bf16 %v1349, %v1349
      %v1353 = vpack.c.bf16 %v1350, %v1350
      %v1357 = vcombine.low %v1351, %v1352
      %v1359 = vunpack.c.l.s4 1983009808
      %v1360 = vunpack.c.0.s8 %v1359
      %v1361 = vlaneseq
      %v1362 = vshrl.u32 %v1361, 7
      %v1363 = vsub.s32 %v1360, %v1362
      %v1364 = vrot.slane %v1357, %v1363
      %v1366 = vunpack.c.l.s4 1983009808
      %v1367 = vunpack.c.0.s8 %v1366
      %v1368 = vlaneseq
      %v1369 = vshrl.u32 %v1368, 7
      %v1370 = vsub.s32 %v1367, %v1369
      %v1371 = vrot.slane %v1353, %v1370
      %v1372 = vcombine.low %v1364, %v1371
      %1374 = vst [vmem:[%s140] sm:$0x3f] %v1372
      %p1375 = scmp.lt.s32.totalorder %s13, 1
      %s1376 = scalar_select %p1375, %s13, 1
      %s1377 = smul.addr %s1376, 3
      %s1378 = smul.addr %s1377, 2
      %s1379 = scalar_lea.vmem %s2, %s1378
      // Predicated region
      $region29: #{forward.19} parent=27 // pred_check
        %p1380 = pneg %p78
      $region30: #{forward.19} parent=27 // pred_check_branch
        %1382 = sbr.rel (%p1380) target = $region32
      $region31: #{forward.19} parent=27 // pred_region
        _
      $region32: #{forward.19} parent=27 // pred_fallthru
        _
    $region28: #{forward.19} parent=5 // pred_fallthru
      _
    %p1383 = scmp.le.s32.totalorder 2, %s8
    // Predicated region
    $region33: #{forward.19} parent=5 // pred_check
      %p1384 = pneg %p1383
    $region34: #{forward.19} parent=5 // pred_check_branch
      %1386 = sbr.rel (%p1384) target = $region36
    $region35: #{forward.19} parent=5 // pred_region
      %s1387 = ssub.s32 %s8, 2
      // Predicated region
      $region37: #{forward.19} parent=35 // pred_check
        %p1388 = pneg %p84
      $region38: #{forward.19} parent=35 // pred_check_branch
        %1390 = sbr.rel (%p1388) target = $region40
      $region39: #{forward.19} parent=35 // pred_region
        %p1391 = scmp.lt.s32.totalorder %s14, 1
        %s1392 = scalar_select %p1391, %s14, 1
        %s1393 = smul.addr %s1392, 3
        %s1394 = smul.addr %s1393, 2
        %s1395 = scalar_lea.vmem %s2, %s1394
      $region40: #{forward.19} parent=35 // pred_fallthru
        _
    $region36: #{forward.19} parent=5 // pred_fallthru
      _
  $region6: #{forward.19} parent=0 // loop_footer
    %s12 = sadd.s32 1, %s8
  $region7: #{forward.19} parent=0 // loop_footer_branch
    %7 = sbr.rel target = $region3
  $region8: #{forward.19} parent=0 // loop_exit
    _

// kernel: forward.20
$region0: #{forward.20}
  #allocation0 [shape = 'u32[]', space=smem, size = 0x4, offset = 0x4, fixed_abs, tag = 'smem constant byte address 0x4 - core index']
  #allocation1 [shape = 'u32[144,128]{1,0:T(1,128)}', space=vmem, size = 0x12000, scoped, tag = 'internal scratch']
  %s0 = inlined_call_operand.vmem [shape: bf16[9,4,5], index: 0, kind: input, shape index: {}]
  %s1 = inlined_call_operand.vmem [shape: bf16[2,5,512], index: 1, kind: input, shape index: {}]
  %s2 = inlined_call_operand.vmem [shape: bf16[2,4,384], index: 2, kind: output, shape index: {}]
  %s3 = sld [smem:[#allocation0]]
  $region41: #{forward.20} parent=0
    _
  %s5 = ssub.s32 1, %s3
  %s6 = scalar_select 0, %s5, %s3
  loop: start=0, step=1, limit=4
  $region2: #{forward.20} parent=0 // loop_pre_header
    _
  $region3: #{forward.20} parent=0 // loop_header
    %s8 = sphi 0, %s12
    %p9 = scmp.ge.s32.totalorder %s8, 4
    %s16 = sphi 0, %s16
    %s18 = sphi 0, %s16
    %s19 = sphi 0, %s18
    %s33 = sphi 0, %s19
    %s39 = sphi 0, %s41
    %s42 = sphi 0, %s39
    %s43 = sphi 0, %s42
    %s59 = sphi 0, %s43
    %s65 = sphi 0, %s67
    %s68 = sphi 0, %s65
    %s69 = sphi 0, %s68
    %s85 = sphi 0, %s69
  $region4: #{forward.20} parent=0 // loop_header_branch
    %11 = sbr.rel (%p9) target = $region8
  $region5: #{forward.20} parent=0 // loop_body
    %s13 = ssub.s32 %s8, 1
    %s14 = ssub.s32 %s8, 2
    %s15 = sadd.s32 %s8, 1
    %s17 = sadd.s32 %s16, 1
    %p20 = scmp.eq.s32.totalorder %s8, 1
    %p21 = scmp.ne.s32.totalorder %s16, %s18
    %p22 = scmp.eq.s32.totalorder %s8, 0
    %p23 = por %p21, %p22
    %p24 = scmp.ne.s32.totalorder %s16, %s18
    %p25 = scmp.eq.s32.totalorder %s13, 1
    %p26 = por %p24, %p25
    %p27 = scmp.ne.s32.totalorder %s18, %s19
    %p28 = scmp.eq.s32.totalorder %s13, 0
    %p29 = por %p27, %p28
    %p30 = scmp.ne.s32.totalorder %s18, %s19
    %p31 = scmp.eq.s32.totalorder %s14, 1
    %p32 = por %p30, %p31
    %p34 = scmp.ne.s32.totalorder %s19, %s33
    %p35 = scmp.eq.s32.totalorder %s14, 0
    %p36 = por %p34, %p35
    %s37 = ssub.s32 %s8, %s15
    %p38 = scmp.eq.s32.totalorder %s37, 0
    %s40 = sadd.s32 %s39, 1
    %s41 = scalar_select %p38, %s39, %s40
    %p44 = pneg %p38
    %p45 = scmp.eq.s32.totalorder %s8, 1
    %p46 = por %p44, %p45
    %p47 = scmp.ne.s32.totalorder %s39, %s42
    %p48 = scmp.eq.s32.totalorder %s8, 0
    %p49 = por %p47, %p48
    %p50 = scmp.ne.s32.totalorder %s39, %s42
    %p51 = scmp.eq.s32.totalorder %s13, 1
    %p52 = por %p50, %p51
    %p53 = scmp.ne.s32.totalorder %s42, %s43
    %p54 = scmp.eq.s32.totalorder %s13, 0
    %p55 = por %p53, %p54
    %p56 = scmp.ne.s32.totalorder %s42, %s43
    %p57 = scmp.eq.s32.totalorder %s14, 1
    %p58 = por %p56, %p57
    %p60 = scmp.ne.s32.totalorder %s43, %s59
    %p61 = scmp.eq.s32.totalorder %s14, 0
    %p62 = por %p60, %p61
    %s63 = ssub.s32 %s8, %s15
    %p64 = scmp.eq.s32.totalorder %s63, 0
    %s66 = sadd.s32 %s65, 1
    %s67 = scalar_select %p64, %s65, %s66
    %p70 = pneg %p64
    %p71 = scmp.eq.s32.totalorder %s8, 1
    %p72 = por %p70, %p71
    %p73 = scmp.ne.s32.totalorder %s65, %s68
    %p74 = scmp.eq.s32.totalorder %s8, 0
    %p75 = por %p73, %p74
    %p76 = scmp.ne.s32.totalorder %s65, %s68
    %p77 = scmp.eq.s32.totalorder %s13, 1
    %p78 = por %p76, %p77
    %p79 = scmp.ne.s32.totalorder %s68, %s69
    %p80 = scmp.eq.s32.totalorder %s13, 0
    %p81 = por %p79, %p80
    %p82 = scmp.ne.s32.totalorder %s68, %s69
    %p83 = scmp.eq.s32.totalorder %s14, 1
    %p84 = por %p82, %p83
    %p86 = scmp.ne.s32.totalorder %s69, %s85
    %p87 = scmp.eq.s32.totalorder %s14, 0
    %p88 = por %p86, %p87
    %p89 = scmp.le.s32.totalorder 1, %s8
    %p90 = scmp.lt.s32.totalorder %s8, 3
    %p91 = pnand %p89, %p90
    %p92 = pneg %p91
    // Predicated region
    $region9: #{forward.20} parent=5 // pred_check
      _
    $region10: #{forward.20} parent=5 // pred_check_branch
      %94 = sbr.rel (%p91) target = $region12
    $region11: #{forward.20} parent=5 // pred_region
      %s95 = ssub.s32 %s8, 1
      // Predicated region
      $region13: #{forward.20} parent=11 // pred_check
        %p96 = pneg %p29
      $region14: #{forward.20} parent=11 // pred_check_branch
        %98 = sbr.rel (%p96) target = $region16
      $region15: #{forward.20} parent=11 // pred_region
        _
      $region16: #{forward.20} parent=11 // pred_fallthru
        _
    $region12: #{forward.20} parent=5 // pred_fallthru
      _
    %p99 = scmp.lt.s32.totalorder %s8, 2
    // Predicated region
    $region17: #{forward.20} parent=5 // pred_check
      %p100 = pneg %p99
    $region18: #{forward.20} parent=5 // pred_check_branch
      %102 = sbr.rel (%p100) target = $region20
    $region19: #{forward.20} parent=5 // pred_region
      // Predicated region
      $region21: #{forward.20} parent=19 // pred_check
        %p103 = pneg %p49
      $region22: #{forward.20} parent=19 // pred_check_branch
        %105 = sbr.rel (%p103) target = $region24
      $region23: #{forward.20} parent=19 // pred_region
        %p106 = scmp.lt.s32.totalorder %s8, 1
        %s107 = scalar_select %p106, %s8, 1
        %s108 = smul.addr %s107, 4
        %s109 = smul.addr %s108, 4
        %s110 = scalar_lea.vmem %s1, %s109
      $region24: #{forward.20} parent=19 // pred_fallthru
        _
    $region20: #{forward.20} parent=5 // pred_fallthru
      _
    %p111 = scmp.le.s32.totalorder 1, %s8
    %p112 = scmp.lt.s32.totalorder %s8, 3
    %p113 = pnand %p111, %p112
    %p114 = pneg %p113
    // Predicated region
    $region25: #{forward.20} parent=5 // pred_check
      _
    $region26: #{forward.20} parent=5 // pred_check_branch
      %116 = sbr.rel (%p113) target = $region28
    $region27: #{forward.20} parent=5 // pred_region
      %s117 = ssub.s32 %s8, 1
      %p118 = pneg %p29
      %p119 = pneg %p26
      %p120 = scmp.lt.s32.totalorder %s13, 1
      %s121 = scalar_select %p120, %s13, 1
      %s122 = smul.addr %s121, 4
      %s123 = smul.addr %s122, 4
      %s124 = scalar_lea.vmem %s1, %s123
      %p125 = pneg %p55
      %p126 = pneg %p52
      %p127 = pneg %p81
      %p128 = pneg %p78
      %p129 = scmp.lt.s32.totalorder %s13, 1
      %s130 = scalar_select %p129, %s13, 1
      %s131 = smul.addr %s130, 3
      %s132 = smul.addr %s131, 2
      %s133 = scalar_lea.vmem %s2, %s132
      %p134 = scmp.lt.s32.totalorder %s13, 1
      %s135 = scalar_select %p134, %s13, 1
      %s136 = smul.addr %s135, 4
      %s137 = smul.addr %s136, 4
      %s138 = scalar_lea.vmem %s1, %s137
      %p139 = scmp.lt.s32.totalorder %s13, 1
      %s140 = scalar_select %p139, %s13, 1
      %s141 = smul.addr %s140, 3
      %s142 = smul.addr %s141, 2
      %s143 = scalar_lea.vmem %s2, %s142
      %v145 = vld [vmem:[%s138] sm:$0x77]
      %v146 = vld [vmem:[%s138 + $0x8] sm:$0x7]
      %v147 = vld [vmem:[%s0] sm:$0x3]
      %v148 = vld [vmem:[%s138 + $0x8] sm:$0x77]
      %s149 = scalar_lea.vmem %s0, 2
      %v150 = vld [vmem:[%s149] sm:$0x3]
      %v153 = vunpack.c.l.b16 %v145
      %v154 = vunpack.c.h.b16 %v145
      %v155 = vunpack.c.l.b16 %v148
      %v156 = vunpack.c.h.b16 %v148
      %v157 = vpack.c.b16 %v153, %v153
      %v158 = vpack.c.b16 %v154, %v154
      %v159 = vpack.c.b16 %v155, %v155
      %v160 = vpack.c.b16 %v156, %v156
      %161 = vrot.lane.b32.xlu0 %v157, 127
      %v162 = vpop.permute.xlu0 %161
      %163 = vrot.lane.b32.xlu0 %v158, 127
      %v164 = vpop.permute.xlu0 %163
      %165 = vrot.lane.b32.xlu0 %v159, 127
      %v166 = vpop.permute.xlu0 %165
      %167 = vrot.lane.b32.xlu0 %v160, 127
      %v168 = vpop.permute.xlu0 %167
      %vm169 = vcmask 1039360
      %v170 = vsel %vm169, %v162, %v164
      %v171 = vsel %vm169, %v164, %v166
      %v172 = vsel %vm169, %v166, %v168
      %vm173 = vcmask 39936
      %v175 = vsel %vm173, %v150, 0
      %vm177 = vcmask 1041408
      %vm178 = vcmask 1042432
      %v179 = vsel %vm177, 4294967295, 65535
      %v180 = vsel %vm178, %v179, 0
      %v182 = vand.u32 %v170, %v180
      %v185 = vand.u32 %v171, %v180
      %v188 = vand.u32 %v172, %v180
      %190 = vmatprep.subr.bf16.mxu0 0
      %191 = vmatpush1.bf16.msra.mxu0 0
      %192 = vmatprep.subr.bf16.mxu0 0
      %193 = vmatpush1.bf16.msra.mxu0 0
      %194 = vmatprep.subr.bf16.mxu0 0
      %195 = vmatpush1.bf16.msra.mxu0 0
      %196 = vmatprep.subr.bf16.mxu0 0
      %197 = vmatpush1.bf16.msra.mxu0 0
      %198 = vmatprep.subr.bf16.mxu0 0
      %199 = vmatpush1.bf16.msra.mxu0 0
      %200 = vmatprep.subr.bf16.mxu0 0
      %201 = vmatpush1.bf16.msra.mxu0 0
      %202 = vmatprep.subr.bf16.mxu0 0
      %203 = vmatpush1.bf16.msra.mxu0 0
      %204 = vmatprep.subr.bf16.mxu0 %v185
      %205 = vmatpush1.bf16.msra.mxu0 %v182
      %206 = vmatprep.subr.bf16.mxu0 0
      %207 = vmatpush2.bf16.msra.mxu0 0
      %208 = vmatprep.subr.bf16.mxu0 0
      %209 = vmatpush2.bf16.msra.mxu0 0
      %210 = vmatprep.subr.bf16.mxu0 0
      %211 = vmatpush2.bf16.msra.mxu0 0
      %212 = vmatprep.subr.bf16.mxu0 0
      %213 = vmatpush2.bf16.msra.mxu0 0
      %214 = vmatprep.subr.bf16.mxu0 0
      %215 = vmatpush2.bf16.msra.mxu0 0
      %216 = vmatprep.subr.bf16.mxu0 0
      %217 = vmatpush2.bf16.msra.mxu0 0
      %218 = vmatprep.subr.bf16.mxu0 0
      %219 = vmatpush2.bf16.msra.mxu0 0
      %220 = vmatprep.subr.bf16.mxu0 0
      %221 = vmatpush2.bf16.msra.mxu0 0
      %222 = vmatprep.mubr.bf16.mxu0 0
      %223 = vmatmul.mubr.bf16.gmra.mxu0 %v175
      %v224 = vpop.f32.mrf.mxu0
      %v225 = vadd.f32 0.0, %v224
      %v226 = vpop.f32.mrf.mxu0
      %v227 = vadd.f32 0.0, %v226
      %v228 = vpop.f32.mrf.mxu0
      %v229 = vpop.f32.mrf.mxu0
      %230 = vdwg.mxu0
      %231 = vmatprep.subr.bf16.mxu0 0
      %232 = vmatpush1.bf16.msra.mxu0 0
      %233 = vmatprep.subr.bf16.mxu0 0
      %234 = vmatpush1.bf16.msra.mxu0 0
      %235 = vmatprep.subr.bf16.mxu0 0
      %236 = vmatpush1.bf16.msra.mxu0 0
      %237 = vmatprep.subr.bf16.mxu0 0
      %238 = vmatpush1.bf16.msra.mxu0 0
      %239 = vmatprep.subr.bf16.mxu0 0
      %240 = vmatpush1.bf16.msra.mxu0 0
      %241 = vmatprep.subr.bf16.mxu0 0
      %242 = vmatpush1.bf16.msra.mxu0 0
      %243 = vmatprep.subr.bf16.mxu0 0
      %244 = vmatpush1.bf16.msra.mxu0 0
      %245 = vmatprep.subr.bf16.mxu0 0
      %246 = vmatpush1.bf16.msra.mxu0 %v188
      %247 = vmatprep.subr.bf16.mxu0 0
      %248 = vmatpush2.bf16.msra.mxu0 0
      %249 = vmatprep.subr.bf16.mxu0 0
      %250 = vmatpush2.bf16.msra.mxu0 0
      %251 = vmatprep.subr.bf16.mxu0 0
      %252 = vmatpush2.bf16.msra.mxu0 0
      %253 = vmatprep.subr.bf16.mxu0 0
      %254 = vmatpush2.bf16.msra.mxu0 0
      %255 = vmatprep.subr.bf16.mxu0 0
      %256 = vmatpush2.bf16.msra.mxu0 0
      %257 = vmatprep.subr.bf16.mxu0 0
      %258 = vmatpush2.bf16.msra.mxu0 0
      %259 = vmatprep.subr.bf16.mxu0 0
      %260 = vmatpush2.bf16.msra.mxu0 0
      %261 = vmatprep.subr.bf16.mxu0 0
      %262 = vmatpush2.bf16.msra.mxu0 0
      %263 = vmatprep.mubr.bf16.mxu0 0
      %264 = vmatmul.mubr.bf16.gmra.mxu0 %v175
      %v265 = vpop.f32.mrf.mxu0
      %v266 = vadd.f32 0.0, %v265
      %v267 = vpop.f32.mrf.mxu0
      %v268 = vpop.f32.mrf.mxu0
      %v269 = vpop.f32.mrf.mxu0
      %270 = vdwg.mxu0
      %v272 = vunpack.c.l.b16 %v146
      %v273 = vpack.c.b16 %v272, %v272
      %v275 = vsel %vm173, %v147, 0
      %v278 = vand.u32 %v157, %v180
      %v281 = vand.u32 %v158, %v180
      %v284 = vand.u32 %v273, %v180
      %286 = vmatprep.subr.bf16.mxu0 0
      %287 = vmatpush1.bf16.msra.mxu0 0
      %288 = vmatprep.subr.bf16.mxu0 0
      %289 = vmatpush1.bf16.msra.mxu0 0
      %290 = vmatprep.subr.bf16.mxu0 0
      %291 = vmatpush1.bf16.msra.mxu0 0
      %292 = vmatprep.subr.bf16.mxu0 0
      %293 = vmatpush1.bf16.msra.mxu0 0
      %294 = vmatprep.subr.bf16.mxu0 0
      %295 = vmatpush1.bf16.msra.mxu0 0
      %296 = vmatprep.subr.bf16.mxu0 0
      %297 = vmatpush1.bf16.msra.mxu0 0
      %298 = vmatprep.subr.bf16.mxu0 0
      %299 = vmatpush1.bf16.msra.mxu0 0
      %300 = vmatprep.subr.bf16.mxu0 %v281
      %301 = vmatpush1.bf16.msra.mxu0 %v278
      %302 = vmatprep.subr.bf16.mxu0 0
      %303 = vmatpush2.bf16.msra.mxu0 0
      %304 = vmatprep.subr.bf16.mxu0 0
      %305 = vmatpush2.bf16.msra.mxu0 0
      %306 = vmatprep.subr.bf16.mxu0 0
      %307 = vmatpush2.bf16.msra.mxu0 0
      %308 = vmatprep.subr.bf16.mxu0 0
      %309 = vmatpush2.bf16.msra.mxu0 0
      %310 = vmatprep.subr.bf16.mxu0 0
      %311 = vmatpush2.bf16.msra.mxu0 0
      %312 = vmatprep.subr.bf16.mxu0 0
      %313 = vmatpush2.bf16.msra.mxu0 0
      %314 = vmatprep.subr.bf16.mxu0 0
      %315 = vmatpush2.bf16.msra.mxu0 0
      %316 = vmatprep.subr.bf16.mxu0 0
      %317 = vmatpush2.bf16.msra.mxu0 0
      %318 = vmatprep.mubr.bf16.mxu0 0
      %319 = vmatmul.mubr.bf16.gmra.mxu0 %v275
      %v320 = vpop.f32.mrf.mxu0
      %v321 = vadd.f32 %v225, %v320
      %v322 = vpop.f32.mrf.mxu0
      %v323 = vadd.f32 %v227, %v322
      %v324 = vpop.f32.mrf.mxu0
      %v325 = vpop.f32.mrf.mxu0
      %326 = vdwg.mxu0
      %327 = vmatprep.subr.bf16.mxu0 0
      %328 = vmatpush1.bf16.msra.mxu0 0
      %329 = vmatprep.subr.bf16.mxu0 0
      %330 = vmatpush1.bf16.msra.mxu0 0
      %331 = vmatprep.subr.bf16.mxu0 0
      %332 = vmatpush1.bf16.msra.mxu0 0
      %333 = vmatprep.subr.bf16.mxu0 0
      %334 = vmatpush1.bf16.msra.mxu0 0
      %335 = vmatprep.subr.bf16.mxu0 0
      %336 = vmatpush1.bf16.msra.mxu0 0
      %337 = vmatprep.subr.bf16.mxu0 0
      %338 = vmatpush1.bf16.msra.mxu0 0
      %339 = vmatprep.subr.bf16.mxu0 0
      %340 = vmatpush1.bf16.msra.mxu0 0
      %341 = vmatprep.subr.bf16.mxu0 0
      %342 = vmatpush1.bf16.msra.mxu0 %v284
      %343 = vmatprep.subr.bf16.mxu0 0
      %344 = vmatpush2.bf16.msra.mxu0 0
      %345 = vmatprep.subr.bf16.mxu0 0
      %346 = vmatpush2.bf16.msra.mxu0 0
      %347 = vmatprep.subr.bf16.mxu0 0
      %348 = vmatpush2.bf16.msra.mxu0 0
      %349 = vmatprep.subr.bf16.mxu0 0
      %350 = vmatpush2.bf16.msra.mxu0 0
      %351 = vmatprep.subr.bf16.mxu0 0
      %352 = vmatpush2.bf16.msra.mxu0 0
      %353 = vmatprep.subr.bf16.mxu0 0
      %354 = vmatpush2.bf16.msra.mxu0 0
      %355 = vmatprep.subr.bf16.mxu0 0
      %356 = vmatpush2.bf16.msra.mxu0 0
      %357 = vmatprep.subr.bf16.mxu0 0
      %358 = vmatpush2.bf16.msra.mxu0 0
      %359 = vmatprep.mubr.bf16.mxu0 0
      %360 = vmatmul.mubr.bf16.gmra.mxu0 %v275
      %v361 = vpop.f32.mrf.mxu0
      %v362 = vadd.f32 %v266, %v361
      %v363 = vpop.f32.mrf.mxu0
      %v364 = vpop.f32.mrf.mxu0
      %v365 = vpop.f32.mrf.mxu0
      %366 = vdwg.mxu0
      %s367 = scalar_lea.vmem %s0, 4
      %v368 = vld [vmem:[%s367] sm:$0x3]
      %369 = vrot.lane.b32.xlu0 %v157, 126
      %v370 = vpop.permute.xlu0 %369
      %371 = vrot.lane.b32.xlu0 %v158, 126
      %v372 = vpop.permute.xlu0 %371
      %373 = vrot.lane.b32.xlu0 %v159, 126
      %v374 = vpop.permute.xlu0 %373
      %375 = vrot.lane.b32.xlu0 %v160, 126
      %v376 = vpop.permute.xlu0 %375
      %vm377 = vcmask 1031168
      %v378 = vsel %vm377, %v370, %v372
      %v379 = vsel %vm377, %v372, %v374
      %v380 = vsel %vm377, %v374, %v376
      %v382 = vsel %vm173, %v368, 0
      %v385 = vand.u32 %v378, %v180
      %v388 = vand.u32 %v379, %v180
      %v391 = vand.u32 %v380, %v180
      %393 = vmatprep.subr.bf16.mxu0 0
      %394 = vmatpush1.bf16.msra.mxu0 0
      %395 = vmatprep.subr.bf16.mxu0 0
      %396 = vmatpush1.bf16.msra.mxu0 0
      %397 = vmatprep.subr.bf16.mxu0 0
      %398 = vmatpush1.bf16.msra.mxu0 0
      %399 = vmatprep.subr.bf16.mxu0 0
      %400 = vmatpush1.bf16.msra.mxu0 0
      %401 = vmatprep.subr.bf16.mxu0 0
      %402 = vmatpush1.bf16.msra.mxu0 0
      %403 = vmatprep.subr.bf16.mxu0 0
      %404 = vmatpush1.bf16.msra.mxu0 0
      %405 = vmatprep.subr.bf16.mxu0 0
      %406 = vmatpush1.bf16.msra.mxu0 0
      %407 = vmatprep.subr.bf16.mxu0 %v388
      %408 = vmatpush1.bf16.msra.mxu0 %v385
      %409 = vmatprep.subr.bf16.mxu0 0
      %410 = vmatpush2.bf16.msra.mxu0 0
      %411 = vmatprep.subr.bf16.mxu0 0
      %412 = vmatpush2.bf16.msra.mxu0 0
      %413 = vmatprep.subr.bf16.mxu0 0
      %414 = vmatpush2.bf16.msra.mxu0 0
      %415 = vmatprep.subr.bf16.mxu0 0
      %416 = vmatpush2.bf16.msra.mxu0 0
      %417 = vmatprep.subr.bf16.mxu0 0
      %418 = vmatpush2.bf16.msra.mxu0 0
      %419 = vmatprep.subr.bf16.mxu0 0
      %420 = vmatpush2.bf16.msra.mxu0 0
      %421 = vmatprep.subr.bf16.mxu0 0
      %422 = vmatpush2.bf16.msra.mxu0 0
      %423 = vmatprep.subr.bf16.mxu0 0
      %424 = vmatpush2.bf16.msra.mxu0 0
      %425 = vmatprep.mubr.bf16.mxu0 0
      %426 = vmatmul.mubr.bf16.gmra.mxu0 %v382
      %v427 = vpop.f32.mrf.mxu0
      %v428 = vadd.f32 0.0, %v427
      %v429 = vpop.f32.mrf.mxu0
      %v430 = vadd.f32 0.0, %v429
      %v431 = vpop.f32.mrf.mxu0
      %v432 = vpop.f32.mrf.mxu0
      %433 = vdwg.mxu0
      %434 = vmatprep.subr.bf16.mxu0 0
      %435 = vmatpush1.bf16.msra.mxu0 0
      %436 = vmatprep.subr.bf16.mxu0 0
      %437 = vmatpush1.bf16.msra.mxu0 0
      %438 = vmatprep.subr.bf16.mxu0 0
      %439 = vmatpush1.bf16.msra.mxu0 0
      %440 = vmatprep.subr.bf16.mxu0 0
      %441 = vmatpush1.bf16.msra.mxu0 0
      %442 = vmatprep.subr.bf16.mxu0 0
      %443 = vmatpush1.bf16.msra.mxu0 0
      %444 = vmatprep.subr.bf16.mxu0 0
      %445 = vmatpush1.bf16.msra.mxu0 0
      %446 = vmatprep.subr.bf16.mxu0 0
      %447 = vmatpush1.bf16.msra.mxu0 0
      %448 = vmatprep.subr.bf16.mxu0 0
      %449 = vmatpush1.bf16.msra.mxu0 %v391
      %450 = vmatprep.subr.bf16.mxu0 0
      %451 = vmatpush2.bf16.msra.mxu0 0
      %452 = vmatprep.subr.bf16.mxu0 0
      %453 = vmatpush2.bf16.msra.mxu0 0
      %454 = vmatprep.subr.bf16.mxu0 0
      %455 = vmatpush2.bf16.msra.mxu0 0
      %456 = vmatprep.subr.bf16.mxu0 0
      %457 = vmatpush2.bf16.msra.mxu0 0
      %458 = vmatprep.subr.bf16.mxu0 0
      %459 = vmatpush2.bf16.msra.mxu0 0
      %460 = vmatprep.subr.bf16.mxu0 0
      %461 = vmatpush2.bf16.msra.mxu0 0
      %462 = vmatprep.subr.bf16.mxu0 0
      %463 = vmatpush2.bf16.msra.mxu0 0
      %464 = vmatprep.subr.bf16.mxu0 0
      %465 = vmatpush2.bf16.msra.mxu0 0
      %466 = vmatprep.mubr.bf16.mxu0 0
      %467 = vmatmul.mubr.bf16.gmra.mxu0 %v382
      %v468 = vpop.f32.mrf.mxu0
      %v469 = vadd.f32 0.0, %v468
      %v470 = vpop.f32.mrf.mxu0
      %v471 = vpop.f32.mrf.mxu0
      %v472 = vpop.f32.mrf.mxu0
      %473 = vdwg.mxu0
      %v474 = vadd.f32 %v321, %v428
      %v475 = vadd.f32 %v323, %v430
      %v476 = vadd.f32 %v362, %v469
      %s477 = scalar_lea.vmem %s0, 6
      %v478 = vld [vmem:[%s477] sm:$0x3]
      %479 = vrot.lane.b32.xlu0 %v157, 110
      %v480 = vpop.permute.xlu0 %479
      %481 = vrot.lane.b32.xlu0 %v158, 110
      %v482 = vpop.permute.xlu0 %481
      %483 = vrot.lane.b32.xlu0 %v159, 110
      %v484 = vpop.permute.xlu0 %483
      %485 = vrot.lane.b32.xlu0 %v160, 110
      %v486 = vpop.permute.xlu0 %485
      %vm487 = vcmask 900096
      %v488 = vsel %vm487, %v480, %v482
      %v489 = vsel %vm487, %v482, %v484
      %v490 = vsel %vm487, %v484, %v486
      %v492 = vsel %vm173, %v478, 0
      %v495 = vand.u32 %v488, %v180
      %v498 = vand.u32 %v489, %v180
      %v501 = vand.u32 %v490, %v180
      %503 = vmatprep.subr.bf16.mxu0 0
      %504 = vmatpush1.bf16.msra.mxu0 0
      %505 = vmatprep.subr.bf16.mxu0 0
      %506 = vmatpush1.bf16.msra.mxu0 0
      %507 = vmatprep.subr.bf16.mxu0 0
      %508 = vmatpush1.bf16.msra.mxu0 0
      %509 = vmatprep.subr.bf16.mxu0 0
      %510 = vmatpush1.bf16.msra.mxu0 0
      %511 = vmatprep.subr.bf16.mxu0 0
      %512 = vmatpush1.bf16.msra.mxu0 0
      %513 = vmatprep.subr.bf16.mxu0 0
      %514 = vmatpush1.bf16.msra.mxu0 0
      %515 = vmatprep.subr.bf16.mxu0 0
      %516 = vmatpush1.bf16.msra.mxu0 0
      %517 = vmatprep.subr.bf16.mxu0 %v498
      %518 = vmatpush1.bf16.msra.mxu0 %v495
      %519 = vmatprep.subr.bf16.mxu0 0
      %520 = vmatpush2.bf16.msra.mxu0 0
      %521 = vmatprep.subr.bf16.mxu0 0
      %522 = vmatpush2.bf16.msra.mxu0 0
      %523 = vmatprep.subr.bf16.mxu0 0
      %524 = vmatpush2.bf16.msra.mxu0 0
      %525 = vmatprep.subr.bf16.mxu0 0
      %526 = vmatpush2.bf16.msra.mxu0 0
      %527 = vmatprep.subr.bf16.mxu0 0
      %528 = vmatpush2.bf16.msra.mxu0 0
      %529 = vmatprep.subr.bf16.mxu0 0
      %530 = vmatpush2.bf16.msra.mxu0 0
      %531 = vmatprep.subr.bf16.mxu0 0
      %532 = vmatpush2.bf16.msra.mxu0 0
      %533 = vmatprep.subr.bf16.mxu0 0
      %534 = vmatpush2.bf16.msra.mxu0 0
      %535 = vmatprep.mubr.bf16.mxu0 0
      %536 = vmatmul.mubr.bf16.gmra.mxu0 %v492
      %v537 = vpop.f32.mrf.mxu0
      %v538 = vadd.f32 0.0, %v537
      %v539 = vpop.f32.mrf.mxu0
      %v540 = vadd.f32 0.0, %v539
      %v541 = vpop.f32.mrf.mxu0
      %v542 = vpop.f32.mrf.mxu0
      %543 = vdwg.mxu0
      %544 = vmatprep.subr.bf16.mxu0 0
      %545 = vmatpush1.bf16.msra.mxu0 0
      %546 = vmatprep.subr.bf16.mxu0 0
      %547 = vmatpush1.bf16.msra.mxu0 0
      %548 = vmatprep.subr.bf16.mxu0 0
      %549 = vmatpush1.bf16.msra.mxu0 0
      %550 = vmatprep.subr.bf16.mxu0 0
      %551 = vmatpush1.bf16.msra.mxu0 0
      %552 = vmatprep.subr.bf16.mxu0 0
      %553 = vmatpush1.bf16.msra.mxu0 0
      %554 = vmatprep.subr.bf16.mxu0 0
      %555 = vmatpush1.bf16.msra.mxu0 0
      %556 = vmatprep.subr.bf16.mxu0 0
      %557 = vmatpush1.bf16.msra.mxu0 0
      %558 = vmatprep.subr.bf16.mxu0 0
      %559 = vmatpush1.bf16.msra.mxu0 %v501
      %560 = vmatprep.subr.bf16.mxu0 0
      %561 = vmatpush2.bf16.msra.mxu0 0
      %562 = vmatprep.subr.bf16.mxu0 0
      %563 = vmatpush2.bf16.msra.mxu0 0
      %564 = vmatprep.subr.bf16.mxu0 0
      %565 = vmatpush2.bf16.msra.mxu0 0
      %566 = vmatprep.subr.bf16.mxu0 0
      %567 = vmatpush2.bf16.msra.mxu0 0
      %568 = vmatprep.subr.bf16.mxu0 0
      %569 = vmatpush2.bf16.msra.mxu0 0
      %570 = vmatprep.subr.bf16.mxu0 0
      %571 = vmatpush2.bf16.msra.mxu0 0
      %572 = vmatprep.subr.bf16.mxu0 0
      %573 = vmatpush2.bf16.msra.mxu0 0
      %574 = vmatprep.subr.bf16.mxu0 0
      %575 = vmatpush2.bf16.msra.mxu0 0
      %576 = vmatprep.mubr.bf16.mxu0 0
      %577 = vmatmul.mubr.bf16.gmra.mxu0 %v492
      %v578 = vpop.f32.mrf.mxu0
      %v579 = vadd.f32 0.0, %v578
      %v580 = vpop.f32.mrf.mxu0
      %v581 = vpop.f32.mrf.mxu0
      %v582 = vpop.f32.mrf.mxu0
      %583 = vdwg.mxu0
      %v584 = vadd.f32 %v474, %v538
      %v585 = vadd.f32 %v475, %v540
      %v586 = vadd.f32 %v476, %v579
      %s587 = scalar_lea.vmem %s0, 8
      %v588 = vld [vmem:[%s587] sm:$0x3]
      %589 = vrot.lane.b32.xlu0 %v157, 109
      %v590 = vpop.permute.xlu0 %589
      %591 = vrot.lane.b32.xlu0 %v158, 109
      %v592 = vpop.permute.xlu0 %591
      %593 = vrot.lane.b32.xlu0 %v159, 109
      %v594 = vpop.permute.xlu0 %593
      %595 = vrot.lane.b32.xlu0 %v160, 109
      %v596 = vpop.permute.xlu0 %595
      %vm597 = vcmask 891904
      %v598 = vsel %vm597, %v590, %v592
      %v599 = vsel %vm597, %v592, %v594
      %v600 = vsel %vm597, %v594, %v596
      %v602 = vsel %vm173, %v588, 0
      %v605 = vand.u32 %v598, %v180
      %v608 = vand.u32 %v599, %v180
      %v611 = vand.u32 %v600, %v180
      %613 = vmatprep.subr.bf16.mxu0 0
      %614 = vmatpush1.bf16.msra.mxu0 0
      %615 = vmatprep.subr.bf16.mxu0 0
      %616 = vmatpush1.bf16.msra.mxu0 0
      %617 = vmatprep.subr.bf16.mxu0 0
      %618 = vmatpush1.bf16.msra.mxu0 0
      %619 = vmatprep.subr.bf16.mxu0 0
      %620 = vmatpush1.bf16.msra.mxu0 0
      %621 = vmatprep.subr.bf16.mxu0 0
      %622 = vmatpush1.bf16.msra.mxu0 0
      %623 = vmatprep.subr.bf16.mxu0 0
      %624 = vmatpush1.bf16.msra.mxu0 0
      %625 = vmatprep.subr.bf16.mxu0 0
      %626 = vmatpush1.bf16.msra.mxu0 0
      %627 = vmatprep.subr.bf16.mxu0 %v608
      %628 = vmatpush1.bf16.msra.mxu0 %v605
      %629 = vmatprep.subr.bf16.mxu0 0
      %630 = vmatpush2.bf16.msra.mxu0 0
      %631 = vmatprep.subr.bf16.mxu0 0
      %632 = vmatpush2.bf16.msra.mxu0 0
      %633 = vmatprep.subr.bf16.mxu0 0
      %634 = vmatpush2.bf16.msra.mxu0 0
      %635 = vmatprep.subr.bf16.mxu0 0
      %636 = vmatpush2.bf16.msra.mxu0 0
      %637 = vmatprep.subr.bf16.mxu0 0
      %638 = vmatpush2.bf16.msra.mxu0 0
      %639 = vmatprep.subr.bf16.mxu0 0
      %640 = vmatpush2.bf16.msra.mxu0 0
      %641 = vmatprep.subr.bf16.mxu0 0
      %642 = vmatpush2.bf16.msra.mxu0 0
      %643 = vmatprep.subr.bf16.mxu0 0
      %644 = vmatpush2.bf16.msra.mxu0 0
      %645 = vmatprep.mubr.bf16.mxu0 0
      %646 = vmatmul.mubr.bf16.gmra.mxu0 %v602
      %v647 = vpop.f32.mrf.mxu0
      %v648 = vadd.f32 0.0, %v647
      %v649 = vpop.f32.mrf.mxu0
      %v650 = vadd.f32 0.0, %v649
      %v651 = vpop.f32.mrf.mxu0
      %v652 = vpop.f32.mrf.mxu0
      %653 = vdwg.mxu0
      %654 = vmatprep.subr.bf16.mxu0 0
      %655 = vmatpush1.bf16.msra.mxu0 0
      %656 = vmatprep.subr.bf16.mxu0 0
      %657 = vmatpush1.bf16.msra.mxu0 0
      %658 = vmatprep.subr.bf16.mxu0 0
      %659 = vmatpush1.bf16.msra.mxu0 0
      %660 = vmatprep.subr.bf16.mxu0 0
      %661 = vmatpush1.bf16.msra.mxu0 0
      %662 = vmatprep.subr.bf16.mxu0 0
      %663 = vmatpush1.bf16.msra.mxu0 0
      %664 = vmatprep.subr.bf16.mxu0 0
      %665 = vmatpush1.bf16.msra.mxu0 0
      %666 = vmatprep.subr.bf16.mxu0 0
      %667 = vmatpush1.bf16.msra.mxu0 0
      %668 = vmatprep.subr.bf16.mxu0 0
      %669 = vmatpush1.bf16.msra.mxu0 %v611
      %670 = vmatprep.subr.bf16.mxu0 0
      %671 = vmatpush2.bf16.msra.mxu0 0
      %672 = vmatprep.subr.bf16.mxu0 0
      %673 = vmatpush2.bf16.msra.mxu0 0
      %674 = vmatprep.subr.bf16.mxu0 0
      %675 = vmatpush2.bf16.msra.mxu0 0
      %676 = vmatprep.subr.bf16.mxu0 0
      %677 = vmatpush2.bf16.msra.mxu0 0
      %678 = vmatprep.subr.bf16.mxu0 0
      %679 = vmatpush2.bf16.msra.mxu0 0
      %680 = vmatprep.subr.bf16.mxu0 0
      %681 = vmatpush2.bf16.msra.mxu0 0
      %682 = vmatprep.subr.bf16.mxu0 0
      %683 = vmatpush2.bf16.msra.mxu0 0
      %684 = vmatprep.subr.bf16.mxu0 0
      %685 = vmatpush2.bf16.msra.mxu0 0
      %686 = vmatprep.mubr.bf16.mxu0 0
      %687 = vmatmul.mubr.bf16.gmra.mxu0 %v602
      %v688 = vpop.f32.mrf.mxu0
      %v689 = vadd.f32 0.0, %v688
      %v690 = vpop.f32.mrf.mxu0
      %v691 = vpop.f32.mrf.mxu0
      %v692 = vpop.f32.mrf.mxu0
      %693 = vdwg.mxu0
      %v694 = vadd.f32 %v584, %v648
      %v695 = vadd.f32 %v585, %v650
      %v696 = vadd.f32 %v586, %v689
      %s697 = scalar_lea.vmem %s0, 10
      %v698 = vld [vmem:[%s697] sm:$0x3]
      %699 = vrot.lane.b32.xlu0 %v157, 108
      %v700 = vpop.permute.xlu0 %699
      %701 = vrot.lane.b32.xlu0 %v158, 108
      %v702 = vpop.permute.xlu0 %701
      %703 = vrot.lane.b32.xlu0 %v159, 108
      %v704 = vpop.permute.xlu0 %703
      %705 = vrot.lane.b32.xlu0 %v160, 108
      %v706 = vpop.permute.xlu0 %705
      %vm707 = vcmask 883712
      %v708 = vsel %vm707, %v700, %v702
      %v709 = vsel %vm707, %v702, %v704
      %v710 = vsel %vm707, %v704, %v706
      %v712 = vsel %vm173, %v698, 0
      %v715 = vand.u32 %v708, %v180
      %v718 = vand.u32 %v709, %v180
      %v721 = vand.u32 %v710, %v180
      %723 = vmatprep.subr.bf16.mxu0 0
      %724 = vmatpush1.bf16.msra.mxu0 0
      %725 = vmatprep.subr.bf16.mxu0 0
      %726 = vmatpush1.bf16.msra.mxu0 0
      %727 = vmatprep.subr.bf16.mxu0 0
      %728 = vmatpush1.bf16.msra.mxu0 0
      %729 = vmatprep.subr.bf16.mxu0 0
      %730 = vmatpush1.bf16.msra.mxu0 0
      %731 = vmatprep.subr.bf16.mxu0 0
      %732 = vmatpush1.bf16.msra.mxu0 0
      %733 = vmatprep.subr.bf16.mxu0 0
      %734 = vmatpush1.bf16.msra.mxu0 0
      %735 = vmatprep.subr.bf16.mxu0 0
      %736 = vmatpush1.bf16.msra.mxu0 0
      %737 = vmatprep.subr.bf16.mxu0 %v718
      %738 = vmatpush1.bf16.msra.mxu0 %v715
      %739 = vmatprep.subr.bf16.mxu0 0
      %740 = vmatpush2.bf16.msra.mxu0 0
      %741 = vmatprep.subr.bf16.mxu0 0
      %742 = vmatpush2.bf16.msra.mxu0 0
      %743 = vmatprep.subr.bf16.mxu0 0
      %744 = vmatpush2.bf16.msra.mxu0 0
      %745 = vmatprep.subr.bf16.mxu0 0
      %746 = vmatpush2.bf16.msra.mxu0 0
      %747 = vmatprep.subr.bf16.mxu0 0
      %748 = vmatpush2.bf16.msra.mxu0 0
      %749 = vmatprep.subr.bf16.mxu0 0
      %750 = vmatpush2.bf16.msra.mxu0 0
      %751 = vmatprep.subr.bf16.mxu0 0
      %752 = vmatpush2.bf16.msra.mxu0 0
      %753 = vmatprep.subr.bf16.mxu0 0
      %754 = vmatpush2.bf16.msra.mxu0 0
      %755 = vmatprep.mubr.bf16.mxu0 0
      %756 = vmatmul.mubr.bf16.gmra.mxu0 %v712
      %v757 = vpop.f32.mrf.mxu0
      %v758 = vadd.f32 0.0, %v757
      %v759 = vpop.f32.mrf.mxu0
      %v760 = vadd.f32 0.0, %v759
      %v761 = vpop.f32.mrf.mxu0
      %v762 = vpop.f32.mrf.mxu0
      %763 = vdwg.mxu0
      %764 = vmatprep.subr.bf16.mxu0 0
      %765 = vmatpush1.bf16.msra.mxu0 0
      %766 = vmatprep.subr.bf16.mxu0 0
      %767 = vmatpush1.bf16.msra.mxu0 0
      %768 = vmatprep.subr.bf16.mxu0 0
      %769 = vmatpush1.bf16.msra.mxu0 0
      %770 = vmatprep.subr.bf16.mxu0 0
      %771 = vmatpush1.bf16.msra.mxu0 0
      %772 = vmatprep.subr.bf16.mxu0 0
      %773 = vmatpush1.bf16.msra.mxu0 0
      %774 = vmatprep.subr.bf16.mxu0 0
      %775 = vmatpush1.bf16.msra.mxu0 0
      %776 = vmatprep.subr.bf16.mxu0 0
      %777 = vmatpush1.bf16.msra.mxu0 0
      %778 = vmatprep.subr.bf16.mxu0 0
      %779 = vmatpush1.bf16.msra.mxu0 %v721
      %780 = vmatprep.subr.bf16.mxu0 0
      %781 = vmatpush2.bf16.msra.mxu0 0
      %782 = vmatprep.subr.bf16.mxu0 0
      %783 = vmatpush2.bf16.msra.mxu0 0
      %784 = vmatprep.subr.bf16.mxu0 0
      %785 = vmatpush2.bf16.msra.mxu0 0
      %786 = vmatprep.subr.bf16.mxu0 0
      %787 = vmatpush2.bf16.msra.mxu0 0
      %788 = vmatprep.subr.bf16.mxu0 0
      %789 = vmatpush2.bf16.msra.mxu0 0
      %790 = vmatprep.subr.bf16.mxu0 0
      %791 = vmatpush2.bf16.msra.mxu0 0
      %792 = vmatprep.subr.bf16.mxu0 0
      %793 = vmatpush2.bf16.msra.mxu0 0
      %794 = vmatprep.subr.bf16.mxu0 0
      %795 = vmatpush2.bf16.msra.mxu0 0
      %796 = vmatprep.mubr.bf16.mxu0 0
      %797 = vmatmul.mubr.bf16.gmra.mxu0 %v712
      %v798 = vpop.f32.mrf.mxu0
      %v799 = vadd.f32 0.0, %v798
      %v800 = vpop.f32.mrf.mxu0
      %v801 = vpop.f32.mrf.mxu0
      %v802 = vpop.f32.mrf.mxu0
      %803 = vdwg.mxu0
      %v804 = vadd.f32 %v694, %v758
      %v805 = vadd.f32 %v695, %v760
      %v806 = vadd.f32 %v696, %v799
      %s807 = scalar_lea.vmem %s0, 12
      %v808 = vld [vmem:[%s807] sm:$0x3]
      %809 = vrot.lane.b32.xlu0 %v157, 92
      %v810 = vpop.permute.xlu0 %809
      %811 = vrot.lane.b32.xlu0 %v158, 92
      %v812 = vpop.permute.xlu0 %811
      %813 = vrot.lane.b32.xlu0 %v159, 92
      %v814 = vpop.permute.xlu0 %813
      %815 = vrot.lane.b32.xlu0 %v160, 92
      %v816 = vpop.permute.xlu0 %815
      %vm817 = vcmask 752640
      %v818 = vsel %vm817, %v810, %v812
      %v819 = vsel %vm817, %v812, %v814
      %v820 = vsel %vm817, %v814, %v816
      %v822 = vsel %vm173, %v808, 0
      %v825 = vand.u32 %v818, %v180
      %v828 = vand.u32 %v819, %v180
      %v831 = vand.u32 %v820, %v180
      %833 = vmatprep.subr.bf16.mxu0 0
      %834 = vmatpush1.bf16.msra.mxu0 0
      %835 = vmatprep.subr.bf16.mxu0 0
      %836 = vmatpush1.bf16.msra.mxu0 0
      %837 = vmatprep.subr.bf16.mxu0 0
      %838 = vmatpush1.bf16.msra.mxu0 0
      %839 = vmatprep.subr.bf16.mxu0 0
      %840 = vmatpush1.bf16.msra.mxu0 0
      %841 = vmatprep.subr.bf16.mxu0 0
      %842 = vmatpush1.bf16.msra.mxu0 0
      %843 = vmatprep.subr.bf16.mxu0 0
      %844 = vmatpush1.bf16.msra.mxu0 0
      %845 = vmatprep.subr.bf16.mxu0 0
      %846 = vmatpush1.bf16.msra.mxu0 0
      %847 = vmatprep.subr.bf16.mxu0 %v828
      %848 = vmatpush1.bf16.msra.mxu0 %v825
      %849 = vmatprep.subr.bf16.mxu0 0
      %850 = vmatpush2.bf16.msra.mxu0 0
      %851 = vmatprep.subr.bf16.mxu0 0
      %852 = vmatpush2.bf16.msra.mxu0 0
      %853 = vmatprep.subr.bf16.mxu0 0
      %854 = vmatpush2.bf16.msra.mxu0 0
      %855 = vmatprep.subr.bf16.mxu0 0
      %856 = vmatpush2.bf16.msra.mxu0 0
      %857 = vmatprep.subr.bf16.mxu0 0
      %858 = vmatpush2.bf16.msra.mxu0 0
      %859 = vmatprep.subr.bf16.mxu0 0
      %860 = vmatpush2.bf16.msra.mxu0 0
      %861 = vmatprep.subr.bf16.mxu0 0
      %862 = vmatpush2.bf16.msra.mxu0 0
      %863 = vmatprep.subr.bf16.mxu0 0
      %864 = vmatpush2.bf16.msra.mxu0 0
      %865 = vmatprep.mubr.bf16.mxu0 0
      %866 = vmatmul.mubr.bf16.gmra.mxu0 %v822
      %v867 = vpop.f32.mrf.mxu0
      %v868 = vadd.f32 0.0, %v867
      %v869 = vpop.f32.mrf.mxu0
      %v870 = vadd.f32 0.0, %v869
      %v871 = vpop.f32.mrf.mxu0
      %v872 = vpop.f32.mrf.mxu0
      %873 = vdwg.mxu0
      %874 = vmatprep.subr.bf16.mxu0 0
      %875 = vmatpush1.bf16.msra.mxu0 0
      %876 = vmatprep.subr.bf16.mxu0 0
      %877 = vmatpush1.bf16.msra.mxu0 0
      %878 = vmatprep.subr.bf16.mxu0 0
      %879 = vmatpush1.bf16.msra.mxu0 0
      %880 = vmatprep.subr.bf16.mxu0 0
      %881 = vmatpush1.bf16.msra.mxu0 0
      %882 = vmatprep.subr.bf16.mxu0 0
      %883 = vmatpush1.bf16.msra.mxu0 0
      %884 = vmatprep.subr.bf16.mxu0 0
      %885 = vmatpush1.bf16.msra.mxu0 0
      %886 = vmatprep.subr.bf16.mxu0 0
      %887 = vmatpush1.bf16.msra.mxu0 0
      %888 = vmatprep.subr.bf16.mxu0 0
      %889 = vmatpush1.bf16.msra.mxu0 %v831
      %890 = vmatprep.subr.bf16.mxu0 0
      %891 = vmatpush2.bf16.msra.mxu0 0
      %892 = vmatprep.subr.bf16.mxu0 0
      %893 = vmatpush2.bf16.msra.mxu0 0
      %894 = vmatprep.subr.bf16.mxu0 0
      %895 = vmatpush2.bf16.msra.mxu0 0
      %896 = vmatprep.subr.bf16.mxu0 0
      %897 = vmatpush2.bf16.msra.mxu0 0
      %898 = vmatprep.subr.bf16.mxu0 0
      %899 = vmatpush2.bf16.msra.mxu0 0
      %900 = vmatprep.subr.bf16.mxu0 0
      %901 = vmatpush2.bf16.msra.mxu0 0
      %902 = vmatprep.subr.bf16.mxu0 0
      %903 = vmatpush2.bf16.msra.mxu0 0
      %904 = vmatprep.subr.bf16.mxu0 0
      %905 = vmatpush2.bf16.msra.mxu0 0
      %906 = vmatprep.mubr.bf16.mxu0 0
      %907 = vmatmul.mubr.bf16.gmra.mxu0 %v822
      %v908 = vpop.f32.mrf.mxu0
      %v909 = vadd.f32 0.0, %v908
      %v910 = vpop.f32.mrf.mxu0
      %v911 = vpop.f32.mrf.mxu0
      %v912 = vpop.f32.mrf.mxu0
      %913 = vdwg.mxu0
      %v914 = vadd.f32 %v804, %v868
      %v915 = vadd.f32 %v805, %v870
      %v916 = vadd.f32 %v806, %v909
      %s917 = scalar_lea.vmem %s0, 14
      %v918 = vld [vmem:[%s917] sm:$0x3]
      %919 = vrot.lane.b32.xlu0 %v157, 91
      %v920 = vpop.permute.xlu0 %919
      %921 = vrot.lane.b32.xlu0 %v158, 91
      %v922 = vpop.permute.xlu0 %921
      %923 = vrot.lane.b32.xlu0 %v159, 91
      %v924 = vpop.permute.xlu0 %923
      %925 = vrot.lane.b32.xlu0 %v160, 91
      %v926 = vpop.permute.xlu0 %925
      %vm927 = vcmask 744448
      %v928 = vsel %vm927, %v920, %v922
      %v929 = vsel %vm927, %v922, %v924
      %v930 = vsel %vm927, %v924, %v926
      %v932 = vsel %vm173, %v918, 0
      %v935 = vand.u32 %v928, %v180
      %v938 = vand.u32 %v929, %v180
      %v941 = vand.u32 %v930, %v180
      %943 = vmatprep.subr.bf16.mxu0 0
      %944 = vmatpush1.bf16.msra.mxu0 0
      %945 = vmatprep.subr.bf16.mxu0 0
      %946 = vmatpush1.bf16.msra.mxu0 0
      %947 = vmatprep.subr.bf16.mxu0 0
      %948 = vmatpush1.bf16.msra.mxu0 0
      %949 = vmatprep.subr.bf16.mxu0 0
      %950 = vmatpush1.bf16.msra.mxu0 0
      %951 = vmatprep.subr.bf16.mxu0 0
      %952 = vmatpush1.bf16.msra.mxu0 0
      %953 = vmatprep.subr.bf16.mxu0 0
      %954 = vmatpush1.bf16.msra.mxu0 0
      %955 = vmatprep.subr.bf16.mxu0 0
      %956 = vmatpush1.bf16.msra.mxu0 0
      %957 = vmatprep.subr.bf16.mxu0 %v938
      %958 = vmatpush1.bf16.msra.mxu0 %v935
      %959 = vmatprep.subr.bf16.mxu0 0
      %960 = vmatpush2.bf16.msra.mxu0 0
      %961 = vmatprep.subr.bf16.mxu0 0
      %962 = vmatpush2.bf16.msra.mxu0 0
      %963 = vmatprep.subr.bf16.mxu0 0
      %964 = vmatpush2.bf16.msra.mxu0 0
      %965 = vmatprep.subr.bf16.mxu0 0
      %966 = vmatpush2.bf16.msra.mxu0 0
      %967 = vmatprep.subr.bf16.mxu0 0
      %968 = vmatpush2.bf16.msra.mxu0 0
      %969 = vmatprep.subr.bf16.mxu0 0
      %970 = vmatpush2.bf16.msra.mxu0 0
      %971 = vmatprep.subr.bf16.mxu0 0
      %972 = vmatpush2.bf16.msra.mxu0 0
      %973 = vmatprep.subr.bf16.mxu0 0
      %974 = vmatpush2.bf16.msra.mxu0 0
      %975 = vmatprep.mubr.bf16.mxu0 0
      %976 = vmatmul.mubr.bf16.gmra.mxu0 %v932
      %v977 = vpop.f32.mrf.mxu0
      %v978 = vadd.f32 0.0, %v977
      %v979 = vpop.f32.mrf.mxu0
      %v980 = vadd.f32 0.0, %v979
      %v981 = vpop.f32.mrf.mxu0
      %v982 = vpop.f32.mrf.mxu0
      %983 = vdwg.mxu0
      %984 = vmatprep.subr.bf16.mxu0 0
      %985 = vmatpush1.bf16.msra.mxu0 0
      %986 = vmatprep.subr.bf16.mxu0 0
      %987 = vmatpush1.bf16.msra.mxu0 0
      %988 = vmatprep.subr.bf16.mxu0 0
      %989 = vmatpush1.bf16.msra.mxu0 0
      %990 = vmatprep.subr.bf16.mxu0 0
      %991 = vmatpush1.bf16.msra.mxu0 0
      %992 = vmatprep.subr.bf16.mxu0 0
      %993 = vmatpush1.bf16.msra.mxu0 0
      %994 = vmatprep.subr.bf16.mxu0 0
      %995 = vmatpush1.bf16.msra.mxu0 0
      %996 = vmatprep.subr.bf16.mxu0 0
      %997 = vmatpush1.bf16.msra.mxu0 0
      %998 = vmatprep.subr.bf16.mxu0 0
      %999 = vmatpush1.bf16.msra.mxu0 %v941
      %1000 = vmatprep.subr.bf16.mxu0 0
      %1001 = vmatpush2.bf16.msra.mxu0 0
      %1002 = vmatprep.subr.bf16.mxu0 0
      %1003 = vmatpush2.bf16.msra.mxu0 0
      %1004 = vmatprep.subr.bf16.mxu0 0
      %1005 = vmatpush2.bf16.msra.mxu0 0
      %1006 = vmatprep.subr.bf16.mxu0 0
      %1007 = vmatpush2.bf16.msra.mxu0 0
      %1008 = vmatprep.subr.bf16.mxu0 0
      %1009 = vmatpush2.bf16.msra.mxu0 0
      %1010 = vmatprep.subr.bf16.mxu0 0
      %1011 = vmatpush2.bf16.msra.mxu0 0
      %1012 = vmatprep.subr.bf16.mxu0 0
      %1013 = vmatpush2.bf16.msra.mxu0 0
      %1014 = vmatprep.subr.bf16.mxu0 0
      %1015 = vmatpush2.bf16.msra.mxu0 0
      %1016 = vmatprep.mubr.bf16.mxu0 0
      %1017 = vmatmul.mubr.bf16.gmra.mxu0 %v932
      %v1018 = vpop.f32.mrf.mxu0
      %v1019 = vadd.f32 0.0, %v1018
      %v1020 = vpop.f32.mrf.mxu0
      %v1021 = vpop.f32.mrf.mxu0
      %v1022 = vpop.f32.mrf.mxu0
      %1023 = vdwg.mxu0
      %v1024 = vadd.f32 %v914, %v978
      %v1025 = vadd.f32 %v915, %v980
      %v1026 = vadd.f32 %v916, %v1019
      %s1027 = scalar_lea.vmem %s0, 16
      %v1028 = vld [vmem:[%s1027] sm:$0x3]
      %1029 = vrot.lane.b32.xlu0 %v157, 90
      %v1030 = vpop.permute.xlu0 %1029
      %1031 = vrot.lane.b32.xlu0 %v158, 90
      %v1032 = vpop.permute.xlu0 %1031
      %1033 = vrot.lane.b32.xlu0 %v159, 90
      %v1034 = vpop.permute.xlu0 %1033
      %1035 = vrot.lane.b32.xlu0 %v160, 90
      %v1036 = vpop.permute.xlu0 %1035
      %vm1037 = vcmask 736256
      %v1038 = vsel %vm1037, %v1030, %v1032
      %v1039 = vsel %vm1037, %v1032, %v1034
      %v1040 = vsel %vm1037, %v1034, %v1036
      %v1042 = vsel %vm173, %v1028, 0
      %v1045 = vand.u32 %v1038, %v180
      %v1048 = vand.u32 %v1039, %v180
      %v1051 = vand.u32 %v1040, %v180
      %1053 = vmatprep.subr.bf16.mxu0 0
      %1054 = vmatpush1.bf16.msra.mxu0 0
      %1055 = vmatprep.subr.bf16.mxu0 0
      %1056 = vmatpush1.bf16.msra.mxu0 0
      %1057 = vmatprep.subr.bf16.mxu0 0
      %1058 = vmatpush1.bf16.msra.mxu0 0
      %1059 = vmatprep.subr.bf16.mxu0 0
      %1060 = vmatpush1.bf16.msra.mxu0 0
      %1061 = vmatprep.subr.bf16.mxu0 0
      %1062 = vmatpush1.bf16.msra.mxu0 0
      %1063 = vmatprep.subr.bf16.mxu0 0
      %1064 = vmatpush1.bf16.msra.mxu0 0
      %1065 = vmatprep.subr.bf16.mxu0 0
      %1066 = vmatpush1.bf16.msra.mxu0 0
      %1067 = vmatprep.subr.bf16.mxu0 %v1048
      %1068 = vmatpush1.bf16.msra.mxu0 %v1045
      %1069 = vmatprep.subr.bf16.mxu0 0
      %1070 = vmatpush2.bf16.msra.mxu0 0
      %1071 = vmatprep.subr.bf16.mxu0 0
      %1072 = vmatpush2.bf16.msra.mxu0 0
      %1073 = vmatprep.subr.bf16.mxu0 0
      %1074 = vmatpush2.bf16.msra.mxu0 0
      %1075 = vmatprep.subr.bf16.mxu0 0
      %1076 = vmatpush2.bf16.msra.mxu0 0
      %1077 = vmatprep.subr.bf16.mxu0 0
      %1078 = vmatpush2.bf16.msra.mxu0 0
      %1079 = vmatprep.subr.bf16.mxu0 0
      %1080 = vmatpush2.bf16.msra.mxu0 0
      %1081 = vmatprep.subr.bf16.mxu0 0
      %1082 = vmatpush2.bf16.msra.mxu0 0
      %1083 = vmatprep.subr.bf16.mxu0 0
      %1084 = vmatpush2.bf16.msra.mxu0 0
      %1085 = vmatprep.mubr.bf16.mxu0 0
      %1086 = vmatmul.mubr.bf16.gmra.mxu0 %v1042
      %v1087 = vpop.f32.mrf.mxu0
      %v1088 = vadd.f32 0.0, %v1087
      %v1089 = vpop.f32.mrf.mxu0
      %v1090 = vadd.f32 0.0, %v1089
      %v1091 = vpop.f32.mrf.mxu0
      %v1092 = vpop.f32.mrf.mxu0
      %1093 = vdwg.mxu0
      %1094 = vmatprep.subr.bf16.mxu0 0
      %1095 = vmatpush1.bf16.msra.mxu0 0
      %1096 = vmatprep.subr.bf16.mxu0 0
      %1097 = vmatpush1.bf16.msra.mxu0 0
      %1098 = vmatprep.subr.bf16.mxu0 0
      %1099 = vmatpush1.bf16.msra.mxu0 0
      %1100 = vmatprep.subr.bf16.mxu0 0
      %1101 = vmatpush1.bf16.msra.mxu0 0
      %1102 = vmatprep.subr.bf16.mxu0 0
      %1103 = vmatpush1.bf16.msra.mxu0 0
      %1104 = vmatprep.subr.bf16.mxu0 0
      %1105 = vmatpush1.bf16.msra.mxu0 0
      %1106 = vmatprep.subr.bf16.mxu0 0
      %1107 = vmatpush1.bf16.msra.mxu0 0
      %1108 = vmatprep.subr.bf16.mxu0 0
      %1109 = vmatpush1.bf16.msra.mxu0 %v1051
      %1110 = vmatprep.subr.bf16.mxu0 0
      %1111 = vmatpush2.bf16.msra.mxu0 0
      %1112 = vmatprep.subr.bf16.mxu0 0
      %1113 = vmatpush2.bf16.msra.mxu0 0
      %1114 = vmatprep.subr.bf16.mxu0 0
      %1115 = vmatpush2.bf16.msra.mxu0 0
      %1116 = vmatprep.subr.bf16.mxu0 0
      %1117 = vmatpush2.bf16.msra.mxu0 0
      %1118 = vmatprep.subr.bf16.mxu0 0
      %1119 = vmatpush2.bf16.msra.mxu0 0
      %1120 = vmatprep.subr.bf16.mxu0 0
      %1121 = vmatpush2.bf16.msra.mxu0 0
      %1122 = vmatprep.subr.bf16.mxu0 0
      %1123 = vmatpush2.bf16.msra.mxu0 0
      %1124 = vmatprep.subr.bf16.mxu0 0
      %1125 = vmatpush2.bf16.msra.mxu0 0
      %1126 = vmatprep.mubr.bf16.mxu0 0
      %1127 = vmatmul.mubr.bf16.gmra.mxu0 %v1042
      %v1128 = vpop.f32.mrf.mxu0
      %v1129 = vadd.f32 0.0, %v1128
      %v1130 = vpop.f32.mrf.mxu0
      %v1131 = vpop.f32.mrf.mxu0
      %v1132 = vpop.f32.mrf.mxu0
      %1133 = vdwg.mxu0
      %v1134 = vadd.f32 %v1024, %v1088
      %v1135 = vadd.f32 %v1025, %v1090
      %v1136 = vadd.f32 %v1026, %v1129
      %v1137 = vmax.f32 %v1134, 0.0
      %v1138 = vmax.f32 %v1135, 0.0
      %v1139 = vmax.f32 %v1136, 0.0
      %v1140 = vpack.c.bf16 %v1137, %v1137
      %v1141 = vpack.c.bf16 %v1138, %v1138
      %v1142 = vpack.c.bf16 %v1139, %v1139
      %v1146 = vcombine.low %v1140, %v1141
      %v1148 = vunpack.c.l.s4 1983009808
      %v1149 = vunpack.c.0.s8 %v1148
      %v1150 = vlaneseq
      %v1151 = vshrl.u32 %v1150, 7
      %v1152 = vsub.s32 %v1149, %v1151
      %v1153 = vrot.slane %v1146, %v1152
      %v1155 = vunpack.c.l.s4 1983009808
      %v1156 = vunpack.c.0.s8 %v1155
      %v1157 = vlaneseq
      %v1158 = vshrl.u32 %v1157, 7
      %v1159 = vsub.s32 %v1156, %v1158
      %v1160 = vrot.slane %v1142, %v1159
      %v1161 = vcombine.low %v1153, %v1160
      %1163 = vst [vmem:[%s143] sm:$0x3f] %v1161
      %p1164 = scmp.lt.s32.totalorder %s13, 1
      %s1165 = scalar_select %p1164, %s13, 1
      %s1166 = smul.addr %s1165, 3
      %s1167 = smul.addr %s1166, 2
      %s1168 = scalar_lea.vmem %s2, %s1167
      // Predicated region
      $region29: #{forward.20} parent=27 // pred_check
        %p1169 = pneg %p78
      $region30: #{forward.20} parent=27 // pred_check_branch
        %1171 = sbr.rel (%p1169) target = $region32
      $region31: #{forward.20} parent=27 // pred_region
        _
      $region32: #{forward.20} parent=27 // pred_fallthru
        _
    $region28: #{forward.20} parent=5 // pred_fallthru
      _
    %p1172 = scmp.le.s32.totalorder 2, %s8
    // Predicated region
    $region33: #{forward.20} parent=5 // pred_check
      %p1173 = pneg %p1172
    $region34: #{forward.20} parent=5 // pred_check_branch
      %1175 = sbr.rel (%p1173) target = $region36
    $region35: #{forward.20} parent=5 // pred_region
      %s1176 = ssub.s32 %s8, 2
      // Predicated region
      $region37: #{forward.20} parent=35 // pred_check
        %p1177 = pneg %p84
      $region38: #{forward.20} parent=35 // pred_check_branch
        %1179 = sbr.rel (%p1177) target = $region40
      $region39: #{forward.20} parent=35 // pred_region
        %p1180 = scmp.lt.s32.totalorder %s14, 1
        %s1181 = scalar_select %p1180, %s14, 1
        %s1182 = smul.addr %s1181, 3
        %s1183 = smul.addr %s1182, 2
        %s1184 = scalar_lea.vmem %s2, %s1183
      $region40: #{forward.20} parent=35 // pred_fallthru
        _
    $region36: #{forward.20} parent=5 // pred_fallthru
      _
  $region6: #{forward.20} parent=0 // loop_footer
    %s12 = sadd.s32 1, %s8
  $region7: #{forward.20} parent=0 // loop_footer_branch
    %7 = sbr.rel target = $region3
  $region8: #{forward.20} parent=0 // loop_exit
    _

// kernel: forward.21
$region0: #{forward.21}
  #allocation0 [shape = 'u32[]', space=smem, size = 0x4, offset = 0x4, fixed_abs, tag = 'smem constant byte address 0x4 - core index']
  #allocation1 [shape = 'u32[144,128]{1,0:T(1,128)}', space=vmem, size = 0x12000, scoped, tag = 'internal scratch']
  %s0 = inlined_call_operand.vmem [shape: bf16[9,1,5], index: 0, kind: input, shape index: {}]
  %s1 = inlined_call_operand.vmem [shape: bf16[2,5,512], index: 1, kind: input, shape index: {}]
  %s2 = inlined_call_operand.vmem [shape: f32[2,1,384], index: 2, kind: output, shape index: {}]
  %s3 = sld [smem:[#allocation0]]
  $region41: #{forward.21} parent=0
    _
  %s5 = ssub.s32 1, %s3
  %s6 = scalar_select 0, %s5, %s3
  loop: start=0, step=1, limit=4
  $region2: #{forward.21} parent=0 // loop_pre_header
    _
  $region3: #{forward.21} parent=0 // loop_header
    %s8 = sphi 0, %s12
    %p9 = scmp.ge.s32.totalorder %s8, 4
    %s16 = sphi 0, %s16
    %s18 = sphi 0, %s16
    %s19 = sphi 0, %s18
    %s33 = sphi 0, %s19
    %s39 = sphi 0, %s41
    %s42 = sphi 0, %s39
    %s43 = sphi 0, %s42
    %s59 = sphi 0, %s43
    %s65 = sphi 0, %s67
    %s68 = sphi 0, %s65
    %s69 = sphi 0, %s68
    %s85 = sphi 0, %s69
  $region4: #{forward.21} parent=0 // loop_header_branch
    %11 = sbr.rel (%p9) target = $region8
  $region5: #{forward.21} parent=0 // loop_body
    %s13 = ssub.s32 %s8, 1
    %s14 = ssub.s32 %s8, 2
    %s15 = sadd.s32 %s8, 1
    %s17 = sadd.s32 %s16, 1
    %p20 = scmp.eq.s32.totalorder %s8, 1
    %p21 = scmp.ne.s32.totalorder %s16, %s18
    %p22 = scmp.eq.s32.totalorder %s8, 0
    %p23 = por %p21, %p22
    %p24 = scmp.ne.s32.totalorder %s16, %s18
    %p25 = scmp.eq.s32.totalorder %s13, 1
    %p26 = por %p24, %p25
    %p27 = scmp.ne.s32.totalorder %s18, %s19
    %p28 = scmp.eq.s32.totalorder %s13, 0
    %p29 = por %p27, %p28
    %p30 = scmp.ne.s32.totalorder %s18, %s19
    %p31 = scmp.eq.s32.totalorder %s14, 1
    %p32 = por %p30, %p31
    %p34 = scmp.ne.s32.totalorder %s19, %s33
    %p35 = scmp.eq.s32.totalorder %s14, 0
    %p36 = por %p34, %p35
    %s37 = ssub.s32 %s8, %s15
    %p38 = scmp.eq.s32.totalorder %s37, 0
    %s40 = sadd.s32 %s39, 1
    %s41 = scalar_select %p38, %s39, %s40
    %p44 = pneg %p38
    %p45 = scmp.eq.s32.totalorder %s8, 1
    %p46 = por %p44, %p45
    %p47 = scmp.ne.s32.totalorder %s39, %s42
    %p48 = scmp.eq.s32.totalorder %s8, 0
    %p49 = por %p47, %p48
    %p50 = scmp.ne.s32.totalorder %s39, %s42
    %p51 = scmp.eq.s32.totalorder %s13, 1
    %p52 = por %p50, %p51
    %p53 = scmp.ne.s32.totalorder %s42, %s43
    %p54 = scmp.eq.s32.totalorder %s13, 0
    %p55 = por %p53, %p54
    %p56 = scmp.ne.s32.totalorder %s42, %s43
    %p57 = scmp.eq.s32.totalorder %s14, 1
    %p58 = por %p56, %p57
    %p60 = scmp.ne.s32.totalorder %s43, %s59
    %p61 = scmp.eq.s32.totalorder %s14, 0
    %p62 = por %p60, %p61
    %s63 = ssub.s32 %s8, %s15
    %p64 = scmp.eq.s32.totalorder %s63, 0
    %s66 = sadd.s32 %s65, 1
    %s67 = scalar_select %p64, %s65, %s66
    %p70 = pneg %p64
    %p71 = scmp.eq.s32.totalorder %s8, 1
    %p72 = por %p70, %p71
    %p73 = scmp.ne.s32.totalorder %s65, %s68
    %p74 = scmp.eq.s32.totalorder %s8, 0
    %p75 = por %p73, %p74
    %p76 = scmp.ne.s32.totalorder %s65, %s68
    %p77 = scmp.eq.s32.totalorder %s13, 1
    %p78 = por %p76, %p77
    %p79 = scmp.ne.s32.totalorder %s68, %s69
    %p80 = scmp.eq.s32.totalorder %s13, 0
    %p81 = por %p79, %p80
    %p82 = scmp.ne.s32.totalorder %s68, %s69
    %p83 = scmp.eq.s32.totalorder %s14, 1
    %p84 = por %p82, %p83
    %p86 = scmp.ne.s32.totalorder %s69, %s85
    %p87 = scmp.eq.s32.totalorder %s14, 0
    %p88 = por %p86, %p87
    %p89 = scmp.le.s32.totalorder 1, %s8
    %p90 = scmp.lt.s32.totalorder %s8, 3
    %p91 = pnand %p89, %p90
    %p92 = pneg %p91
    // Predicated region
    $region9: #{forward.21} parent=5 // pred_check
      _
    $region10: #{forward.21} parent=5 // pred_check_branch
      %94 = sbr.rel (%p91) target = $region12
    $region11: #{forward.21} parent=5 // pred_region
      %s95 = ssub.s32 %s8, 1
      // Predicated region
      $region13: #{forward.21} parent=11 // pred_check
        %p96 = pneg %p29
      $region14: #{forward.21} parent=11 // pred_check_branch
        %98 = sbr.rel (%p96) target = $region16
      $region15: #{forward.21} parent=11 // pred_region
        _
      $region16: #{forward.21} parent=11 // pred_fallthru
        _
    $region12: #{forward.21} parent=5 // pred_fallthru
      _
    %p99 = scmp.lt.s32.totalorder %s8, 2
    // Predicated region
    $region17: #{forward.21} parent=5 // pred_check
      %p100 = pneg %p99
    $region18: #{forward.21} parent=5 // pred_check_branch
      %102 = sbr.rel (%p100) target = $region20
    $region19: #{forward.21} parent=5 // pred_region
      // Predicated region
      $region21: #{forward.21} parent=19 // pred_check
        %p103 = pneg %p49
      $region22: #{forward.21} parent=19 // pred_check_branch
        %105 = sbr.rel (%p103) target = $region24
      $region23: #{forward.21} parent=19 // pred_region
        %p106 = scmp.lt.s32.totalorder %s8, 1
        %s107 = scalar_select %p106, %s8, 1
        %s108 = smul.addr %s107, 4
        %s109 = smul.addr %s108, 4
        %s110 = scalar_lea.vmem %s1, %s109
      $region24: #{forward.21} parent=19 // pred_fallthru
        _
    $region20: #{forward.21} parent=5 // pred_fallthru
      _
    %p111 = scmp.le.s32.totalorder 1, %s8
    %p112 = scmp.lt.s32.totalorder %s8, 3
    %p113 = pnand %p111, %p112
    %p114 = pneg %p113
    // Predicated region
    $region25: #{forward.21} parent=5 // pred_check
      _
    $region26: #{forward.21} parent=5 // pred_check_branch
      %116 = sbr.rel (%p113) target = $region28
    $region27: #{forward.21} parent=5 // pred_region
      %s117 = ssub.s32 %s8, 1
      %p118 = pneg %p29
      %p119 = pneg %p26
      %p120 = scmp.lt.s32.totalorder %s13, 1
      %s121 = scalar_select %p120, %s13, 1
      %s122 = smul.addr %s121, 4
      %s123 = smul.addr %s122, 4
      %s124 = scalar_lea.vmem %s1, %s123
      %p125 = pneg %p55
      %p126 = pneg %p52
      %p127 = pneg %p81
      %p128 = pneg %p78
      %p129 = scmp.lt.s32.totalorder %s13, 1
      %s130 = scalar_select %p129, %s13, 1
      %s131 = smul.addr %s130, 3
      %s132 = scalar_lea.vmem %s2, %s131
      %p133 = scmp.lt.s32.totalorder %s13, 1
      %s134 = scalar_select %p133, %s13, 1
      %s135 = smul.addr %s134, 4
      %s136 = smul.addr %s135, 4
      %s137 = scalar_lea.vmem %s1, %s136
      %p138 = scmp.lt.s32.totalorder %s13, 1
      %s139 = scalar_select %p138, %s13, 1
      %s140 = smul.addr %s139, 3
      %s141 = scalar_lea.vmem %s2, %s140
      %v143 = vld [vmem:[%s137] sm:$0x77]
      %v144 = vld [vmem:[%s137 + $0x8] sm:$0x7]
      %v145 = vld [vmem:[%s0] sm:$0x1]
      %v146 = vld [vmem:[%s137 + $0x8] sm:$0x77]
      %s147 = scalar_lea.vmem %s0, 1
      %v148 = vld [vmem:[%s147] sm:$0x1]
      %v151 = vunpack.c.l.b16 %v143
      %v152 = vunpack.c.h.b16 %v143
      %v153 = vunpack.c.l.b16 %v146
      %v154 = vunpack.c.h.b16 %v146
      %v155 = vpack.c.b16 %v151, %v151
      %v156 = vpack.c.b16 %v152, %v152
      %v157 = vpack.c.b16 %v153, %v153
      %v158 = vpack.c.b16 %v154, %v154
      %159 = vrot.lane.b32.xlu0 %v155, 127
      %v160 = vpop.permute.xlu0 %159
      %161 = vrot.lane.b32.xlu0 %v156, 127
      %v162 = vpop.permute.xlu0 %161
      %163 = vrot.lane.b32.xlu0 %v157, 127
      %v164 = vpop.permute.xlu0 %163
      %165 = vrot.lane.b32.xlu0 %v158, 127
      %v166 = vpop.permute.xlu0 %165
      %vm167 = vcmask 1039360
      %v168 = vsel %vm167, %v160, %v162
      %v169 = vsel %vm167, %v162, %v164
      %v170 = vsel %vm167, %v164, %v166
      %vm171 = vcmask 39936
      %v173 = vsel %vm171, %v148, 0
      %vm175 = vcmask 1041408
      %vm176 = vcmask 1042432
      %v177 = vsel %vm175, 4294967295, 65535
      %v178 = vsel %vm176, %v177, 0
      %v180 = vand.u32 %v168, %v178
      %v183 = vand.u32 %v169, %v178
      %v186 = vand.u32 %v170, %v178
      %188 = vmatprep.subr.bf16.mxu0 0
      %189 = vmatpush1.bf16.msra.mxu0 0
      %190 = vmatprep.subr.bf16.mxu0 0
      %191 = vmatpush1.bf16.msra.mxu0 0
      %192 = vmatprep.subr.bf16.mxu0 0
      %193 = vmatpush1.bf16.msra.mxu0 0
      %194 = vmatprep.subr.bf16.mxu0 0
      %195 = vmatpush1.bf16.msra.mxu0 0
      %196 = vmatprep.subr.bf16.mxu0 0
      %197 = vmatpush1.bf16.msra.mxu0 0
      %198 = vmatprep.subr.bf16.mxu0 0
      %199 = vmatpush1.bf16.msra.mxu0 0
      %200 = vmatprep.subr.bf16.mxu0 0
      %201 = vmatpush1.bf16.msra.mxu0 0
      %202 = vmatprep.subr.bf16.mxu0 %v183
      %203 = vmatpush1.bf16.msra.mxu0 %v180
      %204 = vmatprep.subr.bf16.mxu0 0
      %205 = vmatpush2.bf16.msra.mxu0 0
      %206 = vmatprep.subr.bf16.mxu0 0
      %207 = vmatpush2.bf16.msra.mxu0 0
      %208 = vmatprep.subr.bf16.mxu0 0
      %209 = vmatpush2.bf16.msra.mxu0 0
      %210 = vmatprep.subr.bf16.mxu0 0
      %211 = vmatpush2.bf16.msra.mxu0 0
      %212 = vmatprep.subr.bf16.mxu0 0
      %213 = vmatpush2.bf16.msra.mxu0 0
      %214 = vmatprep.subr.bf16.mxu0 0
      %215 = vmatpush2.bf16.msra.mxu0 0
      %216 = vmatprep.subr.bf16.mxu0 0
      %217 = vmatpush2.bf16.msra.mxu0 0
      %218 = vmatprep.subr.bf16.mxu0 0
      %219 = vmatpush2.bf16.msra.mxu0 0
      %220 = vmatprep.mubr.bf16.mxu0 0
      %221 = vmatmul.mubr.bf16.gmra.mxu0 %v173
      %v222 = vpop.f32.mrf.mxu0
      %v223 = vadd.f32 0.0, %v222
      %v224 = vpop.f32.mrf.mxu0
      %v225 = vadd.f32 0.0, %v224
      %v226 = vpop.f32.mrf.mxu0
      %v227 = vpop.f32.mrf.mxu0
      %228 = vdwg.mxu0
      %229 = vmatprep.subr.bf16.mxu0 0
      %230 = vmatpush1.bf16.msra.mxu0 0
      %231 = vmatprep.subr.bf16.mxu0 0
      %232 = vmatpush1.bf16.msra.mxu0 0
      %233 = vmatprep.subr.bf16.mxu0 0
      %234 = vmatpush1.bf16.msra.mxu0 0
      %235 = vmatprep.subr.bf16.mxu0 0
      %236 = vmatpush1.bf16.msra.mxu0 0
      %237 = vmatprep.subr.bf16.mxu0 0
      %238 = vmatpush1.bf16.msra.mxu0 0
      %239 = vmatprep.subr.bf16.mxu0 0
      %240 = vmatpush1.bf16.msra.mxu0 0
      %241 = vmatprep.subr.bf16.mxu0 0
      %242 = vmatpush1.bf16.msra.mxu0 0
      %243 = vmatprep.subr.bf16.mxu0 0
      %244 = vmatpush1.bf16.msra.mxu0 %v186
      %245 = vmatprep.subr.bf16.mxu0 0
      %246 = vmatpush2.bf16.msra.mxu0 0
      %247 = vmatprep.subr.bf16.mxu0 0
      %248 = vmatpush2.bf16.msra.mxu0 0
      %249 = vmatprep.subr.bf16.mxu0 0
      %250 = vmatpush2.bf16.msra.mxu0 0
      %251 = vmatprep.subr.bf16.mxu0 0
      %252 = vmatpush2.bf16.msra.mxu0 0
      %253 = vmatprep.subr.bf16.mxu0 0
      %254 = vmatpush2.bf16.msra.mxu0 0
      %255 = vmatprep.subr.bf16.mxu0 0
      %256 = vmatpush2.bf16.msra.mxu0 0
      %257 = vmatprep.subr.bf16.mxu0 0
      %258 = vmatpush2.bf16.msra.mxu0 0
      %259 = vmatprep.subr.bf16.mxu0 0
      %260 = vmatpush2.bf16.msra.mxu0 0
      %261 = vmatprep.mubr.bf16.mxu0 0
      %262 = vmatmul.mubr.bf16.gmra.mxu0 %v173
      %v263 = vpop.f32.mrf.mxu0
      %v264 = vadd.f32 0.0, %v263
      %v265 = vpop.f32.mrf.mxu0
      %v266 = vpop.f32.mrf.mxu0
      %v267 = vpop.f32.mrf.mxu0
      %268 = vdwg.mxu0
      %v270 = vunpack.c.l.b16 %v144
      %v271 = vpack.c.b16 %v270, %v270
      %v273 = vsel %vm171, %v145, 0
      %v276 = vand.u32 %v155, %v178
      %v279 = vand.u32 %v156, %v178
      %v282 = vand.u32 %v271, %v178
      %284 = vmatprep.subr.bf16.mxu0 0
      %285 = vmatpush1.bf16.msra.mxu0 0
      %286 = vmatprep.subr.bf16.mxu0 0
      %287 = vmatpush1.bf16.msra.mxu0 0
      %288 = vmatprep.subr.bf16.mxu0 0
      %289 = vmatpush1.bf16.msra.mxu0 0
      %290 = vmatprep.subr.bf16.mxu0 0
      %291 = vmatpush1.bf16.msra.mxu0 0
      %292 = vmatprep.subr.bf16.mxu0 0
      %293 = vmatpush1.bf16.msra.mxu0 0
      %294 = vmatprep.subr.bf16.mxu0 0
      %295 = vmatpush1.bf16.msra.mxu0 0
      %296 = vmatprep.subr.bf16.mxu0 0
      %297 = vmatpush1.bf16.msra.mxu0 0
      %298 = vmatprep.subr.bf16.mxu0 %v279
      %299 = vmatpush1.bf16.msra.mxu0 %v276
      %300 = vmatprep.subr.bf16.mxu0 0
      %301 = vmatpush2.bf16.msra.mxu0 0
      %302 = vmatprep.subr.bf16.mxu0 0
      %303 = vmatpush2.bf16.msra.mxu0 0
      %304 = vmatprep.subr.bf16.mxu0 0
      %305 = vmatpush2.bf16.msra.mxu0 0
      %306 = vmatprep.subr.bf16.mxu0 0
      %307 = vmatpush2.bf16.msra.mxu0 0
      %308 = vmatprep.subr.bf16.mxu0 0
      %309 = vmatpush2.bf16.msra.mxu0 0
      %310 = vmatprep.subr.bf16.mxu0 0
      %311 = vmatpush2.bf16.msra.mxu0 0
      %312 = vmatprep.subr.bf16.mxu0 0
      %313 = vmatpush2.bf16.msra.mxu0 0
      %314 = vmatprep.subr.bf16.mxu0 0
      %315 = vmatpush2.bf16.msra.mxu0 0
      %316 = vmatprep.mubr.bf16.mxu0 0
      %317 = vmatmul.mubr.bf16.gmra.mxu0 %v273
      %v318 = vpop.f32.mrf.mxu0
      %v319 = vadd.f32 %v223, %v318
      %v320 = vpop.f32.mrf.mxu0
      %v321 = vadd.f32 %v225, %v320
      %v322 = vpop.f32.mrf.mxu0
      %v323 = vpop.f32.mrf.mxu0
      %324 = vdwg.mxu0
      %325 = vmatprep.subr.bf16.mxu0 0
      %326 = vmatpush1.bf16.msra.mxu0 0
      %327 = vmatprep.subr.bf16.mxu0 0
      %328 = vmatpush1.bf16.msra.mxu0 0
      %329 = vmatprep.subr.bf16.mxu0 0
      %330 = vmatpush1.bf16.msra.mxu0 0
      %331 = vmatprep.subr.bf16.mxu0 0
      %332 = vmatpush1.bf16.msra.mxu0 0
      %333 = vmatprep.subr.bf16.mxu0 0
      %334 = vmatpush1.bf16.msra.mxu0 0
      %335 = vmatprep.subr.bf16.mxu0 0
      %336 = vmatpush1.bf16.msra.mxu0 0
      %337 = vmatprep.subr.bf16.mxu0 0
      %338 = vmatpush1.bf16.msra.mxu0 0
      %339 = vmatprep.subr.bf16.mxu0 0
      %340 = vmatpush1.bf16.msra.mxu0 %v282
      %341 = vmatprep.subr.bf16.mxu0 0
      %342 = vmatpush2.bf16.msra.mxu0 0
      %343 = vmatprep.subr.bf16.mxu0 0
      %344 = vmatpush2.bf16.msra.mxu0 0
      %345 = vmatprep.subr.bf16.mxu0 0
      %346 = vmatpush2.bf16.msra.mxu0 0
      %347 = vmatprep.subr.bf16.mxu0 0
      %348 = vmatpush2.bf16.msra.mxu0 0
      %349 = vmatprep.subr.bf16.mxu0 0
      %350 = vmatpush2.bf16.msra.mxu0 0
      %351 = vmatprep.subr.bf16.mxu0 0
      %352 = vmatpush2.bf16.msra.mxu0 0
      %353 = vmatprep.subr.bf16.mxu0 0
      %354 = vmatpush2.bf16.msra.mxu0 0
      %355 = vmatprep.subr.bf16.mxu0 0
      %356 = vmatpush2.bf16.msra.mxu0 0
      %357 = vmatprep.mubr.bf16.mxu0 0
      %358 = vmatmul.mubr.bf16.gmra.mxu0 %v273
      %v359 = vpop.f32.mrf.mxu0
      %v360 = vadd.f32 %v264, %v359
      %v361 = vpop.f32.mrf.mxu0
      %v362 = vpop.f32.mrf.mxu0
      %v363 = vpop.f32.mrf.mxu0
      %364 = vdwg.mxu0
      %s365 = scalar_lea.vmem %s0, 2
      %v366 = vld [vmem:[%s365] sm:$0x1]
      %367 = vrot.lane.b32.xlu0 %v155, 126
      %v368 = vpop.permute.xlu0 %367
      %369 = vrot.lane.b32.xlu0 %v156, 126
      %v370 = vpop.permute.xlu0 %369
      %371 = vrot.lane.b32.xlu0 %v157, 126
      %v372 = vpop.permute.xlu0 %371
      %373 = vrot.lane.b32.xlu0 %v158, 126
      %v374 = vpop.permute.xlu0 %373
      %vm375 = vcmask 1031168
      %v376 = vsel %vm375, %v368, %v370
      %v377 = vsel %vm375, %v370, %v372
      %v378 = vsel %vm375, %v372, %v374
      %v380 = vsel %vm171, %v366, 0
      %v383 = vand.u32 %v376, %v178
      %v386 = vand.u32 %v377, %v178
      %v389 = vand.u32 %v378, %v178
      %391 = vmatprep.subr.bf16.mxu0 0
      %392 = vmatpush1.bf16.msra.mxu0 0
      %393 = vmatprep.subr.bf16.mxu0 0
      %394 = vmatpush1.bf16.msra.mxu0 0
      %395 = vmatprep.subr.bf16.mxu0 0
      %396 = vmatpush1.bf16.msra.mxu0 0
      %397 = vmatprep.subr.bf16.mxu0 0
      %398 = vmatpush1.bf16.msra.mxu0 0
      %399 = vmatprep.subr.bf16.mxu0 0
      %400 = vmatpush1.bf16.msra.mxu0 0
      %401 = vmatprep.subr.bf16.mxu0 0
      %402 = vmatpush1.bf16.msra.mxu0 0
      %403 = vmatprep.subr.bf16.mxu0 0
      %404 = vmatpush1.bf16.msra.mxu0 0
      %405 = vmatprep.subr.bf16.mxu0 %v386
      %406 = vmatpush1.bf16.msra.mxu0 %v383
      %407 = vmatprep.subr.bf16.mxu0 0
      %408 = vmatpush2.bf16.msra.mxu0 0
      %409 = vmatprep.subr.bf16.mxu0 0
      %410 = vmatpush2.bf16.msra.mxu0 0
      %411 = vmatprep.subr.bf16.mxu0 0
      %412 = vmatpush2.bf16.msra.mxu0 0
      %413 = vmatprep.subr.bf16.mxu0 0
      %414 = vmatpush2.bf16.msra.mxu0 0
      %415 = vmatprep.subr.bf16.mxu0 0
      %416 = vmatpush2.bf16.msra.mxu0 0
      %417 = vmatprep.subr.bf16.mxu0 0
      %418 = vmatpush2.bf16.msra.mxu0 0
      %419 = vmatprep.subr.bf16.mxu0 0
      %420 = vmatpush2.bf16.msra.mxu0 0
      %421 = vmatprep.subr.bf16.mxu0 0
      %422 = vmatpush2.bf16.msra.mxu0 0
      %423 = vmatprep.mubr.bf16.mxu0 0
      %424 = vmatmul.mubr.bf16.gmra.mxu0 %v380
      %v425 = vpop.f32.mrf.mxu0
      %v426 = vadd.f32 0.0, %v425
      %v427 = vpop.f32.mrf.mxu0
      %v428 = vadd.f32 0.0, %v427
      %v429 = vpop.f32.mrf.mxu0
      %v430 = vpop.f32.mrf.mxu0
      %431 = vdwg.mxu0
      %432 = vmatprep.subr.bf16.mxu0 0
      %433 = vmatpush1.bf16.msra.mxu0 0
      %434 = vmatprep.subr.bf16.mxu0 0
      %435 = vmatpush1.bf16.msra.mxu0 0
      %436 = vmatprep.subr.bf16.mxu0 0
      %437 = vmatpush1.bf16.msra.mxu0 0
      %438 = vmatprep.subr.bf16.mxu0 0
      %439 = vmatpush1.bf16.msra.mxu0 0
      %440 = vmatprep.subr.bf16.mxu0 0
      %441 = vmatpush1.bf16.msra.mxu0 0
      %442 = vmatprep.subr.bf16.mxu0 0
      %443 = vmatpush1.bf16.msra.mxu0 0
      %444 = vmatprep.subr.bf16.mxu0 0
      %445 = vmatpush1.bf16.msra.mxu0 0
      %446 = vmatprep.subr.bf16.mxu0 0
      %447 = vmatpush1.bf16.msra.mxu0 %v389
      %448 = vmatprep.subr.bf16.mxu0 0
      %449 = vmatpush2.bf16.msra.mxu0 0
      %450 = vmatprep.subr.bf16.mxu0 0
      %451 = vmatpush2.bf16.msra.mxu0 0
      %452 = vmatprep.subr.bf16.mxu0 0
      %453 = vmatpush2.bf16.msra.mxu0 0
      %454 = vmatprep.subr.bf16.mxu0 0
      %455 = vmatpush2.bf16.msra.mxu0 0
      %456 = vmatprep.subr.bf16.mxu0 0
      %457 = vmatpush2.bf16.msra.mxu0 0
      %458 = vmatprep.subr.bf16.mxu0 0
      %459 = vmatpush2.bf16.msra.mxu0 0
      %460 = vmatprep.subr.bf16.mxu0 0
      %461 = vmatpush2.bf16.msra.mxu0 0
      %462 = vmatprep.subr.bf16.mxu0 0
      %463 = vmatpush2.bf16.msra.mxu0 0
      %464 = vmatprep.mubr.bf16.mxu0 0
      %465 = vmatmul.mubr.bf16.gmra.mxu0 %v380
      %v466 = vpop.f32.mrf.mxu0
      %v467 = vadd.f32 0.0, %v466
      %v468 = vpop.f32.mrf.mxu0
      %v469 = vpop.f32.mrf.mxu0
      %v470 = vpop.f32.mrf.mxu0
      %471 = vdwg.mxu0
      %v472 = vadd.f32 %v319, %v426
      %v473 = vadd.f32 %v321, %v428
      %v474 = vadd.f32 %v360, %v467
      %s475 = scalar_lea.vmem %s0, 3
      %v476 = vld [vmem:[%s475] sm:$0x1]
      %477 = vrot.lane.b32.xlu0 %v155, 110
      %v478 = vpop.permute.xlu0 %477
      %479 = vrot.lane.b32.xlu0 %v156, 110
      %v480 = vpop.permute.xlu0 %479
      %481 = vrot.lane.b32.xlu0 %v157, 110
      %v482 = vpop.permute.xlu0 %481
      %483 = vrot.lane.b32.xlu0 %v158, 110
      %v484 = vpop.permute.xlu0 %483
      %vm485 = vcmask 900096
      %v486 = vsel %vm485, %v478, %v480
      %v487 = vsel %vm485, %v480, %v482
      %v488 = vsel %vm485, %v482, %v484
      %v490 = vsel %vm171, %v476, 0
      %v493 = vand.u32 %v486, %v178
      %v496 = vand.u32 %v487, %v178
      %v499 = vand.u32 %v488, %v178
      %501 = vmatprep.subr.bf16.mxu0 0
      %502 = vmatpush1.bf16.msra.mxu0 0
      %503 = vmatprep.subr.bf16.mxu0 0
      %504 = vmatpush1.bf16.msra.mxu0 0
      %505 = vmatprep.subr.bf16.mxu0 0
      %506 = vmatpush1.bf16.msra.mxu0 0
      %507 = vmatprep.subr.bf16.mxu0 0
      %508 = vmatpush1.bf16.msra.mxu0 0
      %509 = vmatprep.subr.bf16.mxu0 0
      %510 = vmatpush1.bf16.msra.mxu0 0
      %511 = vmatprep.subr.bf16.mxu0 0
      %512 = vmatpush1.bf16.msra.mxu0 0
      %513 = vmatprep.subr.bf16.mxu0 0
      %514 = vmatpush1.bf16.msra.mxu0 0
      %515 = vmatprep.subr.bf16.mxu0 %v496
      %516 = vmatpush1.bf16.msra.mxu0 %v493
      %517 = vmatprep.subr.bf16.mxu0 0
      %518 = vmatpush2.bf16.msra.mxu0 0
      %519 = vmatprep.subr.bf16.mxu0 0
      %520 = vmatpush2.bf16.msra.mxu0 0
      %521 = vmatprep.subr.bf16.mxu0 0
      %522 = vmatpush2.bf16.msra.mxu0 0
      %523 = vmatprep.subr.bf16.mxu0 0
      %524 = vmatpush2.bf16.msra.mxu0 0
      %525 = vmatprep.subr.bf16.mxu0 0
      %526 = vmatpush2.bf16.msra.mxu0 0
      %527 = vmatprep.subr.bf16.mxu0 0
      %528 = vmatpush2.bf16.msra.mxu0 0
      %529 = vmatprep.subr.bf16.mxu0 0
      %530 = vmatpush2.bf16.msra.mxu0 0
      %531 = vmatprep.subr.bf16.mxu0 0
      %532 = vmatpush2.bf16.msra.mxu0 0
      %533 = vmatprep.mubr.bf16.mxu0 0
      %534 = vmatmul.mubr.bf16.gmra.mxu0 %v490
      %v535 = vpop.f32.mrf.mxu0
      %v536 = vadd.f32 0.0, %v535
      %v537 = vpop.f32.mrf.mxu0
      %v538 = vadd.f32 0.0, %v537
      %v539 = vpop.f32.mrf.mxu0
      %v540 = vpop.f32.mrf.mxu0
      %541 = vdwg.mxu0
      %542 = vmatprep.subr.bf16.mxu0 0
      %543 = vmatpush1.bf16.msra.mxu0 0
      %544 = vmatprep.subr.bf16.mxu0 0
      %545 = vmatpush1.bf16.msra.mxu0 0
      %546 = vmatprep.subr.bf16.mxu0 0
      %547 = vmatpush1.bf16.msra.mxu0 0
      %548 = vmatprep.subr.bf16.mxu0 0
      %549 = vmatpush1.bf16.msra.mxu0 0
      %550 = vmatprep.subr.bf16.mxu0 0
      %551 = vmatpush1.bf16.msra.mxu0 0
      %552 = vmatprep.subr.bf16.mxu0 0
      %553 = vmatpush1.bf16.msra.mxu0 0
      %554 = vmatprep.subr.bf16.mxu0 0
      %555 = vmatpush1.bf16.msra.mxu0 0
      %556 = vmatprep.subr.bf16.mxu0 0
      %557 = vmatpush1.bf16.msra.mxu0 %v499
      %558 = vmatprep.subr.bf16.mxu0 0
      %559 = vmatpush2.bf16.msra.mxu0 0
      %560 = vmatprep.subr.bf16.mxu0 0
      %561 = vmatpush2.bf16.msra.mxu0 0
      %562 = vmatprep.subr.bf16.mxu0 0
      %563 = vmatpush2.bf16.msra.mxu0 0
      %564 = vmatprep.subr.bf16.mxu0 0
      %565 = vmatpush2.bf16.msra.mxu0 0
      %566 = vmatprep.subr.bf16.mxu0 0
      %567 = vmatpush2.bf16.msra.mxu0 0
      %568 = vmatprep.subr.bf16.mxu0 0
      %569 = vmatpush2.bf16.msra.mxu0 0
      %570 = vmatprep.subr.bf16.mxu0 0
      %571 = vmatpush2.bf16.msra.mxu0 0
      %572 = vmatprep.subr.bf16.mxu0 0
      %573 = vmatpush2.bf16.msra.mxu0 0
      %574 = vmatprep.mubr.bf16.mxu0 0
      %575 = vmatmul.mubr.bf16.gmra.mxu0 %v490
      %v576 = vpop.f32.mrf.mxu0
      %v577 = vadd.f32 0.0, %v576
      %v578 = vpop.f32.mrf.mxu0
      %v579 = vpop.f32.mrf.mxu0
      %v580 = vpop.f32.mrf.mxu0
      %581 = vdwg.mxu0
      %v582 = vadd.f32 %v472, %v536
      %v583 = vadd.f32 %v473, %v538
      %v584 = vadd.f32 %v474, %v577
      %s585 = scalar_lea.vmem %s0, 4
      %v586 = vld [vmem:[%s585] sm:$0x1]
      %587 = vrot.lane.b32.xlu0 %v155, 109
      %v588 = vpop.permute.xlu0 %587
      %589 = vrot.lane.b32.xlu0 %v156, 109
      %v590 = vpop.permute.xlu0 %589
      %591 = vrot.lane.b32.xlu0 %v157, 109
      %v592 = vpop.permute.xlu0 %591
      %593 = vrot.lane.b32.xlu0 %v158, 109
      %v594 = vpop.permute.xlu0 %593
      %vm595 = vcmask 891904
      %v596 = vsel %vm595, %v588, %v590
      %v597 = vsel %vm595, %v590, %v592
      %v598 = vsel %vm595, %v592, %v594
      %v600 = vsel %vm171, %v586, 0
      %v603 = vand.u32 %v596, %v178
      %v606 = vand.u32 %v597, %v178
      %v609 = vand.u32 %v598, %v178
      %611 = vmatprep.subr.bf16.mxu0 0
      %612 = vmatpush1.bf16.msra.mxu0 0
      %613 = vmatprep.subr.bf16.mxu0 0
      %614 = vmatpush1.bf16.msra.mxu0 0
      %615 = vmatprep.subr.bf16.mxu0 0
      %616 = vmatpush1.bf16.msra.mxu0 0
      %617 = vmatprep.subr.bf16.mxu0 0
      %618 = vmatpush1.bf16.msra.mxu0 0
      %619 = vmatprep.subr.bf16.mxu0 0
      %620 = vmatpush1.bf16.msra.mxu0 0
      %621 = vmatprep.subr.bf16.mxu0 0
      %622 = vmatpush1.bf16.msra.mxu0 0
      %623 = vmatprep.subr.bf16.mxu0 0
      %624 = vmatpush1.bf16.msra.mxu0 0
      %625 = vmatprep.subr.bf16.mxu0 %v606
      %626 = vmatpush1.bf16.msra.mxu0 %v603
      %627 = vmatprep.subr.bf16.mxu0 0
      %628 = vmatpush2.bf16.msra.mxu0 0
      %629 = vmatprep.subr.bf16.mxu0 0
      %630 = vmatpush2.bf16.msra.mxu0 0
      %631 = vmatprep.subr.bf16.mxu0 0
      %632 = vmatpush2.bf16.msra.mxu0 0
      %633 = vmatprep.subr.bf16.mxu0 0
      %634 = vmatpush2.bf16.msra.mxu0 0
      %635 = vmatprep.subr.bf16.mxu0 0
      %636 = vmatpush2.bf16.msra.mxu0 0
      %637 = vmatprep.subr.bf16.mxu0 0
      %638 = vmatpush2.bf16.msra.mxu0 0
      %639 = vmatprep.subr.bf16.mxu0 0
      %640 = vmatpush2.bf16.msra.mxu0 0
      %641 = vmatprep.subr.bf16.mxu0 0
      %642 = vmatpush2.bf16.msra.mxu0 0
      %643 = vmatprep.mubr.bf16.mxu0 0
      %644 = vmatmul.mubr.bf16.gmra.mxu0 %v600
      %v645 = vpop.f32.mrf.mxu0
      %v646 = vadd.f32 0.0, %v645
      %v647 = vpop.f32.mrf.mxu0
      %v648 = vadd.f32 0.0, %v647
      %v649 = vpop.f32.mrf.mxu0
      %v650 = vpop.f32.mrf.mxu0
      %651 = vdwg.mxu0
      %652 = vmatprep.subr.bf16.mxu0 0
      %653 = vmatpush1.bf16.msra.mxu0 0
      %654 = vmatprep.subr.bf16.mxu0 0
      %655 = vmatpush1.bf16.msra.mxu0 0
      %656 = vmatprep.subr.bf16.mxu0 0
      %657 = vmatpush1.bf16.msra.mxu0 0
      %658 = vmatprep.subr.bf16.mxu0 0
      %659 = vmatpush1.bf16.msra.mxu0 0
      %660 = vmatprep.subr.bf16.mxu0 0
      %661 = vmatpush1.bf16.msra.mxu0 0
      %662 = vmatprep.subr.bf16.mxu0 0
      %663 = vmatpush1.bf16.msra.mxu0 0
      %664 = vmatprep.subr.bf16.mxu0 0
      %665 = vmatpush1.bf16.msra.mxu0 0
      %666 = vmatprep.subr.bf16.mxu0 0
      %667 = vmatpush1.bf16.msra.mxu0 %v609
      %668 = vmatprep.subr.bf16.mxu0 0
      %669 = vmatpush2.bf16.msra.mxu0 0
      %670 = vmatprep.subr.bf16.mxu0 0
      %671 = vmatpush2.bf16.msra.mxu0 0
      %672 = vmatprep.subr.bf16.mxu0 0
      %673 = vmatpush2.bf16.msra.mxu0 0
      %674 = vmatprep.subr.bf16.mxu0 0
      %675 = vmatpush2.bf16.msra.mxu0 0
      %676 = vmatprep.subr.bf16.mxu0 0
      %677 = vmatpush2.bf16.msra.mxu0 0
      %678 = vmatprep.subr.bf16.mxu0 0
      %679 = vmatpush2.bf16.msra.mxu0 0
      %680 = vmatprep.subr.bf16.mxu0 0
      %681 = vmatpush2.bf16.msra.mxu0 0
      %682 = vmatprep.subr.bf16.mxu0 0
      %683 = vmatpush2.bf16.msra.mxu0 0
      %684 = vmatprep.mubr.bf16.mxu0 0
      %685 = vmatmul.mubr.bf16.gmra.mxu0 %v600
      %v686 = vpop.f32.mrf.mxu0
      %v687 = vadd.f32 0.0, %v686
      %v688 = vpop.f32.mrf.mxu0
      %v689 = vpop.f32.mrf.mxu0
      %v690 = vpop.f32.mrf.mxu0
      %691 = vdwg.mxu0
      %v692 = vadd.f32 %v582, %v646
      %v693 = vadd.f32 %v583, %v648
      %v694 = vadd.f32 %v584, %v687
      %s695 = scalar_lea.vmem %s0, 5
      %v696 = vld [vmem:[%s695] sm:$0x1]
      %697 = vrot.lane.b32.xlu0 %v155, 108
      %v698 = vpop.permute.xlu0 %697
      %699 = vrot.lane.b32.xlu0 %v156, 108
      %v700 = vpop.permute.xlu0 %699
      %701 = vrot.lane.b32.xlu0 %v157, 108
      %v702 = vpop.permute.xlu0 %701
      %703 = vrot.lane.b32.xlu0 %v158, 108
      %v704 = vpop.permute.xlu0 %703
      %vm705 = vcmask 883712
      %v706 = vsel %vm705, %v698, %v700
      %v707 = vsel %vm705, %v700, %v702
      %v708 = vsel %vm705, %v702, %v704
      %v710 = vsel %vm171, %v696, 0
      %v713 = vand.u32 %v706, %v178
      %v716 = vand.u32 %v707, %v178
      %v719 = vand.u32 %v708, %v178
      %721 = vmatprep.subr.bf16.mxu0 0
      %722 = vmatpush1.bf16.msra.mxu0 0
      %723 = vmatprep.subr.bf16.mxu0 0
      %724 = vmatpush1.bf16.msra.mxu0 0
      %725 = vmatprep.subr.bf16.mxu0 0
      %726 = vmatpush1.bf16.msra.mxu0 0
      %727 = vmatprep.subr.bf16.mxu0 0
      %728 = vmatpush1.bf16.msra.mxu0 0
      %729 = vmatprep.subr.bf16.mxu0 0
      %730 = vmatpush1.bf16.msra.mxu0 0
      %731 = vmatprep.subr.bf16.mxu0 0
      %732 = vmatpush1.bf16.msra.mxu0 0
      %733 = vmatprep.subr.bf16.mxu0 0
      %734 = vmatpush1.bf16.msra.mxu0 0
      %735 = vmatprep.subr.bf16.mxu0 %v716
      %736 = vmatpush1.bf16.msra.mxu0 %v713
      %737 = vmatprep.subr.bf16.mxu0 0
      %738 = vmatpush2.bf16.msra.mxu0 0
      %739 = vmatprep.subr.bf16.mxu0 0
      %740 = vmatpush2.bf16.msra.mxu0 0
      %741 = vmatprep.subr.bf16.mxu0 0
      %742 = vmatpush2.bf16.msra.mxu0 0
      %743 = vmatprep.subr.bf16.mxu0 0
      %744 = vmatpush2.bf16.msra.mxu0 0
      %745 = vmatprep.subr.bf16.mxu0 0
      %746 = vmatpush2.bf16.msra.mxu0 0
      %747 = vmatprep.subr.bf16.mxu0 0
      %748 = vmatpush2.bf16.msra.mxu0 0
      %749 = vmatprep.subr.bf16.mxu0 0
      %750 = vmatpush2.bf16.msra.mxu0 0
      %751 = vmatprep.subr.bf16.mxu0 0
      %752 = vmatpush2.bf16.msra.mxu0 0
      %753 = vmatprep.mubr.bf16.mxu0 0
      %754 = vmatmul.mubr.bf16.gmra.mxu0 %v710
      %v755 = vpop.f32.mrf.mxu0
      %v756 = vadd.f32 0.0, %v755
      %v757 = vpop.f32.mrf.mxu0
      %v758 = vadd.f32 0.0, %v757
      %v759 = vpop.f32.mrf.mxu0
      %v760 = vpop.f32.mrf.mxu0
      %761 = vdwg.mxu0
      %762 = vmatprep.subr.bf16.mxu0 0
      %763 = vmatpush1.bf16.msra.mxu0 0
      %764 = vmatprep.subr.bf16.mxu0 0
      %765 = vmatpush1.bf16.msra.mxu0 0
      %766 = vmatprep.subr.bf16.mxu0 0
      %767 = vmatpush1.bf16.msra.mxu0 0
      %768 = vmatprep.subr.bf16.mxu0 0
      %769 = vmatpush1.bf16.msra.mxu0 0
      %770 = vmatprep.subr.bf16.mxu0 0
      %771 = vmatpush1.bf16.msra.mxu0 0
      %772 = vmatprep.subr.bf16.mxu0 0
      %773 = vmatpush1.bf16.msra.mxu0 0
      %774 = vmatprep.subr.bf16.mxu0 0
      %775 = vmatpush1.bf16.msra.mxu0 0
      %776 = vmatprep.subr.bf16.mxu0 0
      %777 = vmatpush1.bf16.msra.mxu0 %v719
      %778 = vmatprep.subr.bf16.mxu0 0
      %779 = vmatpush2.bf16.msra.mxu0 0
      %780 = vmatprep.subr.bf16.mxu0 0
      %781 = vmatpush2.bf16.msra.mxu0 0
      %782 = vmatprep.subr.bf16.mxu0 0
      %783 = vmatpush2.bf16.msra.mxu0 0
      %784 = vmatprep.subr.bf16.mxu0 0
      %785 = vmatpush2.bf16.msra.mxu0 0
      %786 = vmatprep.subr.bf16.mxu0 0
      %787 = vmatpush2.bf16.msra.mxu0 0
      %788 = vmatprep.subr.bf16.mxu0 0
      %789 = vmatpush2.bf16.msra.mxu0 0
      %790 = vmatprep.subr.bf16.mxu0 0
      %791 = vmatpush2.bf16.msra.mxu0 0
      %792 = vmatprep.subr.bf16.mxu0 0
      %793 = vmatpush2.bf16.msra.mxu0 0
      %794 = vmatprep.mubr.bf16.mxu0 0
      %795 = vmatmul.mubr.bf16.gmra.mxu0 %v710
      %v796 = vpop.f32.mrf.mxu0
      %v797 = vadd.f32 0.0, %v796
      %v798 = vpop.f32.mrf.mxu0
      %v799 = vpop.f32.mrf.mxu0
      %v800 = vpop.f32.mrf.mxu0
      %801 = vdwg.mxu0
      %v802 = vadd.f32 %v692, %v756
      %v803 = vadd.f32 %v693, %v758
      %v804 = vadd.f32 %v694, %v797
      %s805 = scalar_lea.vmem %s0, 6
      %v806 = vld [vmem:[%s805] sm:$0x1]
      %807 = vrot.lane.b32.xlu0 %v155, 92
      %v808 = vpop.permute.xlu0 %807
      %809 = vrot.lane.b32.xlu0 %v156, 92
      %v810 = vpop.permute.xlu0 %809
      %811 = vrot.lane.b32.xlu0 %v157, 92
      %v812 = vpop.permute.xlu0 %811
      %813 = vrot.lane.b32.xlu0 %v158, 92
      %v814 = vpop.permute.xlu0 %813
      %vm815 = vcmask 752640
      %v816 = vsel %vm815, %v808, %v810
      %v817 = vsel %vm815, %v810, %v812
      %v818 = vsel %vm815, %v812, %v814
      %v820 = vsel %vm171, %v806, 0
      %v823 = vand.u32 %v816, %v178
      %v826 = vand.u32 %v817, %v178
      %v829 = vand.u32 %v818, %v178
      %831 = vmatprep.subr.bf16.mxu0 0
      %832 = vmatpush1.bf16.msra.mxu0 0
      %833 = vmatprep.subr.bf16.mxu0 0
      %834 = vmatpush1.bf16.msra.mxu0 0
      %835 = vmatprep.subr.bf16.mxu0 0
      %836 = vmatpush1.bf16.msra.mxu0 0
      %837 = vmatprep.subr.bf16.mxu0 0
      %838 = vmatpush1.bf16.msra.mxu0 0
      %839 = vmatprep.subr.bf16.mxu0 0
      %840 = vmatpush1.bf16.msra.mxu0 0
      %841 = vmatprep.subr.bf16.mxu0 0
      %842 = vmatpush1.bf16.msra.mxu0 0
      %843 = vmatprep.subr.bf16.mxu0 0
      %844 = vmatpush1.bf16.msra.mxu0 0
      %845 = vmatprep.subr.bf16.mxu0 %v826
      %846 = vmatpush1.bf16.msra.mxu0 %v823
      %847 = vmatprep.subr.bf16.mxu0 0
      %848 = vmatpush2.bf16.msra.mxu0 0
      %849 = vmatprep.subr.bf16.mxu0 0
      %850 = vmatpush2.bf16.msra.mxu0 0
      %851 = vmatprep.subr.bf16.mxu0 0
      %852 = vmatpush2.bf16.msra.mxu0 0
      %853 = vmatprep.subr.bf16.mxu0 0
      %854 = vmatpush2.bf16.msra.mxu0 0
      %855 = vmatprep.subr.bf16.mxu0 0
      %856 = vmatpush2.bf16.msra.mxu0 0
      %857 = vmatprep.subr.bf16.mxu0 0
      %858 = vmatpush2.bf16.msra.mxu0 0
      %859 = vmatprep.subr.bf16.mxu0 0
      %860 = vmatpush2.bf16.msra.mxu0 0
      %861 = vmatprep.subr.bf16.mxu0 0
      %862 = vmatpush2.bf16.msra.mxu0 0
      %863 = vmatprep.mubr.bf16.mxu0 0
      %864 = vmatmul.mubr.bf16.gmra.mxu0 %v820
      %v865 = vpop.f32.mrf.mxu0
      %v866 = vadd.f32 0.0, %v865
      %v867 = vpop.f32.mrf.mxu0
      %v868 = vadd.f32 0.0, %v867
      %v869 = vpop.f32.mrf.mxu0
      %v870 = vpop.f32.mrf.mxu0
      %871 = vdwg.mxu0
      %872 = vmatprep.subr.bf16.mxu0 0
      %873 = vmatpush1.bf16.msra.mxu0 0
      %874 = vmatprep.subr.bf16.mxu0 0
      %875 = vmatpush1.bf16.msra.mxu0 0
      %876 = vmatprep.subr.bf16.mxu0 0
      %877 = vmatpush1.bf16.msra.mxu0 0
      %878 = vmatprep.subr.bf16.mxu0 0
      %879 = vmatpush1.bf16.msra.mxu0 0
      %880 = vmatprep.subr.bf16.mxu0 0
      %881 = vmatpush1.bf16.msra.mxu0 0
      %882 = vmatprep.subr.bf16.mxu0 0
      %883 = vmatpush1.bf16.msra.mxu0 0
      %884 = vmatprep.subr.bf16.mxu0 0
      %885 = vmatpush1.bf16.msra.mxu0 0
      %886 = vmatprep.subr.bf16.mxu0 0
      %887 = vmatpush1.bf16.msra.mxu0 %v829
      %888 = vmatprep.subr.bf16.mxu0 0
      %889 = vmatpush2.bf16.msra.mxu0 0
      %890 = vmatprep.subr.bf16.mxu0 0
      %891 = vmatpush2.bf16.msra.mxu0 0
      %892 = vmatprep.subr.bf16.mxu0 0
      %893 = vmatpush2.bf16.msra.mxu0 0
      %894 = vmatprep.subr.bf16.mxu0 0
      %895 = vmatpush2.bf16.msra.mxu0 0
      %896 = vmatprep.subr.bf16.mxu0 0
      %897 = vmatpush2.bf16.msra.mxu0 0
      %898 = vmatprep.subr.bf16.mxu0 0
      %899 = vmatpush2.bf16.msra.mxu0 0
      %900 = vmatprep.subr.bf16.mxu0 0
      %901 = vmatpush2.bf16.msra.mxu0 0
      %902 = vmatprep.subr.bf16.mxu0 0
      %903 = vmatpush2.bf16.msra.mxu0 0
      %904 = vmatprep.mubr.bf16.mxu0 0
      %905 = vmatmul.mubr.bf16.gmra.mxu0 %v820
      %v906 = vpop.f32.mrf.mxu0
      %v907 = vadd.f32 0.0, %v906
      %v908 = vpop.f32.mrf.mxu0
      %v909 = vpop.f32.mrf.mxu0
      %v910 = vpop.f32.mrf.mxu0
      %911 = vdwg.mxu0
      %v912 = vadd.f32 %v802, %v866
      %v913 = vadd.f32 %v803, %v868
      %v914 = vadd.f32 %v804, %v907
      %s915 = scalar_lea.vmem %s0, 7
      %v916 = vld [vmem:[%s915] sm:$0x1]
      %917 = vrot.lane.b32.xlu0 %v155, 91
      %v918 = vpop.permute.xlu0 %917
      %919 = vrot.lane.b32.xlu0 %v156, 91
      %v920 = vpop.permute.xlu0 %919
      %921 = vrot.lane.b32.xlu0 %v157, 91
      %v922 = vpop.permute.xlu0 %921
      %923 = vrot.lane.b32.xlu0 %v158, 91
      %v924 = vpop.permute.xlu0 %923
      %vm925 = vcmask 744448
      %v926 = vsel %vm925, %v918, %v920
      %v927 = vsel %vm925, %v920, %v922
      %v928 = vsel %vm925, %v922, %v924
      %v930 = vsel %vm171, %v916, 0
      %v933 = vand.u32 %v926, %v178
      %v936 = vand.u32 %v927, %v178
      %v939 = vand.u32 %v928, %v178
      %941 = vmatprep.subr.bf16.mxu0 0
      %942 = vmatpush1.bf16.msra.mxu0 0
      %943 = vmatprep.subr.bf16.mxu0 0
      %944 = vmatpush1.bf16.msra.mxu0 0
      %945 = vmatprep.subr.bf16.mxu0 0
      %946 = vmatpush1.bf16.msra.mxu0 0
      %947 = vmatprep.subr.bf16.mxu0 0
      %948 = vmatpush1.bf16.msra.mxu0 0
      %949 = vmatprep.subr.bf16.mxu0 0
      %950 = vmatpush1.bf16.msra.mxu0 0
      %951 = vmatprep.subr.bf16.mxu0 0
      %952 = vmatpush1.bf16.msra.mxu0 0
      %953 = vmatprep.subr.bf16.mxu0 0
      %954 = vmatpush1.bf16.msra.mxu0 0
      %955 = vmatprep.subr.bf16.mxu0 %v936
      %956 = vmatpush1.bf16.msra.mxu0 %v933
      %957 = vmatprep.subr.bf16.mxu0 0
      %958 = vmatpush2.bf16.msra.mxu0 0
      %959 = vmatprep.subr.bf16.mxu0 0
      %960 = vmatpush2.bf16.msra.mxu0 0
      %961 = vmatprep.subr.bf16.mxu0 0
      %962 = vmatpush2.bf16.msra.mxu0 0
      %963 = vmatprep.subr.bf16.mxu0 0
      %964 = vmatpush2.bf16.msra.mxu0 0
      %965 = vmatprep.subr.bf16.mxu0 0
      %966 = vmatpush2.bf16.msra.mxu0 0
      %967 = vmatprep.subr.bf16.mxu0 0
      %968 = vmatpush2.bf16.msra.mxu0 0
      %969 = vmatprep.subr.bf16.mxu0 0
      %970 = vmatpush2.bf16.msra.mxu0 0
      %971 = vmatprep.subr.bf16.mxu0 0
      %972 = vmatpush2.bf16.msra.mxu0 0
      %973 = vmatprep.mubr.bf16.mxu0 0
      %974 = vmatmul.mubr.bf16.gmra.mxu0 %v930
      %v975 = vpop.f32.mrf.mxu0
      %v976 = vadd.f32 0.0, %v975
      %v977 = vpop.f32.mrf.mxu0
      %v978 = vadd.f32 0.0, %v977
      %v979 = vpop.f32.mrf.mxu0
      %v980 = vpop.f32.mrf.mxu0
      %981 = vdwg.mxu0
      %982 = vmatprep.subr.bf16.mxu0 0
      %983 = vmatpush1.bf16.msra.mxu0 0
      %984 = vmatprep.subr.bf16.mxu0 0
      %985 = vmatpush1.bf16.msra.mxu0 0
      %986 = vmatprep.subr.bf16.mxu0 0
      %987 = vmatpush1.bf16.msra.mxu0 0
      %988 = vmatprep.subr.bf16.mxu0 0
      %989 = vmatpush1.bf16.msra.mxu0 0
      %990 = vmatprep.subr.bf16.mxu0 0
      %991 = vmatpush1.bf16.msra.mxu0 0
      %992 = vmatprep.subr.bf16.mxu0 0
      %993 = vmatpush1.bf16.msra.mxu0 0
      %994 = vmatprep.subr.bf16.mxu0 0
      %995 = vmatpush1.bf16.msra.mxu0 0
      %996 = vmatprep.subr.bf16.mxu0 0
      %997 = vmatpush1.bf16.msra.mxu0 %v939
      %998 = vmatprep.subr.bf16.mxu0 0
      %999 = vmatpush2.bf16.msra.mxu0 0
      %1000 = vmatprep.subr.bf16.mxu0 0
      %1001 = vmatpush2.bf16.msra.mxu0 0
      %1002 = vmatprep.subr.bf16.mxu0 0
      %1003 = vmatpush2.bf16.msra.mxu0 0
      %1004 = vmatprep.subr.bf16.mxu0 0
      %1005 = vmatpush2.bf16.msra.mxu0 0
      %1006 = vmatprep.subr.bf16.mxu0 0
      %1007 = vmatpush2.bf16.msra.mxu0 0
      %1008 = vmatprep.subr.bf16.mxu0 0
      %1009 = vmatpush2.bf16.msra.mxu0 0
      %1010 = vmatprep.subr.bf16.mxu0 0
      %1011 = vmatpush2.bf16.msra.mxu0 0
      %1012 = vmatprep.subr.bf16.mxu0 0
      %1013 = vmatpush2.bf16.msra.mxu0 0
      %1014 = vmatprep.mubr.bf16.mxu0 0
      %1015 = vmatmul.mubr.bf16.gmra.mxu0 %v930
      %v1016 = vpop.f32.mrf.mxu0
      %v1017 = vadd.f32 0.0, %v1016
      %v1018 = vpop.f32.mrf.mxu0
      %v1019 = vpop.f32.mrf.mxu0
      %v1020 = vpop.f32.mrf.mxu0
      %1021 = vdwg.mxu0
      %v1022 = vadd.f32 %v912, %v976
      %v1023 = vadd.f32 %v913, %v978
      %v1024 = vadd.f32 %v914, %v1017
      %s1025 = scalar_lea.vmem %s0, 8
      %v1026 = vld [vmem:[%s1025] sm:$0x1]
      %1027 = vrot.lane.b32.xlu0 %v155, 90
      %v1028 = vpop.permute.xlu0 %1027
      %1029 = vrot.lane.b32.xlu0 %v156, 90
      %v1030 = vpop.permute.xlu0 %1029
      %1031 = vrot.lane.b32.xlu0 %v157, 90
      %v1032 = vpop.permute.xlu0 %1031
      %1033 = vrot.lane.b32.xlu0 %v158, 90
      %v1034 = vpop.permute.xlu0 %1033
      %vm1035 = vcmask 736256
      %v1036 = vsel %vm1035, %v1028, %v1030
      %v1037 = vsel %vm1035, %v1030, %v1032
      %v1038 = vsel %vm1035, %v1032, %v1034
      %v1040 = vsel %vm171, %v1026, 0
      %v1043 = vand.u32 %v1036, %v178
      %v1046 = vand.u32 %v1037, %v178
      %v1049 = vand.u32 %v1038, %v178
      %1051 = vmatprep.subr.bf16.mxu0 0
      %1052 = vmatpush1.bf16.msra.mxu0 0
      %1053 = vmatprep.subr.bf16.mxu0 0
      %1054 = vmatpush1.bf16.msra.mxu0 0
      %1055 = vmatprep.subr.bf16.mxu0 0
      %1056 = vmatpush1.bf16.msra.mxu0 0
      %1057 = vmatprep.subr.bf16.mxu0 0
      %1058 = vmatpush1.bf16.msra.mxu0 0
      %1059 = vmatprep.subr.bf16.mxu0 0
      %1060 = vmatpush1.bf16.msra.mxu0 0
      %1061 = vmatprep.subr.bf16.mxu0 0
      %1062 = vmatpush1.bf16.msra.mxu0 0
      %1063 = vmatprep.subr.bf16.mxu0 0
      %1064 = vmatpush1.bf16.msra.mxu0 0
      %1065 = vmatprep.subr.bf16.mxu0 %v1046
      %1066 = vmatpush1.bf16.msra.mxu0 %v1043
      %1067 = vmatprep.subr.bf16.mxu0 0
      %1068 = vmatpush2.bf16.msra.mxu0 0
      %1069 = vmatprep.subr.bf16.mxu0 0
      %1070 = vmatpush2.bf16.msra.mxu0 0
      %1071 = vmatprep.subr.bf16.mxu0 0
      %1072 = vmatpush2.bf16.msra.mxu0 0
      %1073 = vmatprep.subr.bf16.mxu0 0
      %1074 = vmatpush2.bf16.msra.mxu0 0
      %1075 = vmatprep.subr.bf16.mxu0 0
      %1076 = vmatpush2.bf16.msra.mxu0 0
      %1077 = vmatprep.subr.bf16.mxu0 0
      %1078 = vmatpush2.bf16.msra.mxu0 0
      %1079 = vmatprep.subr.bf16.mxu0 0
      %1080 = vmatpush2.bf16.msra.mxu0 0
      %1081 = vmatprep.subr.bf16.mxu0 0
      %1082 = vmatpush2.bf16.msra.mxu0 0
      %1083 = vmatprep.mubr.bf16.mxu0 0
      %1084 = vmatmul.mubr.bf16.gmra.mxu0 %v1040
      %v1085 = vpop.f32.mrf.mxu0
      %v1086 = vadd.f32 0.0, %v1085
      %v1087 = vpop.f32.mrf.mxu0
      %v1088 = vadd.f32 0.0, %v1087
      %v1089 = vpop.f32.mrf.mxu0
      %v1090 = vpop.f32.mrf.mxu0
      %1091 = vdwg.mxu0
      %1092 = vmatprep.subr.bf16.mxu0 0
      %1093 = vmatpush1.bf16.msra.mxu0 0
      %1094 = vmatprep.subr.bf16.mxu0 0
      %1095 = vmatpush1.bf16.msra.mxu0 0
      %1096 = vmatprep.subr.bf16.mxu0 0
      %1097 = vmatpush1.bf16.msra.mxu0 0
      %1098 = vmatprep.subr.bf16.mxu0 0
      %1099 = vmatpush1.bf16.msra.mxu0 0
      %1100 = vmatprep.subr.bf16.mxu0 0
      %1101 = vmatpush1.bf16.msra.mxu0 0
      %1102 = vmatprep.subr.bf16.mxu0 0
      %1103 = vmatpush1.bf16.msra.mxu0 0
      %1104 = vmatprep.subr.bf16.mxu0 0
      %1105 = vmatpush1.bf16.msra.mxu0 0
      %1106 = vmatprep.subr.bf16.mxu0 0
      %1107 = vmatpush1.bf16.msra.mxu0 %v1049
      %1108 = vmatprep.subr.bf16.mxu0 0
      %1109 = vmatpush2.bf16.msra.mxu0 0
      %1110 = vmatprep.subr.bf16.mxu0 0
      %1111 = vmatpush2.bf16.msra.mxu0 0
      %1112 = vmatprep.subr.bf16.mxu0 0
      %1113 = vmatpush2.bf16.msra.mxu0 0
      %1114 = vmatprep.subr.bf16.mxu0 0
      %1115 = vmatpush2.bf16.msra.mxu0 0
      %1116 = vmatprep.subr.bf16.mxu0 0
      %1117 = vmatpush2.bf16.msra.mxu0 0
      %1118 = vmatprep.subr.bf16.mxu0 0
      %1119 = vmatpush2.bf16.msra.mxu0 0
      %1120 = vmatprep.subr.bf16.mxu0 0
      %1121 = vmatpush2.bf16.msra.mxu0 0
      %1122 = vmatprep.subr.bf16.mxu0 0
      %1123 = vmatpush2.bf16.msra.mxu0 0
      %1124 = vmatprep.mubr.bf16.mxu0 0
      %1125 = vmatmul.mubr.bf16.gmra.mxu0 %v1040
      %v1126 = vpop.f32.mrf.mxu0
      %v1127 = vadd.f32 0.0, %v1126
      %v1128 = vpop.f32.mrf.mxu0
      %v1129 = vpop.f32.mrf.mxu0
      %v1130 = vpop.f32.mrf.mxu0
      %1131 = vdwg.mxu0
      %v1132 = vadd.f32 %v1022, %v1086
      %v1133 = vadd.f32 %v1023, %v1088
      %v1134 = vadd.f32 %v1024, %v1127
      %v1138 = vcombine.low %v1132, %v1133
      %v1140 = vunpack.c.l.s4 1966171168
      %v1141 = vunpack.c.0.s8 %v1140
      %v1142 = vlaneseq
      %v1143 = vshrl.u32 %v1142, 7
      %v1144 = vsub.s32 %v1141, %v1143
      %v1145 = vrot.slane %v1138, %v1144
      %v1147 = vunpack.c.l.s4 1966171168
      %v1148 = vunpack.c.0.s8 %v1147
      %v1149 = vlaneseq
      %v1150 = vshrl.u32 %v1149, 7
      %v1151 = vsub.s32 %v1148, %v1150
      %v1152 = vrot.slane %v1134, %v1151
      %v1153 = vcombine.low %v1145, %v1152
      %v1155 = vunpack.c.l.s4 1966171168
      %v1156 = vunpack.c.0.s8 %v1155
      %v1157 = vlaneseq
      %v1158 = vshrl.u32 %v1157, 7
      %v1159 = vsub.s32 %v1156, %v1158
      %v1160 = vrot.slane %v1153, %v1159
      %v1162 = vlaneseq
      %vm1163 = vcmp.ge.s32.totalorder %v1162, 0
      %vm1164 = vcmp.lt.s32.totalorder %v1162, 384
      %vm1165 = vmand %vm1163, %vm1164
      %1166 = vst.msk [vmem:[%s141] sm:$0x7] %vm1165, %v1160
      %p1167 = scmp.lt.s32.totalorder %s13, 1
      %s1168 = scalar_select %p1167, %s13, 1
      %s1169 = smul.addr %s1168, 3
      %s1170 = scalar_lea.vmem %s2, %s1169
      // Predicated region
      $region29: #{forward.21} parent=27 // pred_check
        %p1171 = pneg %p78
      $region30: #{forward.21} parent=27 // pred_check_branch
        %1173 = sbr.rel (%p1171) target = $region32
      $region31: #{forward.21} parent=27 // pred_region
        _
      $region32: #{forward.21} parent=27 // pred_fallthru
        _
    $region28: #{forward.21} parent=5 // pred_fallthru
      _
    %p1174 = scmp.le.s32.totalorder 2, %s8
    // Predicated region
    $region33: #{forward.21} parent=5 // pred_check
      %p1175 = pneg %p1174
    $region34: #{forward.21} parent=5 // pred_check_branch
      %1177 = sbr.rel (%p1175) target = $region36
    $region35: #{forward.21} parent=5 // pred_region
      %s1178 = ssub.s32 %s8, 2
      // Predicated region
      $region37: #{forward.21} parent=35 // pred_check
        %p1179 = pneg %p84
      $region38: #{forward.21} parent=35 // pred_check_branch
        %1181 = sbr.rel (%p1179) target = $region40
      $region39: #{forward.21} parent=35 // pred_region
        %p1182 = scmp.lt.s32.totalorder %s14, 1
        %s1183 = scalar_select %p1182, %s14, 1
        %s1184 = smul.addr %s1183, 3
        %s1185 = scalar_lea.vmem %s2, %s1184
      $region40: #{forward.21} parent=35 // pred_fallthru
        _
    $region36: #{forward.21} parent=5 // pred_fallthru
      _
  $region6: #{forward.21} parent=0 // loop_footer
    %s12 = sadd.s32 1, %s8
  $region7: #{forward.21} parent=0 // loop_footer_branch
    %7 = sbr.rel target = $region3
  $region8: #{forward.21} parent=0 // loop_exit
    _

// kernel: forward.24
$region0: #{forward.24}
  #allocation0 [shape = 'u32[]', space=smem, size = 0x4, offset = 0x4, fixed_abs, tag = 'smem constant byte address 0x4 - core index']
  #allocation1 [shape = 'u32[144,128]{1,0:T(1,128)}', space=vmem, size = 0x12000, scoped, tag = 'internal scratch']
  %s0 = inlined_call_operand.vmem [shape: bf16[9,4,3], index: 0, kind: input, shape index: {}]
  %s1 = inlined_call_operand.vmem [shape: bf16[2,3,512], index: 1, kind: input, shape index: {}]
  %s2 = inlined_call_operand.vmem [shape: bf16[2,4,384], index: 2, kind: output, shape index: {}]
  %s3 = sld [smem:[#allocation0]]
  $region41: #{forward.24} parent=0
    _
  %s5 = ssub.s32 1, %s3
  %s6 = scalar_select 0, %s5, %s3
  loop: start=0, step=1, limit=4
  $region2: #{forward.24} parent=0 // loop_pre_header
    _
  $region3: #{forward.24} parent=0 // loop_header
    %s8 = sphi 0, %s12
    %p9 = scmp.ge.s32.totalorder %s8, 4
    %s16 = sphi 0, %s16
    %s18 = sphi 0, %s16
    %s19 = sphi 0, %s18
    %s33 = sphi 0, %s19
    %s39 = sphi 0, %s41
    %s42 = sphi 0, %s39
    %s43 = sphi 0, %s42
    %s59 = sphi 0, %s43
    %s65 = sphi 0, %s67
    %s68 = sphi 0, %s65
    %s69 = sphi 0, %s68
    %s85 = sphi 0, %s69
  $region4: #{forward.24} parent=0 // loop_header_branch
    %11 = sbr.rel (%p9) target = $region8
  $region5: #{forward.24} parent=0 // loop_body
    %s13 = ssub.s32 %s8, 1
    %s14 = ssub.s32 %s8, 2
    %s15 = sadd.s32 %s8, 1
    %s17 = sadd.s32 %s16, 1
    %p20 = scmp.eq.s32.totalorder %s8, 1
    %p21 = scmp.ne.s32.totalorder %s16, %s18
    %p22 = scmp.eq.s32.totalorder %s8, 0
    %p23 = por %p21, %p22
    %p24 = scmp.ne.s32.totalorder %s16, %s18
    %p25 = scmp.eq.s32.totalorder %s13, 1
    %p26 = por %p24, %p25
    %p27 = scmp.ne.s32.totalorder %s18, %s19
    %p28 = scmp.eq.s32.totalorder %s13, 0
    %p29 = por %p27, %p28
    %p30 = scmp.ne.s32.totalorder %s18, %s19
    %p31 = scmp.eq.s32.totalorder %s14, 1
    %p32 = por %p30, %p31
    %p34 = scmp.ne.s32.totalorder %s19, %s33
    %p35 = scmp.eq.s32.totalorder %s14, 0
    %p36 = por %p34, %p35
    %s37 = ssub.s32 %s8, %s15
    %p38 = scmp.eq.s32.totalorder %s37, 0
    %s40 = sadd.s32 %s39, 1
    %s41 = scalar_select %p38, %s39, %s40
    %p44 = pneg %p38
    %p45 = scmp.eq.s32.totalorder %s8, 1
    %p46 = por %p44, %p45
    %p47 = scmp.ne.s32.totalorder %s39, %s42
    %p48 = scmp.eq.s32.totalorder %s8, 0
    %p49 = por %p47, %p48
    %p50 = scmp.ne.s32.totalorder %s39, %s42
    %p51 = scmp.eq.s32.totalorder %s13, 1
    %p52 = por %p50, %p51
    %p53 = scmp.ne.s32.totalorder %s42, %s43
    %p54 = scmp.eq.s32.totalorder %s13, 0
    %p55 = por %p53, %p54
    %p56 = scmp.ne.s32.totalorder %s42, %s43
    %p57 = scmp.eq.s32.totalorder %s14, 1
    %p58 = por %p56, %p57
    %p60 = scmp.ne.s32.totalorder %s43, %s59
    %p61 = scmp.eq.s32.totalorder %s14, 0
    %p62 = por %p60, %p61
    %s63 = ssub.s32 %s8, %s15
    %p64 = scmp.eq.s32.totalorder %s63, 0
    %s66 = sadd.s32 %s65, 1
    %s67 = scalar_select %p64, %s65, %s66
    %p70 = pneg %p64
    %p71 = scmp.eq.s32.totalorder %s8, 1
    %p72 = por %p70, %p71
    %p73 = scmp.ne.s32.totalorder %s65, %s68
    %p74 = scmp.eq.s32.totalorder %s8, 0
    %p75 = por %p73, %p74
    %p76 = scmp.ne.s32.totalorder %s65, %s68
    %p77 = scmp.eq.s32.totalorder %s13, 1
    %p78 = por %p76, %p77
    %p79 = scmp.ne.s32.totalorder %s68, %s69
    %p80 = scmp.eq.s32.totalorder %s13, 0
    %p81 = por %p79, %p80
    %p82 = scmp.ne.s32.totalorder %s68, %s69
    %p83 = scmp.eq.s32.totalorder %s14, 1
    %p84 = por %p82, %p83
    %p86 = scmp.ne.s32.totalorder %s69, %s85
    %p87 = scmp.eq.s32.totalorder %s14, 0
    %p88 = por %p86, %p87
    %p89 = scmp.le.s32.totalorder 1, %s8
    %p90 = scmp.lt.s32.totalorder %s8, 3
    %p91 = pnand %p89, %p90
    %p92 = pneg %p91
    // Predicated region
    $region9: #{forward.24} parent=5 // pred_check
      _
    $region10: #{forward.24} parent=5 // pred_check_branch
      %94 = sbr.rel (%p91) target = $region12
    $region11: #{forward.24} parent=5 // pred_region
      %s95 = ssub.s32 %s8, 1
      // Predicated region
      $region13: #{forward.24} parent=11 // pred_check
        %p96 = pneg %p29
      $region14: #{forward.24} parent=11 // pred_check_branch
        %98 = sbr.rel (%p96) target = $region16
      $region15: #{forward.24} parent=11 // pred_region
        _
      $region16: #{forward.24} parent=11 // pred_fallthru
        _
    $region12: #{forward.24} parent=5 // pred_fallthru
      _
    %p99 = scmp.lt.s32.totalorder %s8, 2
    // Predicated region
    $region17: #{forward.24} parent=5 // pred_check
      %p100 = pneg %p99
    $region18: #{forward.24} parent=5 // pred_check_branch
      %102 = sbr.rel (%p100) target = $region20
    $region19: #{forward.24} parent=5 // pred_region
      // Predicated region
      $region21: #{forward.24} parent=19 // pred_check
        %p103 = pneg %p49
      $region22: #{forward.24} parent=19 // pred_check_branch
        %105 = sbr.rel (%p103) target = $region24
      $region23: #{forward.24} parent=19 // pred_region
        %p106 = scmp.lt.s32.totalorder %s8, 1
        %s107 = scalar_select %p106, %s8, 1
        %s108 = smul.addr %s107, 4
        %s109 = smul.addr %s108, 2
        %s110 = scalar_lea.vmem %s1, %s109
      $region24: #{forward.24} parent=19 // pred_fallthru
        _
    $region20: #{forward.24} parent=5 // pred_fallthru
      _
    %p111 = scmp.le.s32.totalorder 1, %s8
    %p112 = scmp.lt.s32.totalorder %s8, 3
    %p113 = pnand %p111, %p112
    %p114 = pneg %p113
    // Predicated region
    $region25: #{forward.24} parent=5 // pred_check
      _
    $region26: #{forward.24} parent=5 // pred_check_branch
      %116 = sbr.rel (%p113) target = $region28
    $region27: #{forward.24} parent=5 // pred_region
      %s117 = ssub.s32 %s8, 1
      %p118 = pneg %p29
      %p119 = pneg %p26
      %p120 = scmp.lt.s32.totalorder %s13, 1
      %s121 = scalar_select %p120, %s13, 1
      %s122 = smul.addr %s121, 4
      %s123 = smul.addr %s122, 2
      %s124 = scalar_lea.vmem %s1, %s123
      %p125 = pneg %p55
      %p126 = pneg %p52
      %p127 = pneg %p81
      %p128 = pneg %p78
      %p129 = scmp.lt.s32.totalorder %s13, 1
      %s130 = scalar_select %p129, %s13, 1
      %s131 = smul.addr %s130, 3
      %s132 = smul.addr %s131, 2
      %s133 = scalar_lea.vmem %s2, %s132
      %p134 = scmp.lt.s32.totalorder %s13, 1
      %s135 = scalar_select %p134, %s13, 1
      %s136 = smul.addr %s135, 4
      %s137 = smul.addr %s136, 2
      %s138 = scalar_lea.vmem %s1, %s137
      %p139 = scmp.lt.s32.totalorder %s13, 1
      %s140 = scalar_select %p139, %s13, 1
      %s141 = smul.addr %s140, 3
      %s142 = smul.addr %s141, 2
      %s143 = scalar_lea.vmem %s2, %s142
      %v145 = vld [vmem:[%s138] sm:$0x3f]
      %v146 = vld [vmem:[%s0] sm:$0x3]
      %v147 = vld [vmem:[%s138] sm:$0xff]
      %s148 = scalar_lea.vmem %s0, 2
      %v149 = vld [vmem:[%s148] sm:$0x3]
      %v151 = vcombine.high %v147, %v147
      %v153 = vunpack.c.l.s4 1983009808
      %v154 = vunpack.c.0.s8 %v153
      %v155 = vlaneseq
      %v156 = vshrl.u32 %v155, 7
      %v157 = vsub.s32 %v154, %v156
      %v158 = vrot.slane %v147, %v157
      %v160 = vunpack.c.l.s4 1983009808
      %v161 = vunpack.c.0.s8 %v160
      %v162 = vlaneseq
      %v163 = vshrl.u32 %v162, 7
      %v164 = vsub.s32 %v161, %v163
      %v165 = vrot.slane %v151, %v164
      %v166 = vcombine.high %v158, %v158
      %v167 = vcombine.high %v165, %v165
      %168 = vrot.lane.b32.xlu0 %v158, 127
      %v169 = vpop.permute.xlu0 %168
      %170 = vrot.lane.b32.xlu0 %v166, 127
      %v171 = vpop.permute.xlu0 %170
      %172 = vrot.lane.b32.xlu0 %v165, 127
      %v173 = vpop.permute.xlu0 %172
      %174 = vrot.lane.b32.xlu0 %v167, 127
      %v175 = vpop.permute.xlu0 %174
      %vm176 = vcmask 1039360
      %v177 = vsel %vm176, %v169, %v171
      %v178 = vsel %vm176, %v171, %v173
      %v179 = vsel %vm176, %v173, %v175
      %vm180 = vcmask 23552
      %v182 = vsel %vm180, %v149, 0
      %vm184 = vcmask 1040384
      %vm185 = vcmask 1041408
      %v186 = vsel %vm184, 4294967295, 65535
      %v187 = vsel %vm185, %v186, 0
      %v189 = vand.u32 %v177, %v187
      %v192 = vand.u32 %v178, %v187
      %v195 = vand.u32 %v179, %v187
      %197 = vmatprep.subr.bf16.mxu0 0
      %198 = vmatpush1.bf16.msra.mxu0 0
      %199 = vmatprep.subr.bf16.mxu0 0
      %200 = vmatpush1.bf16.msra.mxu0 0
      %201 = vmatprep.subr.bf16.mxu0 0
      %202 = vmatpush1.bf16.msra.mxu0 0
      %203 = vmatprep.subr.bf16.mxu0 0
      %204 = vmatpush1.bf16.msra.mxu0 0
      %205 = vmatprep.subr.bf16.mxu0 0
      %206 = vmatpush1.bf16.msra.mxu0 0
      %207 = vmatprep.subr.bf16.mxu0 0
      %208 = vmatpush1.bf16.msra.mxu0 0
      %209 = vmatprep.subr.bf16.mxu0 0
      %210 = vmatpush1.bf16.msra.mxu0 0
      %211 = vmatprep.subr.bf16.mxu0 %v192
      %212 = vmatpush1.bf16.msra.mxu0 %v189
      %213 = vmatprep.subr.bf16.mxu0 0
      %214 = vmatpush2.bf16.msra.mxu0 0
      %215 = vmatprep.subr.bf16.mxu0 0
      %216 = vmatpush2.bf16.msra.mxu0 0
      %217 = vmatprep.subr.bf16.mxu0 0
      %218 = vmatpush2.bf16.msra.mxu0 0
      %219 = vmatprep.subr.bf16.mxu0 0
      %220 = vmatpush2.bf16.msra.mxu0 0
      %221 = vmatprep.subr.bf16.mxu0 0
      %222 = vmatpush2.bf16.msra.mxu0 0
      %223 = vmatprep.subr.bf16.mxu0 0
      %224 = vmatpush2.bf16.msra.mxu0 0
      %225 = vmatprep.subr.bf16.mxu0 0
      %226 = vmatpush2.bf16.msra.mxu0 0
      %227 = vmatprep.subr.bf16.mxu0 0
      %228 = vmatpush2.bf16.msra.mxu0 0
      %229 = vmatprep.mubr.bf16.mxu0 0
      %230 = vmatmul.mubr.bf16.gmra.mxu0 %v182
      %v231 = vpop.f32.mrf.mxu0
      %v232 = vadd.f32 0.0, %v231
      %v233 = vpop.f32.mrf.mxu0
      %v234 = vadd.f32 0.0, %v233
      %v235 = vpop.f32.mrf.mxu0
      %v236 = vpop.f32.mrf.mxu0
      %237 = vdwg.mxu0
      %238 = vmatprep.subr.bf16.mxu0 0
      %239 = vmatpush1.bf16.msra.mxu0 0
      %240 = vmatprep.subr.bf16.mxu0 0
      %241 = vmatpush1.bf16.msra.mxu0 0
      %242 = vmatprep.subr.bf16.mxu0 0
      %243 = vmatpush1.bf16.msra.mxu0 0
      %244 = vmatprep.subr.bf16.mxu0 0
      %245 = vmatpush1.bf16.msra.mxu0 0
      %246 = vmatprep.subr.bf16.mxu0 0
      %247 = vmatpush1.bf16.msra.mxu0 0
      %248 = vmatprep.subr.bf16.mxu0 0
      %249 = vmatpush1.bf16.msra.mxu0 0
      %250 = vmatprep.subr.bf16.mxu0 0
      %251 = vmatpush1.bf16.msra.mxu0 0
      %252 = vmatprep.subr.bf16.mxu0 0
      %253 = vmatpush1.bf16.msra.mxu0 %v195
      %254 = vmatprep.subr.bf16.mxu0 0
      %255 = vmatpush2.bf16.msra.mxu0 0
      %256 = vmatprep.subr.bf16.mxu0 0
      %257 = vmatpush2.bf16.msra.mxu0 0
      %258 = vmatprep.subr.bf16.mxu0 0
      %259 = vmatpush2.bf16.msra.mxu0 0
      %260 = vmatprep.subr.bf16.mxu0 0
      %261 = vmatpush2.bf16.msra.mxu0 0
      %262 = vmatprep.subr.bf16.mxu0 0
      %263 = vmatpush2.bf16.msra.mxu0 0
      %264 = vmatprep.subr.bf16.mxu0 0
      %265 = vmatpush2.bf16.msra.mxu0 0
      %266 = vmatprep.subr.bf16.mxu0 0
      %267 = vmatpush2.bf16.msra.mxu0 0
      %268 = vmatprep.subr.bf16.mxu0 0
      %269 = vmatpush2.bf16.msra.mxu0 0
      %270 = vmatprep.mubr.bf16.mxu0 0
      %271 = vmatmul.mubr.bf16.gmra.mxu0 %v182
      %v272 = vpop.f32.mrf.mxu0
      %v273 = vadd.f32 0.0, %v272
      %v274 = vpop.f32.mrf.mxu0
      %v275 = vpop.f32.mrf.mxu0
      %v276 = vpop.f32.mrf.mxu0
      %277 = vdwg.mxu0
      %v279 = vcombine.high %v145, %v145
      %v281 = vunpack.c.l.s4 1983009808
      %v282 = vunpack.c.0.s8 %v281
      %v283 = vlaneseq
      %v284 = vshrl.u32 %v283, 7
      %v285 = vsub.s32 %v282, %v284
      %v286 = vrot.slane %v145, %v285
      %v288 = vunpack.c.l.s4 1983009808
      %v289 = vunpack.c.0.s8 %v288
      %v290 = vlaneseq
      %v291 = vshrl.u32 %v290, 7
      %v292 = vsub.s32 %v289, %v291
      %v293 = vrot.slane %v279, %v292
      %v294 = vcombine.high %v286, %v286
      %v296 = vsel %vm180, %v146, 0
      %v299 = vand.u32 %v286, %v187
      %v302 = vand.u32 %v294, %v187
      %v305 = vand.u32 %v293, %v187
      %307 = vmatprep.subr.bf16.mxu0 0
      %308 = vmatpush1.bf16.msra.mxu0 0
      %309 = vmatprep.subr.bf16.mxu0 0
      %310 = vmatpush1.bf16.msra.mxu0 0
      %311 = vmatprep.subr.bf16.mxu0 0
      %312 = vmatpush1.bf16.msra.mxu0 0
      %313 = vmatprep.subr.bf16.mxu0 0
      %314 = vmatpush1.bf16.msra.mxu0 0
      %315 = vmatprep.subr.bf16.mxu0 0
      %316 = vmatpush1.bf16.msra.mxu0 0
      %317 = vmatprep.subr.bf16.mxu0 0
      %318 = vmatpush1.bf16.msra.mxu0 0
      %319 = vmatprep.subr.bf16.mxu0 0
      %320 = vmatpush1.bf16.msra.mxu0 0
      %321 = vmatprep.subr.bf16.mxu0 %v302
      %322 = vmatpush1.bf16.msra.mxu0 %v299
      %323 = vmatprep.subr.bf16.mxu0 0
      %324 = vmatpush2.bf16.msra.mxu0 0
      %325 = vmatprep.subr.bf16.mxu0 0
      %326 = vmatpush2.bf16.msra.mxu0 0
      %327 = vmatprep.subr.bf16.mxu0 0
      %328 = vmatpush2.bf16.msra.mxu0 0
      %329 = vmatprep.subr.bf16.mxu0 0
      %330 = vmatpush2.bf16.msra.mxu0 0
      %331 = vmatprep.subr.bf16.mxu0 0
      %332 = vmatpush2.bf16.msra.mxu0 0
      %333 = vmatprep.subr.bf16.mxu0 0
      %334 = vmatpush2.bf16.msra.mxu0 0
      %335 = vmatprep.subr.bf16.mxu0 0
      %336 = vmatpush2.bf16.msra.mxu0 0
      %337 = vmatprep.subr.bf16.mxu0 0
      %338 = vmatpush2.bf16.msra.mxu0 0
      %339 = vmatprep.mubr.bf16.mxu0 0
      %340 = vmatmul.mubr.bf16.gmra.mxu0 %v296
      %v341 = vpop.f32.mrf.mxu0
      %v342 = vadd.f32 %v232, %v341
      %v343 = vpop.f32.mrf.mxu0
      %v344 = vadd.f32 %v234, %v343
      %v345 = vpop.f32.mrf.mxu0
      %v346 = vpop.f32.mrf.mxu0
      %347 = vdwg.mxu0
      %348 = vmatprep.subr.bf16.mxu0 0
      %349 = vmatpush1.bf16.msra.mxu0 0
      %350 = vmatprep.subr.bf16.mxu0 0
      %351 = vmatpush1.bf16.msra.mxu0 0
      %352 = vmatprep.subr.bf16.mxu0 0
      %353 = vmatpush1.bf16.msra.mxu0 0
      %354 = vmatprep.subr.bf16.mxu0 0
      %355 = vmatpush1.bf16.msra.mxu0 0
      %356 = vmatprep.subr.bf16.mxu0 0
      %357 = vmatpush1.bf16.msra.mxu0 0
      %358 = vmatprep.subr.bf16.mxu0 0
      %359 = vmatpush1.bf16.msra.mxu0 0
      %360 = vmatprep.subr.bf16.mxu0 0
      %361 = vmatpush1.bf16.msra.mxu0 0
      %362 = vmatprep.subr.bf16.mxu0 0
      %363 = vmatpush1.bf16.msra.mxu0 %v305
      %364 = vmatprep.subr.bf16.mxu0 0
      %365 = vmatpush2.bf16.msra.mxu0 0
      %366 = vmatprep.subr.bf16.mxu0 0
      %367 = vmatpush2.bf16.msra.mxu0 0
      %368 = vmatprep.subr.bf16.mxu0 0
      %369 = vmatpush2.bf16.msra.mxu0 0
      %370 = vmatprep.subr.bf16.mxu0 0
      %371 = vmatpush2.bf16.msra.mxu0 0
      %372 = vmatprep.subr.bf16.mxu0 0
      %373 = vmatpush2.bf16.msra.mxu0 0
      %374 = vmatprep.subr.bf16.mxu0 0
      %375 = vmatpush2.bf16.msra.mxu0 0
      %376 = vmatprep.subr.bf16.mxu0 0
      %377 = vmatpush2.bf16.msra.mxu0 0
      %378 = vmatprep.subr.bf16.mxu0 0
      %379 = vmatpush2.bf16.msra.mxu0 0
      %380 = vmatprep.mubr.bf16.mxu0 0
      %381 = vmatmul.mubr.bf16.gmra.mxu0 %v296
      %v382 = vpop.f32.mrf.mxu0
      %v383 = vadd.f32 %v273, %v382
      %v384 = vpop.f32.mrf.mxu0
      %v385 = vpop.f32.mrf.mxu0
      %v386 = vpop.f32.mrf.mxu0
      %387 = vdwg.mxu0
      %v388 = vld [vmem:[%s138] sm:$0xff]
      %s389 = scalar_lea.vmem %s0, 4
      %v390 = vld [vmem:[%s389] sm:$0x3]
      %v392 = vcombine.high %v388, %v388
      %v394 = vunpack.c.l.s4 1983009808
      %v395 = vunpack.c.0.s8 %v394
      %v396 = vlaneseq
      %v397 = vshrl.u32 %v396, 7
      %v398 = vsub.s32 %v395, %v397
      %v399 = vrot.slane %v388, %v398
      %v401 = vunpack.c.l.s4 1983009808
      %v402 = vunpack.c.0.s8 %v401
      %v403 = vlaneseq
      %v404 = vshrl.u32 %v403, 7
      %v405 = vsub.s32 %v402, %v404
      %v406 = vrot.slane %v392, %v405
      %v407 = vcombine.high %v399, %v399
      %v408 = vcombine.high %v406, %v406
      %409 = vrot.lane.b32.xlu0 %v399, 126
      %v410 = vpop.permute.xlu0 %409
      %411 = vrot.lane.b32.xlu0 %v407, 126
      %v412 = vpop.permute.xlu0 %411
      %413 = vrot.lane.b32.xlu0 %v406, 126
      %v414 = vpop.permute.xlu0 %413
      %415 = vrot.lane.b32.xlu0 %v408, 126
      %v416 = vpop.permute.xlu0 %415
      %vm417 = vcmask 1031168
      %v418 = vsel %vm417, %v410, %v412
      %v419 = vsel %vm417, %v412, %v414
      %v420 = vsel %vm417, %v414, %v416
      %v422 = vsel %vm180, %v390, 0
      %v425 = vand.u32 %v418, %v187
      %v428 = vand.u32 %v419, %v187
      %v431 = vand.u32 %v420, %v187
      %433 = vmatprep.subr.bf16.mxu0 0
      %434 = vmatpush1.bf16.msra.mxu0 0
      %435 = vmatprep.subr.bf16.mxu0 0
      %436 = vmatpush1.bf16.msra.mxu0 0
      %437 = vmatprep.subr.bf16.mxu0 0
      %438 = vmatpush1.bf16.msra.mxu0 0
      %439 = vmatprep.subr.bf16.mxu0 0
      %440 = vmatpush1.bf16.msra.mxu0 0
      %441 = vmatprep.subr.bf16.mxu0 0
      %442 = vmatpush1.bf16.msra.mxu0 0
      %443 = vmatprep.subr.bf16.mxu0 0
      %444 = vmatpush1.bf16.msra.mxu0 0
      %445 = vmatprep.subr.bf16.mxu0 0
      %446 = vmatpush1.bf16.msra.mxu0 0
      %447 = vmatprep.subr.bf16.mxu0 %v428
      %448 = vmatpush1.bf16.msra.mxu0 %v425
      %449 = vmatprep.subr.bf16.mxu0 0
      %450 = vmatpush2.bf16.msra.mxu0 0
      %451 = vmatprep.subr.bf16.mxu0 0
      %452 = vmatpush2.bf16.msra.mxu0 0
      %453 = vmatprep.subr.bf16.mxu0 0
      %454 = vmatpush2.bf16.msra.mxu0 0
      %455 = vmatprep.subr.bf16.mxu0 0
      %456 = vmatpush2.bf16.msra.mxu0 0
      %457 = vmatprep.subr.bf16.mxu0 0
      %458 = vmatpush2.bf16.msra.mxu0 0
      %459 = vmatprep.subr.bf16.mxu0 0
      %460 = vmatpush2.bf16.msra.mxu0 0
      %461 = vmatprep.subr.bf16.mxu0 0
      %462 = vmatpush2.bf16.msra.mxu0 0
      %463 = vmatprep.subr.bf16.mxu0 0
      %464 = vmatpush2.bf16.msra.mxu0 0
      %465 = vmatprep.mubr.bf16.mxu0 0
      %466 = vmatmul.mubr.bf16.gmra.mxu0 %v422
      %v467 = vpop.f32.mrf.mxu0
      %v468 = vadd.f32 0.0, %v467
      %v469 = vpop.f32.mrf.mxu0
      %v470 = vadd.f32 0.0, %v469
      %v471 = vpop.f32.mrf.mxu0
      %v472 = vpop.f32.mrf.mxu0
      %473 = vdwg.mxu0
      %474 = vmatprep.subr.bf16.mxu0 0
      %475 = vmatpush1.bf16.msra.mxu0 0
      %476 = vmatprep.subr.bf16.mxu0 0
      %477 = vmatpush1.bf16.msra.mxu0 0
      %478 = vmatprep.subr.bf16.mxu0 0
      %479 = vmatpush1.bf16.msra.mxu0 0
      %480 = vmatprep.subr.bf16.mxu0 0
      %481 = vmatpush1.bf16.msra.mxu0 0
      %482 = vmatprep.subr.bf16.mxu0 0
      %483 = vmatpush1.bf16.msra.mxu0 0
      %484 = vmatprep.subr.bf16.mxu0 0
      %485 = vmatpush1.bf16.msra.mxu0 0
      %486 = vmatprep.subr.bf16.mxu0 0
      %487 = vmatpush1.bf16.msra.mxu0 0
      %488 = vmatprep.subr.bf16.mxu0 0
      %489 = vmatpush1.bf16.msra.mxu0 %v431
      %490 = vmatprep.subr.bf16.mxu0 0
      %491 = vmatpush2.bf16.msra.mxu0 0
      %492 = vmatprep.subr.bf16.mxu0 0
      %493 = vmatpush2.bf16.msra.mxu0 0
      %494 = vmatprep.subr.bf16.mxu0 0
      %495 = vmatpush2.bf16.msra.mxu0 0
      %496 = vmatprep.subr.bf16.mxu0 0
      %497 = vmatpush2.bf16.msra.mxu0 0
      %498 = vmatprep.subr.bf16.mxu0 0
      %499 = vmatpush2.bf16.msra.mxu0 0
      %500 = vmatprep.subr.bf16.mxu0 0
      %501 = vmatpush2.bf16.msra.mxu0 0
      %502 = vmatprep.subr.bf16.mxu0 0
      %503 = vmatpush2.bf16.msra.mxu0 0
      %504 = vmatprep.subr.bf16.mxu0 0
      %505 = vmatpush2.bf16.msra.mxu0 0
      %506 = vmatprep.mubr.bf16.mxu0 0
      %507 = vmatmul.mubr.bf16.gmra.mxu0 %v422
      %v508 = vpop.f32.mrf.mxu0
      %v509 = vadd.f32 0.0, %v508
      %v510 = vpop.f32.mrf.mxu0
      %v511 = vpop.f32.mrf.mxu0
      %v512 = vpop.f32.mrf.mxu0
      %513 = vdwg.mxu0
      %v514 = vadd.f32 %v342, %v468
      %v515 = vadd.f32 %v344, %v470
      %v516 = vadd.f32 %v383, %v509
      %v517 = vld [vmem:[%s138] sm:$0xff]
      %s518 = scalar_lea.vmem %s0, 6
      %v519 = vld [vmem:[%s518] sm:$0x3]
      %v521 = vcombine.high %v517, %v517
      %v523 = vunpack.c.l.s4 1983009808
      %v524 = vunpack.c.0.s8 %v523
      %v525 = vlaneseq
      %v526 = vshrl.u32 %v525, 7
      %v527 = vsub.s32 %v524, %v526
      %v528 = vrot.slane %v517, %v527
      %v530 = vunpack.c.l.s4 1983009808
      %v531 = vunpack.c.0.s8 %v530
      %v532 = vlaneseq
      %v533 = vshrl.u32 %v532, 7
      %v534 = vsub.s32 %v531, %v533
      %v535 = vrot.slane %v521, %v534
      %v536 = vcombine.high %v528, %v528
      %v537 = vcombine.high %v535, %v535
      %538 = vrot.lane.b32.xlu0 %v528, 110
      %v539 = vpop.permute.xlu0 %538
      %540 = vrot.lane.b32.xlu0 %v536, 110
      %v541 = vpop.permute.xlu0 %540
      %542 = vrot.lane.b32.xlu0 %v535, 110
      %v543 = vpop.permute.xlu0 %542
      %544 = vrot.lane.b32.xlu0 %v537, 110
      %v545 = vpop.permute.xlu0 %544
      %vm546 = vcmask 900096
      %v547 = vsel %vm546, %v539, %v541
      %v548 = vsel %vm546, %v541, %v543
      %v549 = vsel %vm546, %v543, %v545
      %v551 = vsel %vm180, %v519, 0
      %v554 = vand.u32 %v547, %v187
      %v557 = vand.u32 %v548, %v187
      %v560 = vand.u32 %v549, %v187
      %562 = vmatprep.subr.bf16.mxu0 0
      %563 = vmatpush1.bf16.msra.mxu0 0
      %564 = vmatprep.subr.bf16.mxu0 0
      %565 = vmatpush1.bf16.msra.mxu0 0
      %566 = vmatprep.subr.bf16.mxu0 0
      %567 = vmatpush1.bf16.msra.mxu0 0
      %568 = vmatprep.subr.bf16.mxu0 0
      %569 = vmatpush1.bf16.msra.mxu0 0
      %570 = vmatprep.subr.bf16.mxu0 0
      %571 = vmatpush1.bf16.msra.mxu0 0
      %572 = vmatprep.subr.bf16.mxu0 0
      %573 = vmatpush1.bf16.msra.mxu0 0
      %574 = vmatprep.subr.bf16.mxu0 0
      %575 = vmatpush1.bf16.msra.mxu0 0
      %576 = vmatprep.subr.bf16.mxu0 %v557
      %577 = vmatpush1.bf16.msra.mxu0 %v554
      %578 = vmatprep.subr.bf16.mxu0 0
      %579 = vmatpush2.bf16.msra.mxu0 0
      %580 = vmatprep.subr.bf16.mxu0 0
      %581 = vmatpush2.bf16.msra.mxu0 0
      %582 = vmatprep.subr.bf16.mxu0 0
      %583 = vmatpush2.bf16.msra.mxu0 0
      %584 = vmatprep.subr.bf16.mxu0 0
      %585 = vmatpush2.bf16.msra.mxu0 0
      %586 = vmatprep.subr.bf16.mxu0 0
      %587 = vmatpush2.bf16.msra.mxu0 0
      %588 = vmatprep.subr.bf16.mxu0 0
      %589 = vmatpush2.bf16.msra.mxu0 0
      %590 = vmatprep.subr.bf16.mxu0 0
      %591 = vmatpush2.bf16.msra.mxu0 0
      %592 = vmatprep.subr.bf16.mxu0 0
      %593 = vmatpush2.bf16.msra.mxu0 0
      %594 = vmatprep.mubr.bf16.mxu0 0
      %595 = vmatmul.mubr.bf16.gmra.mxu0 %v551
      %v596 = vpop.f32.mrf.mxu0
      %v597 = vadd.f32 0.0, %v596
      %v598 = vpop.f32.mrf.mxu0
      %v599 = vadd.f32 0.0, %v598
      %v600 = vpop.f32.mrf.mxu0
      %v601 = vpop.f32.mrf.mxu0
      %602 = vdwg.mxu0
      %603 = vmatprep.subr.bf16.mxu0 0
      %604 = vmatpush1.bf16.msra.mxu0 0
      %605 = vmatprep.subr.bf16.mxu0 0
      %606 = vmatpush1.bf16.msra.mxu0 0
      %607 = vmatprep.subr.bf16.mxu0 0
      %608 = vmatpush1.bf16.msra.mxu0 0
      %609 = vmatprep.subr.bf16.mxu0 0
      %610 = vmatpush1.bf16.msra.mxu0 0
      %611 = vmatprep.subr.bf16.mxu0 0
      %612 = vmatpush1.bf16.msra.mxu0 0
      %613 = vmatprep.subr.bf16.mxu0 0
      %614 = vmatpush1.bf16.msra.mxu0 0
      %615 = vmatprep.subr.bf16.mxu0 0
      %616 = vmatpush1.bf16.msra.mxu0 0
      %617 = vmatprep.subr.bf16.mxu0 0
      %618 = vmatpush1.bf16.msra.mxu0 %v560
      %619 = vmatprep.subr.bf16.mxu0 0
      %620 = vmatpush2.bf16.msra.mxu0 0
      %621 = vmatprep.subr.bf16.mxu0 0
      %622 = vmatpush2.bf16.msra.mxu0 0
      %623 = vmatprep.subr.bf16.mxu0 0
      %624 = vmatpush2.bf16.msra.mxu0 0
      %625 = vmatprep.subr.bf16.mxu0 0
      %626 = vmatpush2.bf16.msra.mxu0 0
      %627 = vmatprep.subr.bf16.mxu0 0
      %628 = vmatpush2.bf16.msra.mxu0 0
      %629 = vmatprep.subr.bf16.mxu0 0
      %630 = vmatpush2.bf16.msra.mxu0 0
      %631 = vmatprep.subr.bf16.mxu0 0
      %632 = vmatpush2.bf16.msra.mxu0 0
      %633 = vmatprep.subr.bf16.mxu0 0
      %634 = vmatpush2.bf16.msra.mxu0 0
      %635 = vmatprep.mubr.bf16.mxu0 0
      %636 = vmatmul.mubr.bf16.gmra.mxu0 %v551
      %v637 = vpop.f32.mrf.mxu0
      %v638 = vadd.f32 0.0, %v637
      %v639 = vpop.f32.mrf.mxu0
      %v640 = vpop.f32.mrf.mxu0
      %v641 = vpop.f32.mrf.mxu0
      %642 = vdwg.mxu0
      %v643 = vadd.f32 %v514, %v597
      %v644 = vadd.f32 %v515, %v599
      %v645 = vadd.f32 %v516, %v638
      %v646 = vld [vmem:[%s138] sm:$0xff]
      %s647 = scalar_lea.vmem %s0, 8
      %v648 = vld [vmem:[%s647] sm:$0x3]
      %v650 = vcombine.high %v646, %v646
      %v652 = vunpack.c.l.s4 1983009808
      %v653 = vunpack.c.0.s8 %v652
      %v654 = vlaneseq
      %v655 = vshrl.u32 %v654, 7
      %v656 = vsub.s32 %v653, %v655
      %v657 = vrot.slane %v646, %v656
      %v659 = vunpack.c.l.s4 1983009808
      %v660 = vunpack.c.0.s8 %v659
      %v661 = vlaneseq
      %v662 = vshrl.u32 %v661, 7
      %v663 = vsub.s32 %v660, %v662
      %v664 = vrot.slane %v650, %v663
      %v665 = vcombine.high %v657, %v657
      %v666 = vcombine.high %v664, %v664
      %667 = vrot.lane.b32.xlu0 %v657, 109
      %v668 = vpop.permute.xlu0 %667
      %669 = vrot.lane.b32.xlu0 %v665, 109
      %v670 = vpop.permute.xlu0 %669
      %671 = vrot.lane.b32.xlu0 %v664, 109
      %v672 = vpop.permute.xlu0 %671
      %673 = vrot.lane.b32.xlu0 %v666, 109
      %v674 = vpop.permute.xlu0 %673
      %vm675 = vcmask 891904
      %v676 = vsel %vm675, %v668, %v670
      %v677 = vsel %vm675, %v670, %v672
      %v678 = vsel %vm675, %v672, %v674
      %v680 = vsel %vm180, %v648, 0
      %v683 = vand.u32 %v676, %v187
      %v686 = vand.u32 %v677, %v187
      %v689 = vand.u32 %v678, %v187
      %691 = vmatprep.subr.bf16.mxu0 0
      %692 = vmatpush1.bf16.msra.mxu0 0
      %693 = vmatprep.subr.bf16.mxu0 0
      %694 = vmatpush1.bf16.msra.mxu0 0
      %695 = vmatprep.subr.bf16.mxu0 0
      %696 = vmatpush1.bf16.msra.mxu0 0
      %697 = vmatprep.subr.bf16.mxu0 0
      %698 = vmatpush1.bf16.msra.mxu0 0
      %699 = vmatprep.subr.bf16.mxu0 0
      %700 = vmatpush1.bf16.msra.mxu0 0
      %701 = vmatprep.subr.bf16.mxu0 0
      %702 = vmatpush1.bf16.msra.mxu0 0
      %703 = vmatprep.subr.bf16.mxu0 0
      %704 = vmatpush1.bf16.msra.mxu0 0
      %705 = vmatprep.subr.bf16.mxu0 %v686
      %706 = vmatpush1.bf16.msra.mxu0 %v683
      %707 = vmatprep.subr.bf16.mxu0 0
      %708 = vmatpush2.bf16.msra.mxu0 0
      %709 = vmatprep.subr.bf16.mxu0 0
      %710 = vmatpush2.bf16.msra.mxu0 0
      %711 = vmatprep.subr.bf16.mxu0 0
      %712 = vmatpush2.bf16.msra.mxu0 0
      %713 = vmatprep.subr.bf16.mxu0 0
      %714 = vmatpush2.bf16.msra.mxu0 0
      %715 = vmatprep.subr.bf16.mxu0 0
      %716 = vmatpush2.bf16.msra.mxu0 0
      %717 = vmatprep.subr.bf16.mxu0 0
      %718 = vmatpush2.bf16.msra.mxu0 0
      %719 = vmatprep.subr.bf16.mxu0 0
      %720 = vmatpush2.bf16.msra.mxu0 0
      %721 = vmatprep.subr.bf16.mxu0 0
      %722 = vmatpush2.bf16.msra.mxu0 0
      %723 = vmatprep.mubr.bf16.mxu0 0
      %724 = vmatmul.mubr.bf16.gmra.mxu0 %v680
      %v725 = vpop.f32.mrf.mxu0
      %v726 = vadd.f32 0.0, %v725
      %v727 = vpop.f32.mrf.mxu0
      %v728 = vadd.f32 0.0, %v727
      %v729 = vpop.f32.mrf.mxu0
      %v730 = vpop.f32.mrf.mxu0
      %731 = vdwg.mxu0
      %732 = vmatprep.subr.bf16.mxu0 0
      %733 = vmatpush1.bf16.msra.mxu0 0
      %734 = vmatprep.subr.bf16.mxu0 0
      %735 = vmatpush1.bf16.msra.mxu0 0
      %736 = vmatprep.subr.bf16.mxu0 0
      %737 = vmatpush1.bf16.msra.mxu0 0
      %738 = vmatprep.subr.bf16.mxu0 0
      %739 = vmatpush1.bf16.msra.mxu0 0
      %740 = vmatprep.subr.bf16.mxu0 0
      %741 = vmatpush1.bf16.msra.mxu0 0
      %742 = vmatprep.subr.bf16.mxu0 0
      %743 = vmatpush1.bf16.msra.mxu0 0
      %744 = vmatprep.subr.bf16.mxu0 0
      %745 = vmatpush1.bf16.msra.mxu0 0
      %746 = vmatprep.subr.bf16.mxu0 0
      %747 = vmatpush1.bf16.msra.mxu0 %v689
      %748 = vmatprep.subr.bf16.mxu0 0
      %749 = vmatpush2.bf16.msra.mxu0 0
      %750 = vmatprep.subr.bf16.mxu0 0
      %751 = vmatpush2.bf16.msra.mxu0 0
      %752 = vmatprep.subr.bf16.mxu0 0
      %753 = vmatpush2.bf16.msra.mxu0 0
      %754 = vmatprep.subr.bf16.mxu0 0
      %755 = vmatpush2.bf16.msra.mxu0 0
      %756 = vmatprep.subr.bf16.mxu0 0
      %757 = vmatpush2.bf16.msra.mxu0 0
      %758 = vmatprep.subr.bf16.mxu0 0
      %759 = vmatpush2.bf16.msra.mxu0 0
      %760 = vmatprep.subr.bf16.mxu0 0
      %761 = vmatpush2.bf16.msra.mxu0 0
      %762 = vmatprep.subr.bf16.mxu0 0
      %763 = vmatpush2.bf16.msra.mxu0 0
      %764 = vmatprep.mubr.bf16.mxu0 0
      %765 = vmatmul.mubr.bf16.gmra.mxu0 %v680
      %v766 = vpop.f32.mrf.mxu0
      %v767 = vadd.f32 0.0, %v766
      %v768 = vpop.f32.mrf.mxu0
      %v769 = vpop.f32.mrf.mxu0
      %v770 = vpop.f32.mrf.mxu0
      %771 = vdwg.mxu0
      %v772 = vadd.f32 %v643, %v726
      %v773 = vadd.f32 %v644, %v728
      %v774 = vadd.f32 %v645, %v767
      %v775 = vld [vmem:[%s138] sm:$0xff]
      %s776 = scalar_lea.vmem %s0, 10
      %v777 = vld [vmem:[%s776] sm:$0x3]
      %v779 = vcombine.high %v775, %v775
      %v781 = vunpack.c.l.s4 1983009808
      %v782 = vunpack.c.0.s8 %v781
      %v783 = vlaneseq
      %v784 = vshrl.u32 %v783, 7
      %v785 = vsub.s32 %v782, %v784
      %v786 = vrot.slane %v775, %v785
      %v788 = vunpack.c.l.s4 1983009808
      %v789 = vunpack.c.0.s8 %v788
      %v790 = vlaneseq
      %v791 = vshrl.u32 %v790, 7
      %v792 = vsub.s32 %v789, %v791
      %v793 = vrot.slane %v779, %v792
      %v794 = vcombine.high %v786, %v786
      %v795 = vcombine.high %v793, %v793
      %796 = vrot.lane.b32.xlu0 %v786, 108
      %v797 = vpop.permute.xlu0 %796
      %798 = vrot.lane.b32.xlu0 %v794, 108
      %v799 = vpop.permute.xlu0 %798
      %800 = vrot.lane.b32.xlu0 %v793, 108
      %v801 = vpop.permute.xlu0 %800
      %802 = vrot.lane.b32.xlu0 %v795, 108
      %v803 = vpop.permute.xlu0 %802
      %vm804 = vcmask 883712
      %v805 = vsel %vm804, %v797, %v799
      %v806 = vsel %vm804, %v799, %v801
      %v807 = vsel %vm804, %v801, %v803
      %v809 = vsel %vm180, %v777, 0
      %v812 = vand.u32 %v805, %v187
      %v815 = vand.u32 %v806, %v187
      %v818 = vand.u32 %v807, %v187
      %820 = vmatprep.subr.bf16.mxu0 0
      %821 = vmatpush1.bf16.msra.mxu0 0
      %822 = vmatprep.subr.bf16.mxu0 0
      %823 = vmatpush1.bf16.msra.mxu0 0
      %824 = vmatprep.subr.bf16.mxu0 0
      %825 = vmatpush1.bf16.msra.mxu0 0
      %826 = vmatprep.subr.bf16.mxu0 0
      %827 = vmatpush1.bf16.msra.mxu0 0
      %828 = vmatprep.subr.bf16.mxu0 0
      %829 = vmatpush1.bf16.msra.mxu0 0
      %830 = vmatprep.subr.bf16.mxu0 0
      %831 = vmatpush1.bf16.msra.mxu0 0
      %832 = vmatprep.subr.bf16.mxu0 0
      %833 = vmatpush1.bf16.msra.mxu0 0
      %834 = vmatprep.subr.bf16.mxu0 %v815
      %835 = vmatpush1.bf16.msra.mxu0 %v812
      %836 = vmatprep.subr.bf16.mxu0 0
      %837 = vmatpush2.bf16.msra.mxu0 0
      %838 = vmatprep.subr.bf16.mxu0 0
      %839 = vmatpush2.bf16.msra.mxu0 0
      %840 = vmatprep.subr.bf16.mxu0 0
      %841 = vmatpush2.bf16.msra.mxu0 0
      %842 = vmatprep.subr.bf16.mxu0 0
      %843 = vmatpush2.bf16.msra.mxu0 0
      %844 = vmatprep.subr.bf16.mxu0 0
      %845 = vmatpush2.bf16.msra.mxu0 0
      %846 = vmatprep.subr.bf16.mxu0 0
      %847 = vmatpush2.bf16.msra.mxu0 0
      %848 = vmatprep.subr.bf16.mxu0 0
      %849 = vmatpush2.bf16.msra.mxu0 0
      %850 = vmatprep.subr.bf16.mxu0 0
      %851 = vmatpush2.bf16.msra.mxu0 0
      %852 = vmatprep.mubr.bf16.mxu0 0
      %853 = vmatmul.mubr.bf16.gmra.mxu0 %v809
      %v854 = vpop.f32.mrf.mxu0
      %v855 = vadd.f32 0.0, %v854
      %v856 = vpop.f32.mrf.mxu0
      %v857 = vadd.f32 0.0, %v856
      %v858 = vpop.f32.mrf.mxu0
      %v859 = vpop.f32.mrf.mxu0
      %860 = vdwg.mxu0
      %861 = vmatprep.subr.bf16.mxu0 0
      %862 = vmatpush1.bf16.msra.mxu0 0
      %863 = vmatprep.subr.bf16.mxu0 0
      %864 = vmatpush1.bf16.msra.mxu0 0
      %865 = vmatprep.subr.bf16.mxu0 0
      %866 = vmatpush1.bf16.msra.mxu0 0
      %867 = vmatprep.subr.bf16.mxu0 0
      %868 = vmatpush1.bf16.msra.mxu0 0
      %869 = vmatprep.subr.bf16.mxu0 0
      %870 = vmatpush1.bf16.msra.mxu0 0
      %871 = vmatprep.subr.bf16.mxu0 0
      %872 = vmatpush1.bf16.msra.mxu0 0
      %873 = vmatprep.subr.bf16.mxu0 0
      %874 = vmatpush1.bf16.msra.mxu0 0
      %875 = vmatprep.subr.bf16.mxu0 0
      %876 = vmatpush1.bf16.msra.mxu0 %v818
      %877 = vmatprep.subr.bf16.mxu0 0
      %878 = vmatpush2.bf16.msra.mxu0 0
      %879 = vmatprep.subr.bf16.mxu0 0
      %880 = vmatpush2.bf16.msra.mxu0 0
      %881 = vmatprep.subr.bf16.mxu0 0
      %882 = vmatpush2.bf16.msra.mxu0 0
      %883 = vmatprep.subr.bf16.mxu0 0
      %884 = vmatpush2.bf16.msra.mxu0 0
      %885 = vmatprep.subr.bf16.mxu0 0
      %886 = vmatpush2.bf16.msra.mxu0 0
      %887 = vmatprep.subr.bf16.mxu0 0
      %888 = vmatpush2.bf16.msra.mxu0 0
      %889 = vmatprep.subr.bf16.mxu0 0
      %890 = vmatpush2.bf16.msra.mxu0 0
      %891 = vmatprep.subr.bf16.mxu0 0
      %892 = vmatpush2.bf16.msra.mxu0 0
      %893 = vmatprep.mubr.bf16.mxu0 0
      %894 = vmatmul.mubr.bf16.gmra.mxu0 %v809
      %v895 = vpop.f32.mrf.mxu0
      %v896 = vadd.f32 0.0, %v895
      %v897 = vpop.f32.mrf.mxu0
      %v898 = vpop.f32.mrf.mxu0
      %v899 = vpop.f32.mrf.mxu0
      %900 = vdwg.mxu0
      %v901 = vadd.f32 %v772, %v855
      %v902 = vadd.f32 %v773, %v857
      %v903 = vadd.f32 %v774, %v896
      %v904 = vld [vmem:[%s138] sm:$0xff]
      %s905 = scalar_lea.vmem %s0, 12
      %v906 = vld [vmem:[%s905] sm:$0x3]
      %v908 = vcombine.high %v904, %v904
      %v910 = vunpack.c.l.s4 1983009808
      %v911 = vunpack.c.0.s8 %v910
      %v912 = vlaneseq
      %v913 = vshrl.u32 %v912, 7
      %v914 = vsub.s32 %v911, %v913
      %v915 = vrot.slane %v904, %v914
      %v917 = vunpack.c.l.s4 1983009808
      %v918 = vunpack.c.0.s8 %v917
      %v919 = vlaneseq
      %v920 = vshrl.u32 %v919, 7
      %v921 = vsub.s32 %v918, %v920
      %v922 = vrot.slane %v908, %v921
      %v923 = vcombine.high %v915, %v915
      %v924 = vcombine.high %v922, %v922
      %925 = vrot.lane.b32.xlu0 %v915, 92
      %v926 = vpop.permute.xlu0 %925
      %927 = vrot.lane.b32.xlu0 %v923, 92
      %v928 = vpop.permute.xlu0 %927
      %929 = vrot.lane.b32.xlu0 %v922, 92
      %v930 = vpop.permute.xlu0 %929
      %931 = vrot.lane.b32.xlu0 %v924, 92
      %v932 = vpop.permute.xlu0 %931
      %vm933 = vcmask 752640
      %v934 = vsel %vm933, %v926, %v928
      %v935 = vsel %vm933, %v928, %v930
      %v936 = vsel %vm933, %v930, %v932
      %v938 = vsel %vm180, %v906, 0
      %v941 = vand.u32 %v934, %v187
      %v944 = vand.u32 %v935, %v187
      %v947 = vand.u32 %v936, %v187
      %949 = vmatprep.subr.bf16.mxu0 0
      %950 = vmatpush1.bf16.msra.mxu0 0
      %951 = vmatprep.subr.bf16.mxu0 0
      %952 = vmatpush1.bf16.msra.mxu0 0
      %953 = vmatprep.subr.bf16.mxu0 0
      %954 = vmatpush1.bf16.msra.mxu0 0
      %955 = vmatprep.subr.bf16.mxu0 0
      %956 = vmatpush1.bf16.msra.mxu0 0
      %957 = vmatprep.subr.bf16.mxu0 0
      %958 = vmatpush1.bf16.msra.mxu0 0
      %959 = vmatprep.subr.bf16.mxu0 0
      %960 = vmatpush1.bf16.msra.mxu0 0
      %961 = vmatprep.subr.bf16.mxu0 0
      %962 = vmatpush1.bf16.msra.mxu0 0
      %963 = vmatprep.subr.bf16.mxu0 %v944
      %964 = vmatpush1.bf16.msra.mxu0 %v941
      %965 = vmatprep.subr.bf16.mxu0 0
      %966 = vmatpush2.bf16.msra.mxu0 0
      %967 = vmatprep.subr.bf16.mxu0 0
      %968 = vmatpush2.bf16.msra.mxu0 0
      %969 = vmatprep.subr.bf16.mxu0 0
      %970 = vmatpush2.bf16.msra.mxu0 0
      %971 = vmatprep.subr.bf16.mxu0 0
      %972 = vmatpush2.bf16.msra.mxu0 0
      %973 = vmatprep.subr.bf16.mxu0 0
      %974 = vmatpush2.bf16.msra.mxu0 0
      %975 = vmatprep.subr.bf16.mxu0 0
      %976 = vmatpush2.bf16.msra.mxu0 0
      %977 = vmatprep.subr.bf16.mxu0 0
      %978 = vmatpush2.bf16.msra.mxu0 0
      %979 = vmatprep.subr.bf16.mxu0 0
      %980 = vmatpush2.bf16.msra.mxu0 0
      %981 = vmatprep.mubr.bf16.mxu0 0
      %982 = vmatmul.mubr.bf16.gmra.mxu0 %v938
      %v983 = vpop.f32.mrf.mxu0
      %v984 = vadd.f32 0.0, %v983
      %v985 = vpop.f32.mrf.mxu0
      %v986 = vadd.f32 0.0, %v985
      %v987 = vpop.f32.mrf.mxu0
      %v988 = vpop.f32.mrf.mxu0
      %989 = vdwg.mxu0
      %990 = vmatprep.subr.bf16.mxu0 0
      %991 = vmatpush1.bf16.msra.mxu0 0
      %992 = vmatprep.subr.bf16.mxu0 0
      %993 = vmatpush1.bf16.msra.mxu0 0
      %994 = vmatprep.subr.bf16.mxu0 0
      %995 = vmatpush1.bf16.msra.mxu0 0
      %996 = vmatprep.subr.bf16.mxu0 0
      %997 = vmatpush1.bf16.msra.mxu0 0
      %998 = vmatprep.subr.bf16.mxu0 0
      %999 = vmatpush1.bf16.msra.mxu0 0
      %1000 = vmatprep.subr.bf16.mxu0 0
      %1001 = vmatpush1.bf16.msra.mxu0 0
      %1002 = vmatprep.subr.bf16.mxu0 0
      %1003 = vmatpush1.bf16.msra.mxu0 0
      %1004 = vmatprep.subr.bf16.mxu0 0
      %1005 = vmatpush1.bf16.msra.mxu0 %v947
      %1006 = vmatprep.subr.bf16.mxu0 0
      %1007 = vmatpush2.bf16.msra.mxu0 0
      %1008 = vmatprep.subr.bf16.mxu0 0
      %1009 = vmatpush2.bf16.msra.mxu0 0
      %1010 = vmatprep.subr.bf16.mxu0 0
      %1011 = vmatpush2.bf16.msra.mxu0 0
      %1012 = vmatprep.subr.bf16.mxu0 0
      %1013 = vmatpush2.bf16.msra.mxu0 0
      %1014 = vmatprep.subr.bf16.mxu0 0
      %1015 = vmatpush2.bf16.msra.mxu0 0
      %1016 = vmatprep.subr.bf16.mxu0 0
      %1017 = vmatpush2.bf16.msra.mxu0 0
      %1018 = vmatprep.subr.bf16.mxu0 0
      %1019 = vmatpush2.bf16.msra.mxu0 0
      %1020 = vmatprep.subr.bf16.mxu0 0
      %1021 = vmatpush2.bf16.msra.mxu0 0
      %1022 = vmatprep.mubr.bf16.mxu0 0
      %1023 = vmatmul.mubr.bf16.gmra.mxu0 %v938
      %v1024 = vpop.f32.mrf.mxu0
      %v1025 = vadd.f32 0.0, %v1024
      %v1026 = vpop.f32.mrf.mxu0
      %v1027 = vpop.f32.mrf.mxu0
      %v1028 = vpop.f32.mrf.mxu0
      %1029 = vdwg.mxu0
      %v1030 = vadd.f32 %v901, %v984
      %v1031 = vadd.f32 %v902, %v986
      %v1032 = vadd.f32 %v903, %v1025
      %v1033 = vld [vmem:[%s138] sm:$0xff]
      %s1034 = scalar_lea.vmem %s0, 14
      %v1035 = vld [vmem:[%s1034] sm:$0x3]
      %v1037 = vcombine.high %v1033, %v1033
      %v1039 = vunpack.c.l.s4 1983009808
      %v1040 = vunpack.c.0.s8 %v1039
      %v1041 = vlaneseq
      %v1042 = vshrl.u32 %v1041, 7
      %v1043 = vsub.s32 %v1040, %v1042
      %v1044 = vrot.slane %v1033, %v1043
      %v1046 = vunpack.c.l.s4 1983009808
      %v1047 = vunpack.c.0.s8 %v1046
      %v1048 = vlaneseq
      %v1049 = vshrl.u32 %v1048, 7
      %v1050 = vsub.s32 %v1047, %v1049
      %v1051 = vrot.slane %v1037, %v1050
      %v1052 = vcombine.high %v1044, %v1044
      %v1053 = vcombine.high %v1051, %v1051
      %1054 = vrot.lane.b32.xlu0 %v1044, 91
      %v1055 = vpop.permute.xlu0 %1054
      %1056 = vrot.lane.b32.xlu0 %v1052, 91
      %v1057 = vpop.permute.xlu0 %1056
      %1058 = vrot.lane.b32.xlu0 %v1051, 91
      %v1059 = vpop.permute.xlu0 %1058
      %1060 = vrot.lane.b32.xlu0 %v1053, 91
      %v1061 = vpop.permute.xlu0 %1060
      %vm1062 = vcmask 744448
      %v1063 = vsel %vm1062, %v1055, %v1057
      %v1064 = vsel %vm1062, %v1057, %v1059
      %v1065 = vsel %vm1062, %v1059, %v1061
      %v1067 = vsel %vm180, %v1035, 0
      %v1070 = vand.u32 %v1063, %v187
      %v1073 = vand.u32 %v1064, %v187
      %v1076 = vand.u32 %v1065, %v187
      %1078 = vmatprep.subr.bf16.mxu0 0
      %1079 = vmatpush1.bf16.msra.mxu0 0
      %1080 = vmatprep.subr.bf16.mxu0 0
      %1081 = vmatpush1.bf16.msra.mxu0 0
      %1082 = vmatprep.subr.bf16.mxu0 0
      %1083 = vmatpush1.bf16.msra.mxu0 0
      %1084 = vmatprep.subr.bf16.mxu0 0
      %1085 = vmatpush1.bf16.msra.mxu0 0
      %1086 = vmatprep.subr.bf16.mxu0 0
      %1087 = vmatpush1.bf16.msra.mxu0 0
      %1088 = vmatprep.subr.bf16.mxu0 0
      %1089 = vmatpush1.bf16.msra.mxu0 0
      %1090 = vmatprep.subr.bf16.mxu0 0
      %1091 = vmatpush1.bf16.msra.mxu0 0
      %1092 = vmatprep.subr.bf16.mxu0 %v1073
      %1093 = vmatpush1.bf16.msra.mxu0 %v1070
      %1094 = vmatprep.subr.bf16.mxu0 0
      %1095 = vmatpush2.bf16.msra.mxu0 0
      %1096 = vmatprep.subr.bf16.mxu0 0
      %1097 = vmatpush2.bf16.msra.mxu0 0
      %1098 = vmatprep.subr.bf16.mxu0 0
      %1099 = vmatpush2.bf16.msra.mxu0 0
      %1100 = vmatprep.subr.bf16.mxu0 0
      %1101 = vmatpush2.bf16.msra.mxu0 0
      %1102 = vmatprep.subr.bf16.mxu0 0
      %1103 = vmatpush2.bf16.msra.mxu0 0
      %1104 = vmatprep.subr.bf16.mxu0 0
      %1105 = vmatpush2.bf16.msra.mxu0 0
      %1106 = vmatprep.subr.bf16.mxu0 0
      %1107 = vmatpush2.bf16.msra.mxu0 0
      %1108 = vmatprep.subr.bf16.mxu0 0
      %1109 = vmatpush2.bf16.msra.mxu0 0
      %1110 = vmatprep.mubr.bf16.mxu0 0
      %1111 = vmatmul.mubr.bf16.gmra.mxu0 %v1067
      %v1112 = vpop.f32.mrf.mxu0
      %v1113 = vadd.f32 0.0, %v1112
      %v1114 = vpop.f32.mrf.mxu0
      %v1115 = vadd.f32 0.0, %v1114
      %v1116 = vpop.f32.mrf.mxu0
      %v1117 = vpop.f32.mrf.mxu0
      %1118 = vdwg.mxu0
      %1119 = vmatprep.subr.bf16.mxu0 0
      %1120 = vmatpush1.bf16.msra.mxu0 0
      %1121 = vmatprep.subr.bf16.mxu0 0
      %1122 = vmatpush1.bf16.msra.mxu0 0
      %1123 = vmatprep.subr.bf16.mxu0 0
      %1124 = vmatpush1.bf16.msra.mxu0 0
      %1125 = vmatprep.subr.bf16.mxu0 0
      %1126 = vmatpush1.bf16.msra.mxu0 0
      %1127 = vmatprep.subr.bf16.mxu0 0
      %1128 = vmatpush1.bf16.msra.mxu0 0
      %1129 = vmatprep.subr.bf16.mxu0 0
      %1130 = vmatpush1.bf16.msra.mxu0 0
      %1131 = vmatprep.subr.bf16.mxu0 0
      %1132 = vmatpush1.bf16.msra.mxu0 0
      %1133 = vmatprep.subr.bf16.mxu0 0
      %1134 = vmatpush1.bf16.msra.mxu0 %v1076
      %1135 = vmatprep.subr.bf16.mxu0 0
      %1136 = vmatpush2.bf16.msra.mxu0 0
      %1137 = vmatprep.subr.bf16.mxu0 0
      %1138 = vmatpush2.bf16.msra.mxu0 0
      %1139 = vmatprep.subr.bf16.mxu0 0
      %1140 = vmatpush2.bf16.msra.mxu0 0
      %1141 = vmatprep.subr.bf16.mxu0 0
      %1142 = vmatpush2.bf16.msra.mxu0 0
      %1143 = vmatprep.subr.bf16.mxu0 0
      %1144 = vmatpush2.bf16.msra.mxu0 0
      %1145 = vmatprep.subr.bf16.mxu0 0
      %1146 = vmatpush2.bf16.msra.mxu0 0
      %1147 = vmatprep.subr.bf16.mxu0 0
      %1148 = vmatpush2.bf16.msra.mxu0 0
      %1149 = vmatprep.subr.bf16.mxu0 0
      %1150 = vmatpush2.bf16.msra.mxu0 0
      %1151 = vmatprep.mubr.bf16.mxu0 0
      %1152 = vmatmul.mubr.bf16.gmra.mxu0 %v1067
      %v1153 = vpop.f32.mrf.mxu0
      %v1154 = vadd.f32 0.0, %v1153
      %v1155 = vpop.f32.mrf.mxu0
      %v1156 = vpop.f32.mrf.mxu0
      %v1157 = vpop.f32.mrf.mxu0
      %1158 = vdwg.mxu0
      %v1159 = vadd.f32 %v1030, %v1113
      %v1160 = vadd.f32 %v1031, %v1115
      %v1161 = vadd.f32 %v1032, %v1154
      %v1162 = vld [vmem:[%s138] sm:$0xff]
      %s1163 = scalar_lea.vmem %s0, 16
      %v1164 = vld [vmem:[%s1163] sm:$0x3]
      %v1166 = vcombine.high %v1162, %v1162
      %v1168 = vunpack.c.l.s4 1983009808
      %v1169 = vunpack.c.0.s8 %v1168
      %v1170 = vlaneseq
      %v1171 = vshrl.u32 %v1170, 7
      %v1172 = vsub.s32 %v1169, %v1171
      %v1173 = vrot.slane %v1162, %v1172
      %v1175 = vunpack.c.l.s4 1983009808
      %v1176 = vunpack.c.0.s8 %v1175
      %v1177 = vlaneseq
      %v1178 = vshrl.u32 %v1177, 7
      %v1179 = vsub.s32 %v1176, %v1178
      %v1180 = vrot.slane %v1166, %v1179
      %v1181 = vcombine.high %v1173, %v1173
      %v1182 = vcombine.high %v1180, %v1180
      %1183 = vrot.lane.b32.xlu0 %v1173, 90
      %v1184 = vpop.permute.xlu0 %1183
      %1185 = vrot.lane.b32.xlu0 %v1181, 90
      %v1186 = vpop.permute.xlu0 %1185
      %1187 = vrot.lane.b32.xlu0 %v1180, 90
      %v1188 = vpop.permute.xlu0 %1187
      %1189 = vrot.lane.b32.xlu0 %v1182, 90
      %v1190 = vpop.permute.xlu0 %1189
      %vm1191 = vcmask 736256
      %v1192 = vsel %vm1191, %v1184, %v1186
      %v1193 = vsel %vm1191, %v1186, %v1188
      %v1194 = vsel %vm1191, %v1188, %v1190
      %v1196 = vsel %vm180, %v1164, 0
      %v1199 = vand.u32 %v1192, %v187
      %v1202 = vand.u32 %v1193, %v187
      %v1205 = vand.u32 %v1194, %v187
      %1207 = vmatprep.subr.bf16.mxu0 0
      %1208 = vmatpush1.bf16.msra.mxu0 0
      %1209 = vmatprep.subr.bf16.mxu0 0
      %1210 = vmatpush1.bf16.msra.mxu0 0
      %1211 = vmatprep.subr.bf16.mxu0 0
      %1212 = vmatpush1.bf16.msra.mxu0 0
      %1213 = vmatprep.subr.bf16.mxu0 0
      %1214 = vmatpush1.bf16.msra.mxu0 0
      %1215 = vmatprep.subr.bf16.mxu0 0
      %1216 = vmatpush1.bf16.msra.mxu0 0
      %1217 = vmatprep.subr.bf16.mxu0 0
      %1218 = vmatpush1.bf16.msra.mxu0 0
      %1219 = vmatprep.subr.bf16.mxu0 0
      %1220 = vmatpush1.bf16.msra.mxu0 0
      %1221 = vmatprep.subr.bf16.mxu0 %v1202
      %1222 = vmatpush1.bf16.msra.mxu0 %v1199
      %1223 = vmatprep.subr.bf16.mxu0 0
      %1224 = vmatpush2.bf16.msra.mxu0 0
      %1225 = vmatprep.subr.bf16.mxu0 0
      %1226 = vmatpush2.bf16.msra.mxu0 0
      %1227 = vmatprep.subr.bf16.mxu0 0
      %1228 = vmatpush2.bf16.msra.mxu0 0
      %1229 = vmatprep.subr.bf16.mxu0 0
      %1230 = vmatpush2.bf16.msra.mxu0 0
      %1231 = vmatprep.subr.bf16.mxu0 0
      %1232 = vmatpush2.bf16.msra.mxu0 0
      %1233 = vmatprep.subr.bf16.mxu0 0
      %1234 = vmatpush2.bf16.msra.mxu0 0
      %1235 = vmatprep.subr.bf16.mxu0 0
      %1236 = vmatpush2.bf16.msra.mxu0 0
      %1237 = vmatprep.subr.bf16.mxu0 0
      %1238 = vmatpush2.bf16.msra.mxu0 0
      %1239 = vmatprep.mubr.bf16.mxu0 0
      %1240 = vmatmul.mubr.bf16.gmra.mxu0 %v1196
      %v1241 = vpop.f32.mrf.mxu0
      %v1242 = vadd.f32 0.0, %v1241
      %v1243 = vpop.f32.mrf.mxu0
      %v1244 = vadd.f32 0.0, %v1243
      %v1245 = vpop.f32.mrf.mxu0
      %v1246 = vpop.f32.mrf.mxu0
      %1247 = vdwg.mxu0
      %1248 = vmatprep.subr.bf16.mxu0 0
      %1249 = vmatpush1.bf16.msra.mxu0 0
      %1250 = vmatprep.subr.bf16.mxu0 0
      %1251 = vmatpush1.bf16.msra.mxu0 0
      %1252 = vmatprep.subr.bf16.mxu0 0
      %1253 = vmatpush1.bf16.msra.mxu0 0
      %1254 = vmatprep.subr.bf16.mxu0 0
      %1255 = vmatpush1.bf16.msra.mxu0 0
      %1256 = vmatprep.subr.bf16.mxu0 0
      %1257 = vmatpush1.bf16.msra.mxu0 0
      %1258 = vmatprep.subr.bf16.mxu0 0
      %1259 = vmatpush1.bf16.msra.mxu0 0
      %1260 = vmatprep.subr.bf16.mxu0 0
      %1261 = vmatpush1.bf16.msra.mxu0 0
      %1262 = vmatprep.subr.bf16.mxu0 0
      %1263 = vmatpush1.bf16.msra.mxu0 %v1205
      %1264 = vmatprep.subr.bf16.mxu0 0
      %1265 = vmatpush2.bf16.msra.mxu0 0
      %1266 = vmatprep.subr.bf16.mxu0 0
      %1267 = vmatpush2.bf16.msra.mxu0 0
      %1268 = vmatprep.subr.bf16.mxu0 0
      %1269 = vmatpush2.bf16.msra.mxu0 0
      %1270 = vmatprep.subr.bf16.mxu0 0
      %1271 = vmatpush2.bf16.msra.mxu0 0
      %1272 = vmatprep.subr.bf16.mxu0 0
      %1273 = vmatpush2.bf16.msra.mxu0 0
      %1274 = vmatprep.subr.bf16.mxu0 0
      %1275 = vmatpush2.bf16.msra.mxu0 0
      %1276 = vmatprep.subr.bf16.mxu0 0
      %1277 = vmatpush2.bf16.msra.mxu0 0
      %1278 = vmatprep.subr.bf16.mxu0 0
      %1279 = vmatpush2.bf16.msra.mxu0 0
      %1280 = vmatprep.mubr.bf16.mxu0 0
      %1281 = vmatmul.mubr.bf16.gmra.mxu0 %v1196
      %v1282 = vpop.f32.mrf.mxu0
      %v1283 = vadd.f32 0.0, %v1282
      %v1284 = vpop.f32.mrf.mxu0
      %v1285 = vpop.f32.mrf.mxu0
      %v1286 = vpop.f32.mrf.mxu0
      %1287 = vdwg.mxu0
      %v1288 = vadd.f32 %v1159, %v1242
      %v1289 = vadd.f32 %v1160, %v1244
      %v1290 = vadd.f32 %v1161, %v1283
      %v1291 = vmax.f32 %v1288, 0.0
      %v1292 = vmax.f32 %v1289, 0.0
      %v1293 = vmax.f32 %v1290, 0.0
      %v1294 = vpack.c.bf16 %v1291, %v1291
      %v1295 = vpack.c.bf16 %v1292, %v1292
      %v1296 = vpack.c.bf16 %v1293, %v1293
      %v1300 = vcombine.low %v1294, %v1295
      %v1302 = vunpack.c.l.s4 1983009808
      %v1303 = vunpack.c.0.s8 %v1302
      %v1304 = vlaneseq
      %v1305 = vshrl.u32 %v1304, 7
      %v1306 = vsub.s32 %v1303, %v1305
      %v1307 = vrot.slane %v1300, %v1306
      %v1309 = vunpack.c.l.s4 1983009808
      %v1310 = vunpack.c.0.s8 %v1309
      %v1311 = vlaneseq
      %v1312 = vshrl.u32 %v1311, 7
      %v1313 = vsub.s32 %v1310, %v1312
      %v1314 = vrot.slane %v1296, %v1313
      %v1315 = vcombine.low %v1307, %v1314
      %1317 = vst [vmem:[%s143] sm:$0x3f] %v1315
      %p1318 = scmp.lt.s32.totalorder %s13, 1
      %s1319 = scalar_select %p1318, %s13, 1
      %s1320 = smul.addr %s1319, 3
      %s1321 = smul.addr %s1320, 2
      %s1322 = scalar_lea.vmem %s2, %s1321
      // Predicated region
      $region29: #{forward.24} parent=27 // pred_check
        %p1323 = pneg %p78
      $region30: #{forward.24} parent=27 // pred_check_branch
        %1325 = sbr.rel (%p1323) target = $region32
      $region31: #{forward.24} parent=27 // pred_region
        _
      $region32: #{forward.24} parent=27 // pred_fallthru
        _
    $region28: #{forward.24} parent=5 // pred_fallthru
      _
    %p1326 = scmp.le.s32.totalorder 2, %s8
    // Predicated region
    $region33: #{forward.24} parent=5 // pred_check
      %p1327 = pneg %p1326
    $region34: #{forward.24} parent=5 // pred_check_branch
      %1329 = sbr.rel (%p1327) target = $region36
    $region35: #{forward.24} parent=5 // pred_region
      %s1330 = ssub.s32 %s8, 2
      // Predicated region
      $region37: #{forward.24} parent=35 // pred_check
        %p1331 = pneg %p84
      $region38: #{forward.24} parent=35 // pred_check_branch
        %1333 = sbr.rel (%p1331) target = $region40
      $region39: #{forward.24} parent=35 // pred_region
        %p1334 = scmp.lt.s32.totalorder %s14, 1
        %s1335 = scalar_select %p1334, %s14, 1
        %s1336 = smul.addr %s1335, 3
        %s1337 = smul.addr %s1336, 2
        %s1338 = scalar_lea.vmem %s2, %s1337
      $region40: #{forward.24} parent=35 // pred_fallthru
        _
    $region36: #{forward.24} parent=5 // pred_fallthru
      _
  $region6: #{forward.24} parent=0 // loop_footer
    %s12 = sadd.s32 1, %s8
  $region7: #{forward.24} parent=0 // loop_footer_branch
    %7 = sbr.rel target = $region3
  $region8: #{forward.24} parent=0 // loop_exit
    _

// kernel: forward.29
$region0: #{forward.29}
  #allocation0 [shape = 'u32[]', space=smem, size = 0x4, offset = 0x4, fixed_abs, tag = 'smem constant byte address 0x4 - core index']
  #allocation1 [shape = 'u32[144,128]{1,0:T(1,128)}', space=vmem, size = 0x12000, scoped, tag = 'internal scratch']
  %s0 = inlined_call_operand.vmem [shape: bf16[9,4,4], index: 0, kind: input, shape index: {}]
  %s1 = inlined_call_operand.vmem [shape: bf16[2,4,512], index: 1, kind: input, shape index: {}]
  %s2 = inlined_call_operand.vmem [shape: bf16[2,4,384], index: 2, kind: output, shape index: {}]
  %s3 = sld [smem:[#allocation0]]
  $region41: #{forward.29} parent=0
    _
  %s5 = ssub.s32 1, %s3
  %s6 = scalar_select 0, %s5, %s3
  loop: start=0, step=1, limit=4
  $region2: #{forward.29} parent=0 // loop_pre_header
    _
  $region3: #{forward.29} parent=0 // loop_header
    %s8 = sphi 0, %s12
    %p9 = scmp.ge.s32.totalorder %s8, 4
    %s16 = sphi 0, %s16
    %s18 = sphi 0, %s16
    %s19 = sphi 0, %s18
    %s33 = sphi 0, %s19
    %s39 = sphi 0, %s41
    %s42 = sphi 0, %s39
    %s43 = sphi 0, %s42
    %s59 = sphi 0, %s43
    %s65 = sphi 0, %s67
    %s68 = sphi 0, %s65
    %s69 = sphi 0, %s68
    %s85 = sphi 0, %s69
  $region4: #{forward.29} parent=0 // loop_header_branch
    %11 = sbr.rel (%p9) target = $region8
  $region5: #{forward.29} parent=0 // loop_body
    %s13 = ssub.s32 %s8, 1
    %s14 = ssub.s32 %s8, 2
    %s15 = sadd.s32 %s8, 1
    %s17 = sadd.s32 %s16, 1
    %p20 = scmp.eq.s32.totalorder %s8, 1
    %p21 = scmp.ne.s32.totalorder %s16, %s18
    %p22 = scmp.eq.s32.totalorder %s8, 0
    %p23 = por %p21, %p22
    %p24 = scmp.ne.s32.totalorder %s16, %s18
    %p25 = scmp.eq.s32.totalorder %s13, 1
    %p26 = por %p24, %p25
    %p27 = scmp.ne.s32.totalorder %s18, %s19
    %p28 = scmp.eq.s32.totalorder %s13, 0
    %p29 = por %p27, %p28
    %p30 = scmp.ne.s32.totalorder %s18, %s19
    %p31 = scmp.eq.s32.totalorder %s14, 1
    %p32 = por %p30, %p31
    %p34 = scmp.ne.s32.totalorder %s19, %s33
    %p35 = scmp.eq.s32.totalorder %s14, 0
    %p36 = por %p34, %p35
    %s37 = ssub.s32 %s8, %s15
    %p38 = scmp.eq.s32.totalorder %s37, 0
    %s40 = sadd.s32 %s39, 1
    %s41 = scalar_select %p38, %s39, %s40
    %p44 = pneg %p38
    %p45 = scmp.eq.s32.totalorder %s8, 1
    %p46 = por %p44, %p45
    %p47 = scmp.ne.s32.totalorder %s39, %s42
    %p48 = scmp.eq.s32.totalorder %s8, 0
    %p49 = por %p47, %p48
    %p50 = scmp.ne.s32.totalorder %s39, %s42
    %p51 = scmp.eq.s32.totalorder %s13, 1
    %p52 = por %p50, %p51
    %p53 = scmp.ne.s32.totalorder %s42, %s43
    %p54 = scmp.eq.s32.totalorder %s13, 0
    %p55 = por %p53, %p54
    %p56 = scmp.ne.s32.totalorder %s42, %s43
    %p57 = scmp.eq.s32.totalorder %s14, 1
    %p58 = por %p56, %p57
    %p60 = scmp.ne.s32.totalorder %s43, %s59
    %p61 = scmp.eq.s32.totalorder %s14, 0
    %p62 = por %p60, %p61
    %s63 = ssub.s32 %s8, %s15
    %p64 = scmp.eq.s32.totalorder %s63, 0
    %s66 = sadd.s32 %s65, 1
    %s67 = scalar_select %p64, %s65, %s66
    %p70 = pneg %p64
    %p71 = scmp.eq.s32.totalorder %s8, 1
    %p72 = por %p70, %p71
    %p73 = scmp.ne.s32.totalorder %s65, %s68
    %p74 = scmp.eq.s32.totalorder %s8, 0
    %p75 = por %p73, %p74
    %p76 = scmp.ne.s32.totalorder %s65, %s68
    %p77 = scmp.eq.s32.totalorder %s13, 1
    %p78 = por %p76, %p77
    %p79 = scmp.ne.s32.totalorder %s68, %s69
    %p80 = scmp.eq.s32.totalorder %s13, 0
    %p81 = por %p79, %p80
    %p82 = scmp.ne.s32.totalorder %s68, %s69
    %p83 = scmp.eq.s32.totalorder %s14, 1
    %p84 = por %p82, %p83
    %p86 = scmp.ne.s32.totalorder %s69, %s85
    %p87 = scmp.eq.s32.totalorder %s14, 0
    %p88 = por %p86, %p87
    %p89 = scmp.le.s32.totalorder 1, %s8
    %p90 = scmp.lt.s32.totalorder %s8, 3
    %p91 = pnand %p89, %p90
    %p92 = pneg %p91
    // Predicated region
    $region9: #{forward.29} parent=5 // pred_check
      _
    $region10: #{forward.29} parent=5 // pred_check_branch
      %94 = sbr.rel (%p91) target = $region12
    $region11: #{forward.29} parent=5 // pred_region
      %s95 = ssub.s32 %s8, 1
      // Predicated region
      $region13: #{forward.29} parent=11 // pred_check
        %p96 = pneg %p29
      $region14: #{forward.29} parent=11 // pred_check_branch
        %98 = sbr.rel (%p96) target = $region16
      $region15: #{forward.29} parent=11 // pred_region
        _
      $region16: #{forward.29} parent=11 // pred_fallthru
        _
    $region12: #{forward.29} parent=5 // pred_fallthru
      _
    %p99 = scmp.lt.s32.totalorder %s8, 2
    // Predicated region
    $region17: #{forward.29} parent=5 // pred_check
      %p100 = pneg %p99
    $region18: #{forward.29} parent=5 // pred_check_branch
      %102 = sbr.rel (%p100) target = $region20
    $region19: #{forward.29} parent=5 // pred_region
      // Predicated region
      $region21: #{forward.29} parent=19 // pred_check
        %p103 = pneg %p49
      $region22: #{forward.29} parent=19 // pred_check_branch
        %105 = sbr.rel (%p103) target = $region24
      $region23: #{forward.29} parent=19 // pred_region
        %p106 = scmp.lt.s32.totalorder %s8, 1
        %s107 = scalar_select %p106, %s8, 1
        %s108 = smul.addr %s107, 4
        %s109 = smul.addr %s108, 2
        %s110 = scalar_lea.vmem %s1, %s109
      $region24: #{forward.29} parent=19 // pred_fallthru
        _
    $region20: #{forward.29} parent=5 // pred_fallthru
      _
    %p111 = scmp.le.s32.totalorder 1, %s8
    %p112 = scmp.lt.s32.totalorder %s8, 3
    %p113 = pnand %p111, %p112
    %p114 = pneg %p113
    // Predicated region
    $region25: #{forward.29} parent=5 // pred_check
      _
    $region26: #{forward.29} parent=5 // pred_check_branch
      %116 = sbr.rel (%p113) target = $region28
    $region27: #{forward.29} parent=5 // pred_region
      %s117 = ssub.s32 %s8, 1
      %p118 = pneg %p29
      %p119 = pneg %p26
      %p120 = scmp.lt.s32.totalorder %s13, 1
      %s121 = scalar_select %p120, %s13, 1
      %s122 = smul.addr %s121, 4
      %s123 = smul.addr %s122, 2
      %s124 = scalar_lea.vmem %s1, %s123
      %p125 = pneg %p55
      %p126 = pneg %p52
      %p127 = pneg %p81
      %p128 = pneg %p78
      %p129 = scmp.lt.s32.totalorder %s13, 1
      %s130 = scalar_select %p129, %s13, 1
      %s131 = smul.addr %s130, 3
      %s132 = smul.addr %s131, 2
      %s133 = scalar_lea.vmem %s2, %s132
      %p134 = scmp.lt.s32.totalorder %s13, 1
      %s135 = scalar_select %p134, %s13, 1
      %s136 = smul.addr %s135, 4
      %s137 = smul.addr %s136, 2
      %s138 = scalar_lea.vmem %s1, %s137
      %p139 = scmp.lt.s32.totalorder %s13, 1
      %s140 = scalar_select %p139, %s13, 1
      %s141 = smul.addr %s140, 3
      %s142 = smul.addr %s141, 2
      %s143 = scalar_lea.vmem %s2, %s142
      %v145 = vld [vmem:[%s138] sm:$0x3f]
      %v146 = vld [vmem:[%s0] sm:$0x3]
      %v147 = vld [vmem:[%s138] sm:$0xff]
      %s148 = scalar_lea.vmem %s0, 2
      %v149 = vld [vmem:[%s148] sm:$0x3]
      %v151 = vcombine.high %v147, %v147
      %v153 = vunpack.c.l.s4 1983009808
      %v154 = vunpack.c.0.s8 %v153
      %v155 = vlaneseq
      %v156 = vshrl.u32 %v155, 7
      %v157 = vsub.s32 %v154, %v156
      %v158 = vrot.slane %v147, %v157
      %v160 = vunpack.c.l.s4 1983009808
      %v161 = vunpack.c.0.s8 %v160
      %v162 = vlaneseq
      %v163 = vshrl.u32 %v162, 7
      %v164 = vsub.s32 %v161, %v163
      %v165 = vrot.slane %v151, %v164
      %v166 = vcombine.high %v158, %v158
      %v167 = vcombine.high %v165, %v165
      %168 = vrot.lane.b32.xlu0 %v158, 127
      %v169 = vpop.permute.xlu0 %168
      %170 = vrot.lane.b32.xlu0 %v166, 127
      %v171 = vpop.permute.xlu0 %170
      %172 = vrot.lane.b32.xlu0 %v165, 127
      %v173 = vpop.permute.xlu0 %172
      %174 = vrot.lane.b32.xlu0 %v167, 127
      %v175 = vpop.permute.xlu0 %174
      %vm176 = vcmask 1039360
      %v177 = vsel %vm176, %v169, %v171
      %v178 = vsel %vm176, %v171, %v173
      %v179 = vsel %vm176, %v173, %v175
      %vm180 = vcmask 31744
      %v182 = vsel %vm180, %v149, 0
      %vm184 = vcmask 1041408
      %v186 = vsel %vm184, %v177, 0
      %v189 = vsel %vm184, %v178, 0
      %v192 = vsel %vm184, %v179, 0
      %194 = vmatprep.subr.bf16.mxu0 0
      %195 = vmatpush1.bf16.msra.mxu0 0
      %196 = vmatprep.subr.bf16.mxu0 0
      %197 = vmatpush1.bf16.msra.mxu0 0
      %198 = vmatprep.subr.bf16.mxu0 0
      %199 = vmatpush1.bf16.msra.mxu0 0
      %200 = vmatprep.subr.bf16.mxu0 0
      %201 = vmatpush1.bf16.msra.mxu0 0
      %202 = vmatprep.subr.bf16.mxu0 0
      %203 = vmatpush1.bf16.msra.mxu0 0
      %204 = vmatprep.subr.bf16.mxu0 0
      %205 = vmatpush1.bf16.msra.mxu0 0
      %206 = vmatprep.subr.bf16.mxu0 0
      %207 = vmatpush1.bf16.msra.mxu0 0
      %208 = vmatprep.subr.bf16.mxu0 %v189
      %209 = vmatpush1.bf16.msra.mxu0 %v186
      %210 = vmatprep.subr.bf16.mxu0 0
      %211 = vmatpush2.bf16.msra.mxu0 0
      %212 = vmatprep.subr.bf16.mxu0 0
      %213 = vmatpush2.bf16.msra.mxu0 0
      %214 = vmatprep.subr.bf16.mxu0 0
      %215 = vmatpush2.bf16.msra.mxu0 0
      %216 = vmatprep.subr.bf16.mxu0 0
      %217 = vmatpush2.bf16.msra.mxu0 0
      %218 = vmatprep.subr.bf16.mxu0 0
      %219 = vmatpush2.bf16.msra.mxu0 0
      %220 = vmatprep.subr.bf16.mxu0 0
      %221 = vmatpush2.bf16.msra.mxu0 0
      %222 = vmatprep.subr.bf16.mxu0 0
      %223 = vmatpush2.bf16.msra.mxu0 0
      %224 = vmatprep.subr.bf16.mxu0 0
      %225 = vmatpush2.bf16.msra.mxu0 0
      %226 = vmatprep.mubr.bf16.mxu0 0
      %227 = vmatmul.mubr.bf16.gmra.mxu0 %v182
      %v228 = vpop.f32.mrf.mxu0
      %v229 = vadd.f32 0.0, %v228
      %v230 = vpop.f32.mrf.mxu0
      %v231 = vadd.f32 0.0, %v230
      %v232 = vpop.f32.mrf.mxu0
      %v233 = vpop.f32.mrf.mxu0
      %234 = vdwg.mxu0
      %235 = vmatprep.subr.bf16.mxu0 0
      %236 = vmatpush1.bf16.msra.mxu0 0
      %237 = vmatprep.subr.bf16.mxu0 0
      %238 = vmatpush1.bf16.msra.mxu0 0
      %239 = vmatprep.subr.bf16.mxu0 0
      %240 = vmatpush1.bf16.msra.mxu0 0
      %241 = vmatprep.subr.bf16.mxu0 0
      %242 = vmatpush1.bf16.msra.mxu0 0
      %243 = vmatprep.subr.bf16.mxu0 0
      %244 = vmatpush1.bf16.msra.mxu0 0
      %245 = vmatprep.subr.bf16.mxu0 0
      %246 = vmatpush1.bf16.msra.mxu0 0
      %247 = vmatprep.subr.bf16.mxu0 0
      %248 = vmatpush1.bf16.msra.mxu0 0
      %249 = vmatprep.subr.bf16.mxu0 0
      %250 = vmatpush1.bf16.msra.mxu0 %v192
      %251 = vmatprep.subr.bf16.mxu0 0
      %252 = vmatpush2.bf16.msra.mxu0 0
      %253 = vmatprep.subr.bf16.mxu0 0
      %254 = vmatpush2.bf16.msra.mxu0 0
      %255 = vmatprep.subr.bf16.mxu0 0
      %256 = vmatpush2.bf16.msra.mxu0 0
      %257 = vmatprep.subr.bf16.mxu0 0
      %258 = vmatpush2.bf16.msra.mxu0 0
      %259 = vmatprep.subr.bf16.mxu0 0
      %260 = vmatpush2.bf16.msra.mxu0 0
      %261 = vmatprep.subr.bf16.mxu0 0
      %262 = vmatpush2.bf16.msra.mxu0 0
      %263 = vmatprep.subr.bf16.mxu0 0
      %264 = vmatpush2.bf16.msra.mxu0 0
      %265 = vmatprep.subr.bf16.mxu0 0
      %266 = vmatpush2.bf16.msra.mxu0 0
      %267 = vmatprep.mubr.bf16.mxu0 0
      %268 = vmatmul.mubr.bf16.gmra.mxu0 %v182
      %v269 = vpop.f32.mrf.mxu0
      %v270 = vadd.f32 0.0, %v269
      %v271 = vpop.f32.mrf.mxu0
      %v272 = vpop.f32.mrf.mxu0
      %v273 = vpop.f32.mrf.mxu0
      %274 = vdwg.mxu0
      %v276 = vcombine.high %v145, %v145
      %v278 = vunpack.c.l.s4 1983009808
      %v279 = vunpack.c.0.s8 %v278
      %v280 = vlaneseq
      %v281 = vshrl.u32 %v280, 7
      %v282 = vsub.s32 %v279, %v281
      %v283 = vrot.slane %v145, %v282
      %v285 = vunpack.c.l.s4 1983009808
      %v286 = vunpack.c.0.s8 %v285
      %v287 = vlaneseq
      %v288 = vshrl.u32 %v287, 7
      %v289 = vsub.s32 %v286, %v288
      %v290 = vrot.slane %v276, %v289
      %v291 = vcombine.high %v283, %v283
      %v293 = vsel %vm180, %v146, 0
      %v296 = vsel %vm184, %v283, 0
      %v299 = vsel %vm184, %v291, 0
      %v302 = vsel %vm184, %v290, 0
      %304 = vmatprep.subr.bf16.mxu0 0
      %305 = vmatpush1.bf16.msra.mxu0 0
      %306 = vmatprep.subr.bf16.mxu0 0
      %307 = vmatpush1.bf16.msra.mxu0 0
      %308 = vmatprep.subr.bf16.mxu0 0
      %309 = vmatpush1.bf16.msra.mxu0 0
      %310 = vmatprep.subr.bf16.mxu0 0
      %311 = vmatpush1.bf16.msra.mxu0 0
      %312 = vmatprep.subr.bf16.mxu0 0
      %313 = vmatpush1.bf16.msra.mxu0 0
      %314 = vmatprep.subr.bf16.mxu0 0
      %315 = vmatpush1.bf16.msra.mxu0 0
      %316 = vmatprep.subr.bf16.mxu0 0
      %317 = vmatpush1.bf16.msra.mxu0 0
      %318 = vmatprep.subr.bf16.mxu0 %v299
      %319 = vmatpush1.bf16.msra.mxu0 %v296
      %320 = vmatprep.subr.bf16.mxu0 0
      %321 = vmatpush2.bf16.msra.mxu0 0
      %322 = vmatprep.subr.bf16.mxu0 0
      %323 = vmatpush2.bf16.msra.mxu0 0
      %324 = vmatprep.subr.bf16.mxu0 0
      %325 = vmatpush2.bf16.msra.mxu0 0
      %326 = vmatprep.subr.bf16.mxu0 0
      %327 = vmatpush2.bf16.msra.mxu0 0
      %328 = vmatprep.subr.bf16.mxu0 0
      %329 = vmatpush2.bf16.msra.mxu0 0
      %330 = vmatprep.subr.bf16.mxu0 0
      %331 = vmatpush2.bf16.msra.mxu0 0
      %332 = vmatprep.subr.bf16.mxu0 0
      %333 = vmatpush2.bf16.msra.mxu0 0
      %334 = vmatprep.subr.bf16.mxu0 0
      %335 = vmatpush2.bf16.msra.mxu0 0
      %336 = vmatprep.mubr.bf16.mxu0 0
      %337 = vmatmul.mubr.bf16.gmra.mxu0 %v293
      %v338 = vpop.f32.mrf.mxu0
      %v339 = vadd.f32 %v229, %v338
      %v340 = vpop.f32.mrf.mxu0
      %v341 = vadd.f32 %v231, %v340
      %v342 = vpop.f32.mrf.mxu0
      %v343 = vpop.f32.mrf.mxu0
      %344 = vdwg.mxu0
      %345 = vmatprep.subr.bf16.mxu0 0
      %346 = vmatpush1.bf16.msra.mxu0 0
      %347 = vmatprep.subr.bf16.mxu0 0
      %348 = vmatpush1.bf16.msra.mxu0 0
      %349 = vmatprep.subr.bf16.mxu0 0
      %350 = vmatpush1.bf16.msra.mxu0 0
      %351 = vmatprep.subr.bf16.mxu0 0
      %352 = vmatpush1.bf16.msra.mxu0 0
      %353 = vmatprep.subr.bf16.mxu0 0
      %354 = vmatpush1.bf16.msra.mxu0 0
      %355 = vmatprep.subr.bf16.mxu0 0
      %356 = vmatpush1.bf16.msra.mxu0 0
      %357 = vmatprep.subr.bf16.mxu0 0
      %358 = vmatpush1.bf16.msra.mxu0 0
      %359 = vmatprep.subr.bf16.mxu0 0
      %360 = vmatpush1.bf16.msra.mxu0 %v302
      %361 = vmatprep.subr.bf16.mxu0 0
      %362 = vmatpush2.bf16.msra.mxu0 0
      %363 = vmatprep.subr.bf16.mxu0 0
      %364 = vmatpush2.bf16.msra.mxu0 0
      %365 = vmatprep.subr.bf16.mxu0 0
      %366 = vmatpush2.bf16.msra.mxu0 0
      %367 = vmatprep.subr.bf16.mxu0 0
      %368 = vmatpush2.bf16.msra.mxu0 0
      %369 = vmatprep.subr.bf16.mxu0 0
      %370 = vmatpush2.bf16.msra.mxu0 0
      %371 = vmatprep.subr.bf16.mxu0 0
      %372 = vmatpush2.bf16.msra.mxu0 0
      %373 = vmatprep.subr.bf16.mxu0 0
      %374 = vmatpush2.bf16.msra.mxu0 0
      %375 = vmatprep.subr.bf16.mxu0 0
      %376 = vmatpush2.bf16.msra.mxu0 0
      %377 = vmatprep.mubr.bf16.mxu0 0
      %378 = vmatmul.mubr.bf16.gmra.mxu0 %v293
      %v379 = vpop.f32.mrf.mxu0
      %v380 = vadd.f32 %v270, %v379
      %v381 = vpop.f32.mrf.mxu0
      %v382 = vpop.f32.mrf.mxu0
      %v383 = vpop.f32.mrf.mxu0
      %384 = vdwg.mxu0
      %v385 = vld [vmem:[%s138] sm:$0xff]
      %s386 = scalar_lea.vmem %s0, 4
      %v387 = vld [vmem:[%s386] sm:$0x3]
      %v389 = vcombine.high %v385, %v385
      %v391 = vunpack.c.l.s4 1983009808
      %v392 = vunpack.c.0.s8 %v391
      %v393 = vlaneseq
      %v394 = vshrl.u32 %v393, 7
      %v395 = vsub.s32 %v392, %v394
      %v396 = vrot.slane %v385, %v395
      %v398 = vunpack.c.l.s4 1983009808
      %v399 = vunpack.c.0.s8 %v398
      %v400 = vlaneseq
      %v401 = vshrl.u32 %v400, 7
      %v402 = vsub.s32 %v399, %v401
      %v403 = vrot.slane %v389, %v402
      %v404 = vcombine.high %v396, %v396
      %v405 = vcombine.high %v403, %v403
      %406 = vrot.lane.b32.xlu0 %v396, 126
      %v407 = vpop.permute.xlu0 %406
      %408 = vrot.lane.b32.xlu0 %v404, 126
      %v409 = vpop.permute.xlu0 %408
      %410 = vrot.lane.b32.xlu0 %v403, 126
      %v411 = vpop.permute.xlu0 %410
      %412 = vrot.lane.b32.xlu0 %v405, 126
      %v413 = vpop.permute.xlu0 %412
      %vm414 = vcmask 1031168
      %v415 = vsel %vm414, %v407, %v409
      %v416 = vsel %vm414, %v409, %v411
      %v417 = vsel %vm414, %v411, %v413
      %v419 = vsel %vm180, %v387, 0
      %v422 = vsel %vm184, %v415, 0
      %v425 = vsel %vm184, %v416, 0
      %v428 = vsel %vm184, %v417, 0
      %430 = vmatprep.subr.bf16.mxu0 0
      %431 = vmatpush1.bf16.msra.mxu0 0
      %432 = vmatprep.subr.bf16.mxu0 0
      %433 = vmatpush1.bf16.msra.mxu0 0
      %434 = vmatprep.subr.bf16.mxu0 0
      %435 = vmatpush1.bf16.msra.mxu0 0
      %436 = vmatprep.subr.bf16.mxu0 0
      %437 = vmatpush1.bf16.msra.mxu0 0
      %438 = vmatprep.subr.bf16.mxu0 0
      %439 = vmatpush1.bf16.msra.mxu0 0
      %440 = vmatprep.subr.bf16.mxu0 0
      %441 = vmatpush1.bf16.msra.mxu0 0
      %442 = vmatprep.subr.bf16.mxu0 0
      %443 = vmatpush1.bf16.msra.mxu0 0
      %444 = vmatprep.subr.bf16.mxu0 %v425
      %445 = vmatpush1.bf16.msra.mxu0 %v422
      %446 = vmatprep.subr.bf16.mxu0 0
      %447 = vmatpush2.bf16.msra.mxu0 0
      %448 = vmatprep.subr.bf16.mxu0 0
      %449 = vmatpush2.bf16.msra.mxu0 0
      %450 = vmatprep.subr.bf16.mxu0 0
      %451 = vmatpush2.bf16.msra.mxu0 0
      %452 = vmatprep.subr.bf16.mxu0 0
      %453 = vmatpush2.bf16.msra.mxu0 0
      %454 = vmatprep.subr.bf16.mxu0 0
      %455 = vmatpush2.bf16.msra.mxu0 0
      %456 = vmatprep.subr.bf16.mxu0 0
      %457 = vmatpush2.bf16.msra.mxu0 0
      %458 = vmatprep.subr.bf16.mxu0 0
      %459 = vmatpush2.bf16.msra.mxu0 0
      %460 = vmatprep.subr.bf16.mxu0 0
      %461 = vmatpush2.bf16.msra.mxu0 0
      %462 = vmatprep.mubr.bf16.mxu0 0
      %463 = vmatmul.mubr.bf16.gmra.mxu0 %v419
      %v464 = vpop.f32.mrf.mxu0
      %v465 = vadd.f32 0.0, %v464
      %v466 = vpop.f32.mrf.mxu0
      %v467 = vadd.f32 0.0, %v466
      %v468 = vpop.f32.mrf.mxu0
      %v469 = vpop.f32.mrf.mxu0
      %470 = vdwg.mxu0
      %471 = vmatprep.subr.bf16.mxu0 0
      %472 = vmatpush1.bf16.msra.mxu0 0
      %473 = vmatprep.subr.bf16.mxu0 0
      %474 = vmatpush1.bf16.msra.mxu0 0
      %475 = vmatprep.subr.bf16.mxu0 0
      %476 = vmatpush1.bf16.msra.mxu0 0
      %477 = vmatprep.subr.bf16.mxu0 0
      %478 = vmatpush1.bf16.msra.mxu0 0
      %479 = vmatprep.subr.bf16.mxu0 0
      %480 = vmatpush1.bf16.msra.mxu0 0
      %481 = vmatprep.subr.bf16.mxu0 0
      %482 = vmatpush1.bf16.msra.mxu0 0
      %483 = vmatprep.subr.bf16.mxu0 0
      %484 = vmatpush1.bf16.msra.mxu0 0
      %485 = vmatprep.subr.bf16.mxu0 0
      %486 = vmatpush1.bf16.msra.mxu0 %v428
      %487 = vmatprep.subr.bf16.mxu0 0
      %488 = vmatpush2.bf16.msra.mxu0 0
      %489 = vmatprep.subr.bf16.mxu0 0
      %490 = vmatpush2.bf16.msra.mxu0 0
      %491 = vmatprep.subr.bf16.mxu0 0
      %492 = vmatpush2.bf16.msra.mxu0 0
      %493 = vmatprep.subr.bf16.mxu0 0
      %494 = vmatpush2.bf16.msra.mxu0 0
      %495 = vmatprep.subr.bf16.mxu0 0
      %496 = vmatpush2.bf16.msra.mxu0 0
      %497 = vmatprep.subr.bf16.mxu0 0
      %498 = vmatpush2.bf16.msra.mxu0 0
      %499 = vmatprep.subr.bf16.mxu0 0
      %500 = vmatpush2.bf16.msra.mxu0 0
      %501 = vmatprep.subr.bf16.mxu0 0
      %502 = vmatpush2.bf16.msra.mxu0 0
      %503 = vmatprep.mubr.bf16.mxu0 0
      %504 = vmatmul.mubr.bf16.gmra.mxu0 %v419
      %v505 = vpop.f32.mrf.mxu0
      %v506 = vadd.f32 0.0, %v505
      %v507 = vpop.f32.mrf.mxu0
      %v508 = vpop.f32.mrf.mxu0
      %v509 = vpop.f32.mrf.mxu0
      %510 = vdwg.mxu0
      %v511 = vadd.f32 %v339, %v465
      %v512 = vadd.f32 %v341, %v467
      %v513 = vadd.f32 %v380, %v506
      %v514 = vld [vmem:[%s138] sm:$0xff]
      %s515 = scalar_lea.vmem %s0, 6
      %v516 = vld [vmem:[%s515] sm:$0x3]
      %v518 = vcombine.high %v514, %v514
      %v520 = vunpack.c.l.s4 1983009808
      %v521 = vunpack.c.0.s8 %v520
      %v522 = vlaneseq
      %v523 = vshrl.u32 %v522, 7
      %v524 = vsub.s32 %v521, %v523
      %v525 = vrot.slane %v514, %v524
      %v527 = vunpack.c.l.s4 1983009808
      %v528 = vunpack.c.0.s8 %v527
      %v529 = vlaneseq
      %v530 = vshrl.u32 %v529, 7
      %v531 = vsub.s32 %v528, %v530
      %v532 = vrot.slane %v518, %v531
      %v533 = vcombine.high %v525, %v525
      %v534 = vcombine.high %v532, %v532
      %535 = vrot.lane.b32.xlu0 %v525, 110
      %v536 = vpop.permute.xlu0 %535
      %537 = vrot.lane.b32.xlu0 %v533, 110
      %v538 = vpop.permute.xlu0 %537
      %539 = vrot.lane.b32.xlu0 %v532, 110
      %v540 = vpop.permute.xlu0 %539
      %541 = vrot.lane.b32.xlu0 %v534, 110
      %v542 = vpop.permute.xlu0 %541
      %vm543 = vcmask 900096
      %v544 = vsel %vm543, %v536, %v538
      %v545 = vsel %vm543, %v538, %v540
      %v546 = vsel %vm543, %v540, %v542
      %v548 = vsel %vm180, %v516, 0
      %v551 = vsel %vm184, %v544, 0
      %v554 = vsel %vm184, %v545, 0
      %v557 = vsel %vm184, %v546, 0
      %559 = vmatprep.subr.bf16.mxu0 0
      %560 = vmatpush1.bf16.msra.mxu0 0
      %561 = vmatprep.subr.bf16.mxu0 0
      %562 = vmatpush1.bf16.msra.mxu0 0
      %563 = vmatprep.subr.bf16.mxu0 0
      %564 = vmatpush1.bf16.msra.mxu0 0
      %565 = vmatprep.subr.bf16.mxu0 0
      %566 = vmatpush1.bf16.msra.mxu0 0
      %567 = vmatprep.subr.bf16.mxu0 0
      %568 = vmatpush1.bf16.msra.mxu0 0
      %569 = vmatprep.subr.bf16.mxu0 0
      %570 = vmatpush1.bf16.msra.mxu0 0
      %571 = vmatprep.subr.bf16.mxu0 0
      %572 = vmatpush1.bf16.msra.mxu0 0
      %573 = vmatprep.subr.bf16.mxu0 %v554
      %574 = vmatpush1.bf16.msra.mxu0 %v551
      %575 = vmatprep.subr.bf16.mxu0 0
      %576 = vmatpush2.bf16.msra.mxu0 0
      %577 = vmatprep.subr.bf16.mxu0 0
      %578 = vmatpush2.bf16.msra.mxu0 0
      %579 = vmatprep.subr.bf16.mxu0 0
      %580 = vmatpush2.bf16.msra.mxu0 0
      %581 = vmatprep.subr.bf16.mxu0 0
      %582 = vmatpush2.bf16.msra.mxu0 0
      %583 = vmatprep.subr.bf16.mxu0 0
      %584 = vmatpush2.bf16.msra.mxu0 0
      %585 = vmatprep.subr.bf16.mxu0 0
      %586 = vmatpush2.bf16.msra.mxu0 0
      %587 = vmatprep.subr.bf16.mxu0 0
      %588 = vmatpush2.bf16.msra.mxu0 0
      %589 = vmatprep.subr.bf16.mxu0 0
      %590 = vmatpush2.bf16.msra.mxu0 0
      %591 = vmatprep.mubr.bf16.mxu0 0
      %592 = vmatmul.mubr.bf16.gmra.mxu0 %v548
      %v593 = vpop.f32.mrf.mxu0
      %v594 = vadd.f32 0.0, %v593
      %v595 = vpop.f32.mrf.mxu0
      %v596 = vadd.f32 0.0, %v595
      %v597 = vpop.f32.mrf.mxu0
      %v598 = vpop.f32.mrf.mxu0
      %599 = vdwg.mxu0
      %600 = vmatprep.subr.bf16.mxu0 0
      %601 = vmatpush1.bf16.msra.mxu0 0
      %602 = vmatprep.subr.bf16.mxu0 0
      %603 = vmatpush1.bf16.msra.mxu0 0
      %604 = vmatprep.subr.bf16.mxu0 0
      %605 = vmatpush1.bf16.msra.mxu0 0
      %606 = vmatprep.subr.bf16.mxu0 0
      %607 = vmatpush1.bf16.msra.mxu0 0
      %608 = vmatprep.subr.bf16.mxu0 0
      %609 = vmatpush1.bf16.msra.mxu0 0
      %610 = vmatprep.subr.bf16.mxu0 0
      %611 = vmatpush1.bf16.msra.mxu0 0
      %612 = vmatprep.subr.bf16.mxu0 0
      %613 = vmatpush1.bf16.msra.mxu0 0
      %614 = vmatprep.subr.bf16.mxu0 0
      %615 = vmatpush1.bf16.msra.mxu0 %v557
      %616 = vmatprep.subr.bf16.mxu0 0
      %617 = vmatpush2.bf16.msra.mxu0 0
      %618 = vmatprep.subr.bf16.mxu0 0
      %619 = vmatpush2.bf16.msra.mxu0 0
      %620 = vmatprep.subr.bf16.mxu0 0
      %621 = vmatpush2.bf16.msra.mxu0 0
      %622 = vmatprep.subr.bf16.mxu0 0
      %623 = vmatpush2.bf16.msra.mxu0 0
      %624 = vmatprep.subr.bf16.mxu0 0
      %625 = vmatpush2.bf16.msra.mxu0 0
      %626 = vmatprep.subr.bf16.mxu0 0
      %627 = vmatpush2.bf16.msra.mxu0 0
      %628 = vmatprep.subr.bf16.mxu0 0
      %629 = vmatpush2.bf16.msra.mxu0 0
      %630 = vmatprep.subr.bf16.mxu0 0
      %631 = vmatpush2.bf16.msra.mxu0 0
      %632 = vmatprep.mubr.bf16.mxu0 0
      %633 = vmatmul.mubr.bf16.gmra.mxu0 %v548
      %v634 = vpop.f32.mrf.mxu0
      %v635 = vadd.f32 0.0, %v634
      %v636 = vpop.f32.mrf.mxu0
      %v637 = vpop.f32.mrf.mxu0
      %v638 = vpop.f32.mrf.mxu0
      %639 = vdwg.mxu0
      %v640 = vadd.f32 %v511, %v594
      %v641 = vadd.f32 %v512, %v596
      %v642 = vadd.f32 %v513, %v635
      %v643 = vld [vmem:[%s138] sm:$0xff]
      %s644 = scalar_lea.vmem %s0, 8
      %v645 = vld [vmem:[%s644] sm:$0x3]
      %v647 = vcombine.high %v643, %v643
      %v649 = vunpack.c.l.s4 1983009808
      %v650 = vunpack.c.0.s8 %v649
      %v651 = vlaneseq
      %v652 = vshrl.u32 %v651, 7
      %v653 = vsub.s32 %v650, %v652
      %v654 = vrot.slane %v643, %v653
      %v656 = vunpack.c.l.s4 1983009808
      %v657 = vunpack.c.0.s8 %v656
      %v658 = vlaneseq
      %v659 = vshrl.u32 %v658, 7
      %v660 = vsub.s32 %v657, %v659
      %v661 = vrot.slane %v647, %v660
      %v662 = vcombine.high %v654, %v654
      %v663 = vcombine.high %v661, %v661
      %664 = vrot.lane.b32.xlu0 %v654, 109
      %v665 = vpop.permute.xlu0 %664
      %666 = vrot.lane.b32.xlu0 %v662, 109
      %v667 = vpop.permute.xlu0 %666
      %668 = vrot.lane.b32.xlu0 %v661, 109
      %v669 = vpop.permute.xlu0 %668
      %670 = vrot.lane.b32.xlu0 %v663, 109
      %v671 = vpop.permute.xlu0 %670
      %vm672 = vcmask 891904
      %v673 = vsel %vm672, %v665, %v667
      %v674 = vsel %vm672, %v667, %v669
      %v675 = vsel %vm672, %v669, %v671
      %v677 = vsel %vm180, %v645, 0
      %v680 = vsel %vm184, %v673, 0
      %v683 = vsel %vm184, %v674, 0
      %v686 = vsel %vm184, %v675, 0
      %688 = vmatprep.subr.bf16.mxu0 0
      %689 = vmatpush1.bf16.msra.mxu0 0
      %690 = vmatprep.subr.bf16.mxu0 0
      %691 = vmatpush1.bf16.msra.mxu0 0
      %692 = vmatprep.subr.bf16.mxu0 0
      %693 = vmatpush1.bf16.msra.mxu0 0
      %694 = vmatprep.subr.bf16.mxu0 0
      %695 = vmatpush1.bf16.msra.mxu0 0
      %696 = vmatprep.subr.bf16.mxu0 0
      %697 = vmatpush1.bf16.msra.mxu0 0
      %698 = vmatprep.subr.bf16.mxu0 0
      %699 = vmatpush1.bf16.msra.mxu0 0
      %700 = vmatprep.subr.bf16.mxu0 0
      %701 = vmatpush1.bf16.msra.mxu0 0
      %702 = vmatprep.subr.bf16.mxu0 %v683
      %703 = vmatpush1.bf16.msra.mxu0 %v680
      %704 = vmatprep.subr.bf16.mxu0 0
      %705 = vmatpush2.bf16.msra.mxu0 0
      %706 = vmatprep.subr.bf16.mxu0 0
      %707 = vmatpush2.bf16.msra.mxu0 0
      %708 = vmatprep.subr.bf16.mxu0 0
      %709 = vmatpush2.bf16.msra.mxu0 0
      %710 = vmatprep.subr.bf16.mxu0 0
      %711 = vmatpush2.bf16.msra.mxu0 0
      %712 = vmatprep.subr.bf16.mxu0 0
      %713 = vmatpush2.bf16.msra.mxu0 0
      %714 = vmatprep.subr.bf16.mxu0 0
      %715 = vmatpush2.bf16.msra.mxu0 0
      %716 = vmatprep.subr.bf16.mxu0 0
      %717 = vmatpush2.bf16.msra.mxu0 0
      %718 = vmatprep.subr.bf16.mxu0 0
      %719 = vmatpush2.bf16.msra.mxu0 0
      %720 = vmatprep.mubr.bf16.mxu0 0
      %721 = vmatmul.mubr.bf16.gmra.mxu0 %v677
      %v722 = vpop.f32.mrf.mxu0
      %v723 = vadd.f32 0.0, %v722
      %v724 = vpop.f32.mrf.mxu0
      %v725 = vadd.f32 0.0, %v724
      %v726 = vpop.f32.mrf.mxu0
      %v727 = vpop.f32.mrf.mxu0
      %728 = vdwg.mxu0
      %729 = vmatprep.subr.bf16.mxu0 0
      %730 = vmatpush1.bf16.msra.mxu0 0
      %731 = vmatprep.subr.bf16.mxu0 0
      %732 = vmatpush1.bf16.msra.mxu0 0
      %733 = vmatprep.subr.bf16.mxu0 0
      %734 = vmatpush1.bf16.msra.mxu0 0
      %735 = vmatprep.subr.bf16.mxu0 0
      %736 = vmatpush1.bf16.msra.mxu0 0
      %737 = vmatprep.subr.bf16.mxu0 0
      %738 = vmatpush1.bf16.msra.mxu0 0
      %739 = vmatprep.subr.bf16.mxu0 0
      %740 = vmatpush1.bf16.msra.mxu0 0
      %741 = vmatprep.subr.bf16.mxu0 0
      %742 = vmatpush1.bf16.msra.mxu0 0
      %743 = vmatprep.subr.bf16.mxu0 0
      %744 = vmatpush1.bf16.msra.mxu0 %v686
      %745 = vmatprep.subr.bf16.mxu0 0
      %746 = vmatpush2.bf16.msra.mxu0 0
      %747 = vmatprep.subr.bf16.mxu0 0
      %748 = vmatpush2.bf16.msra.mxu0 0
      %749 = vmatprep.subr.bf16.mxu0 0
      %750 = vmatpush2.bf16.msra.mxu0 0
      %751 = vmatprep.subr.bf16.mxu0 0
      %752 = vmatpush2.bf16.msra.mxu0 0
      %753 = vmatprep.subr.bf16.mxu0 0
      %754 = vmatpush2.bf16.msra.mxu0 0
      %755 = vmatprep.subr.bf16.mxu0 0
      %756 = vmatpush2.bf16.msra.mxu0 0
      %757 = vmatprep.subr.bf16.mxu0 0
      %758 = vmatpush2.bf16.msra.mxu0 0
      %759 = vmatprep.subr.bf16.mxu0 0
      %760 = vmatpush2.bf16.msra.mxu0 0
      %761 = vmatprep.mubr.bf16.mxu0 0
      %762 = vmatmul.mubr.bf16.gmra.mxu0 %v677
      %v763 = vpop.f32.mrf.mxu0
      %v764 = vadd.f32 0.0, %v763
      %v765 = vpop.f32.mrf.mxu0
      %v766 = vpop.f32.mrf.mxu0
      %v767 = vpop.f32.mrf.mxu0
      %768 = vdwg.mxu0
      %v769 = vadd.f32 %v640, %v723
      %v770 = vadd.f32 %v641, %v725
      %v771 = vadd.f32 %v642, %v764
      %v772 = vld [vmem:[%s138] sm:$0xff]
      %s773 = scalar_lea.vmem %s0, 10
      %v774 = vld [vmem:[%s773] sm:$0x3]
      %v776 = vcombine.high %v772, %v772
      %v778 = vunpack.c.l.s4 1983009808
      %v779 = vunpack.c.0.s8 %v778
      %v780 = vlaneseq
      %v781 = vshrl.u32 %v780, 7
      %v782 = vsub.s32 %v779, %v781
      %v783 = vrot.slane %v772, %v782
      %v785 = vunpack.c.l.s4 1983009808
      %v786 = vunpack.c.0.s8 %v785
      %v787 = vlaneseq
      %v788 = vshrl.u32 %v787, 7
      %v789 = vsub.s32 %v786, %v788
      %v790 = vrot.slane %v776, %v789
      %v791 = vcombine.high %v783, %v783
      %v792 = vcombine.high %v790, %v790
      %793 = vrot.lane.b32.xlu0 %v783, 108
      %v794 = vpop.permute.xlu0 %793
      %795 = vrot.lane.b32.xlu0 %v791, 108
      %v796 = vpop.permute.xlu0 %795
      %797 = vrot.lane.b32.xlu0 %v790, 108
      %v798 = vpop.permute.xlu0 %797
      %799 = vrot.lane.b32.xlu0 %v792, 108
      %v800 = vpop.permute.xlu0 %799
      %vm801 = vcmask 883712
      %v802 = vsel %vm801, %v794, %v796
      %v803 = vsel %vm801, %v796, %v798
      %v804 = vsel %vm801, %v798, %v800
      %v806 = vsel %vm180, %v774, 0
      %v809 = vsel %vm184, %v802, 0
      %v812 = vsel %vm184, %v803, 0
      %v815 = vsel %vm184, %v804, 0
      %817 = vmatprep.subr.bf16.mxu0 0
      %818 = vmatpush1.bf16.msra.mxu0 0
      %819 = vmatprep.subr.bf16.mxu0 0
      %820 = vmatpush1.bf16.msra.mxu0 0
      %821 = vmatprep.subr.bf16.mxu0 0
      %822 = vmatpush1.bf16.msra.mxu0 0
      %823 = vmatprep.subr.bf16.mxu0 0
      %824 = vmatpush1.bf16.msra.mxu0 0
      %825 = vmatprep.subr.bf16.mxu0 0
      %826 = vmatpush1.bf16.msra.mxu0 0
      %827 = vmatprep.subr.bf16.mxu0 0
      %828 = vmatpush1.bf16.msra.mxu0 0
      %829 = vmatprep.subr.bf16.mxu0 0
      %830 = vmatpush1.bf16.msra.mxu0 0
      %831 = vmatprep.subr.bf16.mxu0 %v812
      %832 = vmatpush1.bf16.msra.mxu0 %v809
      %833 = vmatprep.subr.bf16.mxu0 0
      %834 = vmatpush2.bf16.msra.mxu0 0
      %835 = vmatprep.subr.bf16.mxu0 0
      %836 = vmatpush2.bf16.msra.mxu0 0
      %837 = vmatprep.subr.bf16.mxu0 0
      %838 = vmatpush2.bf16.msra.mxu0 0
      %839 = vmatprep.subr.bf16.mxu0 0
      %840 = vmatpush2.bf16.msra.mxu0 0
      %841 = vmatprep.subr.bf16.mxu0 0
      %842 = vmatpush2.bf16.msra.mxu0 0
      %843 = vmatprep.subr.bf16.mxu0 0
      %844 = vmatpush2.bf16.msra.mxu0 0
      %845 = vmatprep.subr.bf16.mxu0 0
      %846 = vmatpush2.bf16.msra.mxu0 0
      %847 = vmatprep.subr.bf16.mxu0 0
      %848 = vmatpush2.bf16.msra.mxu0 0
      %849 = vmatprep.mubr.bf16.mxu0 0
      %850 = vmatmul.mubr.bf16.gmra.mxu0 %v806
      %v851 = vpop.f32.mrf.mxu0
      %v852 = vadd.f32 0.0, %v851
      %v853 = vpop.f32.mrf.mxu0
      %v854 = vadd.f32 0.0, %v853
      %v855 = vpop.f32.mrf.mxu0
      %v856 = vpop.f32.mrf.mxu0
      %857 = vdwg.mxu0
      %858 = vmatprep.subr.bf16.mxu0 0
      %859 = vmatpush1.bf16.msra.mxu0 0
      %860 = vmatprep.subr.bf16.mxu0 0
      %861 = vmatpush1.bf16.msra.mxu0 0
      %862 = vmatprep.subr.bf16.mxu0 0
      %863 = vmatpush1.bf16.msra.mxu0 0
      %864 = vmatprep.subr.bf16.mxu0 0
      %865 = vmatpush1.bf16.msra.mxu0 0
      %866 = vmatprep.subr.bf16.mxu0 0
      %867 = vmatpush1.bf16.msra.mxu0 0
      %868 = vmatprep.subr.bf16.mxu0 0
      %869 = vmatpush1.bf16.msra.mxu0 0
      %870 = vmatprep.subr.bf16.mxu0 0
      %871 = vmatpush1.bf16.msra.mxu0 0
      %872 = vmatprep.subr.bf16.mxu0 0
      %873 = vmatpush1.bf16.msra.mxu0 %v815
      %874 = vmatprep.subr.bf16.mxu0 0
      %875 = vmatpush2.bf16.msra.mxu0 0
      %876 = vmatprep.subr.bf16.mxu0 0
      %877 = vmatpush2.bf16.msra.mxu0 0
      %878 = vmatprep.subr.bf16.mxu0 0
      %879 = vmatpush2.bf16.msra.mxu0 0
      %880 = vmatprep.subr.bf16.mxu0 0
      %881 = vmatpush2.bf16.msra.mxu0 0
      %882 = vmatprep.subr.bf16.mxu0 0
      %883 = vmatpush2.bf16.msra.mxu0 0
      %884 = vmatprep.subr.bf16.mxu0 0
      %885 = vmatpush2.bf16.msra.mxu0 0
      %886 = vmatprep.subr.bf16.mxu0 0
      %887 = vmatpush2.bf16.msra.mxu0 0
      %888 = vmatprep.subr.bf16.mxu0 0
      %889 = vmatpush2.bf16.msra.mxu0 0
      %890 = vmatprep.mubr.bf16.mxu0 0
      %891 = vmatmul.mubr.bf16.gmra.mxu0 %v806
      %v892 = vpop.f32.mrf.mxu0
      %v893 = vadd.f32 0.0, %v892
      %v894 = vpop.f32.mrf.mxu0
      %v895 = vpop.f32.mrf.mxu0
      %v896 = vpop.f32.mrf.mxu0
      %897 = vdwg.mxu0
      %v898 = vadd.f32 %v769, %v852
      %v899 = vadd.f32 %v770, %v854
      %v900 = vadd.f32 %v771, %v893
      %v901 = vld [vmem:[%s138] sm:$0xff]
      %s902 = scalar_lea.vmem %s0, 12
      %v903 = vld [vmem:[%s902] sm:$0x3]
      %v905 = vcombine.high %v901, %v901
      %v907 = vunpack.c.l.s4 1983009808
      %v908 = vunpack.c.0.s8 %v907
      %v909 = vlaneseq
      %v910 = vshrl.u32 %v909, 7
      %v911 = vsub.s32 %v908, %v910
      %v912 = vrot.slane %v901, %v911
      %v914 = vunpack.c.l.s4 1983009808
      %v915 = vunpack.c.0.s8 %v914
      %v916 = vlaneseq
      %v917 = vshrl.u32 %v916, 7
      %v918 = vsub.s32 %v915, %v917
      %v919 = vrot.slane %v905, %v918
      %v920 = vcombine.high %v912, %v912
      %v921 = vcombine.high %v919, %v919
      %922 = vrot.lane.b32.xlu0 %v912, 92
      %v923 = vpop.permute.xlu0 %922
      %924 = vrot.lane.b32.xlu0 %v920, 92
      %v925 = vpop.permute.xlu0 %924
      %926 = vrot.lane.b32.xlu0 %v919, 92
      %v927 = vpop.permute.xlu0 %926
      %928 = vrot.lane.b32.xlu0 %v921, 92
      %v929 = vpop.permute.xlu0 %928
      %vm930 = vcmask 752640
      %v931 = vsel %vm930, %v923, %v925
      %v932 = vsel %vm930, %v925, %v927
      %v933 = vsel %vm930, %v927, %v929
      %v935 = vsel %vm180, %v903, 0
      %v938 = vsel %vm184, %v931, 0
      %v941 = vsel %vm184, %v932, 0
      %v944 = vsel %vm184, %v933, 0
      %946 = vmatprep.subr.bf16.mxu0 0
      %947 = vmatpush1.bf16.msra.mxu0 0
      %948 = vmatprep.subr.bf16.mxu0 0
      %949 = vmatpush1.bf16.msra.mxu0 0
      %950 = vmatprep.subr.bf16.mxu0 0
      %951 = vmatpush1.bf16.msra.mxu0 0
      %952 = vmatprep.subr.bf16.mxu0 0
      %953 = vmatpush1.bf16.msra.mxu0 0
      %954 = vmatprep.subr.bf16.mxu0 0
      %955 = vmatpush1.bf16.msra.mxu0 0
      %956 = vmatprep.subr.bf16.mxu0 0
      %957 = vmatpush1.bf16.msra.mxu0 0
      %958 = vmatprep.subr.bf16.mxu0 0
      %959 = vmatpush1.bf16.msra.mxu0 0
      %960 = vmatprep.subr.bf16.mxu0 %v941
      %961 = vmatpush1.bf16.msra.mxu0 %v938
      %962 = vmatprep.subr.bf16.mxu0 0
      %963 = vmatpush2.bf16.msra.mxu0 0
      %964 = vmatprep.subr.bf16.mxu0 0
      %965 = vmatpush2.bf16.msra.mxu0 0
      %966 = vmatprep.subr.bf16.mxu0 0
      %967 = vmatpush2.bf16.msra.mxu0 0
      %968 = vmatprep.subr.bf16.mxu0 0
      %969 = vmatpush2.bf16.msra.mxu0 0
      %970 = vmatprep.subr.bf16.mxu0 0
      %971 = vmatpush2.bf16.msra.mxu0 0
      %972 = vmatprep.subr.bf16.mxu0 0
      %973 = vmatpush2.bf16.msra.mxu0 0
      %974 = vmatprep.subr.bf16.mxu0 0
      %975 = vmatpush2.bf16.msra.mxu0 0
      %976 = vmatprep.subr.bf16.mxu0 0
      %977 = vmatpush2.bf16.msra.mxu0 0
      %978 = vmatprep.mubr.bf16.mxu0 0
      %979 = vmatmul.mubr.bf16.gmra.mxu0 %v935
      %v980 = vpop.f32.mrf.mxu0
      %v981 = vadd.f32 0.0, %v980
      %v982 = vpop.f32.mrf.mxu0
      %v983 = vadd.f32 0.0, %v982
      %v984 = vpop.f32.mrf.mxu0
      %v985 = vpop.f32.mrf.mxu0
      %986 = vdwg.mxu0
      %987 = vmatprep.subr.bf16.mxu0 0
      %988 = vmatpush1.bf16.msra.mxu0 0
      %989 = vmatprep.subr.bf16.mxu0 0
      %990 = vmatpush1.bf16.msra.mxu0 0
      %991 = vmatprep.subr.bf16.mxu0 0
      %992 = vmatpush1.bf16.msra.mxu0 0
      %993 = vmatprep.subr.bf16.mxu0 0
      %994 = vmatpush1.bf16.msra.mxu0 0
      %995 = vmatprep.subr.bf16.mxu0 0
      %996 = vmatpush1.bf16.msra.mxu0 0
      %997 = vmatprep.subr.bf16.mxu0 0
      %998 = vmatpush1.bf16.msra.mxu0 0
      %999 = vmatprep.subr.bf16.mxu0 0
      %1000 = vmatpush1.bf16.msra.mxu0 0
      %1001 = vmatprep.subr.bf16.mxu0 0
      %1002 = vmatpush1.bf16.msra.mxu0 %v944
      %1003 = vmatprep.subr.bf16.mxu0 0
      %1004 = vmatpush2.bf16.msra.mxu0 0
      %1005 = vmatprep.subr.bf16.mxu0 0
      %1006 = vmatpush2.bf16.msra.mxu0 0
      %1007 = vmatprep.subr.bf16.mxu0 0
      %1008 = vmatpush2.bf16.msra.mxu0 0
      %1009 = vmatprep.subr.bf16.mxu0 0
      %1010 = vmatpush2.bf16.msra.mxu0 0
      %1011 = vmatprep.subr.bf16.mxu0 0
      %1012 = vmatpush2.bf16.msra.mxu0 0
      %1013 = vmatprep.subr.bf16.mxu0 0
      %1014 = vmatpush2.bf16.msra.mxu0 0
      %1015 = vmatprep.subr.bf16.mxu0 0
      %1016 = vmatpush2.bf16.msra.mxu0 0
      %1017 = vmatprep.subr.bf16.mxu0 0
      %1018 = vmatpush2.bf16.msra.mxu0 0
      %1019 = vmatprep.mubr.bf16.mxu0 0
      %1020 = vmatmul.mubr.bf16.gmra.mxu0 %v935
      %v1021 = vpop.f32.mrf.mxu0
      %v1022 = vadd.f32 0.0, %v1021
      %v1023 = vpop.f32.mrf.mxu0
      %v1024 = vpop.f32.mrf.mxu0
      %v1025 = vpop.f32.mrf.mxu0
      %1026 = vdwg.mxu0
      %v1027 = vadd.f32 %v898, %v981
      %v1028 = vadd.f32 %v899, %v983
      %v1029 = vadd.f32 %v900, %v1022
      %v1030 = vld [vmem:[%s138] sm:$0xff]
      %s1031 = scalar_lea.vmem %s0, 14
      %v1032 = vld [vmem:[%s1031] sm:$0x3]
      %v1034 = vcombine.high %v1030, %v1030
      %v1036 = vunpack.c.l.s4 1983009808
      %v1037 = vunpack.c.0.s8 %v1036
      %v1038 = vlaneseq
      %v1039 = vshrl.u32 %v1038, 7
      %v1040 = vsub.s32 %v1037, %v1039
      %v1041 = vrot.slane %v1030, %v1040
      %v1043 = vunpack.c.l.s4 1983009808
      %v1044 = vunpack.c.0.s8 %v1043
      %v1045 = vlaneseq
      %v1046 = vshrl.u32 %v1045, 7
      %v1047 = vsub.s32 %v1044, %v1046
      %v1048 = vrot.slane %v1034, %v1047
      %v1049 = vcombine.high %v1041, %v1041
      %v1050 = vcombine.high %v1048, %v1048
      %1051 = vrot.lane.b32.xlu0 %v1041, 91
      %v1052 = vpop.permute.xlu0 %1051
      %1053 = vrot.lane.b32.xlu0 %v1049, 91
      %v1054 = vpop.permute.xlu0 %1053
      %1055 = vrot.lane.b32.xlu0 %v1048, 91
      %v1056 = vpop.permute.xlu0 %1055
      %1057 = vrot.lane.b32.xlu0 %v1050, 91
      %v1058 = vpop.permute.xlu0 %1057
      %vm1059 = vcmask 744448
      %v1060 = vsel %vm1059, %v1052, %v1054
      %v1061 = vsel %vm1059, %v1054, %v1056
      %v1062 = vsel %vm1059, %v1056, %v1058
      %v1064 = vsel %vm180, %v1032, 0
      %v1067 = vsel %vm184, %v1060, 0
      %v1070 = vsel %vm184, %v1061, 0
      %v1073 = vsel %vm184, %v1062, 0
      %1075 = vmatprep.subr.bf16.mxu0 0
      %1076 = vmatpush1.bf16.msra.mxu0 0
      %1077 = vmatprep.subr.bf16.mxu0 0
      %1078 = vmatpush1.bf16.msra.mxu0 0
      %1079 = vmatprep.subr.bf16.mxu0 0
      %1080 = vmatpush1.bf16.msra.mxu0 0
      %1081 = vmatprep.subr.bf16.mxu0 0
      %1082 = vmatpush1.bf16.msra.mxu0 0
      %1083 = vmatprep.subr.bf16.mxu0 0
      %1084 = vmatpush1.bf16.msra.mxu0 0
      %1085 = vmatprep.subr.bf16.mxu0 0
      %1086 = vmatpush1.bf16.msra.mxu0 0
      %1087 = vmatprep.subr.bf16.mxu0 0
      %1088 = vmatpush1.bf16.msra.mxu0 0
      %1089 = vmatprep.subr.bf16.mxu0 %v1070
      %1090 = vmatpush1.bf16.msra.mxu0 %v1067
      %1091 = vmatprep.subr.bf16.mxu0 0
      %1092 = vmatpush2.bf16.msra.mxu0 0
      %1093 = vmatprep.subr.bf16.mxu0 0
      %1094 = vmatpush2.bf16.msra.mxu0 0
      %1095 = vmatprep.subr.bf16.mxu0 0
      %1096 = vmatpush2.bf16.msra.mxu0 0
      %1097 = vmatprep.subr.bf16.mxu0 0
      %1098 = vmatpush2.bf16.msra.mxu0 0
      %1099 = vmatprep.subr.bf16.mxu0 0
      %1100 = vmatpush2.bf16.msra.mxu0 0
      %1101 = vmatprep.subr.bf16.mxu0 0
      %1102 = vmatpush2.bf16.msra.mxu0 0
      %1103 = vmatprep.subr.bf16.mxu0 0
      %1104 = vmatpush2.bf16.msra.mxu0 0
      %1105 = vmatprep.subr.bf16.mxu0 0
      %1106 = vmatpush2.bf16.msra.mxu0 0
      %1107 = vmatprep.mubr.bf16.mxu0 0
      %1108 = vmatmul.mubr.bf16.gmra.mxu0 %v1064
      %v1109 = vpop.f32.mrf.mxu0
      %v1110 = vadd.f32 0.0, %v1109
      %v1111 = vpop.f32.mrf.mxu0
      %v1112 = vadd.f32 0.0, %v1111
      %v1113 = vpop.f32.mrf.mxu0
      %v1114 = vpop.f32.mrf.mxu0
      %1115 = vdwg.mxu0
      %1116 = vmatprep.subr.bf16.mxu0 0
      %1117 = vmatpush1.bf16.msra.mxu0 0
      %1118 = vmatprep.subr.bf16.mxu0 0
      %1119 = vmatpush1.bf16.msra.mxu0 0
      %1120 = vmatprep.subr.bf16.mxu0 0
      %1121 = vmatpush1.bf16.msra.mxu0 0
      %1122 = vmatprep.subr.bf16.mxu0 0
      %1123 = vmatpush1.bf16.msra.mxu0 0
      %1124 = vmatprep.subr.bf16.mxu0 0
      %1125 = vmatpush1.bf16.msra.mxu0 0
      %1126 = vmatprep.subr.bf16.mxu0 0
      %1127 = vmatpush1.bf16.msra.mxu0 0
      %1128 = vmatprep.subr.bf16.mxu0 0
      %1129 = vmatpush1.bf16.msra.mxu0 0
      %1130 = vmatprep.subr.bf16.mxu0 0
      %1131 = vmatpush1.bf16.msra.mxu0 %v1073
      %1132 = vmatprep.subr.bf16.mxu0 0
      %1133 = vmatpush2.bf16.msra.mxu0 0
      %1134 = vmatprep.subr.bf16.mxu0 0
      %1135 = vmatpush2.bf16.msra.mxu0 0
      %1136 = vmatprep.subr.bf16.mxu0 0
      %1137 = vmatpush2.bf16.msra.mxu0 0
      %1138 = vmatprep.subr.bf16.mxu0 0
      %1139 = vmatpush2.bf16.msra.mxu0 0
      %1140 = vmatprep.subr.bf16.mxu0 0
      %1141 = vmatpush2.bf16.msra.mxu0 0
      %1142 = vmatprep.subr.bf16.mxu0 0
      %1143 = vmatpush2.bf16.msra.mxu0 0
      %1144 = vmatprep.subr.bf16.mxu0 0
      %1145 = vmatpush2.bf16.msra.mxu0 0
      %1146 = vmatprep.subr.bf16.mxu0 0
      %1147 = vmatpush2.bf16.msra.mxu0 0
      %1148 = vmatprep.mubr.bf16.mxu0 0
      %1149 = vmatmul.mubr.bf16.gmra.mxu0 %v1064
      %v1150 = vpop.f32.mrf.mxu0
      %v1151 = vadd.f32 0.0, %v1150
      %v1152 = vpop.f32.mrf.mxu0
      %v1153 = vpop.f32.mrf.mxu0
      %v1154 = vpop.f32.mrf.mxu0
      %1155 = vdwg.mxu0
      %v1156 = vadd.f32 %v1027, %v1110
      %v1157 = vadd.f32 %v1028, %v1112
      %v1158 = vadd.f32 %v1029, %v1151
      %v1159 = vld [vmem:[%s138] sm:$0xff]
      %s1160 = scalar_lea.vmem %s0, 16
      %v1161 = vld [vmem:[%s1160] sm:$0x3]
      %v1163 = vcombine.high %v1159, %v1159
      %v1165 = vunpack.c.l.s4 1983009808
      %v1166 = vunpack.c.0.s8 %v1165
      %v1167 = vlaneseq
      %v1168 = vshrl.u32 %v1167, 7
      %v1169 = vsub.s32 %v1166, %v1168
      %v1170 = vrot.slane %v1159, %v1169
      %v1172 = vunpack.c.l.s4 1983009808
      %v1173 = vunpack.c.0.s8 %v1172
      %v1174 = vlaneseq
      %v1175 = vshrl.u32 %v1174, 7
      %v1176 = vsub.s32 %v1173, %v1175
      %v1177 = vrot.slane %v1163, %v1176
      %v1178 = vcombine.high %v1170, %v1170
      %v1179 = vcombine.high %v1177, %v1177
      %1180 = vrot.lane.b32.xlu0 %v1170, 90
      %v1181 = vpop.permute.xlu0 %1180
      %1182 = vrot.lane.b32.xlu0 %v1178, 90
      %v1183 = vpop.permute.xlu0 %1182
      %1184 = vrot.lane.b32.xlu0 %v1177, 90
      %v1185 = vpop.permute.xlu0 %1184
      %1186 = vrot.lane.b32.xlu0 %v1179, 90
      %v1187 = vpop.permute.xlu0 %1186
      %vm1188 = vcmask 736256
      %v1189 = vsel %vm1188, %v1181, %v1183
      %v1190 = vsel %vm1188, %v1183, %v1185
      %v1191 = vsel %vm1188, %v1185, %v1187
      %v1193 = vsel %vm180, %v1161, 0
      %v1196 = vsel %vm184, %v1189, 0
      %v1199 = vsel %vm184, %v1190, 0
      %v1202 = vsel %vm184, %v1191, 0
      %1204 = vmatprep.subr.bf16.mxu0 0
      %1205 = vmatpush1.bf16.msra.mxu0 0
      %1206 = vmatprep.subr.bf16.mxu0 0
      %1207 = vmatpush1.bf16.msra.mxu0 0
      %1208 = vmatprep.subr.bf16.mxu0 0
      %1209 = vmatpush1.bf16.msra.mxu0 0
      %1210 = vmatprep.subr.bf16.mxu0 0
      %1211 = vmatpush1.bf16.msra.mxu0 0
      %1212 = vmatprep.subr.bf16.mxu0 0
      %1213 = vmatpush1.bf16.msra.mxu0 0
      %1214 = vmatprep.subr.bf16.mxu0 0
      %1215 = vmatpush1.bf16.msra.mxu0 0
      %1216 = vmatprep.subr.bf16.mxu0 0
      %1217 = vmatpush1.bf16.msra.mxu0 0
      %1218 = vmatprep.subr.bf16.mxu0 %v1199
      %1219 = vmatpush1.bf16.msra.mxu0 %v1196
      %1220 = vmatprep.subr.bf16.mxu0 0
      %1221 = vmatpush2.bf16.msra.mxu0 0
      %1222 = vmatprep.subr.bf16.mxu0 0
      %1223 = vmatpush2.bf16.msra.mxu0 0
      %1224 = vmatprep.subr.bf16.mxu0 0
      %1225 = vmatpush2.bf16.msra.mxu0 0
      %1226 = vmatprep.subr.bf16.mxu0 0
      %1227 = vmatpush2.bf16.msra.mxu0 0
      %1228 = vmatprep.subr.bf16.mxu0 0
      %1229 = vmatpush2.bf16.msra.mxu0 0
      %1230 = vmatprep.subr.bf16.mxu0 0
      %1231 = vmatpush2.bf16.msra.mxu0 0
      %1232 = vmatprep.subr.bf16.mxu0 0
      %1233 = vmatpush2.bf16.msra.mxu0 0
      %1234 = vmatprep.subr.bf16.mxu0 0
      %1235 = vmatpush2.bf16.msra.mxu0 0
      %1236 = vmatprep.mubr.bf16.mxu0 0
      %1237 = vmatmul.mubr.bf16.gmra.mxu0 %v1193
      %v1238 = vpop.f32.mrf.mxu0
      %v1239 = vadd.f32 0.0, %v1238
      %v1240 = vpop.f32.mrf.mxu0
      %v1241 = vadd.f32 0.0, %v1240
      %v1242 = vpop.f32.mrf.mxu0
      %v1243 = vpop.f32.mrf.mxu0
      %1244 = vdwg.mxu0
      %1245 = vmatprep.subr.bf16.mxu0 0
      %1246 = vmatpush1.bf16.msra.mxu0 0
      %1247 = vmatprep.subr.bf16.mxu0 0
      %1248 = vmatpush1.bf16.msra.mxu0 0
      %1249 = vmatprep.subr.bf16.mxu0 0
      %1250 = vmatpush1.bf16.msra.mxu0 0
      %1251 = vmatprep.subr.bf16.mxu0 0
      %1252 = vmatpush1.bf16.msra.mxu0 0
      %1253 = vmatprep.subr.bf16.mxu0 0
      %1254 = vmatpush1.bf16.msra.mxu0 0
      %1255 = vmatprep.subr.bf16.mxu0 0
      %1256 = vmatpush1.bf16.msra.mxu0 0
      %1257 = vmatprep.subr.bf16.mxu0 0
      %1258 = vmatpush1.bf16.msra.mxu0 0
      %1259 = vmatprep.subr.bf16.mxu0 0
      %1260 = vmatpush1.bf16.msra.mxu0 %v1202
      %1261 = vmatprep.subr.bf16.mxu0 0
      %1262 = vmatpush2.bf16.msra.mxu0 0
      %1263 = vmatprep.subr.bf16.mxu0 0
      %1264 = vmatpush2.bf16.msra.mxu0 0
      %1265 = vmatprep.subr.bf16.mxu0 0
      %1266 = vmatpush2.bf16.msra.mxu0 0
      %1267 = vmatprep.subr.bf16.mxu0 0
      %1268 = vmatpush2.bf16.msra.mxu0 0
      %1269 = vmatprep.subr.bf16.mxu0 0
      %1270 = vmatpush2.bf16.msra.mxu0 0
      %1271 = vmatprep.subr.bf16.mxu0 0
      %1272 = vmatpush2.bf16.msra.mxu0 0
      %1273 = vmatprep.subr.bf16.mxu0 0
      %1274 = vmatpush2.bf16.msra.mxu0 0
      %1275 = vmatprep.subr.bf16.mxu0 0
      %1276 = vmatpush2.bf16.msra.mxu0 0
      %1277 = vmatprep.mubr.bf16.mxu0 0
      %1278 = vmatmul.mubr.bf16.gmra.mxu0 %v1193
      %v1279 = vpop.f32.mrf.mxu0
      %v1280 = vadd.f32 0.0, %v1279
      %v1281 = vpop.f32.mrf.mxu0
      %v1282 = vpop.f32.mrf.mxu0
      %v1283 = vpop.f32.mrf.mxu0
      %1284 = vdwg.mxu0
      %v1285 = vadd.f32 %v1156, %v1239
      %v1286 = vadd.f32 %v1157, %v1241
      %v1287 = vadd.f32 %v1158, %v1280
      %v1288 = vmax.f32 %v1285, 0.0
      %v1289 = vmax.f32 %v1286, 0.0
      %v1290 = vmax.f32 %v1287, 0.0
      %v1291 = vpack.c.bf16 %v1288, %v1288
      %v1292 = vpack.c.bf16 %v1289, %v1289
      %v1293 = vpack.c.bf16 %v1290, %v1290
      %v1297 = vcombine.low %v1291, %v1292
      %v1299 = vunpack.c.l.s4 1983009808
      %v1300 = vunpack.c.0.s8 %v1299
      %v1301 = vlaneseq
      %v1302 = vshrl.u32 %v1301, 7
      %v1303 = vsub.s32 %v1300, %v1302
      %v1304 = vrot.slane %v1297, %v1303
      %v1306 = vunpack.c.l.s4 1983009808
      %v1307 = vunpack.c.0.s8 %v1306
      %v1308 = vlaneseq
      %v1309 = vshrl.u32 %v1308, 7
      %v1310 = vsub.s32 %v1307, %v1309
      %v1311 = vrot.slane %v1293, %v1310
      %v1312 = vcombine.low %v1304, %v1311
      %1314 = vst [vmem:[%s143] sm:$0x3f] %v1312
      %p1315 = scmp.lt.s32.totalorder %s13, 1
      %s1316 = scalar_select %p1315, %s13, 1
      %s1317 = smul.addr %s1316, 3
      %s1318 = smul.addr %s1317, 2
      %s1319 = scalar_lea.vmem %s2, %s1318
      // Predicated region
      $region29: #{forward.29} parent=27 // pred_check
        %p1320 = pneg %p78
      $region30: #{forward.29} parent=27 // pred_check_branch
        %1322 = sbr.rel (%p1320) target = $region32
      $region31: #{forward.29} parent=27 // pred_region
        _
      $region32: #{forward.29} parent=27 // pred_fallthru
        _
    $region28: #{forward.29} parent=5 // pred_fallthru
      _
    %p1323 = scmp.le.s32.totalorder 2, %s8
    // Predicated region
    $region33: #{forward.29} parent=5 // pred_check
      %p1324 = pneg %p1323
    $region34: #{forward.29} parent=5 // pred_check_branch
      %1326 = sbr.rel (%p1324) target = $region36
    $region35: #{forward.29} parent=5 // pred_region
      %s1327 = ssub.s32 %s8, 2
      // Predicated region
      $region37: #{forward.29} parent=35 // pred_check
        %p1328 = pneg %p84
      $region38: #{forward.29} parent=35 // pred_check_branch
        %1330 = sbr.rel (%p1328) target = $region40
      $region39: #{forward.29} parent=35 // pred_region
        %p1331 = scmp.lt.s32.totalorder %s14, 1
        %s1332 = scalar_select %p1331, %s14, 1
        %s1333 = smul.addr %s1332, 3
        %s1334 = smul.addr %s1333, 2
        %s1335 = scalar_lea.vmem %s2, %s1334
      $region40: #{forward.29} parent=35 // pred_fallthru
        _
    $region36: #{forward.29} parent=5 // pred_fallthru
      _
  $region6: #{forward.29} parent=0 // loop_footer
    %s12 = sadd.s32 1, %s8
  $region7: #{forward.29} parent=0 // loop_footer_branch
    %7 = sbr.rel target = $region3
  $region8: #{forward.29} parent=0 // loop_exit
    _

</llo_original>
